<compile_context>
chip_gen: v6e
topology: v6e:2x2x1
jax: 0.10.0
libtpu: 0.0.40
codegen_flags: <defaults>
</compile_context>

<pallas_src>
import math

import jax
import jax.numpy as jnp
from jax import lax
from jax.experimental import pallas as pl
from jax.experimental.pallas import tpu as pltpu

D_MODEL = 32
D_FF = 64
N_HEADS = 4
D_K = D_MODEL // N_HEADS
N_LAYERS = 2
VOCAB = 16
EPS = 1e-6
NEG_INF = -1e9

# Fixed positional ordering of the (stacked) parameter tensors passed into the fused kernel.
PARAM_KEYS = (
    # encoder layers (leading dim = N_LAYERS)
    "enc_ln1_g", "enc_ln1_b", "enc_qkv_w", "enc_qkv_b", "enc_wo", "enc_bo",
    "enc_ln2_g", "enc_ln2_b", "enc_ff_w1", "enc_ff_b1", "enc_ff_w2", "enc_ff_b2",
    # final encoder norm (shape (1, D))
    "enc_ln_g", "enc_ln_b",
    # decoder layers (leading dim = N_LAYERS)
    "dec_ln1_g", "dec_ln1_b", "dec_sqkv_w", "dec_sqkv_b", "dec_swo", "dec_sbo",
    "dec_ln2_g", "dec_ln2_b", "dec_cq_w", "dec_cq_b", "dec_ckv_w", "dec_ckv_b",
    "dec_cwo", "dec_cbo", "dec_ln3_g", "dec_ln3_b",
    "dec_ff_w1", "dec_ff_b1", "dec_ff_w2", "dec_ff_b2",
    # final decoder norm (shape (1, D))
    "dec_ln_g", "dec_ln_b",
)


# ----------------------------- fused kernel -----------------------------

def _encdec_kernel(*refs):
    # refs = (x_src, x_tgt, src_mask, tgt_mask, *params, out)
    xsrc_ref, xtgt_ref, srcm_ref, tgtm_ref = refs[0], refs[1], refs[2], refs[3]
    p = dict(zip(PARAM_KEYS, refs[4:4 + len(PARAM_KEYS)]))
    o_ref = refs[4 + len(PARAM_KEYS)]

    inv_sqrt_dk = 1.0 / math.sqrt(D_K)

    # ---- helpers (pure functions on VMEM-resident values) ----
    def layer_norm(x, g, b):
        # Annotated-Transformer LayerNorm: a_2 * (x - mean) / (std + eps) + b_2,
        # with torch.std's unbiased estimator (divide by D-1).
        mean = jnp.mean(x, axis=-1, keepdims=True)
        xc = x - mean
        var = jnp.sum(xc * xc, axis=-1, keepdims=True) * (1.0 / (D_MODEL - 1))
        inv = pl.reciprocal(jnp.sqrt(var) + EPS, approx=True)   # EUP slot
        return g * xc * inv + b

    def softmax(s):
        s = s - jnp.max(s, axis=-1, keepdims=True)
        e = jnp.exp(s)
        return e * pl.reciprocal(jnp.sum(e, axis=-1, keepdims=True), approx=True)

    def attention(q, k, v, add_mask):
        # q: [Sq, D]; k, v: [Sk, D]; add_mask broadcastable to [Sq, Sk].
        # Heads are static lane slices of D_MODEL — no transposes, no HBM round-trips.
        outs = []
        for h in range(N_HEADS):
            sl = slice(h * D_K, (h + 1) * D_K)
            s = lax.dot_general(q[:, sl], k[:, sl], (((1,), (1,)), ((), ())),
                                preferred_element_type=jnp.float32)
            prob = softmax(s * inv_sqrt_dk + add_mask)
            outs.append(jnp.dot(prob, v[:, sl], preferred_element_type=jnp.float32))
        return jnp.concatenate(outs, axis=-1)                    # [Sq, D]

    def self_attn_block(x, qkv_w, qkv_b, wo, bo, add_mask):
        qkv = jnp.dot(x, qkv_w, preferred_element_type=jnp.float32) + qkv_b
        q = qkv[:, :D_MODEL]
        k = qkv[:, D_MODEL:2 * D_MODEL]
        v = qkv[:, 2 * D_MODEL:]
        o = attention(q, k, v, add_mask)
        return jnp.dot(o, wo, preferred_element_type=jnp.float32) + bo

    def ffn(x, w1, b1, w2, b2):
        h = jnp.dot(x, w1, preferred_element_type=jnp.float32) + b1
        h = jnp.maximum(h, 0.0)  # ReLU
        return jnp.dot(h, w2, preferred_element_type=jnp.float32) + b2

    # ---- masks (built in-register; no head-broadcast materialization) ----
    src_add = jnp.where(srcm_ref[0] != 0, 0.0, NEG_INF).astype(jnp.float32)  # [1, S_src]
    tgt_add = jnp.where(tgtm_ref[0] != 0, 0.0, NEG_INF).astype(jnp.float32)  # [S_tgt, S_tgt]

    # ---- encoder (pre-norm) ----
    x = xsrc_ref[0]                                                          # [S_src, D]
    for l in range(N_LAYERS):
        h = layer_norm(x, p["enc_ln1_g"][l], p["enc_ln1_b"][l])
        x = x + self_attn_block(h, p["enc_qkv_w"][l], p["enc_qkv_b"][l],
                                p["enc_wo"][l], p["enc_bo"][l], src_add)
        h = layer_norm(x, p["enc_ln2_g"][l], p["enc_ln2_b"][l])
        x = x + ffn(h, p["enc_ff_w1"][l], p["enc_ff_b1"][l],
                    p["enc_ff_w2"][l], p["enc_ff_b2"][l])
    memory = layer_norm(x, p["enc_ln_g"][0], p["enc_ln_b"][0])               # [S_src, D]

    # ---- decoder (pre-norm) ----
    y = xtgt_ref[0]                                                          # [S_tgt, D]
    for l in range(N_LAYERS):
        # masked self-attention
        h = layer_norm(y, p["dec_ln1_g"][l], p["dec_ln1_b"][l])
        y = y + self_attn_block(h, p["dec_sqkv_w"][l], p["dec_sqkv_b"][l],
                                p["dec_swo"][l], p["dec_sbo"][l], tgt_add)
        # cross-attention (Q from decoder, fused K/V from encoder memory)
        h = layer_norm(y, p["dec_ln2_g"][l], p["dec_ln2_b"][l])
        q = jnp.dot(h, p["dec_cq_w"][l],
                    preferred_element_type=jnp.float32) + p["dec_cq_b"][l]
        kv = jnp.dot(memory, p["dec_ckv_w"][l],
                     preferred_element_type=jnp.float32) + p["dec_ckv_b"][l]
        k = kv[:, :D_MODEL]
        v = kv[:, D_MODEL:]
        o = attention(q, k, v, src_add)
        y = y + (jnp.dot(o, p["dec_cwo"][l],
                         preferred_element_type=jnp.float32) + p["dec_cbo"][l])
        # feed-forward
        h = layer_norm(y, p["dec_ln3_g"][l], p["dec_ln3_b"][l])
        y = y + ffn(h, p["dec_ff_w1"][l], p["dec_ff_b1"][l],
                    p["dec_ff_w2"][l], p["dec_ff_b2"][l])

    o_ref[0] = layer_norm(y, p["dec_ln_g"][0], p["dec_ln_b"][0])


# ----------------------------- wrapper -----------------------------

def positional_encoding(max_len, d_model):
    pos = jnp.arange(max_len, dtype=jnp.float32)[:, None]
    div = jnp.exp(jnp.arange(0, d_model, 2, dtype=jnp.float32)
                  * (-math.log(10000.0) / d_model))
    pe = jnp.zeros((max_len, d_model), jnp.float32)
    pe = pe.at[:, 0::2].set(jnp.sin(pos * div))
    pe = pe.at[:, 1::2].set(jnp.cos(pos * div))
    return pe


def embed(ids, table, pe):
    # TODO(synk): embedding lookup is a gather; kept as plain-JAX glue outside the kernel.
    x = jnp.take(table, ids, axis=0) * math.sqrt(D_MODEL)
    return x + pe[None, : ids.shape[1], :]


def encoder_decoder_forward(params, src, tgt, src_mask, tgt_mask):
    B, S_src = src.shape
    S_tgt = tgt.shape[1]

    # embeddings + positional encoding (plain-JAX glue; tiny)
    x_src = embed(src, params["src_emb"], params["pe"])          # [B, S_src, D]
    x_tgt = embed(tgt, params["tgt_emb"], params["pe"])          # [B, S_tgt, D]

    src_m = src_mask.astype(jnp.int32).reshape(B, 1, S_src)      # [B, 1, S_src]
    tgt_m = jnp.broadcast_to(tgt_mask, (B, S_tgt, S_tgt)).astype(jnp.int32)

    flat_params = [params[k] for k in PARAM_KEYS]

    def batched_spec(shape):
        nd = len(shape)
        return pl.BlockSpec((1,) + tuple(shape[1:]),
                            lambda b, _nd=nd: (b,) + (0,) * (_nd - 1))

    def replicated_spec(arr):
        nd = arr.ndim
        return pl.BlockSpec(arr.shape, lambda b, _nd=nd: (0,) * _nd)

    in_specs = ([batched_spec(x_src.shape), batched_spec(x_tgt.shape),
                 batched_spec(src_m.shape), batched_spec(tgt_m.shape)]
                + [replicated_spec(a) for a in flat_params])

    return pl.pallas_call(
        _encdec_kernel,
        out_shape=jax.ShapeDtypeStruct((B, S_tgt, D_MODEL), jnp.float32),
        grid=(B,),
        in_specs=in_specs,
        out_specs=pl.BlockSpec((1, S_tgt, D_MODEL), lambda b: (b, 0, 0)),
        compiler_params=pltpu.CompilerParams(
            dimension_semantics=("parallel",)),   # batch across TCs on v7x
    )(x_src, x_tgt, src_m, tgt_m, *flat_params)


# ----------------------------- params -----------------------------

def init_params(key):
    keys = iter(jax.random.split(key, 256))

    def w(shape, scale=0.05):
        return (scale * jax.random.normal(next(keys), shape)).astype(jnp.float32)

    def zeros(*shape):
        return jnp.zeros(shape, jnp.float32)

    def ones(*shape):
        return jnp.ones(shape, jnp.float32)

    L = N_LAYERS
    return dict(
        src_emb=w((VOCAB, D_MODEL), 1.0),
        tgt_emb=w((VOCAB, D_MODEL), 1.0),
        pe=positional_encoding(64, D_MODEL),
        # encoder layers (stacked over the layer dim)
        enc_ln1_g=ones(L, D_MODEL), enc_ln1_b=zeros(L, D_MODEL),
        enc_qkv_w=w((L, D_MODEL, 3 * D_MODEL)), enc_qkv_b=zeros(L, 3 * D_MODEL),
        enc_wo=w((L, D_MODEL, D_MODEL)), enc_bo=zeros(L, D_MODEL),
        enc_ln2_g=ones(L, D_MODEL), enc_ln2_b=zeros(L, D_MODEL),
        enc_ff_w1=w((L, D_MODEL, D_FF)), enc_ff_b1=zeros(L, D_FF),
        enc_ff_w2=w((L, D_FF, D_MODEL)), enc_ff_b2=zeros(L, D_MODEL),
        enc_ln_g=ones(1, D_MODEL), enc_ln_b=zeros(1, D_MODEL),
        # decoder layers
        dec_ln1_g=ones(L, D_MODEL), dec_ln1_b=zeros(L, D_MODEL),
        dec_sqkv_w=w((L, D_MODEL, 3 * D_MODEL)), dec_sqkv_b=zeros(L, 3 * D_MODEL),
        dec_swo=w((L, D_MODEL, D_MODEL)), dec_sbo=zeros(L, D_MODEL),
        dec_ln2_g=ones(L, D_MODEL), dec_ln2_b=zeros(L, D_MODEL),
        dec_cq_w=w((L, D_MODEL, D_MODEL)), dec_cq_b=zeros(L, D_MODEL),
        dec_ckv_w=w((L, D_MODEL, 2 * D_MODEL)), dec_ckv_b=zeros(L, 2 * D_MODEL),
        dec_cwo=w((L, D_MODEL, D_MODEL)), dec_cbo=zeros(L, D_MODEL),
        dec_ln3_g=ones(L, D_MODEL), dec_ln3_b=zeros(L, D_MODEL),
        dec_ff_w1=w((L, D_MODEL, D_FF)), dec_ff_b1=zeros(L, D_FF),
        dec_ff_w2=w((L, D_FF, D_MODEL)), dec_ff_b2=zeros(L, D_MODEL),
        dec_ln_g=ones(1, D_MODEL), dec_ln_b=zeros(1, D_MODEL),
    )


# ----------------------------- main -----------------------------

if __name__ == "__main__":
    key = jax.random.PRNGKey(0)
    pkey, skey, tkey = jax.random.split(key, 3)
    params = init_params(pkey)

    B, S_SRC, S_TGT = 2, 8, 8
    src = jax.random.randint(skey, (B, S_SRC), 0, VOCAB, dtype=jnp.int32)
    tgt = jax.random.randint(tkey, (B, S_TGT), 0, VOCAB, dtype=jnp.int32)
    src_mask = jnp.ones((B, 1, S_SRC), dtype=jnp.int32)                      # all valid
    tgt_mask = jnp.broadcast_to(                                             # subsequent mask
        jnp.tril(jnp.ones((S_TGT, S_TGT), dtype=jnp.int32))[None, :, :],
        (B, S_TGT, S_TGT))

    forward = jax.jit(encoder_decoder_forward)
    out = forward(params, src, tgt, src_mask, tgt_mask)
    out = jax.block_until_ready(out)
    assert out.shape == (B, S_TGT, D_MODEL) and out.dtype == jnp.float32
    assert bool(jnp.all(jnp.isfinite(out)))
    # TODO(synk): generator (final Linear+log_softmax) exists in __init__ but is not
    # invoked in forward(), so it is intentionally not applied here.
    print("KERNEL_OK")
</pallas_src>

<mosaic_0001>
module attributes {stable_mosaic.version = 11 : i64} {
  func.func @_encdec_kernel(%arg0: i32, %arg1: memref<1x8x32xf32, #tpu.memory_space<vmem>>, %arg2: memref<1x8x32xf32, #tpu.memory_space<vmem>>, %arg3: memref<1x1x8xi32, #tpu.memory_space<vmem>>, %arg4: memref<1x8x8xi32, #tpu.memory_space<vmem>>, %arg5: memref<2x32xf32, #tpu.memory_space<vmem>>, %arg6: memref<2x32xf32, #tpu.memory_space<vmem>>, %arg7: memref<2x32x96xf32, #tpu.memory_space<vmem>>, %arg8: memref<2x96xf32, #tpu.memory_space<vmem>>, %arg9: memref<2x32x32xf32, #tpu.memory_space<vmem>>, %arg10: memref<2x32xf32, #tpu.memory_space<vmem>>, %arg11: memref<2x32xf32, #tpu.memory_space<vmem>>, %arg12: memref<2x32xf32, #tpu.memory_space<vmem>>, %arg13: memref<2x32x64xf32, #tpu.memory_space<vmem>>, %arg14: memref<2x64xf32, #tpu.memory_space<vmem>>, %arg15: memref<2x64x32xf32, #tpu.memory_space<vmem>>, %arg16: memref<2x32xf32, #tpu.memory_space<vmem>>, %arg17: memref<1x32xf32, #tpu.memory_space<vmem>>, %arg18: memref<1x32xf32, #tpu.memory_space<vmem>>, %arg19: memref<2x32xf32, #tpu.memory_space<vmem>>, %arg20: memref<2x32xf32, #tpu.memory_space<vmem>>, %arg21: memref<2x32x96xf32, #tpu.memory_space<vmem>>, %arg22: memref<2x96xf32, #tpu.memory_space<vmem>>, %arg23: memref<2x32x32xf32, #tpu.memory_space<vmem>>, %arg24: memref<2x32xf32, #tpu.memory_space<vmem>>, %arg25: memref<2x32xf32, #tpu.memory_space<vmem>>, %arg26: memref<2x32xf32, #tpu.memory_space<vmem>>, %arg27: memref<2x32x32xf32, #tpu.memory_space<vmem>>, %arg28: memref<2x32xf32, #tpu.memory_space<vmem>>, %arg29: memref<2x32x64xf32, #tpu.memory_space<vmem>>, %arg30: memref<2x64xf32, #tpu.memory_space<vmem>>, %arg31: memref<2x32x32xf32, #tpu.memory_space<vmem>>, %arg32: memref<2x32xf32, #tpu.memory_space<vmem>>, %arg33: memref<2x32xf32, #tpu.memory_space<vmem>>, %arg34: memref<2x32xf32, #tpu.memory_space<vmem>>, %arg35: memref<2x32x64xf32, #tpu.memory_space<vmem>>, %arg36: memref<2x64xf32, #tpu.memory_space<vmem>>, %arg37: memref<2x64x32xf32, #tpu.memory_space<vmem>>, %arg38: memref<2x32xf32, #tpu.memory_space<vmem>>, %arg39: memref<1x32xf32, #tpu.memory_space<vmem>>, %arg40: memref<1x32xf32, #tpu.memory_space<vmem>>, %arg41: memref<1x8x32xf32, #tpu.memory_space<vmem>>) attributes {dimension_semantics = [#tpu.dimension_semantics<parallel>], iteration_bounds = array<i64: 2>, scalar_prefetch = 0 : i64, scratch_operands = 0 : i64, tpu.core_type = #tpu.core_type<tc>, window_params = [{transform_indices = @transform_0, window_bounds = array<i64: 1, 8, 32>}, {transform_indices = @transform_1, window_bounds = array<i64: 1, 8, 32>}, {transform_indices = @transform_2, window_bounds = array<i64: 1, 1, 8>}, {transform_indices = @transform_3, window_bounds = array<i64: 1, 8, 8>}, {pipeline_mode = #tpu.pipeline_mode<synchronous>, transform_indices = @transform_4, window_bounds = array<i64: 2, 32>}, {pipeline_mode = #tpu.pipeline_mode<synchronous>, transform_indices = @transform_5, window_bounds = array<i64: 2, 32>}, {pipeline_mode = #tpu.pipeline_mode<synchronous>, transform_indices = @transform_6, window_bounds = array<i64: 2, 32, 96>}, {pipeline_mode = #tpu.pipeline_mode<synchronous>, transform_indices = @transform_7, window_bounds = array<i64: 2, 96>}, {pipeline_mode = #tpu.pipeline_mode<synchronous>, transform_indices = @transform_8, window_bounds = array<i64: 2, 32, 32>}, {pipeline_mode = #tpu.pipeline_mode<synchronous>, transform_indices = @transform_9, window_bounds = array<i64: 2, 32>}, {pipeline_mode = #tpu.pipeline_mode<synchronous>, transform_indices = @transform_10, window_bounds = array<i64: 2, 32>}, {pipeline_mode = #tpu.pipeline_mode<synchronous>, transform_indices = @transform_11, window_bounds = array<i64: 2, 32>}, {pipeline_mode = #tpu.pipeline_mode<synchronous>, transform_indices = @transform_12, window_bounds = array<i64: 2, 32, 64>}, {pipeline_mode = #tpu.pipeline_mode<synchronous>, transform_indices = @transform_13, window_bounds = array<i64: 2, 64>}, {pipeline_mode = #tpu.pipeline_mode<synchronous>, transform_indices = @transform_14, window_bounds = array<i64: 2, 64, 32>}, {pipeline_mode = #tpu.pipeline_mode<synchronous>, transform_indices = @transform_15, window_bounds = array<i64: 2, 32>}, {pipeline_mode = #tpu.pipeline_mode<synchronous>, transform_indices = @transform_16, window_bounds = array<i64: 1, 32>}, {pipeline_mode = #tpu.pipeline_mode<synchronous>, transform_indices = @transform_17, window_bounds = array<i64: 1, 32>}, {pipeline_mode = #tpu.pipeline_mode<synchronous>, transform_indices = @transform_18, window_bounds = array<i64: 2, 32>}, {pipeline_mode = #tpu.pipeline_mode<synchronous>, transform_indices = @transform_19, window_bounds = array<i64: 2, 32>}, {pipeline_mode = #tpu.pipeline_mode<synchronous>, transform_indices = @transform_20, window_bounds = array<i64: 2, 32, 96>}, {pipeline_mode = #tpu.pipeline_mode<synchronous>, transform_indices = @transform_21, window_bounds = array<i64: 2, 96>}, {pipeline_mode = #tpu.pipeline_mode<synchronous>, transform_indices = @transform_22, window_bounds = array<i64: 2, 32, 32>}, {pipeline_mode = #tpu.pipeline_mode<synchronous>, transform_indices = @transform_23, window_bounds = array<i64: 2, 32>}, {pipeline_mode = #tpu.pipeline_mode<synchronous>, transform_indices = @transform_24, window_bounds = array<i64: 2, 32>}, {pipeline_mode = #tpu.pipeline_mode<synchronous>, transform_indices = @transform_25, window_bounds = array<i64: 2, 32>}, {pipeline_mode = #tpu.pipeline_mode<synchronous>, transform_indices = @transform_26, window_bounds = array<i64: 2, 32, 32>}, {pipeline_mode = #tpu.pipeline_mode<synchronous>, transform_indices = @transform_27, window_bounds = array<i64: 2, 32>}, {pipeline_mode = #tpu.pipeline_mode<synchronous>, transform_indices = @transform_28, window_bounds = array<i64: 2, 32, 64>}, {pipeline_mode = #tpu.pipeline_mode<synchronous>, transform_indices = @transform_29, window_bounds = array<i64: 2, 64>}, {pipeline_mode = #tpu.pipeline_mode<synchronous>, transform_indices = @transform_30, window_bounds = array<i64: 2, 32, 32>}, {pipeline_mode = #tpu.pipeline_mode<synchronous>, transform_indices = @transform_31, window_bounds = array<i64: 2, 32>}, {pipeline_mode = #tpu.pipeline_mode<synchronous>, transform_indices = @transform_32, window_bounds = array<i64: 2, 32>}, {pipeline_mode = #tpu.pipeline_mode<synchronous>, transform_indices = @transform_33, window_bounds = array<i64: 2, 32>}, {pipeline_mode = #tpu.pipeline_mode<synchronous>, transform_indices = @transform_34, window_bounds = array<i64: 2, 32, 64>}, {pipeline_mode = #tpu.pipeline_mode<synchronous>, transform_indices = @transform_35, window_bounds = array<i64: 2, 64>}, {pipeline_mode = #tpu.pipeline_mode<synchronous>, transform_indices = @transform_36, window_bounds = array<i64: 2, 64, 32>}, {pipeline_mode = #tpu.pipeline_mode<synchronous>, transform_indices = @transform_37, window_bounds = array<i64: 2, 32>}, {pipeline_mode = #tpu.pipeline_mode<synchronous>, transform_indices = @transform_38, window_bounds = array<i64: 1, 32>}, {pipeline_mode = #tpu.pipeline_mode<synchronous>, transform_indices = @transform_39, window_bounds = array<i64: 1, 32>}, {transform_indices = @transform_40, window_bounds = array<i64: 1, 8, 32>}]} {
    %c0 = arith.constant 0 : index
    %c0_0 = arith.constant 0 : index
    %c0_1 = arith.constant 0 : index
    %0 = vector.load %arg3[%c0, %c0_0, %c0_1] : memref<1x1x8xi32, #tpu.memory_space<vmem>>, vector<1x1x8xi32>
    %1 = vector.shape_cast %0 : vector<1x1x8xi32> to vector<1x8xi32>
    %c0_i32 = arith.constant 0 : i32
    %2 = vector.broadcast %c0_i32 : i32 to vector<1x8xi32>
    %3 = arith.cmpi ne, %1, %2 : vector<1x8xi32>
    %cst = arith.constant 0.000000e+00 : f32
    %cst_2 = arith.constant -1.000000e+09 : f32
    %4 = vector.broadcast %cst : f32 to vector<1x8xf32>
    %5 = vector.broadcast %cst_2 : f32 to vector<1x8xf32>
    %6 = arith.select %3, %4, %5 : vector<1x8xi1>, vector<1x8xf32>
    %c0_3 = arith.constant 0 : index
    %c0_4 = arith.constant 0 : index
    %c0_5 = arith.constant 0 : index
    %7 = vector.load %arg4[%c0_3, %c0_4, %c0_5] : memref<1x8x8xi32, #tpu.memory_space<vmem>>, vector<1x8x8xi32>
    %8 = vector.shape_cast %7 : vector<1x8x8xi32> to vector<8x8xi32>
    %c0_i32_6 = arith.constant 0 : i32
    %9 = vector.broadcast %c0_i32_6 : i32 to vector<8x8xi32>
    %10 = arith.cmpi ne, %8, %9 : vector<8x8xi32>
    %cst_7 = arith.constant 0.000000e+00 : f32
    %cst_8 = arith.constant -1.000000e+09 : f32
    %11 = vector.broadcast %cst_7 : f32 to vector<8x8xf32>
    %12 = vector.broadcast %cst_8 : f32 to vector<8x8xf32>
    %13 = arith.select %10, %11, %12 : vector<8x8xi1>, vector<8x8xf32>
    %c0_9 = arith.constant 0 : index
    %c0_10 = arith.constant 0 : index
    %c0_11 = arith.constant 0 : index
    %14 = vector.load %arg1[%c0_9, %c0_10, %c0_11] : memref<1x8x32xf32, #tpu.memory_space<vmem>>, vector<1x8x32xf32>
    %15 = vector.shape_cast %14 : vector<1x8x32xf32> to vector<8x32xf32>
    %c0_12 = arith.constant 0 : index
    %c0_13 = arith.constant 0 : index
    %16 = vector.load %arg5[%c0_12, %c0_13] : memref<2x32xf32, #tpu.memory_space<vmem>>, vector<1x32xf32>
    %17 = vector.shape_cast %16 : vector<1x32xf32> to vector<32xf32>
    %c0_14 = arith.constant 0 : index
    %c0_15 = arith.constant 0 : index
    %18 = vector.load %arg6[%c0_14, %c0_15] : memref<2x32xf32, #tpu.memory_space<vmem>>, vector<1x32xf32>
    %19 = vector.shape_cast %18 : vector<1x32xf32> to vector<32xf32>
    %cst_16 = arith.constant dense<0.000000e+00> : vector<8xf32>
    %20 = vector.multi_reduction <add>, %15, %cst_16 [1] : vector<8x32xf32> to vector<8xf32>
    %21 = vector.shape_cast %20 : vector<8xf32> to vector<8x1xf32>
    %cst_17 = arith.constant 3.200000e+01 : f32
    %22 = vector.broadcast %cst_17 : f32 to vector<8x1xf32>
    %23 = arith.divf %21, %22 : vector<8x1xf32>
    %24 = vector.broadcast %23 : vector<8x1xf32> to vector<8x32xf32>
    %25 = arith.subf %15, %24 : vector<8x32xf32>
    %26 = arith.mulf %25, %25 : vector<8x32xf32>
    %cst_18 = arith.constant dense<0.000000e+00> : vector<8xf32>
    %27 = vector.multi_reduction <add>, %26, %cst_18 [1] : vector<8x32xf32> to vector<8xf32>
    %28 = vector.shape_cast %27 : vector<8xf32> to vector<8x1xf32>
    %cst_19 = arith.constant 0.0322580636 : f32
    %29 = vector.broadcast %cst_19 : f32 to vector<8x1xf32>
    %30 = arith.mulf %28, %29 : vector<8x1xf32>
    %31 = math.sqrt %30 : vector<8x1xf32>
    %cst_20 = arith.constant 9.99999997E-7 : f32
    %32 = vector.broadcast %cst_20 : f32 to vector<8x1xf32>
    %33 = arith.addf %31, %32 : vector<8x1xf32>
    %34 = tpu.reciprocal %33 {approx = true} : vector<8x1xf32> -> vector<8x1xf32>
    %35 = vector.shape_cast %17 : vector<32xf32> to vector<1x32xf32>
    %36 = vector.broadcast %35 : vector<1x32xf32> to vector<8x32xf32>
    %37 = arith.mulf %36, %25 : vector<8x32xf32>
    %38 = vector.broadcast %34 : vector<8x1xf32> to vector<8x32xf32>
    %39 = arith.mulf %37, %38 : vector<8x32xf32>
    %40 = vector.shape_cast %19 : vector<32xf32> to vector<1x32xf32>
    %41 = vector.broadcast %40 : vector<1x32xf32> to vector<8x32xf32>
    %42 = arith.addf %39, %41 : vector<8x32xf32>
    %c0_21 = arith.constant 0 : index
    %c0_22 = arith.constant 0 : index
    %c0_23 = arith.constant 0 : index
    %43 = vector.load %arg7[%c0_21, %c0_22, %c0_23] : memref<2x32x96xf32, #tpu.memory_space<vmem>>, vector<1x32x96xf32>
    %44 = vector.shape_cast %43 : vector<1x32x96xf32> to vector<32x96xf32>
    %c0_24 = arith.constant 0 : index
    %c0_25 = arith.constant 0 : index
    %45 = vector.load %arg8[%c0_24, %c0_25] : memref<2x96xf32, #tpu.memory_space<vmem>>, vector<1x96xf32>
    %46 = vector.shape_cast %45 : vector<1x96xf32> to vector<96xf32>
    %c0_26 = arith.constant 0 : index
    %c0_27 = arith.constant 0 : index
    %c0_28 = arith.constant 0 : index
    %47 = vector.load %arg9[%c0_26, %c0_27, %c0_28] : memref<2x32x32xf32, #tpu.memory_space<vmem>>, vector<1x32x32xf32>
    %48 = vector.shape_cast %47 : vector<1x32x32xf32> to vector<32x32xf32>
    %c0_29 = arith.constant 0 : index
    %c0_30 = arith.constant 0 : index
    %49 = vector.load %arg10[%c0_29, %c0_30] : memref<2x32xf32, #tpu.memory_space<vmem>>, vector<1x32xf32>
    %50 = vector.shape_cast %49 : vector<1x32xf32> to vector<32xf32>
    %cst_31 = arith.constant dense<0.000000e+00> : vector<8x96xf32>
    %51 = tpu.matmul %42, %44, %cst_31 {dimension_numbers = #tpu.dot_dimension_numbers<[1], [0], [0], [1], [0, 0, 1, 1], [], []>} : vector<8x32xf32>, vector<32x96xf32>, vector<8x96xf32> -> vector<8x96xf32>
    %52 = vector.shape_cast %46 : vector<96xf32> to vector<1x96xf32>
    %53 = vector.broadcast %52 : vector<1x96xf32> to vector<8x96xf32>
    %54 = arith.addf %51, %53 : vector<8x96xf32>
    %55 = vector.extract_strided_slice %54 {offsets = [0, 0], sizes = [8, 32], strides = [1, 1]} : vector<8x96xf32> to vector<8x32xf32>
    %56 = vector.extract_strided_slice %54 {offsets = [0, 32], sizes = [8, 32], strides = [1, 1]} : vector<8x96xf32> to vector<8x32xf32>
    %57 = vector.extract_strided_slice %54 {offsets = [0, 64], sizes = [8, 32], strides = [1, 1]} : vector<8x96xf32> to vector<8x32xf32>
    %58 = vector.extract_strided_slice %55 {offsets = [0, 0], sizes = [8, 8], strides = [1, 1]} : vector<8x32xf32> to vector<8x8xf32>
    %59 = vector.extract_strided_slice %56 {offsets = [0, 0], sizes = [8, 8], strides = [1, 1]} : vector<8x32xf32> to vector<8x8xf32>
    %cst_32 = arith.constant dense<0.000000e+00> : vector<8x8xf32>
    %60 = tpu.matmul %58, %59, %cst_32 {dimension_numbers = #tpu.dot_dimension_numbers<[1], [1], [0], [0], [0, 0, 1, 0], [], []>} : vector<8x8xf32>, vector<8x8xf32>, vector<8x8xf32> -> vector<8x8xf32>
    %cst_33 = arith.constant 0.353553385 : f32
    %61 = vector.broadcast %cst_33 : f32 to vector<8x8xf32>
    %62 = arith.mulf %60, %61 : vector<8x8xf32>
    %63 = vector.broadcast %6 : vector<1x8xf32> to vector<8x8xf32>
    %64 = arith.addf %62, %63 : vector<8x8xf32>
    %cst_34 = arith.constant dense<0xFF800000> : vector<8xf32>
    %65 = vector.multi_reduction <maximumf>, %64, %cst_34 [1] : vector<8x8xf32> to vector<8xf32>
    %66 = vector.shape_cast %65 : vector<8xf32> to vector<8x1xf32>
    %67 = vector.broadcast %66 : vector<8x1xf32> to vector<8x8xf32>
    %68 = arith.subf %64, %67 : vector<8x8xf32>
    %69 = math.exp %68 : vector<8x8xf32>
    %cst_35 = arith.constant dense<0.000000e+00> : vector<8xf32>
    %70 = vector.multi_reduction <add>, %69, %cst_35 [1] : vector<8x8xf32> to vector<8xf32>
    %71 = vector.shape_cast %70 : vector<8xf32> to vector<8x1xf32>
    %72 = tpu.reciprocal %71 {approx = true} : vector<8x1xf32> -> vector<8x1xf32>
    %73 = vector.broadcast %72 : vector<8x1xf32> to vector<8x8xf32>
    %74 = arith.mulf %69, %73 : vector<8x8xf32>
    %75 = vector.extract_strided_slice %57 {offsets = [0, 0], sizes = [8, 8], strides = [1, 1]} : vector<8x32xf32> to vector<8x8xf32>
    %cst_36 = arith.constant dense<0.000000e+00> : vector<8x8xf32>
    %76 = tpu.matmul %74, %75, %cst_36 {dimension_numbers = #tpu.dot_dimension_numbers<[1], [0], [0], [1], [0, 0, 1, 1], [], []>} : vector<8x8xf32>, vector<8x8xf32>, vector<8x8xf32> -> vector<8x8xf32>
    %77 = vector.extract_strided_slice %55 {offsets = [0, 8], sizes = [8, 8], strides = [1, 1]} : vector<8x32xf32> to vector<8x8xf32>
    %78 = vector.extract_strided_slice %56 {offsets = [0, 8], sizes = [8, 8], strides = [1, 1]} : vector<8x32xf32> to vector<8x8xf32>
    %cst_37 = arith.constant dense<0.000000e+00> : vector<8x8xf32>
    %79 = tpu.matmul %77, %78, %cst_37 {dimension_numbers = #tpu.dot_dimension_numbers<[1], [1], [0], [0], [0, 0, 1, 0], [], []>} : vector<8x8xf32>, vector<8x8xf32>, vector<8x8xf32> -> vector<8x8xf32>
    %cst_38 = arith.constant 0.353553385 : f32
    %80 = vector.broadcast %cst_38 : f32 to vector<8x8xf32>
    %81 = arith.mulf %79, %80 : vector<8x8xf32>
    %82 = vector.broadcast %6 : vector<1x8xf32> to vector<8x8xf32>
    %83 = arith.addf %81, %82 : vector<8x8xf32>
    %cst_39 = arith.constant dense<0xFF800000> : vector<8xf32>
    %84 = vector.multi_reduction <maximumf>, %83, %cst_39 [1] : vector<8x8xf32> to vector<8xf32>
    %85 = vector.shape_cast %84 : vector<8xf32> to vector<8x1xf32>
    %86 = vector.broadcast %85 : vector<8x1xf32> to vector<8x8xf32>
    %87 = arith.subf %83, %86 : vector<8x8xf32>
    %88 = math.exp %87 : vector<8x8xf32>
    %cst_40 = arith.constant dense<0.000000e+00> : vector<8xf32>
    %89 = vector.multi_reduction <add>, %88, %cst_40 [1] : vector<8x8xf32> to vector<8xf32>
    %90 = vector.shape_cast %89 : vector<8xf32> to vector<8x1xf32>
    %91 = tpu.reciprocal %90 {approx = true} : vector<8x1xf32> -> vector<8x1xf32>
    %92 = vector.broadcast %91 : vector<8x1xf32> to vector<8x8xf32>
    %93 = arith.mulf %88, %92 : vector<8x8xf32>
    %94 = vector.extract_strided_slice %57 {offsets = [0, 8], sizes = [8, 8], strides = [1, 1]} : vector<8x32xf32> to vector<8x8xf32>
    %cst_41 = arith.constant dense<0.000000e+00> : vector<8x8xf32>
    %95 = tpu.matmul %93, %94, %cst_41 {dimension_numbers = #tpu.dot_dimension_numbers<[1], [0], [0], [1], [0, 0, 1, 1], [], []>} : vector<8x8xf32>, vector<8x8xf32>, vector<8x8xf32> -> vector<8x8xf32>
    %96 = vector.extract_strided_slice %55 {offsets = [0, 16], sizes = [8, 8], strides = [1, 1]} : vector<8x32xf32> to vector<8x8xf32>
    %97 = vector.extract_strided_slice %56 {offsets = [0, 16], sizes = [8, 8], strides = [1, 1]} : vector<8x32xf32> to vector<8x8xf32>
    %cst_42 = arith.constant dense<0.000000e+00> : vector<8x8xf32>
    %98 = tpu.matmul %96, %97, %cst_42 {dimension_numbers = #tpu.dot_dimension_numbers<[1], [1], [0], [0], [0, 0, 1, 0], [], []>} : vector<8x8xf32>, vector<8x8xf32>, vector<8x8xf32> -> vector<8x8xf32>
    %cst_43 = arith.constant 0.353553385 : f32
    %99 = vector.broadcast %cst_43 : f32 to vector<8x8xf32>
    %100 = arith.mulf %98, %99 : vector<8x8xf32>
    %101 = vector.broadcast %6 : vector<1x8xf32> to vector<8x8xf32>
    %102 = arith.addf %100, %101 : vector<8x8xf32>
    %cst_44 = arith.constant dense<0xFF800000> : vector<8xf32>
    %103 = vector.multi_reduction <maximumf>, %102, %cst_44 [1] : vector<8x8xf32> to vector<8xf32>
    %104 = vector.shape_cast %103 : vector<8xf32> to vector<8x1xf32>
    %105 = vector.broadcast %104 : vector<8x1xf32> to vector<8x8xf32>
    %106 = arith.subf %102, %105 : vector<8x8xf32>
    %107 = math.exp %106 : vector<8x8xf32>
    %cst_45 = arith.constant dense<0.000000e+00> : vector<8xf32>
    %108 = vector.multi_reduction <add>, %107, %cst_45 [1] : vector<8x8xf32> to vector<8xf32>
    %109 = vector.shape_cast %108 : vector<8xf32> to vector<8x1xf32>
    %110 = tpu.reciprocal %109 {approx = true} : vector<8x1xf32> -> vector<8x1xf32>
    %111 = vector.broadcast %110 : vector<8x1xf32> to vector<8x8xf32>
    %112 = arith.mulf %107, %111 : vector<8x8xf32>
    %113 = vector.extract_strided_slice %57 {offsets = [0, 16], sizes = [8, 8], strides = [1, 1]} : vector<8x32xf32> to vector<8x8xf32>
    %cst_46 = arith.constant dense<0.000000e+00> : vector<8x8xf32>
    %114 = tpu.matmul %112, %113, %cst_46 {dimension_numbers = #tpu.dot_dimension_numbers<[1], [0], [0], [1], [0, 0, 1, 1], [], []>} : vector<8x8xf32>, vector<8x8xf32>, vector<8x8xf32> -> vector<8x8xf32>
    %115 = vector.extract_strided_slice %55 {offsets = [0, 24], sizes = [8, 8], strides = [1, 1]} : vector<8x32xf32> to vector<8x8xf32>
    %116 = vector.extract_strided_slice %56 {offsets = [0, 24], sizes = [8, 8], strides = [1, 1]} : vector<8x32xf32> to vector<8x8xf32>
    %cst_47 = arith.constant dense<0.000000e+00> : vector<8x8xf32>
    %117 = tpu.matmul %115, %116, %cst_47 {dimension_numbers = #tpu.dot_dimension_numbers<[1], [1], [0], [0], [0, 0, 1, 0], [], []>} : vector<8x8xf32>, vector<8x8xf32>, vector<8x8xf32> -> vector<8x8xf32>
    %cst_48 = arith.constant 0.353553385 : f32
    %118 = vector.broadcast %cst_48 : f32 to vector<8x8xf32>
    %119 = arith.mulf %117, %118 : vector<8x8xf32>
    %120 = vector.broadcast %6 : vector<1x8xf32> to vector<8x8xf32>
    %121 = arith.addf %119, %120 : vector<8x8xf32>
    %cst_49 = arith.constant dense<0xFF800000> : vector<8xf32>
    %122 = vector.multi_reduction <maximumf>, %121, %cst_49 [1] : vector<8x8xf32> to vector<8xf32>
    %123 = vector.shape_cast %122 : vector<8xf32> to vector<8x1xf32>
    %124 = vector.broadcast %123 : vector<8x1xf32> to vector<8x8xf32>
    %125 = arith.subf %121, %124 : vector<8x8xf32>
    %126 = math.exp %125 : vector<8x8xf32>
    %cst_50 = arith.constant dense<0.000000e+00> : vector<8xf32>
    %127 = vector.multi_reduction <add>, %126, %cst_50 [1] : vector<8x8xf32> to vector<8xf32>
    %128 = vector.shape_cast %127 : vector<8xf32> to vector<8x1xf32>
    %129 = tpu.reciprocal %128 {approx = true} : vector<8x1xf32> -> vector<8x1xf32>
    %130 = vector.broadcast %129 : vector<8x1xf32> to vector<8x8xf32>
    %131 = arith.mulf %126, %130 : vector<8x8xf32>
    %132 = vector.extract_strided_slice %57 {offsets = [0, 24], sizes = [8, 8], strides = [1, 1]} : vector<8x32xf32> to vector<8x8xf32>
    %cst_51 = arith.constant dense<0.000000e+00> : vector<8x8xf32>
    %133 = tpu.matmul %131, %132, %cst_51 {dimension_numbers = #tpu.dot_dimension_numbers<[1], [0], [0], [1], [0, 0, 1, 1], [], []>} : vector<8x8xf32>, vector<8x8xf32>, vector<8x8xf32> -> vector<8x8xf32>
    %134 = tpu.concatenate %76, %95, %114, %133 in 1 : vector<8x8xf32>, vector<8x8xf32>, vector<8x8xf32>, vector<8x8xf32> -> vector<8x32xf32>
    %cst_52 = arith.constant dense<0.000000e+00> : vector<8x32xf32>
    %135 = tpu.matmul %134, %48, %cst_52 {dimension_numbers = #tpu.dot_dimension_numbers<[1], [0], [0], [1], [0, 0, 1, 1], [], []>} : vector<8x32xf32>, vector<32x32xf32>, vector<8x32xf32> -> vector<8x32xf32>
    %136 = vector.shape_cast %50 : vector<32xf32> to vector<1x32xf32>
    %137 = vector.broadcast %136 : vector<1x32xf32> to vector<8x32xf32>
    %138 = arith.addf %135, %137 : vector<8x32xf32>
    %139 = arith.addf %15, %138 : vector<8x32xf32>
    %c0_53 = arith.constant 0 : index
    %c0_54 = arith.constant 0 : index
    %140 = vector.load %arg11[%c0_53, %c0_54] : memref<2x32xf32, #tpu.memory_space<vmem>>, vector<1x32xf32>
    %141 = vector.shape_cast %140 : vector<1x32xf32> to vector<32xf32>
    %c0_55 = arith.constant 0 : index
    %c0_56 = arith.constant 0 : index
    %142 = vector.load %arg12[%c0_55, %c0_56] : memref<2x32xf32, #tpu.memory_space<vmem>>, vector<1x32xf32>
    %143 = vector.shape_cast %142 : vector<1x32xf32> to vector<32xf32>
    %cst_57 = arith.constant dense<0.000000e+00> : vector<8xf32>
    %144 = vector.multi_reduction <add>, %139, %cst_57 [1] : vector<8x32xf32> to vector<8xf32>
    %145 = vector.shape_cast %144 : vector<8xf32> to vector<8x1xf32>
    %cst_58 = arith.constant 3.200000e+01 : f32
    %146 = vector.broadcast %cst_58 : f32 to vector<8x1xf32>
    %147 = arith.divf %145, %146 : vector<8x1xf32>
    %148 = vector.broadcast %147 : vector<8x1xf32> to vector<8x32xf32>
    %149 = arith.subf %139, %148 : vector<8x32xf32>
    %150 = arith.mulf %149, %149 : vector<8x32xf32>
    %cst_59 = arith.constant dense<0.000000e+00> : vector<8xf32>
    %151 = vector.multi_reduction <add>, %150, %cst_59 [1] : vector<8x32xf32> to vector<8xf32>
    %152 = vector.shape_cast %151 : vector<8xf32> to vector<8x1xf32>
    %cst_60 = arith.constant 0.0322580636 : f32
    %153 = vector.broadcast %cst_60 : f32 to vector<8x1xf32>
    %154 = arith.mulf %152, %153 : vector<8x1xf32>
    %155 = math.sqrt %154 : vector<8x1xf32>
    %cst_61 = arith.constant 9.99999997E-7 : f32
    %156 = vector.broadcast %cst_61 : f32 to vector<8x1xf32>
    %157 = arith.addf %155, %156 : vector<8x1xf32>
    %158 = tpu.reciprocal %157 {approx = true} : vector<8x1xf32> -> vector<8x1xf32>
    %159 = vector.shape_cast %141 : vector<32xf32> to vector<1x32xf32>
    %160 = vector.broadcast %159 : vector<1x32xf32> to vector<8x32xf32>
    %161 = arith.mulf %160, %149 : vector<8x32xf32>
    %162 = vector.broadcast %158 : vector<8x1xf32> to vector<8x32xf32>
    %163 = arith.mulf %161, %162 : vector<8x32xf32>
    %164 = vector.shape_cast %143 : vector<32xf32> to vector<1x32xf32>
    %165 = vector.broadcast %164 : vector<1x32xf32> to vector<8x32xf32>
    %166 = arith.addf %163, %165 : vector<8x32xf32>
    %c0_62 = arith.constant 0 : index
    %c0_63 = arith.constant 0 : index
    %c0_64 = arith.constant 0 : index
    %167 = vector.load %arg13[%c0_62, %c0_63, %c0_64] : memref<2x32x64xf32, #tpu.memory_space<vmem>>, vector<1x32x64xf32>
    %168 = vector.shape_cast %167 : vector<1x32x64xf32> to vector<32x64xf32>
    %c0_65 = arith.constant 0 : index
    %c0_66 = arith.constant 0 : index
    %169 = vector.load %arg14[%c0_65, %c0_66] : memref<2x64xf32, #tpu.memory_space<vmem>>, vector<1x64xf32>
    %170 = vector.shape_cast %169 : vector<1x64xf32> to vector<64xf32>
    %c0_67 = arith.constant 0 : index
    %c0_68 = arith.constant 0 : index
    %c0_69 = arith.constant 0 : index
    %171 = vector.load %arg15[%c0_67, %c0_68, %c0_69] : memref<2x64x32xf32, #tpu.memory_space<vmem>>, vector<1x64x32xf32>
    %172 = vector.shape_cast %171 : vector<1x64x32xf32> to vector<64x32xf32>
    %c0_70 = arith.constant 0 : index
    %c0_71 = arith.constant 0 : index
    %173 = vector.load %arg16[%c0_70, %c0_71] : memref<2x32xf32, #tpu.memory_space<vmem>>, vector<1x32xf32>
    %174 = vector.shape_cast %173 : vector<1x32xf32> to vector<32xf32>
    %cst_72 = arith.constant dense<0.000000e+00> : vector<8x64xf32>
    %175 = tpu.matmul %166, %168, %cst_72 {dimension_numbers = #tpu.dot_dimension_numbers<[1], [0], [0], [1], [0, 0, 1, 1], [], []>} : vector<8x32xf32>, vector<32x64xf32>, vector<8x64xf32> -> vector<8x64xf32>
    %176 = vector.shape_cast %170 : vector<64xf32> to vector<1x64xf32>
    %177 = vector.broadcast %176 : vector<1x64xf32> to vector<8x64xf32>
    %178 = arith.addf %175, %177 : vector<8x64xf32>
    %cst_73 = arith.constant 0.000000e+00 : f32
    %179 = vector.broadcast %cst_73 : f32 to vector<8x64xf32>
    %180 = arith.maximumf %178, %179 : vector<8x64xf32>
    %cst_74 = arith.constant dense<0.000000e+00> : vector<8x32xf32>
    %181 = tpu.matmul %180, %172, %cst_74 {dimension_numbers = #tpu.dot_dimension_numbers<[1], [0], [0], [1], [0, 0, 1, 1], [], []>} : vector<8x64xf32>, vector<64x32xf32>, vector<8x32xf32> -> vector<8x32xf32>
    %182 = vector.shape_cast %174 : vector<32xf32> to vector<1x32xf32>
    %183 = vector.broadcast %182 : vector<1x32xf32> to vector<8x32xf32>
    %184 = arith.addf %181, %183 : vector<8x32xf32>
    %185 = arith.addf %139, %184 : vector<8x32xf32>
    %c1 = arith.constant 1 : index
    %c0_75 = arith.constant 0 : index
    %186 = vector.load %arg5[%c1, %c0_75] : memref<2x32xf32, #tpu.memory_space<vmem>>, vector<1x32xf32>
    %187 = vector.shape_cast %186 : vector<1x32xf32> to vector<32xf32>
    %c1_76 = arith.constant 1 : index
    %c0_77 = arith.constant 0 : index
    %188 = vector.load %arg6[%c1_76, %c0_77] : memref<2x32xf32, #tpu.memory_space<vmem>>, vector<1x32xf32>
    %189 = vector.shape_cast %188 : vector<1x32xf32> to vector<32xf32>
    %cst_78 = arith.constant dense<0.000000e+00> : vector<8xf32>
    %190 = vector.multi_reduction <add>, %185, %cst_78 [1] : vector<8x32xf32> to vector<8xf32>
    %191 = vector.shape_cast %190 : vector<8xf32> to vector<8x1xf32>
    %cst_79 = arith.constant 3.200000e+01 : f32
    %192 = vector.broadcast %cst_79 : f32 to vector<8x1xf32>
    %193 = arith.divf %191, %192 : vector<8x1xf32>
    %194 = vector.broadcast %193 : vector<8x1xf32> to vector<8x32xf32>
    %195 = arith.subf %185, %194 : vector<8x32xf32>
    %196 = arith.mulf %195, %195 : vector<8x32xf32>
    %cst_80 = arith.constant dense<0.000000e+00> : vector<8xf32>
    %197 = vector.multi_reduction <add>, %196, %cst_80 [1] : vector<8x32xf32> to vector<8xf32>
    %198 = vector.shape_cast %197 : vector<8xf32> to vector<8x1xf32>
    %cst_81 = arith.constant 0.0322580636 : f32
    %199 = vector.broadcast %cst_81 : f32 to vector<8x1xf32>
    %200 = arith.mulf %198, %199 : vector<8x1xf32>
    %201 = math.sqrt %200 : vector<8x1xf32>
    %cst_82 = arith.constant 9.99999997E-7 : f32
    %202 = vector.broadcast %cst_82 : f32 to vector<8x1xf32>
    %203 = arith.addf %201, %202 : vector<8x1xf32>
    %204 = tpu.reciprocal %203 {approx = true} : vector<8x1xf32> -> vector<8x1xf32>
    %205 = vector.shape_cast %187 : vector<32xf32> to vector<1x32xf32>
    %206 = vector.broadcast %205 : vector<1x32xf32> to vector<8x32xf32>
    %207 = arith.mulf %206, %195 : vector<8x32xf32>
    %208 = vector.broadcast %204 : vector<8x1xf32> to vector<8x32xf32>
    %209 = arith.mulf %207, %208 : vector<8x32xf32>
    %210 = vector.shape_cast %189 : vector<32xf32> to vector<1x32xf32>
    %211 = vector.broadcast %210 : vector<1x32xf32> to vector<8x32xf32>
    %212 = arith.addf %209, %211 : vector<8x32xf32>
    %c1_83 = arith.constant 1 : index
    %c0_84 = arith.constant 0 : index
    %c0_85 = arith.constant 0 : index
    %213 = vector.load %arg7[%c1_83, %c0_84, %c0_85] : memref<2x32x96xf32, #tpu.memory_space<vmem>>, vector<1x32x96xf32>
    %214 = vector.shape_cast %213 : vector<1x32x96xf32> to vector<32x96xf32>
    %c1_86 = arith.constant 1 : index
    %c0_87 = arith.constant 0 : index
    %215 = vector.load %arg8[%c1_86, %c0_87] : memref<2x96xf32, #tpu.memory_space<vmem>>, vector<1x96xf32>
    %216 = vector.shape_cast %215 : vector<1x96xf32> to vector<96xf32>
    %c1_88 = arith.constant 1 : index
    %c0_89 = arith.constant 0 : index
    %c0_90 = arith.constant 0 : index
    %217 = vector.load %arg9[%c1_88, %c0_89, %c0_90] : memref<2x32x32xf32, #tpu.memory_space<vmem>>, vector<1x32x32xf32>
    %218 = vector.shape_cast %217 : vector<1x32x32xf32> to vector<32x32xf32>
    %c1_91 = arith.constant 1 : index
    %c0_92 = arith.constant 0 : index
    %219 = vector.load %arg10[%c1_91, %c0_92] : memref<2x32xf32, #tpu.memory_space<vmem>>, vector<1x32xf32>
    %220 = vector.shape_cast %219 : vector<1x32xf32> to vector<32xf32>
    %cst_93 = arith.constant dense<0.000000e+00> : vector<8x96xf32>
    %221 = tpu.matmul %212, %214, %cst_93 {dimension_numbers = #tpu.dot_dimension_numbers<[1], [0], [0], [1], [0, 0, 1, 1], [], []>} : vector<8x32xf32>, vector<32x96xf32>, vector<8x96xf32> -> vector<8x96xf32>
    %222 = vector.shape_cast %216 : vector<96xf32> to vector<1x96xf32>
    %223 = vector.broadcast %222 : vector<1x96xf32> to vector<8x96xf32>
    %224 = arith.addf %221, %223 : vector<8x96xf32>
    %225 = vector.extract_strided_slice %224 {offsets = [0, 0], sizes = [8, 32], strides = [1, 1]} : vector<8x96xf32> to vector<8x32xf32>
    %226 = vector.extract_strided_slice %224 {offsets = [0, 32], sizes = [8, 32], strides = [1, 1]} : vector<8x96xf32> to vector<8x32xf32>
    %227 = vector.extract_strided_slice %224 {offsets = [0, 64], sizes = [8, 32], strides = [1, 1]} : vector<8x96xf32> to vector<8x32xf32>
    %228 = vector.extract_strided_slice %225 {offsets = [0, 0], sizes = [8, 8], strides = [1, 1]} : vector<8x32xf32> to vector<8x8xf32>
    %229 = vector.extract_strided_slice %226 {offsets = [0, 0], sizes = [8, 8], strides = [1, 1]} : vector<8x32xf32> to vector<8x8xf32>
    %cst_94 = arith.constant dense<0.000000e+00> : vector<8x8xf32>
    %230 = tpu.matmul %228, %229, %cst_94 {dimension_numbers = #tpu.dot_dimension_numbers<[1], [1], [0], [0], [0, 0, 1, 0], [], []>} : vector<8x8xf32>, vector<8x8xf32>, vector<8x8xf32> -> vector<8x8xf32>
    %cst_95 = arith.constant 0.353553385 : f32
    %231 = vector.broadcast %cst_95 : f32 to vector<8x8xf32>
    %232 = arith.mulf %230, %231 : vector<8x8xf32>
    %233 = vector.broadcast %6 : vector<1x8xf32> to vector<8x8xf32>
    %234 = arith.addf %232, %233 : vector<8x8xf32>
    %cst_96 = arith.constant dense<0xFF800000> : vector<8xf32>
    %235 = vector.multi_reduction <maximumf>, %234, %cst_96 [1] : vector<8x8xf32> to vector<8xf32>
    %236 = vector.shape_cast %235 : vector<8xf32> to vector<8x1xf32>
    %237 = vector.broadcast %236 : vector<8x1xf32> to vector<8x8xf32>
    %238 = arith.subf %234, %237 : vector<8x8xf32>
    %239 = math.exp %238 : vector<8x8xf32>
    %cst_97 = arith.constant dense<0.000000e+00> : vector<8xf32>
    %240 = vector.multi_reduction <add>, %239, %cst_97 [1] : vector<8x8xf32> to vector<8xf32>
    %241 = vector.shape_cast %240 : vector<8xf32> to vector<8x1xf32>
    %242 = tpu.reciprocal %241 {approx = true} : vector<8x1xf32> -> vector<8x1xf32>
    %243 = vector.broadcast %242 : vector<8x1xf32> to vector<8x8xf32>
    %244 = arith.mulf %239, %243 : vector<8x8xf32>
    %245 = vector.extract_strided_slice %227 {offsets = [0, 0], sizes = [8, 8], strides = [1, 1]} : vector<8x32xf32> to vector<8x8xf32>
    %cst_98 = arith.constant dense<0.000000e+00> : vector<8x8xf32>
    %246 = tpu.matmul %244, %245, %cst_98 {dimension_numbers = #tpu.dot_dimension_numbers<[1], [0], [0], [1], [0, 0, 1, 1], [], []>} : vector<8x8xf32>, vector<8x8xf32>, vector<8x8xf32> -> vector<8x8xf32>
    %247 = vector.extract_strided_slice %225 {offsets = [0, 8], sizes = [8, 8], strides = [1, 1]} : vector<8x32xf32> to vector<8x8xf32>
    %248 = vector.extract_strided_slice %226 {offsets = [0, 8], sizes = [8, 8], strides = [1, 1]} : vector<8x32xf32> to vector<8x8xf32>
    %cst_99 = arith.constant dense<0.000000e+00> : vector<8x8xf32>
    %249 = tpu.matmul %247, %248, %cst_99 {dimension_numbers = #tpu.dot_dimension_numbers<[1], [1], [0], [0], [0, 0, 1, 0], [], []>} : vector<8x8xf32>, vector<8x8xf32>, vector<8x8xf32> -> vector<8x8xf32>
    %cst_100 = arith.constant 0.353553385 : f32
    %250 = vector.broadcast %cst_100 : f32 to vector<8x8xf32>
    %251 = arith.mulf %249, %250 : vector<8x8xf32>
    %252 = vector.broadcast %6 : vector<1x8xf32> to vector<8x8xf32>
    %253 = arith.addf %251, %252 : vector<8x8xf32>
    %cst_101 = arith.constant dense<0xFF800000> : vector<8xf32>
    %254 = vector.multi_reduction <maximumf>, %253, %cst_101 [1] : vector<8x8xf32> to vector<8xf32>
    %255 = vector.shape_cast %254 : vector<8xf32> to vector<8x1xf32>
    %256 = vector.broadcast %255 : vector<8x1xf32> to vector<8x8xf32>
    %257 = arith.subf %253, %256 : vector<8x8xf32>
    %258 = math.exp %257 : vector<8x8xf32>
    %cst_102 = arith.constant dense<0.000000e+00> : vector<8xf32>
    %259 = vector.multi_reduction <add>, %258, %cst_102 [1] : vector<8x8xf32> to vector<8xf32>
    %260 = vector.shape_cast %259 : vector<8xf32> to vector<8x1xf32>
    %261 = tpu.reciprocal %260 {approx = true} : vector<8x1xf32> -> vector<8x1xf32>
    %262 = vector.broadcast %261 : vector<8x1xf32> to vector<8x8xf32>
    %263 = arith.mulf %258, %262 : vector<8x8xf32>
    %264 = vector.extract_strided_slice %227 {offsets = [0, 8], sizes = [8, 8], strides = [1, 1]} : vector<8x32xf32> to vector<8x8xf32>
    %cst_103 = arith.constant dense<0.000000e+00> : vector<8x8xf32>
    %265 = tpu.matmul %263, %264, %cst_103 {dimension_numbers = #tpu.dot_dimension_numbers<[1], [0], [0], [1], [0, 0, 1, 1], [], []>} : vector<8x8xf32>, vector<8x8xf32>, vector<8x8xf32> -> vector<8x8xf32>
    %266 = vector.extract_strided_slice %225 {offsets = [0, 16], sizes = [8, 8], strides = [1, 1]} : vector<8x32xf32> to vector<8x8xf32>
    %267 = vector.extract_strided_slice %226 {offsets = [0, 16], sizes = [8, 8], strides = [1, 1]} : vector<8x32xf32> to vector<8x8xf32>
    %cst_104 = arith.constant dense<0.000000e+00> : vector<8x8xf32>
    %268 = tpu.matmul %266, %267, %cst_104 {dimension_numbers = #tpu.dot_dimension_numbers<[1], [1], [0], [0], [0, 0, 1, 0], [], []>} : vector<8x8xf32>, vector<8x8xf32>, vector<8x8xf32> -> vector<8x8xf32>
    %cst_105 = arith.constant 0.353553385 : f32
    %269 = vector.broadcast %cst_105 : f32 to vector<8x8xf32>
    %270 = arith.mulf %268, %269 : vector<8x8xf32>
    %271 = vector.broadcast %6 : vector<1x8xf32> to vector<8x8xf32>
    %272 = arith.addf %270, %271 : vector<8x8xf32>
    %cst_106 = arith.constant dense<0xFF800000> : vector<8xf32>
    %273 = vector.multi_reduction <maximumf>, %272, %cst_106 [1] : vector<8x8xf32> to vector<8xf32>
    %274 = vector.shape_cast %273 : vector<8xf32> to vector<8x1xf32>
    %275 = vector.broadcast %274 : vector<8x1xf32> to vector<8x8xf32>
    %276 = arith.subf %272, %275 : vector<8x8xf32>
    %277 = math.exp %276 : vector<8x8xf32>
    %cst_107 = arith.constant dense<0.000000e+00> : vector<8xf32>
    %278 = vector.multi_reduction <add>, %277, %cst_107 [1] : vector<8x8xf32> to vector<8xf32>
    %279 = vector.shape_cast %278 : vector<8xf32> to vector<8x1xf32>
    %280 = tpu.reciprocal %279 {approx = true} : vector<8x1xf32> -> vector<8x1xf32>
    %281 = vector.broadcast %280 : vector<8x1xf32> to vector<8x8xf32>
    %282 = arith.mulf %277, %281 : vector<8x8xf32>
    %283 = vector.extract_strided_slice %227 {offsets = [0, 16], sizes = [8, 8], strides = [1, 1]} : vector<8x32xf32> to vector<8x8xf32>
    %cst_108 = arith.constant dense<0.000000e+00> : vector<8x8xf32>
    %284 = tpu.matmul %282, %283, %cst_108 {dimension_numbers = #tpu.dot_dimension_numbers<[1], [0], [0], [1], [0, 0, 1, 1], [], []>} : vector<8x8xf32>, vector<8x8xf32>, vector<8x8xf32> -> vector<8x8xf32>
    %285 = vector.extract_strided_slice %225 {offsets = [0, 24], sizes = [8, 8], strides = [1, 1]} : vector<8x32xf32> to vector<8x8xf32>
    %286 = vector.extract_strided_slice %226 {offsets = [0, 24], sizes = [8, 8], strides = [1, 1]} : vector<8x32xf32> to vector<8x8xf32>
    %cst_109 = arith.constant dense<0.000000e+00> : vector<8x8xf32>
    %287 = tpu.matmul %285, %286, %cst_109 {dimension_numbers = #tpu.dot_dimension_numbers<[1], [1], [0], [0], [0, 0, 1, 0], [], []>} : vector<8x8xf32>, vector<8x8xf32>, vector<8x8xf32> -> vector<8x8xf32>
    %cst_110 = arith.constant 0.353553385 : f32
    %288 = vector.broadcast %cst_110 : f32 to vector<8x8xf32>
    %289 = arith.mulf %287, %288 : vector<8x8xf32>
    %290 = vector.broadcast %6 : vector<1x8xf32> to vector<8x8xf32>
    %291 = arith.addf %289, %290 : vector<8x8xf32>
    %cst_111 = arith.constant dense<0xFF800000> : vector<8xf32>
    %292 = vector.multi_reduction <maximumf>, %291, %cst_111 [1] : vector<8x8xf32> to vector<8xf32>
    %293 = vector.shape_cast %292 : vector<8xf32> to vector<8x1xf32>
    %294 = vector.broadcast %293 : vector<8x1xf32> to vector<8x8xf32>
    %295 = arith.subf %291, %294 : vector<8x8xf32>
    %296 = math.exp %295 : vector<8x8xf32>
    %cst_112 = arith.constant dense<0.000000e+00> : vector<8xf32>
    %297 = vector.multi_reduction <add>, %296, %cst_112 [1] : vector<8x8xf32> to vector<8xf32>
    %298 = vector.shape_cast %297 : vector<8xf32> to vector<8x1xf32>
    %299 = tpu.reciprocal %298 {approx = true} : vector<8x1xf32> -> vector<8x1xf32>
    %300 = vector.broadcast %299 : vector<8x1xf32> to vector<8x8xf32>
    %301 = arith.mulf %296, %300 : vector<8x8xf32>
    %302 = vector.extract_strided_slice %227 {offsets = [0, 24], sizes = [8, 8], strides = [1, 1]} : vector<8x32xf32> to vector<8x8xf32>
    %cst_113 = arith.constant dense<0.000000e+00> : vector<8x8xf32>
    %303 = tpu.matmul %301, %302, %cst_113 {dimension_numbers = #tpu.dot_dimension_numbers<[1], [0], [0], [1], [0, 0, 1, 1], [], []>} : vector<8x8xf32>, vector<8x8xf32>, vector<8x8xf32> -> vector<8x8xf32>
    %304 = tpu.concatenate %246, %265, %284, %303 in 1 : vector<8x8xf32>, vector<8x8xf32>, vector<8x8xf32>, vector<8x8xf32> -> vector<8x32xf32>
    %cst_114 = arith.constant dense<0.000000e+00> : vector<8x32xf32>
    %305 = tpu.matmul %304, %218, %cst_114 {dimension_numbers = #tpu.dot_dimension_numbers<[1], [0], [0], [1], [0, 0, 1, 1], [], []>} : vector<8x32xf32>, vector<32x32xf32>, vector<8x32xf32> -> vector<8x32xf32>
    %306 = vector.shape_cast %220 : vector<32xf32> to vector<1x32xf32>
    %307 = vector.broadcast %306 : vector<1x32xf32> to vector<8x32xf32>
    %308 = arith.addf %305, %307 : vector<8x32xf32>
    %309 = arith.addf %185, %308 : vector<8x32xf32>
    %c1_115 = arith.constant 1 : index
    %c0_116 = arith.constant 0 : index
    %310 = vector.load %arg11[%c1_115, %c0_116] : memref<2x32xf32, #tpu.memory_space<vmem>>, vector<1x32xf32>
    %311 = vector.shape_cast %310 : vector<1x32xf32> to vector<32xf32>
    %c1_117 = arith.constant 1 : index
    %c0_118 = arith.constant 0 : index
    %312 = vector.load %arg12[%c1_117, %c0_118] : memref<2x32xf32, #tpu.memory_space<vmem>>, vector<1x32xf32>
    %313 = vector.shape_cast %312 : vector<1x32xf32> to vector<32xf32>
    %cst_119 = arith.constant dense<0.000000e+00> : vector<8xf32>
    %314 = vector.multi_reduction <add>, %309, %cst_119 [1] : vector<8x32xf32> to vector<8xf32>
    %315 = vector.shape_cast %314 : vector<8xf32> to vector<8x1xf32>
    %cst_120 = arith.constant 3.200000e+01 : f32
    %316 = vector.broadcast %cst_120 : f32 to vector<8x1xf32>
    %317 = arith.divf %315, %316 : vector<8x1xf32>
    %318 = vector.broadcast %317 : vector<8x1xf32> to vector<8x32xf32>
    %319 = arith.subf %309, %318 : vector<8x32xf32>
    %320 = arith.mulf %319, %319 : vector<8x32xf32>
    %cst_121 = arith.constant dense<0.000000e+00> : vector<8xf32>
    %321 = vector.multi_reduction <add>, %320, %cst_121 [1] : vector<8x32xf32> to vector<8xf32>
    %322 = vector.shape_cast %321 : vector<8xf32> to vector<8x1xf32>
    %cst_122 = arith.constant 0.0322580636 : f32
    %323 = vector.broadcast %cst_122 : f32 to vector<8x1xf32>
    %324 = arith.mulf %322, %323 : vector<8x1xf32>
    %325 = math.sqrt %324 : vector<8x1xf32>
    %cst_123 = arith.constant 9.99999997E-7 : f32
    %326 = vector.broadcast %cst_123 : f32 to vector<8x1xf32>
    %327 = arith.addf %325, %326 : vector<8x1xf32>
    %328 = tpu.reciprocal %327 {approx = true} : vector<8x1xf32> -> vector<8x1xf32>
    %329 = vector.shape_cast %311 : vector<32xf32> to vector<1x32xf32>
    %330 = vector.broadcast %329 : vector<1x32xf32> to vector<8x32xf32>
    %331 = arith.mulf %330, %319 : vector<8x32xf32>
    %332 = vector.broadcast %328 : vector<8x1xf32> to vector<8x32xf32>
    %333 = arith.mulf %331, %332 : vector<8x32xf32>
    %334 = vector.shape_cast %313 : vector<32xf32> to vector<1x32xf32>
    %335 = vector.broadcast %334 : vector<1x32xf32> to vector<8x32xf32>
    %336 = arith.addf %333, %335 : vector<8x32xf32>
    %c1_124 = arith.constant 1 : index
    %c0_125 = arith.constant 0 : index
    %c0_126 = arith.constant 0 : index
    %337 = vector.load %arg13[%c1_124, %c0_125, %c0_126] : memref<2x32x64xf32, #tpu.memory_space<vmem>>, vector<1x32x64xf32>
    %338 = vector.shape_cast %337 : vector<1x32x64xf32> to vector<32x64xf32>
    %c1_127 = arith.constant 1 : index
    %c0_128 = arith.constant 0 : index
    %339 = vector.load %arg14[%c1_127, %c0_128] : memref<2x64xf32, #tpu.memory_space<vmem>>, vector<1x64xf32>
    %340 = vector.shape_cast %339 : vector<1x64xf32> to vector<64xf32>
    %c1_129 = arith.constant 1 : index
    %c0_130 = arith.constant 0 : index
    %c0_131 = arith.constant 0 : index
    %341 = vector.load %arg15[%c1_129, %c0_130, %c0_131] : memref<2x64x32xf32, #tpu.memory_space<vmem>>, vector<1x64x32xf32>
    %342 = vector.shape_cast %341 : vector<1x64x32xf32> to vector<64x32xf32>
    %c1_132 = arith.constant 1 : index
    %c0_133 = arith.constant 0 : index
    %343 = vector.load %arg16[%c1_132, %c0_133] : memref<2x32xf32, #tpu.memory_space<vmem>>, vector<1x32xf32>
    %344 = vector.shape_cast %343 : vector<1x32xf32> to vector<32xf32>
    %cst_134 = arith.constant dense<0.000000e+00> : vector<8x64xf32>
    %345 = tpu.matmul %336, %338, %cst_134 {dimension_numbers = #tpu.dot_dimension_numbers<[1], [0], [0], [1], [0, 0, 1, 1], [], []>} : vector<8x32xf32>, vector<32x64xf32>, vector<8x64xf32> -> vector<8x64xf32>
    %346 = vector.shape_cast %340 : vector<64xf32> to vector<1x64xf32>
    %347 = vector.broadcast %346 : vector<1x64xf32> to vector<8x64xf32>
    %348 = arith.addf %345, %347 : vector<8x64xf32>
    %cst_135 = arith.constant 0.000000e+00 : f32
    %349 = vector.broadcast %cst_135 : f32 to vector<8x64xf32>
    %350 = arith.maximumf %348, %349 : vector<8x64xf32>
    %cst_136 = arith.constant dense<0.000000e+00> : vector<8x32xf32>
    %351 = tpu.matmul %350, %342, %cst_136 {dimension_numbers = #tpu.dot_dimension_numbers<[1], [0], [0], [1], [0, 0, 1, 1], [], []>} : vector<8x64xf32>, vector<64x32xf32>, vector<8x32xf32> -> vector<8x32xf32>
    %352 = vector.shape_cast %344 : vector<32xf32> to vector<1x32xf32>
    %353 = vector.broadcast %352 : vector<1x32xf32> to vector<8x32xf32>
    %354 = arith.addf %351, %353 : vector<8x32xf32>
    %355 = arith.addf %309, %354 : vector<8x32xf32>
    %c0_137 = arith.constant 0 : index
    %c0_138 = arith.constant 0 : index
    %356 = vector.load %arg17[%c0_137, %c0_138] : memref<1x32xf32, #tpu.memory_space<vmem>>, vector<1x32xf32>
    %357 = vector.shape_cast %356 : vector<1x32xf32> to vector<32xf32>
    %c0_139 = arith.constant 0 : index
    %c0_140 = arith.constant 0 : index
    %358 = vector.load %arg18[%c0_139, %c0_140] : memref<1x32xf32, #tpu.memory_space<vmem>>, vector<1x32xf32>
    %359 = vector.shape_cast %358 : vector<1x32xf32> to vector<32xf32>
    %cst_141 = arith.constant dense<0.000000e+00> : vector<8xf32>
    %360 = vector.multi_reduction <add>, %355, %cst_141 [1] : vector<8x32xf32> to vector<8xf32>
    %361 = vector.shape_cast %360 : vector<8xf32> to vector<8x1xf32>
    %cst_142 = arith.constant 3.200000e+01 : f32
    %362 = vector.broadcast %cst_142 : f32 to vector<8x1xf32>
    %363 = arith.divf %361, %362 : vector<8x1xf32>
    %364 = vector.broadcast %363 : vector<8x1xf32> to vector<8x32xf32>
    %365 = arith.subf %355, %364 : vector<8x32xf32>
    %366 = arith.mulf %365, %365 : vector<8x32xf32>
    %cst_143 = arith.constant dense<0.000000e+00> : vector<8xf32>
    %367 = vector.multi_reduction <add>, %366, %cst_143 [1] : vector<8x32xf32> to vector<8xf32>
    %368 = vector.shape_cast %367 : vector<8xf32> to vector<8x1xf32>
    %cst_144 = arith.constant 0.0322580636 : f32
    %369 = vector.broadcast %cst_144 : f32 to vector<8x1xf32>
    %370 = arith.mulf %368, %369 : vector<8x1xf32>
    %371 = math.sqrt %370 : vector<8x1xf32>
    %cst_145 = arith.constant 9.99999997E-7 : f32
    %372 = vector.broadcast %cst_145 : f32 to vector<8x1xf32>
    %373 = arith.addf %371, %372 : vector<8x1xf32>
    %374 = tpu.reciprocal %373 {approx = true} : vector<8x1xf32> -> vector<8x1xf32>
    %375 = vector.shape_cast %357 : vector<32xf32> to vector<1x32xf32>
    %376 = vector.broadcast %375 : vector<1x32xf32> to vector<8x32xf32>
    %377 = arith.mulf %376, %365 : vector<8x32xf32>
    %378 = vector.broadcast %374 : vector<8x1xf32> to vector<8x32xf32>
    %379 = arith.mulf %377, %378 : vector<8x32xf32>
    %380 = vector.shape_cast %359 : vector<32xf32> to vector<1x32xf32>
    %381 = vector.broadcast %380 : vector<1x32xf32> to vector<8x32xf32>
    %382 = arith.addf %379, %381 : vector<8x32xf32>
    %c0_146 = arith.constant 0 : index
    %c0_147 = arith.constant 0 : index
    %c0_148 = arith.constant 0 : index
    %383 = vector.load %arg2[%c0_146, %c0_147, %c0_148] : memref<1x8x32xf32, #tpu.memory_space<vmem>>, vector<1x8x32xf32>
    %384 = vector.shape_cast %383 : vector<1x8x32xf32> to vector<8x32xf32>
    %c0_149 = arith.constant 0 : index
    %c0_150 = arith.constant 0 : index
    %385 = vector.load %arg19[%c0_149, %c0_150] : memref<2x32xf32, #tpu.memory_space<vmem>>, vector<1x32xf32>
    %386 = vector.shape_cast %385 : vector<1x32xf32> to vector<32xf32>
    %c0_151 = arith.constant 0 : index
    %c0_152 = arith.constant 0 : index
    %387 = vector.load %arg20[%c0_151, %c0_152] : memref<2x32xf32, #tpu.memory_space<vmem>>, vector<1x32xf32>
    %388 = vector.shape_cast %387 : vector<1x32xf32> to vector<32xf32>
    %cst_153 = arith.constant dense<0.000000e+00> : vector<8xf32>
    %389 = vector.multi_reduction <add>, %384, %cst_153 [1] : vector<8x32xf32> to vector<8xf32>
    %390 = vector.shape_cast %389 : vector<8xf32> to vector<8x1xf32>
    %cst_154 = arith.constant 3.200000e+01 : f32
    %391 = vector.broadcast %cst_154 : f32 to vector<8x1xf32>
    %392 = arith.divf %390, %391 : vector<8x1xf32>
    %393 = vector.broadcast %392 : vector<8x1xf32> to vector<8x32xf32>
    %394 = arith.subf %384, %393 : vector<8x32xf32>
    %395 = arith.mulf %394, %394 : vector<8x32xf32>
    %cst_155 = arith.constant dense<0.000000e+00> : vector<8xf32>
    %396 = vector.multi_reduction <add>, %395, %cst_155 [1] : vector<8x32xf32> to vector<8xf32>
    %397 = vector.shape_cast %396 : vector<8xf32> to vector<8x1xf32>
    %cst_156 = arith.constant 0.0322580636 : f32
    %398 = vector.broadcast %cst_156 : f32 to vector<8x1xf32>
    %399 = arith.mulf %397, %398 : vector<8x1xf32>
    %400 = math.sqrt %399 : vector<8x1xf32>
    %cst_157 = arith.constant 9.99999997E-7 : f32
    %401 = vector.broadcast %cst_157 : f32 to vector<8x1xf32>
    %402 = arith.addf %400, %401 : vector<8x1xf32>
    %403 = tpu.reciprocal %402 {approx = true} : vector<8x1xf32> -> vector<8x1xf32>
    %404 = vector.shape_cast %386 : vector<32xf32> to vector<1x32xf32>
    %405 = vector.broadcast %404 : vector<1x32xf32> to vector<8x32xf32>
    %406 = arith.mulf %405, %394 : vector<8x32xf32>
    %407 = vector.broadcast %403 : vector<8x1xf32> to vector<8x32xf32>
    %408 = arith.mulf %406, %407 : vector<8x32xf32>
    %409 = vector.shape_cast %388 : vector<32xf32> to vector<1x32xf32>
    %410 = vector.broadcast %409 : vector<1x32xf32> to vector<8x32xf32>
    %411 = arith.addf %408, %410 : vector<8x32xf32>
    %c0_158 = arith.constant 0 : index
    %c0_159 = arith.constant 0 : index
    %c0_160 = arith.constant 0 : index
    %412 = vector.load %arg21[%c0_158, %c0_159, %c0_160] : memref<2x32x96xf32, #tpu.memory_space<vmem>>, vector<1x32x96xf32>
    %413 = vector.shape_cast %412 : vector<1x32x96xf32> to vector<32x96xf32>
    %c0_161 = arith.constant 0 : index
    %c0_162 = arith.constant 0 : index
    %414 = vector.load %arg22[%c0_161, %c0_162] : memref<2x96xf32, #tpu.memory_space<vmem>>, vector<1x96xf32>
    %415 = vector.shape_cast %414 : vector<1x96xf32> to vector<96xf32>
    %c0_163 = arith.constant 0 : index
    %c0_164 = arith.constant 0 : index
    %c0_165 = arith.constant 0 : index
    %416 = vector.load %arg23[%c0_163, %c0_164, %c0_165] : memref<2x32x32xf32, #tpu.memory_space<vmem>>, vector<1x32x32xf32>
    %417 = vector.shape_cast %416 : vector<1x32x32xf32> to vector<32x32xf32>
    %c0_166 = arith.constant 0 : index
    %c0_167 = arith.constant 0 : index
    %418 = vector.load %arg24[%c0_166, %c0_167] : memref<2x32xf32, #tpu.memory_space<vmem>>, vector<1x32xf32>
    %419 = vector.shape_cast %418 : vector<1x32xf32> to vector<32xf32>
    %cst_168 = arith.constant dense<0.000000e+00> : vector<8x96xf32>
    %420 = tpu.matmul %411, %413, %cst_168 {dimension_numbers = #tpu.dot_dimension_numbers<[1], [0], [0], [1], [0, 0, 1, 1], [], []>} : vector<8x32xf32>, vector<32x96xf32>, vector<8x96xf32> -> vector<8x96xf32>
    %421 = vector.shape_cast %415 : vector<96xf32> to vector<1x96xf32>
    %422 = vector.broadcast %421 : vector<1x96xf32> to vector<8x96xf32>
    %423 = arith.addf %420, %422 : vector<8x96xf32>
    %424 = vector.extract_strided_slice %423 {offsets = [0, 0], sizes = [8, 32], strides = [1, 1]} : vector<8x96xf32> to vector<8x32xf32>
    %425 = vector.extract_strided_slice %423 {offsets = [0, 32], sizes = [8, 32], strides = [1, 1]} : vector<8x96xf32> to vector<8x32xf32>
    %426 = vector.extract_strided_slice %423 {offsets = [0, 64], sizes = [8, 32], strides = [1, 1]} : vector<8x96xf32> to vector<8x32xf32>
    %427 = vector.extract_strided_slice %424 {offsets = [0, 0], sizes = [8, 8], strides = [1, 1]} : vector<8x32xf32> to vector<8x8xf32>
    %428 = vector.extract_strided_slice %425 {offsets = [0, 0], sizes = [8, 8], strides = [1, 1]} : vector<8x32xf32> to vector<8x8xf32>
    %cst_169 = arith.constant dense<0.000000e+00> : vector<8x8xf32>
    %429 = tpu.matmul %427, %428, %cst_169 {dimension_numbers = #tpu.dot_dimension_numbers<[1], [1], [0], [0], [0, 0, 1, 0], [], []>} : vector<8x8xf32>, vector<8x8xf32>, vector<8x8xf32> -> vector<8x8xf32>
    %cst_170 = arith.constant 0.353553385 : f32
    %430 = vector.broadcast %cst_170 : f32 to vector<8x8xf32>
    %431 = arith.mulf %429, %430 : vector<8x8xf32>
    %432 = arith.addf %431, %13 : vector<8x8xf32>
    %cst_171 = arith.constant dense<0xFF800000> : vector<8xf32>
    %433 = vector.multi_reduction <maximumf>, %432, %cst_171 [1] : vector<8x8xf32> to vector<8xf32>
    %434 = vector.shape_cast %433 : vector<8xf32> to vector<8x1xf32>
    %435 = vector.broadcast %434 : vector<8x1xf32> to vector<8x8xf32>
    %436 = arith.subf %432, %435 : vector<8x8xf32>
    %437 = math.exp %436 : vector<8x8xf32>
    %cst_172 = arith.constant dense<0.000000e+00> : vector<8xf32>
    %438 = vector.multi_reduction <add>, %437, %cst_172 [1] : vector<8x8xf32> to vector<8xf32>
    %439 = vector.shape_cast %438 : vector<8xf32> to vector<8x1xf32>
    %440 = tpu.reciprocal %439 {approx = true} : vector<8x1xf32> -> vector<8x1xf32>
    %441 = vector.broadcast %440 : vector<8x1xf32> to vector<8x8xf32>
    %442 = arith.mulf %437, %441 : vector<8x8xf32>
    %443 = vector.extract_strided_slice %426 {offsets = [0, 0], sizes = [8, 8], strides = [1, 1]} : vector<8x32xf32> to vector<8x8xf32>
    %cst_173 = arith.constant dense<0.000000e+00> : vector<8x8xf32>
    %444 = tpu.matmul %442, %443, %cst_173 {dimension_numbers = #tpu.dot_dimension_numbers<[1], [0], [0], [1], [0, 0, 1, 1], [], []>} : vector<8x8xf32>, vector<8x8xf32>, vector<8x8xf32> -> vector<8x8xf32>
    %445 = vector.extract_strided_slice %424 {offsets = [0, 8], sizes = [8, 8], strides = [1, 1]} : vector<8x32xf32> to vector<8x8xf32>
    %446 = vector.extract_strided_slice %425 {offsets = [0, 8], sizes = [8, 8], strides = [1, 1]} : vector<8x32xf32> to vector<8x8xf32>
    %cst_174 = arith.constant dense<0.000000e+00> : vector<8x8xf32>
    %447 = tpu.matmul %445, %446, %cst_174 {dimension_numbers = #tpu.dot_dimension_numbers<[1], [1], [0], [0], [0, 0, 1, 0], [], []>} : vector<8x8xf32>, vector<8x8xf32>, vector<8x8xf32> -> vector<8x8xf32>
    %cst_175 = arith.constant 0.353553385 : f32
    %448 = vector.broadcast %cst_175 : f32 to vector<8x8xf32>
    %449 = arith.mulf %447, %448 : vector<8x8xf32>
    %450 = arith.addf %449, %13 : vector<8x8xf32>
    %cst_176 = arith.constant dense<0xFF800000> : vector<8xf32>
    %451 = vector.multi_reduction <maximumf>, %450, %cst_176 [1] : vector<8x8xf32> to vector<8xf32>
    %452 = vector.shape_cast %451 : vector<8xf32> to vector<8x1xf32>
    %453 = vector.broadcast %452 : vector<8x1xf32> to vector<8x8xf32>
    %454 = arith.subf %450, %453 : vector<8x8xf32>
    %455 = math.exp %454 : vector<8x8xf32>
    %cst_177 = arith.constant dense<0.000000e+00> : vector<8xf32>
    %456 = vector.multi_reduction <add>, %455, %cst_177 [1] : vector<8x8xf32> to vector<8xf32>
    %457 = vector.shape_cast %456 : vector<8xf32> to vector<8x1xf32>
    %458 = tpu.reciprocal %457 {approx = true} : vector<8x1xf32> -> vector<8x1xf32>
    %459 = vector.broadcast %458 : vector<8x1xf32> to vector<8x8xf32>
    %460 = arith.mulf %455, %459 : vector<8x8xf32>
    %461 = vector.extract_strided_slice %426 {offsets = [0, 8], sizes = [8, 8], strides = [1, 1]} : vector<8x32xf32> to vector<8x8xf32>
    %cst_178 = arith.constant dense<0.000000e+00> : vector<8x8xf32>
    %462 = tpu.matmul %460, %461, %cst_178 {dimension_numbers = #tpu.dot_dimension_numbers<[1], [0], [0], [1], [0, 0, 1, 1], [], []>} : vector<8x8xf32>, vector<8x8xf32>, vector<8x8xf32> -> vector<8x8xf32>
    %463 = vector.extract_strided_slice %424 {offsets = [0, 16], sizes = [8, 8], strides = [1, 1]} : vector<8x32xf32> to vector<8x8xf32>
    %464 = vector.extract_strided_slice %425 {offsets = [0, 16], sizes = [8, 8], strides = [1, 1]} : vector<8x32xf32> to vector<8x8xf32>
    %cst_179 = arith.constant dense<0.000000e+00> : vector<8x8xf32>
    %465 = tpu.matmul %463, %464, %cst_179 {dimension_numbers = #tpu.dot_dimension_numbers<[1], [1], [0], [0], [0, 0, 1, 0], [], []>} : vector<8x8xf32>, vector<8x8xf32>, vector<8x8xf32> -> vector<8x8xf32>
    %cst_180 = arith.constant 0.353553385 : f32
    %466 = vector.broadcast %cst_180 : f32 to vector<8x8xf32>
    %467 = arith.mulf %465, %466 : vector<8x8xf32>
    %468 = arith.addf %467, %13 : vector<8x8xf32>
    %cst_181 = arith.constant dense<0xFF800000> : vector<8xf32>
    %469 = vector.multi_reduction <maximumf>, %468, %cst_181 [1] : vector<8x8xf32> to vector<8xf32>
    %470 = vector.shape_cast %469 : vector<8xf32> to vector<8x1xf32>
    %471 = vector.broadcast %470 : vector<8x1xf32> to vector<8x8xf32>
    %472 = arith.subf %468, %471 : vector<8x8xf32>
    %473 = math.exp %472 : vector<8x8xf32>
    %cst_182 = arith.constant dense<0.000000e+00> : vector<8xf32>
    %474 = vector.multi_reduction <add>, %473, %cst_182 [1] : vector<8x8xf32> to vector<8xf32>
    %475 = vector.shape_cast %474 : vector<8xf32> to vector<8x1xf32>
    %476 = tpu.reciprocal %475 {approx = true} : vector<8x1xf32> -> vector<8x1xf32>
    %477 = vector.broadcast %476 : vector<8x1xf32> to vector<8x8xf32>
    %478 = arith.mulf %473, %477 : vector<8x8xf32>
    %479 = vector.extract_strided_slice %426 {offsets = [0, 16], sizes = [8, 8], strides = [1, 1]} : vector<8x32xf32> to vector<8x8xf32>
    %cst_183 = arith.constant dense<0.000000e+00> : vector<8x8xf32>
    %480 = tpu.matmul %478, %479, %cst_183 {dimension_numbers = #tpu.dot_dimension_numbers<[1], [0], [0], [1], [0, 0, 1, 1], [], []>} : vector<8x8xf32>, vector<8x8xf32>, vector<8x8xf32> -> vector<8x8xf32>
    %481 = vector.extract_strided_slice %424 {offsets = [0, 24], sizes = [8, 8], strides = [1, 1]} : vector<8x32xf32> to vector<8x8xf32>
    %482 = vector.extract_strided_slice %425 {offsets = [0, 24], sizes = [8, 8], strides = [1, 1]} : vector<8x32xf32> to vector<8x8xf32>
    %cst_184 = arith.constant dense<0.000000e+00> : vector<8x8xf32>
    %483 = tpu.matmul %481, %482, %cst_184 {dimension_numbers = #tpu.dot_dimension_numbers<[1], [1], [0], [0], [0, 0, 1, 0], [], []>} : vector<8x8xf32>, vector<8x8xf32>, vector<8x8xf32> -> vector<8x8xf32>
    %cst_185 = arith.constant 0.353553385 : f32
    %484 = vector.broadcast %cst_185 : f32 to vector<8x8xf32>
    %485 = arith.mulf %483, %484 : vector<8x8xf32>
    %486 = arith.addf %485, %13 : vector<8x8xf32>
    %cst_186 = arith.constant dense<0xFF800000> : vector<8xf32>
    %487 = vector.multi_reduction <maximumf>, %486, %cst_186 [1] : vector<8x8xf32> to vector<8xf32>
    %488 = vector.shape_cast %487 : vector<8xf32> to vector<8x1xf32>
    %489 = vector.broadcast %488 : vector<8x1xf32> to vector<8x8xf32>
    %490 = arith.subf %486, %489 : vector<8x8xf32>
    %491 = math.exp %490 : vector<8x8xf32>
    %cst_187 = arith.constant dense<0.000000e+00> : vector<8xf32>
    %492 = vector.multi_reduction <add>, %491, %cst_187 [1] : vector<8x8xf32> to vector<8xf32>
    %493 = vector.shape_cast %492 : vector<8xf32> to vector<8x1xf32>
    %494 = tpu.reciprocal %493 {approx = true} : vector<8x1xf32> -> vector<8x1xf32>
    %495 = vector.broadcast %494 : vector<8x1xf32> to vector<8x8xf32>
    %496 = arith.mulf %491, %495 : vector<8x8xf32>
    %497 = vector.extract_strided_slice %426 {offsets = [0, 24], sizes = [8, 8], strides = [1, 1]} : vector<8x32xf32> to vector<8x8xf32>
    %cst_188 = arith.constant dense<0.000000e+00> : vector<8x8xf32>
    %498 = tpu.matmul %496, %497, %cst_188 {dimension_numbers = #tpu.dot_dimension_numbers<[1], [0], [0], [1], [0, 0, 1, 1], [], []>} : vector<8x8xf32>, vector<8x8xf32>, vector<8x8xf32> -> vector<8x8xf32>
    %499 = tpu.concatenate %444, %462, %480, %498 in 1 : vector<8x8xf32>, vector<8x8xf32>, vector<8x8xf32>, vector<8x8xf32> -> vector<8x32xf32>
    %cst_189 = arith.constant dense<0.000000e+00> : vector<8x32xf32>
    %500 = tpu.matmul %499, %417, %cst_189 {dimension_numbers = #tpu.dot_dimension_numbers<[1], [0], [0], [1], [0, 0, 1, 1], [], []>} : vector<8x32xf32>, vector<32x32xf32>, vector<8x32xf32> -> vector<8x32xf32>
    %501 = vector.shape_cast %419 : vector<32xf32> to vector<1x32xf32>
    %502 = vector.broadcast %501 : vector<1x32xf32> to vector<8x32xf32>
    %503 = arith.addf %500, %502 : vector<8x32xf32>
    %504 = arith.addf %384, %503 : vector<8x32xf32>
    %c0_190 = arith.constant 0 : index
    %c0_191 = arith.constant 0 : index
    %505 = vector.load %arg25[%c0_190, %c0_191] : memref<2x32xf32, #tpu.memory_space<vmem>>, vector<1x32xf32>
    %506 = vector.shape_cast %505 : vector<1x32xf32> to vector<32xf32>
    %c0_192 = arith.constant 0 : index
    %c0_193 = arith.constant 0 : index
    %507 = vector.load %arg26[%c0_192, %c0_193] : memref<2x32xf32, #tpu.memory_space<vmem>>, vector<1x32xf32>
    %508 = vector.shape_cast %507 : vector<1x32xf32> to vector<32xf32>
    %cst_194 = arith.constant dense<0.000000e+00> : vector<8xf32>
    %509 = vector.multi_reduction <add>, %504, %cst_194 [1] : vector<8x32xf32> to vector<8xf32>
    %510 = vector.shape_cast %509 : vector<8xf32> to vector<8x1xf32>
    %cst_195 = arith.constant 3.200000e+01 : f32
    %511 = vector.broadcast %cst_195 : f32 to vector<8x1xf32>
    %512 = arith.divf %510, %511 : vector<8x1xf32>
    %513 = vector.broadcast %512 : vector<8x1xf32> to vector<8x32xf32>
    %514 = arith.subf %504, %513 : vector<8x32xf32>
    %515 = arith.mulf %514, %514 : vector<8x32xf32>
    %cst_196 = arith.constant dense<0.000000e+00> : vector<8xf32>
    %516 = vector.multi_reduction <add>, %515, %cst_196 [1] : vector<8x32xf32> to vector<8xf32>
    %517 = vector.shape_cast %516 : vector<8xf32> to vector<8x1xf32>
    %cst_197 = arith.constant 0.0322580636 : f32
    %518 = vector.broadcast %cst_197 : f32 to vector<8x1xf32>
    %519 = arith.mulf %517, %518 : vector<8x1xf32>
    %520 = math.sqrt %519 : vector<8x1xf32>
    %cst_198 = arith.constant 9.99999997E-7 : f32
    %521 = vector.broadcast %cst_198 : f32 to vector<8x1xf32>
    %522 = arith.addf %520, %521 : vector<8x1xf32>
    %523 = tpu.reciprocal %522 {approx = true} : vector<8x1xf32> -> vector<8x1xf32>
    %524 = vector.shape_cast %506 : vector<32xf32> to vector<1x32xf32>
    %525 = vector.broadcast %524 : vector<1x32xf32> to vector<8x32xf32>
    %526 = arith.mulf %525, %514 : vector<8x32xf32>
    %527 = vector.broadcast %523 : vector<8x1xf32> to vector<8x32xf32>
    %528 = arith.mulf %526, %527 : vector<8x32xf32>
    %529 = vector.shape_cast %508 : vector<32xf32> to vector<1x32xf32>
    %530 = vector.broadcast %529 : vector<1x32xf32> to vector<8x32xf32>
    %531 = arith.addf %528, %530 : vector<8x32xf32>
    %c0_199 = arith.constant 0 : index
    %c0_200 = arith.constant 0 : index
    %c0_201 = arith.constant 0 : index
    %532 = vector.load %arg27[%c0_199, %c0_200, %c0_201] : memref<2x32x32xf32, #tpu.memory_space<vmem>>, vector<1x32x32xf32>
    %533 = vector.shape_cast %532 : vector<1x32x32xf32> to vector<32x32xf32>
    %cst_202 = arith.constant dense<0.000000e+00> : vector<8x32xf32>
    %534 = tpu.matmul %531, %533, %cst_202 {dimension_numbers = #tpu.dot_dimension_numbers<[1], [0], [0], [1], [0, 0, 1, 1], [], []>} : vector<8x32xf32>, vector<32x32xf32>, vector<8x32xf32> -> vector<8x32xf32>
    %c0_203 = arith.constant 0 : index
    %c0_204 = arith.constant 0 : index
    %535 = vector.load %arg28[%c0_203, %c0_204] : memref<2x32xf32, #tpu.memory_space<vmem>>, vector<1x32xf32>
    %536 = vector.shape_cast %535 : vector<1x32xf32> to vector<32xf32>
    %537 = vector.shape_cast %536 : vector<32xf32> to vector<1x32xf32>
    %538 = vector.broadcast %537 : vector<1x32xf32> to vector<8x32xf32>
    %539 = arith.addf %534, %538 : vector<8x32xf32>
    %c0_205 = arith.constant 0 : index
    %c0_206 = arith.constant 0 : index
    %c0_207 = arith.constant 0 : index
    %540 = vector.load %arg29[%c0_205, %c0_206, %c0_207] : memref<2x32x64xf32, #tpu.memory_space<vmem>>, vector<1x32x64xf32>
    %541 = vector.shape_cast %540 : vector<1x32x64xf32> to vector<32x64xf32>
    %cst_208 = arith.constant dense<0.000000e+00> : vector<8x64xf32>
    %542 = tpu.matmul %382, %541, %cst_208 {dimension_numbers = #tpu.dot_dimension_numbers<[1], [0], [0], [1], [0, 0, 1, 1], [], []>} : vector<8x32xf32>, vector<32x64xf32>, vector<8x64xf32> -> vector<8x64xf32>
    %c0_209 = arith.constant 0 : index
    %c0_210 = arith.constant 0 : index
    %543 = vector.load %arg30[%c0_209, %c0_210] : memref<2x64xf32, #tpu.memory_space<vmem>>, vector<1x64xf32>
    %544 = vector.shape_cast %543 : vector<1x64xf32> to vector<64xf32>
    %545 = vector.shape_cast %544 : vector<64xf32> to vector<1x64xf32>
    %546 = vector.broadcast %545 : vector<1x64xf32> to vector<8x64xf32>
    %547 = arith.addf %542, %546 : vector<8x64xf32>
    %548 = vector.extract_strided_slice %547 {offsets = [0, 0], sizes = [8, 32], strides = [1, 1]} : vector<8x64xf32> to vector<8x32xf32>
    %549 = vector.extract_strided_slice %547 {offsets = [0, 32], sizes = [8, 32], strides = [1, 1]} : vector<8x64xf32> to vector<8x32xf32>
    %550 = vector.extract_strided_slice %539 {offsets = [0, 0], sizes = [8, 8], strides = [1, 1]} : vector<8x32xf32> to vector<8x8xf32>
    %551 = vector.extract_strided_slice %548 {offsets = [0, 0], sizes = [8, 8], strides = [1, 1]} : vector<8x32xf32> to vector<8x8xf32>
    %cst_211 = arith.constant dense<0.000000e+00> : vector<8x8xf32>
    %552 = tpu.matmul %550, %551, %cst_211 {dimension_numbers = #tpu.dot_dimension_numbers<[1], [1], [0], [0], [0, 0, 1, 0], [], []>} : vector<8x8xf32>, vector<8x8xf32>, vector<8x8xf32> -> vector<8x8xf32>
    %cst_212 = arith.constant 0.353553385 : f32
    %553 = vector.broadcast %cst_212 : f32 to vector<8x8xf32>
    %554 = arith.mulf %552, %553 : vector<8x8xf32>
    %555 = vector.broadcast %6 : vector<1x8xf32> to vector<8x8xf32>
    %556 = arith.addf %554, %555 : vector<8x8xf32>
    %cst_213 = arith.constant dense<0xFF800000> : vector<8xf32>
    %557 = vector.multi_reduction <maximumf>, %556, %cst_213 [1] : vector<8x8xf32> to vector<8xf32>
    %558 = vector.shape_cast %557 : vector<8xf32> to vector<8x1xf32>
    %559 = vector.broadcast %558 : vector<8x1xf32> to vector<8x8xf32>
    %560 = arith.subf %556, %559 : vector<8x8xf32>
    %561 = math.exp %560 : vector<8x8xf32>
    %cst_214 = arith.constant dense<0.000000e+00> : vector<8xf32>
    %562 = vector.multi_reduction <add>, %561, %cst_214 [1] : vector<8x8xf32> to vector<8xf32>
    %563 = vector.shape_cast %562 : vector<8xf32> to vector<8x1xf32>
    %564 = tpu.reciprocal %563 {approx = true} : vector<8x1xf32> -> vector<8x1xf32>
    %565 = vector.broadcast %564 : vector<8x1xf32> to vector<8x8xf32>
    %566 = arith.mulf %561, %565 : vector<8x8xf32>
    %567 = vector.extract_strided_slice %549 {offsets = [0, 0], sizes = [8, 8], strides = [1, 1]} : vector<8x32xf32> to vector<8x8xf32>
    %cst_215 = arith.constant dense<0.000000e+00> : vector<8x8xf32>
    %568 = tpu.matmul %566, %567, %cst_215 {dimension_numbers = #tpu.dot_dimension_numbers<[1], [0], [0], [1], [0, 0, 1, 1], [], []>} : vector<8x8xf32>, vector<8x8xf32>, vector<8x8xf32> -> vector<8x8xf32>
    %569 = vector.extract_strided_slice %539 {offsets = [0, 8], sizes = [8, 8], strides = [1, 1]} : vector<8x32xf32> to vector<8x8xf32>
    %570 = vector.extract_strided_slice %548 {offsets = [0, 8], sizes = [8, 8], strides = [1, 1]} : vector<8x32xf32> to vector<8x8xf32>
    %cst_216 = arith.constant dense<0.000000e+00> : vector<8x8xf32>
    %571 = tpu.matmul %569, %570, %cst_216 {dimension_numbers = #tpu.dot_dimension_numbers<[1], [1], [0], [0], [0, 0, 1, 0], [], []>} : vector<8x8xf32>, vector<8x8xf32>, vector<8x8xf32> -> vector<8x8xf32>
    %cst_217 = arith.constant 0.353553385 : f32
    %572 = vector.broadcast %cst_217 : f32 to vector<8x8xf32>
    %573 = arith.mulf %571, %572 : vector<8x8xf32>
    %574 = vector.broadcast %6 : vector<1x8xf32> to vector<8x8xf32>
    %575 = arith.addf %573, %574 : vector<8x8xf32>
    %cst_218 = arith.constant dense<0xFF800000> : vector<8xf32>
    %576 = vector.multi_reduction <maximumf>, %575, %cst_218 [1] : vector<8x8xf32> to vector<8xf32>
    %577 = vector.shape_cast %576 : vector<8xf32> to vector<8x1xf32>
    %578 = vector.broadcast %577 : vector<8x1xf32> to vector<8x8xf32>
    %579 = arith.subf %575, %578 : vector<8x8xf32>
    %580 = math.exp %579 : vector<8x8xf32>
    %cst_219 = arith.constant dense<0.000000e+00> : vector<8xf32>
    %581 = vector.multi_reduction <add>, %580, %cst_219 [1] : vector<8x8xf32> to vector<8xf32>
    %582 = vector.shape_cast %581 : vector<8xf32> to vector<8x1xf32>
    %583 = tpu.reciprocal %582 {approx = true} : vector<8x1xf32> -> vector<8x1xf32>
    %584 = vector.broadcast %583 : vector<8x1xf32> to vector<8x8xf32>
    %585 = arith.mulf %580, %584 : vector<8x8xf32>
    %586 = vector.extract_strided_slice %549 {offsets = [0, 8], sizes = [8, 8], strides = [1, 1]} : vector<8x32xf32> to vector<8x8xf32>
    %cst_220 = arith.constant dense<0.000000e+00> : vector<8x8xf32>
    %587 = tpu.matmul %585, %586, %cst_220 {dimension_numbers = #tpu.dot_dimension_numbers<[1], [0], [0], [1], [0, 0, 1, 1], [], []>} : vector<8x8xf32>, vector<8x8xf32>, vector<8x8xf32> -> vector<8x8xf32>
    %588 = vector.extract_strided_slice %539 {offsets = [0, 16], sizes = [8, 8], strides = [1, 1]} : vector<8x32xf32> to vector<8x8xf32>
    %589 = vector.extract_strided_slice %548 {offsets = [0, 16], sizes = [8, 8], strides = [1, 1]} : vector<8x32xf32> to vector<8x8xf32>
    %cst_221 = arith.constant dense<0.000000e+00> : vector<8x8xf32>
    %590 = tpu.matmul %588, %589, %cst_221 {dimension_numbers = #tpu.dot_dimension_numbers<[1], [1], [0], [0], [0, 0, 1, 0], [], []>} : vector<8x8xf32>, vector<8x8xf32>, vector<8x8xf32> -> vector<8x8xf32>
    %cst_222 = arith.constant 0.353553385 : f32
    %591 = vector.broadcast %cst_222 : f32 to vector<8x8xf32>
    %592 = arith.mulf %590, %591 : vector<8x8xf32>
    %593 = vector.broadcast %6 : vector<1x8xf32> to vector<8x8xf32>
    %594 = arith.addf %592, %593 : vector<8x8xf32>
    %cst_223 = arith.constant dense<0xFF800000> : vector<8xf32>
    %595 = vector.multi_reduction <maximumf>, %594, %cst_223 [1] : vector<8x8xf32> to vector<8xf32>
    %596 = vector.shape_cast %595 : vector<8xf32> to vector<8x1xf32>
    %597 = vector.broadcast %596 : vector<8x1xf32> to vector<8x8xf32>
    %598 = arith.subf %594, %597 : vector<8x8xf32>
    %599 = math.exp %598 : vector<8x8xf32>
    %cst_224 = arith.constant dense<0.000000e+00> : vector<8xf32>
    %600 = vector.multi_reduction <add>, %599, %cst_224 [1] : vector<8x8xf32> to vector<8xf32>
    %601 = vector.shape_cast %600 : vector<8xf32> to vector<8x1xf32>
    %602 = tpu.reciprocal %601 {approx = true} : vector<8x1xf32> -> vector<8x1xf32>
    %603 = vector.broadcast %602 : vector<8x1xf32> to vector<8x8xf32>
    %604 = arith.mulf %599, %603 : vector<8x8xf32>
    %605 = vector.extract_strided_slice %549 {offsets = [0, 16], sizes = [8, 8], strides = [1, 1]} : vector<8x32xf32> to vector<8x8xf32>
    %cst_225 = arith.constant dense<0.000000e+00> : vector<8x8xf32>
    %606 = tpu.matmul %604, %605, %cst_225 {dimension_numbers = #tpu.dot_dimension_numbers<[1], [0], [0], [1], [0, 0, 1, 1], [], []>} : vector<8x8xf32>, vector<8x8xf32>, vector<8x8xf32> -> vector<8x8xf32>
    %607 = vector.extract_strided_slice %539 {offsets = [0, 24], sizes = [8, 8], strides = [1, 1]} : vector<8x32xf32> to vector<8x8xf32>
    %608 = vector.extract_strided_slice %548 {offsets = [0, 24], sizes = [8, 8], strides = [1, 1]} : vector<8x32xf32> to vector<8x8xf32>
    %cst_226 = arith.constant dense<0.000000e+00> : vector<8x8xf32>
    %609 = tpu.matmul %607, %608, %cst_226 {dimension_numbers = #tpu.dot_dimension_numbers<[1], [1], [0], [0], [0, 0, 1, 0], [], []>} : vector<8x8xf32>, vector<8x8xf32>, vector<8x8xf32> -> vector<8x8xf32>
    %cst_227 = arith.constant 0.353553385 : f32
    %610 = vector.broadcast %cst_227 : f32 to vector<8x8xf32>
    %611 = arith.mulf %609, %610 : vector<8x8xf32>
    %612 = vector.broadcast %6 : vector<1x8xf32> to vector<8x8xf32>
    %613 = arith.addf %611, %612 : vector<8x8xf32>
    %cst_228 = arith.constant dense<0xFF800000> : vector<8xf32>
    %614 = vector.multi_reduction <maximumf>, %613, %cst_228 [1] : vector<8x8xf32> to vector<8xf32>
    %615 = vector.shape_cast %614 : vector<8xf32> to vector<8x1xf32>
    %616 = vector.broadcast %615 : vector<8x1xf32> to vector<8x8xf32>
    %617 = arith.subf %613, %616 : vector<8x8xf32>
    %618 = math.exp %617 : vector<8x8xf32>
    %cst_229 = arith.constant dense<0.000000e+00> : vector<8xf32>
    %619 = vector.multi_reduction <add>, %618, %cst_229 [1] : vector<8x8xf32> to vector<8xf32>
    %620 = vector.shape_cast %619 : vector<8xf32> to vector<8x1xf32>
    %621 = tpu.reciprocal %620 {approx = true} : vector<8x1xf32> -> vector<8x1xf32>
    %622 = vector.broadcast %621 : vector<8x1xf32> to vector<8x8xf32>
    %623 = arith.mulf %618, %622 : vector<8x8xf32>
    %624 = vector.extract_strided_slice %549 {offsets = [0, 24], sizes = [8, 8], strides = [1, 1]} : vector<8x32xf32> to vector<8x8xf32>
    %cst_230 = arith.constant dense<0.000000e+00> : vector<8x8xf32>
    %625 = tpu.matmul %623, %624, %cst_230 {dimension_numbers = #tpu.dot_dimension_numbers<[1], [0], [0], [1], [0, 0, 1, 1], [], []>} : vector<8x8xf32>, vector<8x8xf32>, vector<8x8xf32> -> vector<8x8xf32>
    %626 = tpu.concatenate %568, %587, %606, %625 in 1 : vector<8x8xf32>, vector<8x8xf32>, vector<8x8xf32>, vector<8x8xf32> -> vector<8x32xf32>
    %c0_231 = arith.constant 0 : index
    %c0_232 = arith.constant 0 : index
    %c0_233 = arith.constant 0 : index
    %627 = vector.load %arg31[%c0_231, %c0_232, %c0_233] : memref<2x32x32xf32, #tpu.memory_space<vmem>>, vector<1x32x32xf32>
    %628 = vector.shape_cast %627 : vector<1x32x32xf32> to vector<32x32xf32>
    %cst_234 = arith.constant dense<0.000000e+00> : vector<8x32xf32>
    %629 = tpu.matmul %626, %628, %cst_234 {dimension_numbers = #tpu.dot_dimension_numbers<[1], [0], [0], [1], [0, 0, 1, 1], [], []>} : vector<8x32xf32>, vector<32x32xf32>, vector<8x32xf32> -> vector<8x32xf32>
    %c0_235 = arith.constant 0 : index
    %c0_236 = arith.constant 0 : index
    %630 = vector.load %arg32[%c0_235, %c0_236] : memref<2x32xf32, #tpu.memory_space<vmem>>, vector<1x32xf32>
    %631 = vector.shape_cast %630 : vector<1x32xf32> to vector<32xf32>
    %632 = vector.shape_cast %631 : vector<32xf32> to vector<1x32xf32>
    %633 = vector.broadcast %632 : vector<1x32xf32> to vector<8x32xf32>
    %634 = arith.addf %629, %633 : vector<8x32xf32>
    %635 = arith.addf %504, %634 : vector<8x32xf32>
    %c0_237 = arith.constant 0 : index
    %c0_238 = arith.constant 0 : index
    %636 = vector.load %arg33[%c0_237, %c0_238] : memref<2x32xf32, #tpu.memory_space<vmem>>, vector<1x32xf32>
    %637 = vector.shape_cast %636 : vector<1x32xf32> to vector<32xf32>
    %c0_239 = arith.constant 0 : index
    %c0_240 = arith.constant 0 : index
    %638 = vector.load %arg34[%c0_239, %c0_240] : memref<2x32xf32, #tpu.memory_space<vmem>>, vector<1x32xf32>
    %639 = vector.shape_cast %638 : vector<1x32xf32> to vector<32xf32>
    %cst_241 = arith.constant dense<0.000000e+00> : vector<8xf32>
    %640 = vector.multi_reduction <add>, %635, %cst_241 [1] : vector<8x32xf32> to vector<8xf32>
    %641 = vector.shape_cast %640 : vector<8xf32> to vector<8x1xf32>
    %cst_242 = arith.constant 3.200000e+01 : f32
    %642 = vector.broadcast %cst_242 : f32 to vector<8x1xf32>
    %643 = arith.divf %641, %642 : vector<8x1xf32>
    %644 = vector.broadcast %643 : vector<8x1xf32> to vector<8x32xf32>
    %645 = arith.subf %635, %644 : vector<8x32xf32>
    %646 = arith.mulf %645, %645 : vector<8x32xf32>
    %cst_243 = arith.constant dense<0.000000e+00> : vector<8xf32>
    %647 = vector.multi_reduction <add>, %646, %cst_243 [1] : vector<8x32xf32> to vector<8xf32>
    %648 = vector.shape_cast %647 : vector<8xf32> to vector<8x1xf32>
    %cst_244 = arith.constant 0.0322580636 : f32
    %649 = vector.broadcast %cst_244 : f32 to vector<8x1xf32>
    %650 = arith.mulf %648, %649 : vector<8x1xf32>
    %651 = math.sqrt %650 : vector<8x1xf32>
    %cst_245 = arith.constant 9.99999997E-7 : f32
    %652 = vector.broadcast %cst_245 : f32 to vector<8x1xf32>
    %653 = arith.addf %651, %652 : vector<8x1xf32>
    %654 = tpu.reciprocal %653 {approx = true} : vector<8x1xf32> -> vector<8x1xf32>
    %655 = vector.shape_cast %637 : vector<32xf32> to vector<1x32xf32>
    %656 = vector.broadcast %655 : vector<1x32xf32> to vector<8x32xf32>
    %657 = arith.mulf %656, %645 : vector<8x32xf32>
    %658 = vector.broadcast %654 : vector<8x1xf32> to vector<8x32xf32>
    %659 = arith.mulf %657, %658 : vector<8x32xf32>
    %660 = vector.shape_cast %639 : vector<32xf32> to vector<1x32xf32>
    %661 = vector.broadcast %660 : vector<1x32xf32> to vector<8x32xf32>
    %662 = arith.addf %659, %661 : vector<8x32xf32>
    %c0_246 = arith.constant 0 : index
    %c0_247 = arith.constant 0 : index
    %c0_248 = arith.constant 0 : index
    %663 = vector.load %arg35[%c0_246, %c0_247, %c0_248] : memref<2x32x64xf32, #tpu.memory_space<vmem>>, vector<1x32x64xf32>
    %664 = vector.shape_cast %663 : vector<1x32x64xf32> to vector<32x64xf32>
    %c0_249 = arith.constant 0 : index
    %c0_250 = arith.constant 0 : index
    %665 = vector.load %arg36[%c0_249, %c0_250] : memref<2x64xf32, #tpu.memory_space<vmem>>, vector<1x64xf32>
    %666 = vector.shape_cast %665 : vector<1x64xf32> to vector<64xf32>
    %c0_251 = arith.constant 0 : index
    %c0_252 = arith.constant 0 : index
    %c0_253 = arith.constant 0 : index
    %667 = vector.load %arg37[%c0_251, %c0_252, %c0_253] : memref<2x64x32xf32, #tpu.memory_space<vmem>>, vector<1x64x32xf32>
    %668 = vector.shape_cast %667 : vector<1x64x32xf32> to vector<64x32xf32>
    %c0_254 = arith.constant 0 : index
    %c0_255 = arith.constant 0 : index
    %669 = vector.load %arg38[%c0_254, %c0_255] : memref<2x32xf32, #tpu.memory_space<vmem>>, vector<1x32xf32>
    %670 = vector.shape_cast %669 : vector<1x32xf32> to vector<32xf32>
    %cst_256 = arith.constant dense<0.000000e+00> : vector<8x64xf32>
    %671 = tpu.matmul %662, %664, %cst_256 {dimension_numbers = #tpu.dot_dimension_numbers<[1], [0], [0], [1], [0, 0, 1, 1], [], []>} : vector<8x32xf32>, vector<32x64xf32>, vector<8x64xf32> -> vector<8x64xf32>
    %672 = vector.shape_cast %666 : vector<64xf32> to vector<1x64xf32>
    %673 = vector.broadcast %672 : vector<1x64xf32> to vector<8x64xf32>
    %674 = arith.addf %671, %673 : vector<8x64xf32>
    %cst_257 = arith.constant 0.000000e+00 : f32
    %675 = vector.broadcast %cst_257 : f32 to vector<8x64xf32>
    %676 = arith.maximumf %674, %675 : vector<8x64xf32>
    %cst_258 = arith.constant dense<0.000000e+00> : vector<8x32xf32>
    %677 = tpu.matmul %676, %668, %cst_258 {dimension_numbers = #tpu.dot_dimension_numbers<[1], [0], [0], [1], [0, 0, 1, 1], [], []>} : vector<8x64xf32>, vector<64x32xf32>, vector<8x32xf32> -> vector<8x32xf32>
    %678 = vector.shape_cast %670 : vector<32xf32> to vector<1x32xf32>
    %679 = vector.broadcast %678 : vector<1x32xf32> to vector<8x32xf32>
    %680 = arith.addf %677, %679 : vector<8x32xf32>
    %681 = arith.addf %635, %680 : vector<8x32xf32>
    %c1_259 = arith.constant 1 : index
    %c0_260 = arith.constant 0 : index
    %682 = vector.load %arg19[%c1_259, %c0_260] : memref<2x32xf32, #tpu.memory_space<vmem>>, vector<1x32xf32>
    %683 = vector.shape_cast %682 : vector<1x32xf32> to vector<32xf32>
    %c1_261 = arith.constant 1 : index
    %c0_262 = arith.constant 0 : index
    %684 = vector.load %arg20[%c1_261, %c0_262] : memref<2x32xf32, #tpu.memory_space<vmem>>, vector<1x32xf32>
    %685 = vector.shape_cast %684 : vector<1x32xf32> to vector<32xf32>
    %cst_263 = arith.constant dense<0.000000e+00> : vector<8xf32>
    %686 = vector.multi_reduction <add>, %681, %cst_263 [1] : vector<8x32xf32> to vector<8xf32>
    %687 = vector.shape_cast %686 : vector<8xf32> to vector<8x1xf32>
    %cst_264 = arith.constant 3.200000e+01 : f32
    %688 = vector.broadcast %cst_264 : f32 to vector<8x1xf32>
    %689 = arith.divf %687, %688 : vector<8x1xf32>
    %690 = vector.broadcast %689 : vector<8x1xf32> to vector<8x32xf32>
    %691 = arith.subf %681, %690 : vector<8x32xf32>
    %692 = arith.mulf %691, %691 : vector<8x32xf32>
    %cst_265 = arith.constant dense<0.000000e+00> : vector<8xf32>
    %693 = vector.multi_reduction <add>, %692, %cst_265 [1] : vector<8x32xf32> to vector<8xf32>
    %694 = vector.shape_cast %693 : vector<8xf32> to vector<8x1xf32>
    %cst_266 = arith.constant 0.0322580636 : f32
    %695 = vector.broadcast %cst_266 : f32 to vector<8x1xf32>
    %696 = arith.mulf %694, %695 : vector<8x1xf32>
    %697 = math.sqrt %696 : vector<8x1xf32>
    %cst_267 = arith.constant 9.99999997E-7 : f32
    %698 = vector.broadcast %cst_267 : f32 to vector<8x1xf32>
    %699 = arith.addf %697, %698 : vector<8x1xf32>
    %700 = tpu.reciprocal %699 {approx = true} : vector<8x1xf32> -> vector<8x1xf32>
    %701 = vector.shape_cast %683 : vector<32xf32> to vector<1x32xf32>
    %702 = vector.broadcast %701 : vector<1x32xf32> to vector<8x32xf32>
    %703 = arith.mulf %702, %691 : vector<8x32xf32>
    %704 = vector.broadcast %700 : vector<8x1xf32> to vector<8x32xf32>
    %705 = arith.mulf %703, %704 : vector<8x32xf32>
    %706 = vector.shape_cast %685 : vector<32xf32> to vector<1x32xf32>
    %707 = vector.broadcast %706 : vector<1x32xf32> to vector<8x32xf32>
    %708 = arith.addf %705, %707 : vector<8x32xf32>
    %c1_268 = arith.constant 1 : index
    %c0_269 = arith.constant 0 : index
    %c0_270 = arith.constant 0 : index
    %709 = vector.load %arg21[%c1_268, %c0_269, %c0_270] : memref<2x32x96xf32, #tpu.memory_space<vmem>>, vector<1x32x96xf32>
    %710 = vector.shape_cast %709 : vector<1x32x96xf32> to vector<32x96xf32>
    %c1_271 = arith.constant 1 : index
    %c0_272 = arith.constant 0 : index
    %711 = vector.load %arg22[%c1_271, %c0_272] : memref<2x96xf32, #tpu.memory_space<vmem>>, vector<1x96xf32>
    %712 = vector.shape_cast %711 : vector<1x96xf32> to vector<96xf32>
    %c1_273 = arith.constant 1 : index
    %c0_274 = arith.constant 0 : index
    %c0_275 = arith.constant 0 : index
    %713 = vector.load %arg23[%c1_273, %c0_274, %c0_275] : memref<2x32x32xf32, #tpu.memory_space<vmem>>, vector<1x32x32xf32>
    %714 = vector.shape_cast %713 : vector<1x32x32xf32> to vector<32x32xf32>
    %c1_276 = arith.constant 1 : index
    %c0_277 = arith.constant 0 : index
    %715 = vector.load %arg24[%c1_276, %c0_277] : memref<2x32xf32, #tpu.memory_space<vmem>>, vector<1x32xf32>
    %716 = vector.shape_cast %715 : vector<1x32xf32> to vector<32xf32>
    %cst_278 = arith.constant dense<0.000000e+00> : vector<8x96xf32>
    %717 = tpu.matmul %708, %710, %cst_278 {dimension_numbers = #tpu.dot_dimension_numbers<[1], [0], [0], [1], [0, 0, 1, 1], [], []>} : vector<8x32xf32>, vector<32x96xf32>, vector<8x96xf32> -> vector<8x96xf32>
    %718 = vector.shape_cast %712 : vector<96xf32> to vector<1x96xf32>
    %719 = vector.broadcast %718 : vector<1x96xf32> to vector<8x96xf32>
    %720 = arith.addf %717, %719 : vector<8x96xf32>
    %721 = vector.extract_strided_slice %720 {offsets = [0, 0], sizes = [8, 32], strides = [1, 1]} : vector<8x96xf32> to vector<8x32xf32>
    %722 = vector.extract_strided_slice %720 {offsets = [0, 32], sizes = [8, 32], strides = [1, 1]} : vector<8x96xf32> to vector<8x32xf32>
    %723 = vector.extract_strided_slice %720 {offsets = [0, 64], sizes = [8, 32], strides = [1, 1]} : vector<8x96xf32> to vector<8x32xf32>
    %724 = vector.extract_strided_slice %721 {offsets = [0, 0], sizes = [8, 8], strides = [1, 1]} : vector<8x32xf32> to vector<8x8xf32>
    %725 = vector.extract_strided_slice %722 {offsets = [0, 0], sizes = [8, 8], strides = [1, 1]} : vector<8x32xf32> to vector<8x8xf32>
    %cst_279 = arith.constant dense<0.000000e+00> : vector<8x8xf32>
    %726 = tpu.matmul %724, %725, %cst_279 {dimension_numbers = #tpu.dot_dimension_numbers<[1], [1], [0], [0], [0, 0, 1, 0], [], []>} : vector<8x8xf32>, vector<8x8xf32>, vector<8x8xf32> -> vector<8x8xf32>
    %cst_280 = arith.constant 0.353553385 : f32
    %727 = vector.broadcast %cst_280 : f32 to vector<8x8xf32>
    %728 = arith.mulf %726, %727 : vector<8x8xf32>
    %729 = arith.addf %728, %13 : vector<8x8xf32>
    %cst_281 = arith.constant dense<0xFF800000> : vector<8xf32>
    %730 = vector.multi_reduction <maximumf>, %729, %cst_281 [1] : vector<8x8xf32> to vector<8xf32>
    %731 = vector.shape_cast %730 : vector<8xf32> to vector<8x1xf32>
    %732 = vector.broadcast %731 : vector<8x1xf32> to vector<8x8xf32>
    %733 = arith.subf %729, %732 : vector<8x8xf32>
    %734 = math.exp %733 : vector<8x8xf32>
    %cst_282 = arith.constant dense<0.000000e+00> : vector<8xf32>
    %735 = vector.multi_reduction <add>, %734, %cst_282 [1] : vector<8x8xf32> to vector<8xf32>
    %736 = vector.shape_cast %735 : vector<8xf32> to vector<8x1xf32>
    %737 = tpu.reciprocal %736 {approx = true} : vector<8x1xf32> -> vector<8x1xf32>
    %738 = vector.broadcast %737 : vector<8x1xf32> to vector<8x8xf32>
    %739 = arith.mulf %734, %738 : vector<8x8xf32>
    %740 = vector.extract_strided_slice %723 {offsets = [0, 0], sizes = [8, 8], strides = [1, 1]} : vector<8x32xf32> to vector<8x8xf32>
    %cst_283 = arith.constant dense<0.000000e+00> : vector<8x8xf32>
    %741 = tpu.matmul %739, %740, %cst_283 {dimension_numbers = #tpu.dot_dimension_numbers<[1], [0], [0], [1], [0, 0, 1, 1], [], []>} : vector<8x8xf32>, vector<8x8xf32>, vector<8x8xf32> -> vector<8x8xf32>
    %742 = vector.extract_strided_slice %721 {offsets = [0, 8], sizes = [8, 8], strides = [1, 1]} : vector<8x32xf32> to vector<8x8xf32>
    %743 = vector.extract_strided_slice %722 {offsets = [0, 8], sizes = [8, 8], strides = [1, 1]} : vector<8x32xf32> to vector<8x8xf32>
    %cst_284 = arith.constant dense<0.000000e+00> : vector<8x8xf32>
    %744 = tpu.matmul %742, %743, %cst_284 {dimension_numbers = #tpu.dot_dimension_numbers<[1], [1], [0], [0], [0, 0, 1, 0], [], []>} : vector<8x8xf32>, vector<8x8xf32>, vector<8x8xf32> -> vector<8x8xf32>
    %cst_285 = arith.constant 0.353553385 : f32
    %745 = vector.broadcast %cst_285 : f32 to vector<8x8xf32>
    %746 = arith.mulf %744, %745 : vector<8x8xf32>
    %747 = arith.addf %746, %13 : vector<8x8xf32>
    %cst_286 = arith.constant dense<0xFF800000> : vector<8xf32>
    %748 = vector.multi_reduction <maximumf>, %747, %cst_286 [1] : vector<8x8xf32> to vector<8xf32>
    %749 = vector.shape_cast %748 : vector<8xf32> to vector<8x1xf32>
    %750 = vector.broadcast %749 : vector<8x1xf32> to vector<8x8xf32>
    %751 = arith.subf %747, %750 : vector<8x8xf32>
    %752 = math.exp %751 : vector<8x8xf32>
    %cst_287 = arith.constant dense<0.000000e+00> : vector<8xf32>
    %753 = vector.multi_reduction <add>, %752, %cst_287 [1] : vector<8x8xf32> to vector<8xf32>
    %754 = vector.shape_cast %753 : vector<8xf32> to vector<8x1xf32>
    %755 = tpu.reciprocal %754 {approx = true} : vector<8x1xf32> -> vector<8x1xf32>
    %756 = vector.broadcast %755 : vector<8x1xf32> to vector<8x8xf32>
    %757 = arith.mulf %752, %756 : vector<8x8xf32>
    %758 = vector.extract_strided_slice %723 {offsets = [0, 8], sizes = [8, 8], strides = [1, 1]} : vector<8x32xf32> to vector<8x8xf32>
    %cst_288 = arith.constant dense<0.000000e+00> : vector<8x8xf32>
    %759 = tpu.matmul %757, %758, %cst_288 {dimension_numbers = #tpu.dot_dimension_numbers<[1], [0], [0], [1], [0, 0, 1, 1], [], []>} : vector<8x8xf32>, vector<8x8xf32>, vector<8x8xf32> -> vector<8x8xf32>
    %760 = vector.extract_strided_slice %721 {offsets = [0, 16], sizes = [8, 8], strides = [1, 1]} : vector<8x32xf32> to vector<8x8xf32>
    %761 = vector.extract_strided_slice %722 {offsets = [0, 16], sizes = [8, 8], strides = [1, 1]} : vector<8x32xf32> to vector<8x8xf32>
    %cst_289 = arith.constant dense<0.000000e+00> : vector<8x8xf32>
    %762 = tpu.matmul %760, %761, %cst_289 {dimension_numbers = #tpu.dot_dimension_numbers<[1], [1], [0], [0], [0, 0, 1, 0], [], []>} : vector<8x8xf32>, vector<8x8xf32>, vector<8x8xf32> -> vector<8x8xf32>
    %cst_290 = arith.constant 0.353553385 : f32
    %763 = vector.broadcast %cst_290 : f32 to vector<8x8xf32>
    %764 = arith.mulf %762, %763 : vector<8x8xf32>
    %765 = arith.addf %764, %13 : vector<8x8xf32>
    %cst_291 = arith.constant dense<0xFF800000> : vector<8xf32>
    %766 = vector.multi_reduction <maximumf>, %765, %cst_291 [1] : vector<8x8xf32> to vector<8xf32>
    %767 = vector.shape_cast %766 : vector<8xf32> to vector<8x1xf32>
    %768 = vector.broadcast %767 : vector<8x1xf32> to vector<8x8xf32>
    %769 = arith.subf %765, %768 : vector<8x8xf32>
    %770 = math.exp %769 : vector<8x8xf32>
    %cst_292 = arith.constant dense<0.000000e+00> : vector<8xf32>
    %771 = vector.multi_reduction <add>, %770, %cst_292 [1] : vector<8x8xf32> to vector<8xf32>
    %772 = vector.shape_cast %771 : vector<8xf32> to vector<8x1xf32>
    %773 = tpu.reciprocal %772 {approx = true} : vector<8x1xf32> -> vector<8x1xf32>
    %774 = vector.broadcast %773 : vector<8x1xf32> to vector<8x8xf32>
    %775 = arith.mulf %770, %774 : vector<8x8xf32>
    %776 = vector.extract_strided_slice %723 {offsets = [0, 16], sizes = [8, 8], strides = [1, 1]} : vector<8x32xf32> to vector<8x8xf32>
    %cst_293 = arith.constant dense<0.000000e+00> : vector<8x8xf32>
    %777 = tpu.matmul %775, %776, %cst_293 {dimension_numbers = #tpu.dot_dimension_numbers<[1], [0], [0], [1], [0, 0, 1, 1], [], []>} : vector<8x8xf32>, vector<8x8xf32>, vector<8x8xf32> -> vector<8x8xf32>
    %778 = vector.extract_strided_slice %721 {offsets = [0, 24], sizes = [8, 8], strides = [1, 1]} : vector<8x32xf32> to vector<8x8xf32>
    %779 = vector.extract_strided_slice %722 {offsets = [0, 24], sizes = [8, 8], strides = [1, 1]} : vector<8x32xf32> to vector<8x8xf32>
    %cst_294 = arith.constant dense<0.000000e+00> : vector<8x8xf32>
    %780 = tpu.matmul %778, %779, %cst_294 {dimension_numbers = #tpu.dot_dimension_numbers<[1], [1], [0], [0], [0, 0, 1, 0], [], []>} : vector<8x8xf32>, vector<8x8xf32>, vector<8x8xf32> -> vector<8x8xf32>
    %cst_295 = arith.constant 0.353553385 : f32
    %781 = vector.broadcast %cst_295 : f32 to vector<8x8xf32>
    %782 = arith.mulf %780, %781 : vector<8x8xf32>
    %783 = arith.addf %782, %13 : vector<8x8xf32>
    %cst_296 = arith.constant dense<0xFF800000> : vector<8xf32>
    %784 = vector.multi_reduction <maximumf>, %783, %cst_296 [1] : vector<8x8xf32> to vector<8xf32>
    %785 = vector.shape_cast %784 : vector<8xf32> to vector<8x1xf32>
    %786 = vector.broadcast %785 : vector<8x1xf32> to vector<8x8xf32>
    %787 = arith.subf %783, %786 : vector<8x8xf32>
    %788 = math.exp %787 : vector<8x8xf32>
    %cst_297 = arith.constant dense<0.000000e+00> : vector<8xf32>
    %789 = vector.multi_reduction <add>, %788, %cst_297 [1] : vector<8x8xf32> to vector<8xf32>
    %790 = vector.shape_cast %789 : vector<8xf32> to vector<8x1xf32>
    %791 = tpu.reciprocal %790 {approx = true} : vector<8x1xf32> -> vector<8x1xf32>
    %792 = vector.broadcast %791 : vector<8x1xf32> to vector<8x8xf32>
    %793 = arith.mulf %788, %792 : vector<8x8xf32>
    %794 = vector.extract_strided_slice %723 {offsets = [0, 24], sizes = [8, 8], strides = [1, 1]} : vector<8x32xf32> to vector<8x8xf32>
    %cst_298 = arith.constant dense<0.000000e+00> : vector<8x8xf32>
    %795 = tpu.matmul %793, %794, %cst_298 {dimension_numbers = #tpu.dot_dimension_numbers<[1], [0], [0], [1], [0, 0, 1, 1], [], []>} : vector<8x8xf32>, vector<8x8xf32>, vector<8x8xf32> -> vector<8x8xf32>
    %796 = tpu.concatenate %741, %759, %777, %795 in 1 : vector<8x8xf32>, vector<8x8xf32>, vector<8x8xf32>, vector<8x8xf32> -> vector<8x32xf32>
    %cst_299 = arith.constant dense<0.000000e+00> : vector<8x32xf32>
    %797 = tpu.matmul %796, %714, %cst_299 {dimension_numbers = #tpu.dot_dimension_numbers<[1], [0], [0], [1], [0, 0, 1, 1], [], []>} : vector<8x32xf32>, vector<32x32xf32>, vector<8x32xf32> -> vector<8x32xf32>
    %798 = vector.shape_cast %716 : vector<32xf32> to vector<1x32xf32>
    %799 = vector.broadcast %798 : vector<1x32xf32> to vector<8x32xf32>
    %800 = arith.addf %797, %799 : vector<8x32xf32>
    %801 = arith.addf %681, %800 : vector<8x32xf32>
    %c1_300 = arith.constant 1 : index
    %c0_301 = arith.constant 0 : index
    %802 = vector.load %arg25[%c1_300, %c0_301] : memref<2x32xf32, #tpu.memory_space<vmem>>, vector<1x32xf32>
    %803 = vector.shape_cast %802 : vector<1x32xf32> to vector<32xf32>
    %c1_302 = arith.constant 1 : index
    %c0_303 = arith.constant 0 : index
    %804 = vector.load %arg26[%c1_302, %c0_303] : memref<2x32xf32, #tpu.memory_space<vmem>>, vector<1x32xf32>
    %805 = vector.shape_cast %804 : vector<1x32xf32> to vector<32xf32>
    %cst_304 = arith.constant dense<0.000000e+00> : vector<8xf32>
    %806 = vector.multi_reduction <add>, %801, %cst_304 [1] : vector<8x32xf32> to vector<8xf32>
    %807 = vector.shape_cast %806 : vector<8xf32> to vector<8x1xf32>
    %cst_305 = arith.constant 3.200000e+01 : f32
    %808 = vector.broadcast %cst_305 : f32 to vector<8x1xf32>
    %809 = arith.divf %807, %808 : vector<8x1xf32>
    %810 = vector.broadcast %809 : vector<8x1xf32> to vector<8x32xf32>
    %811 = arith.subf %801, %810 : vector<8x32xf32>
    %812 = arith.mulf %811, %811 : vector<8x32xf32>
    %cst_306 = arith.constant dense<0.000000e+00> : vector<8xf32>
    %813 = vector.multi_reduction <add>, %812, %cst_306 [1] : vector<8x32xf32> to vector<8xf32>
    %814 = vector.shape_cast %813 : vector<8xf32> to vector<8x1xf32>
    %cst_307 = arith.constant 0.0322580636 : f32
    %815 = vector.broadcast %cst_307 : f32 to vector<8x1xf32>
    %816 = arith.mulf %814, %815 : vector<8x1xf32>
    %817 = math.sqrt %816 : vector<8x1xf32>
    %cst_308 = arith.constant 9.99999997E-7 : f32
    %818 = vector.broadcast %cst_308 : f32 to vector<8x1xf32>
    %819 = arith.addf %817, %818 : vector<8x1xf32>
    %820 = tpu.reciprocal %819 {approx = true} : vector<8x1xf32> -> vector<8x1xf32>
    %821 = vector.shape_cast %803 : vector<32xf32> to vector<1x32xf32>
    %822 = vector.broadcast %821 : vector<1x32xf32> to vector<8x32xf32>
    %823 = arith.mulf %822, %811 : vector<8x32xf32>
    %824 = vector.broadcast %820 : vector<8x1xf32> to vector<8x32xf32>
    %825 = arith.mulf %823, %824 : vector<8x32xf32>
    %826 = vector.shape_cast %805 : vector<32xf32> to vector<1x32xf32>
    %827 = vector.broadcast %826 : vector<1x32xf32> to vector<8x32xf32>
    %828 = arith.addf %825, %827 : vector<8x32xf32>
    %c1_309 = arith.constant 1 : index
    %c0_310 = arith.constant 0 : index
    %c0_311 = arith.constant 0 : index
    %829 = vector.load %arg27[%c1_309, %c0_310, %c0_311] : memref<2x32x32xf32, #tpu.memory_space<vmem>>, vector<1x32x32xf32>
    %830 = vector.shape_cast %829 : vector<1x32x32xf32> to vector<32x32xf32>
    %cst_312 = arith.constant dense<0.000000e+00> : vector<8x32xf32>
    %831 = tpu.matmul %828, %830, %cst_312 {dimension_numbers = #tpu.dot_dimension_numbers<[1], [0], [0], [1], [0, 0, 1, 1], [], []>} : vector<8x32xf32>, vector<32x32xf32>, vector<8x32xf32> -> vector<8x32xf32>
    %c1_313 = arith.constant 1 : index
    %c0_314 = arith.constant 0 : index
    %832 = vector.load %arg28[%c1_313, %c0_314] : memref<2x32xf32, #tpu.memory_space<vmem>>, vector<1x32xf32>
    %833 = vector.shape_cast %832 : vector<1x32xf32> to vector<32xf32>
    %834 = vector.shape_cast %833 : vector<32xf32> to vector<1x32xf32>
    %835 = vector.broadcast %834 : vector<1x32xf32> to vector<8x32xf32>
    %836 = arith.addf %831, %835 : vector<8x32xf32>
    %c1_315 = arith.constant 1 : index
    %c0_316 = arith.constant 0 : index
    %c0_317 = arith.constant 0 : index
    %837 = vector.load %arg29[%c1_315, %c0_316, %c0_317] : memref<2x32x64xf32, #tpu.memory_space<vmem>>, vector<1x32x64xf32>
    %838 = vector.shape_cast %837 : vector<1x32x64xf32> to vector<32x64xf32>
    %cst_318 = arith.constant dense<0.000000e+00> : vector<8x64xf32>
    %839 = tpu.matmul %382, %838, %cst_318 {dimension_numbers = #tpu.dot_dimension_numbers<[1], [0], [0], [1], [0, 0, 1, 1], [], []>} : vector<8x32xf32>, vector<32x64xf32>, vector<8x64xf32> -> vector<8x64xf32>
    %c1_319 = arith.constant 1 : index
    %c0_320 = arith.constant 0 : index
    %840 = vector.load %arg30[%c1_319, %c0_320] : memref<2x64xf32, #tpu.memory_space<vmem>>, vector<1x64xf32>
    %841 = vector.shape_cast %840 : vector<1x64xf32> to vector<64xf32>
    %842 = vector.shape_cast %841 : vector<64xf32> to vector<1x64xf32>
    %843 = vector.broadcast %842 : vector<1x64xf32> to vector<8x64xf32>
    %844 = arith.addf %839, %843 : vector<8x64xf32>
    %845 = vector.extract_strided_slice %844 {offsets = [0, 0], sizes = [8, 32], strides = [1, 1]} : vector<8x64xf32> to vector<8x32xf32>
    %846 = vector.extract_strided_slice %844 {offsets = [0, 32], sizes = [8, 32], strides = [1, 1]} : vector<8x64xf32> to vector<8x32xf32>
    %847 = vector.extract_strided_slice %836 {offsets = [0, 0], sizes = [8, 8], strides = [1, 1]} : vector<8x32xf32> to vector<8x8xf32>
    %848 = vector.extract_strided_slice %845 {offsets = [0, 0], sizes = [8, 8], strides = [1, 1]} : vector<8x32xf32> to vector<8x8xf32>
    %cst_321 = arith.constant dense<0.000000e+00> : vector<8x8xf32>
    %849 = tpu.matmul %847, %848, %cst_321 {dimension_numbers = #tpu.dot_dimension_numbers<[1], [1], [0], [0], [0, 0, 1, 0], [], []>} : vector<8x8xf32>, vector<8x8xf32>, vector<8x8xf32> -> vector<8x8xf32>
    %cst_322 = arith.constant 0.353553385 : f32
    %850 = vector.broadcast %cst_322 : f32 to vector<8x8xf32>
    %851 = arith.mulf %849, %850 : vector<8x8xf32>
    %852 = vector.broadcast %6 : vector<1x8xf32> to vector<8x8xf32>
    %853 = arith.addf %851, %852 : vector<8x8xf32>
    %cst_323 = arith.constant dense<0xFF800000> : vector<8xf32>
    %854 = vector.multi_reduction <maximumf>, %853, %cst_323 [1] : vector<8x8xf32> to vector<8xf32>
    %855 = vector.shape_cast %854 : vector<8xf32> to vector<8x1xf32>
    %856 = vector.broadcast %855 : vector<8x1xf32> to vector<8x8xf32>
    %857 = arith.subf %853, %856 : vector<8x8xf32>
    %858 = math.exp %857 : vector<8x8xf32>
    %cst_324 = arith.constant dense<0.000000e+00> : vector<8xf32>
    %859 = vector.multi_reduction <add>, %858, %cst_324 [1] : vector<8x8xf32> to vector<8xf32>
    %860 = vector.shape_cast %859 : vector<8xf32> to vector<8x1xf32>
    %861 = tpu.reciprocal %860 {approx = true} : vector<8x1xf32> -> vector<8x1xf32>
    %862 = vector.broadcast %861 : vector<8x1xf32> to vector<8x8xf32>
    %863 = arith.mulf %858, %862 : vector<8x8xf32>
    %864 = vector.extract_strided_slice %846 {offsets = [0, 0], sizes = [8, 8], strides = [1, 1]} : vector<8x32xf32> to vector<8x8xf32>
    %cst_325 = arith.constant dense<0.000000e+00> : vector<8x8xf32>
    %865 = tpu.matmul %863, %864, %cst_325 {dimension_numbers = #tpu.dot_dimension_numbers<[1], [0], [0], [1], [0, 0, 1, 1], [], []>} : vector<8x8xf32>, vector<8x8xf32>, vector<8x8xf32> -> vector<8x8xf32>
    %866 = vector.extract_strided_slice %836 {offsets = [0, 8], sizes = [8, 8], strides = [1, 1]} : vector<8x32xf32> to vector<8x8xf32>
    %867 = vector.extract_strided_slice %845 {offsets = [0, 8], sizes = [8, 8], strides = [1, 1]} : vector<8x32xf32> to vector<8x8xf32>
    %cst_326 = arith.constant dense<0.000000e+00> : vector<8x8xf32>
    %868 = tpu.matmul %866, %867, %cst_326 {dimension_numbers = #tpu.dot_dimension_numbers<[1], [1], [0], [0], [0, 0, 1, 0], [], []>} : vector<8x8xf32>, vector<8x8xf32>, vector<8x8xf32> -> vector<8x8xf32>
    %cst_327 = arith.constant 0.353553385 : f32
    %869 = vector.broadcast %cst_327 : f32 to vector<8x8xf32>
    %870 = arith.mulf %868, %869 : vector<8x8xf32>
    %871 = vector.broadcast %6 : vector<1x8xf32> to vector<8x8xf32>
    %872 = arith.addf %870, %871 : vector<8x8xf32>
    %cst_328 = arith.constant dense<0xFF800000> : vector<8xf32>
    %873 = vector.multi_reduction <maximumf>, %872, %cst_328 [1] : vector<8x8xf32> to vector<8xf32>
    %874 = vector.shape_cast %873 : vector<8xf32> to vector<8x1xf32>
    %875 = vector.broadcast %874 : vector<8x1xf32> to vector<8x8xf32>
    %876 = arith.subf %872, %875 : vector<8x8xf32>
    %877 = math.exp %876 : vector<8x8xf32>
    %cst_329 = arith.constant dense<0.000000e+00> : vector<8xf32>
    %878 = vector.multi_reduction <add>, %877, %cst_329 [1] : vector<8x8xf32> to vector<8xf32>
    %879 = vector.shape_cast %878 : vector<8xf32> to vector<8x1xf32>
    %880 = tpu.reciprocal %879 {approx = true} : vector<8x1xf32> -> vector<8x1xf32>
    %881 = vector.broadcast %880 : vector<8x1xf32> to vector<8x8xf32>
    %882 = arith.mulf %877, %881 : vector<8x8xf32>
    %883 = vector.extract_strided_slice %846 {offsets = [0, 8], sizes = [8, 8], strides = [1, 1]} : vector<8x32xf32> to vector<8x8xf32>
    %cst_330 = arith.constant dense<0.000000e+00> : vector<8x8xf32>
    %884 = tpu.matmul %882, %883, %cst_330 {dimension_numbers = #tpu.dot_dimension_numbers<[1], [0], [0], [1], [0, 0, 1, 1], [], []>} : vector<8x8xf32>, vector<8x8xf32>, vector<8x8xf32> -> vector<8x8xf32>
    %885 = vector.extract_strided_slice %836 {offsets = [0, 16], sizes = [8, 8], strides = [1, 1]} : vector<8x32xf32> to vector<8x8xf32>
    %886 = vector.extract_strided_slice %845 {offsets = [0, 16], sizes = [8, 8], strides = [1, 1]} : vector<8x32xf32> to vector<8x8xf32>
    %cst_331 = arith.constant dense<0.000000e+00> : vector<8x8xf32>
    %887 = tpu.matmul %885, %886, %cst_331 {dimension_numbers = #tpu.dot_dimension_numbers<[1], [1], [0], [0], [0, 0, 1, 0], [], []>} : vector<8x8xf32>, vector<8x8xf32>, vector<8x8xf32> -> vector<8x8xf32>
    %cst_332 = arith.constant 0.353553385 : f32
    %888 = vector.broadcast %cst_332 : f32 to vector<8x8xf32>
    %889 = arith.mulf %887, %888 : vector<8x8xf32>
    %890 = vector.broadcast %6 : vector<1x8xf32> to vector<8x8xf32>
    %891 = arith.addf %889, %890 : vector<8x8xf32>
    %cst_333 = arith.constant dense<0xFF800000> : vector<8xf32>
    %892 = vector.multi_reduction <maximumf>, %891, %cst_333 [1] : vector<8x8xf32> to vector<8xf32>
    %893 = vector.shape_cast %892 : vector<8xf32> to vector<8x1xf32>
    %894 = vector.broadcast %893 : vector<8x1xf32> to vector<8x8xf32>
    %895 = arith.subf %891, %894 : vector<8x8xf32>
    %896 = math.exp %895 : vector<8x8xf32>
    %cst_334 = arith.constant dense<0.000000e+00> : vector<8xf32>
    %897 = vector.multi_reduction <add>, %896, %cst_334 [1] : vector<8x8xf32> to vector<8xf32>
    %898 = vector.shape_cast %897 : vector<8xf32> to vector<8x1xf32>
    %899 = tpu.reciprocal %898 {approx = true} : vector<8x1xf32> -> vector<8x1xf32>
    %900 = vector.broadcast %899 : vector<8x1xf32> to vector<8x8xf32>
    %901 = arith.mulf %896, %900 : vector<8x8xf32>
    %902 = vector.extract_strided_slice %846 {offsets = [0, 16], sizes = [8, 8], strides = [1, 1]} : vector<8x32xf32> to vector<8x8xf32>
    %cst_335 = arith.constant dense<0.000000e+00> : vector<8x8xf32>
    %903 = tpu.matmul %901, %902, %cst_335 {dimension_numbers = #tpu.dot_dimension_numbers<[1], [0], [0], [1], [0, 0, 1, 1], [], []>} : vector<8x8xf32>, vector<8x8xf32>, vector<8x8xf32> -> vector<8x8xf32>
    %904 = vector.extract_strided_slice %836 {offsets = [0, 24], sizes = [8, 8], strides = [1, 1]} : vector<8x32xf32> to vector<8x8xf32>
    %905 = vector.extract_strided_slice %845 {offsets = [0, 24], sizes = [8, 8], strides = [1, 1]} : vector<8x32xf32> to vector<8x8xf32>
    %cst_336 = arith.constant dense<0.000000e+00> : vector<8x8xf32>
    %906 = tpu.matmul %904, %905, %cst_336 {dimension_numbers = #tpu.dot_dimension_numbers<[1], [1], [0], [0], [0, 0, 1, 0], [], []>} : vector<8x8xf32>, vector<8x8xf32>, vector<8x8xf32> -> vector<8x8xf32>
    %cst_337 = arith.constant 0.353553385 : f32
    %907 = vector.broadcast %cst_337 : f32 to vector<8x8xf32>
    %908 = arith.mulf %906, %907 : vector<8x8xf32>
    %909 = vector.broadcast %6 : vector<1x8xf32> to vector<8x8xf32>
    %910 = arith.addf %908, %909 : vector<8x8xf32>
    %cst_338 = arith.constant dense<0xFF800000> : vector<8xf32>
    %911 = vector.multi_reduction <maximumf>, %910, %cst_338 [1] : vector<8x8xf32> to vector<8xf32>
    %912 = vector.shape_cast %911 : vector<8xf32> to vector<8x1xf32>
    %913 = vector.broadcast %912 : vector<8x1xf32> to vector<8x8xf32>
    %914 = arith.subf %910, %913 : vector<8x8xf32>
    %915 = math.exp %914 : vector<8x8xf32>
    %cst_339 = arith.constant dense<0.000000e+00> : vector<8xf32>
    %916 = vector.multi_reduction <add>, %915, %cst_339 [1] : vector<8x8xf32> to vector<8xf32>
    %917 = vector.shape_cast %916 : vector<8xf32> to vector<8x1xf32>
    %918 = tpu.reciprocal %917 {approx = true} : vector<8x1xf32> -> vector<8x1xf32>
    %919 = vector.broadcast %918 : vector<8x1xf32> to vector<8x8xf32>
    %920 = arith.mulf %915, %919 : vector<8x8xf32>
    %921 = vector.extract_strided_slice %846 {offsets = [0, 24], sizes = [8, 8], strides = [1, 1]} : vector<8x32xf32> to vector<8x8xf32>
    %cst_340 = arith.constant dense<0.000000e+00> : vector<8x8xf32>
    %922 = tpu.matmul %920, %921, %cst_340 {dimension_numbers = #tpu.dot_dimension_numbers<[1], [0], [0], [1], [0, 0, 1, 1], [], []>} : vector<8x8xf32>, vector<8x8xf32>, vector<8x8xf32> -> vector<8x8xf32>
    %923 = tpu.concatenate %865, %884, %903, %922 in 1 : vector<8x8xf32>, vector<8x8xf32>, vector<8x8xf32>, vector<8x8xf32> -> vector<8x32xf32>
    %c1_341 = arith.constant 1 : index
    %c0_342 = arith.constant 0 : index
    %c0_343 = arith.constant 0 : index
    %924 = vector.load %arg31[%c1_341, %c0_342, %c0_343] : memref<2x32x32xf32, #tpu.memory_space<vmem>>, vector<1x32x32xf32>
    %925 = vector.shape_cast %924 : vector<1x32x32xf32> to vector<32x32xf32>
    %cst_344 = arith.constant dense<0.000000e+00> : vector<8x32xf32>
    %926 = tpu.matmul %923, %925, %cst_344 {dimension_numbers = #tpu.dot_dimension_numbers<[1], [0], [0], [1], [0, 0, 1, 1], [], []>} : vector<8x32xf32>, vector<32x32xf32>, vector<8x32xf32> -> vector<8x32xf32>
    %c1_345 = arith.constant 1 : index
    %c0_346 = arith.constant 0 : index
    %927 = vector.load %arg32[%c1_345, %c0_346] : memref<2x32xf32, #tpu.memory_space<vmem>>, vector<1x32xf32>
    %928 = vector.shape_cast %927 : vector<1x32xf32> to vector<32xf32>
    %929 = vector.shape_cast %928 : vector<32xf32> to vector<1x32xf32>
    %930 = vector.broadcast %929 : vector<1x32xf32> to vector<8x32xf32>
    %931 = arith.addf %926, %930 : vector<8x32xf32>
    %932 = arith.addf %801, %931 : vector<8x32xf32>
    %c1_347 = arith.constant 1 : index
    %c0_348 = arith.constant 0 : index
    %933 = vector.load %arg33[%c1_347, %c0_348] : memref<2x32xf32, #tpu.memory_space<vmem>>, vector<1x32xf32>
    %934 = vector.shape_cast %933 : vector<1x32xf32> to vector<32xf32>
    %c1_349 = arith.constant 1 : index
    %c0_350 = arith.constant 0 : index
    %935 = vector.load %arg34[%c1_349, %c0_350] : memref<2x32xf32, #tpu.memory_space<vmem>>, vector<1x32xf32>
    %936 = vector.shape_cast %935 : vector<1x32xf32> to vector<32xf32>
    %cst_351 = arith.constant dense<0.000000e+00> : vector<8xf32>
    %937 = vector.multi_reduction <add>, %932, %cst_351 [1] : vector<8x32xf32> to vector<8xf32>
    %938 = vector.shape_cast %937 : vector<8xf32> to vector<8x1xf32>
    %cst_352 = arith.constant 3.200000e+01 : f32
    %939 = vector.broadcast %cst_352 : f32 to vector<8x1xf32>
    %940 = arith.divf %938, %939 : vector<8x1xf32>
    %941 = vector.broadcast %940 : vector<8x1xf32> to vector<8x32xf32>
    %942 = arith.subf %932, %941 : vector<8x32xf32>
    %943 = arith.mulf %942, %942 : vector<8x32xf32>
    %cst_353 = arith.constant dense<0.000000e+00> : vector<8xf32>
    %944 = vector.multi_reduction <add>, %943, %cst_353 [1] : vector<8x32xf32> to vector<8xf32>
    %945 = vector.shape_cast %944 : vector<8xf32> to vector<8x1xf32>
    %cst_354 = arith.constant 0.0322580636 : f32
    %946 = vector.broadcast %cst_354 : f32 to vector<8x1xf32>
    %947 = arith.mulf %945, %946 : vector<8x1xf32>
    %948 = math.sqrt %947 : vector<8x1xf32>
    %cst_355 = arith.constant 9.99999997E-7 : f32
    %949 = vector.broadcast %cst_355 : f32 to vector<8x1xf32>
    %950 = arith.addf %948, %949 : vector<8x1xf32>
    %951 = tpu.reciprocal %950 {approx = true} : vector<8x1xf32> -> vector<8x1xf32>
    %952 = vector.shape_cast %934 : vector<32xf32> to vector<1x32xf32>
    %953 = vector.broadcast %952 : vector<1x32xf32> to vector<8x32xf32>
    %954 = arith.mulf %953, %942 : vector<8x32xf32>
    %955 = vector.broadcast %951 : vector<8x1xf32> to vector<8x32xf32>
    %956 = arith.mulf %954, %955 : vector<8x32xf32>
    %957 = vector.shape_cast %936 : vector<32xf32> to vector<1x32xf32>
    %958 = vector.broadcast %957 : vector<1x32xf32> to vector<8x32xf32>
    %959 = arith.addf %956, %958 : vector<8x32xf32>
    %c1_356 = arith.constant 1 : index
    %c0_357 = arith.constant 0 : index
    %c0_358 = arith.constant 0 : index
    %960 = vector.load %arg35[%c1_356, %c0_357, %c0_358] : memref<2x32x64xf32, #tpu.memory_space<vmem>>, vector<1x32x64xf32>
    %961 = vector.shape_cast %960 : vector<1x32x64xf32> to vector<32x64xf32>
    %c1_359 = arith.constant 1 : index
    %c0_360 = arith.constant 0 : index
    %962 = vector.load %arg36[%c1_359, %c0_360] : memref<2x64xf32, #tpu.memory_space<vmem>>, vector<1x64xf32>
    %963 = vector.shape_cast %962 : vector<1x64xf32> to vector<64xf32>
    %c1_361 = arith.constant 1 : index
    %c0_362 = arith.constant 0 : index
    %c0_363 = arith.constant 0 : index
    %964 = vector.load %arg37[%c1_361, %c0_362, %c0_363] : memref<2x64x32xf32, #tpu.memory_space<vmem>>, vector<1x64x32xf32>
    %965 = vector.shape_cast %964 : vector<1x64x32xf32> to vector<64x32xf32>
    %c1_364 = arith.constant 1 : index
    %c0_365 = arith.constant 0 : index
    %966 = vector.load %arg38[%c1_364, %c0_365] : memref<2x32xf32, #tpu.memory_space<vmem>>, vector<1x32xf32>
    %967 = vector.shape_cast %966 : vector<1x32xf32> to vector<32xf32>
    %cst_366 = arith.constant dense<0.000000e+00> : vector<8x64xf32>
    %968 = tpu.matmul %959, %961, %cst_366 {dimension_numbers = #tpu.dot_dimension_numbers<[1], [0], [0], [1], [0, 0, 1, 1], [], []>} : vector<8x32xf32>, vector<32x64xf32>, vector<8x64xf32> -> vector<8x64xf32>
    %969 = vector.shape_cast %963 : vector<64xf32> to vector<1x64xf32>
    %970 = vector.broadcast %969 : vector<1x64xf32> to vector<8x64xf32>
    %971 = arith.addf %968, %970 : vector<8x64xf32>
    %cst_367 = arith.constant 0.000000e+00 : f32
    %972 = vector.broadcast %cst_367 : f32 to vector<8x64xf32>
    %973 = arith.maximumf %971, %972 : vector<8x64xf32>
    %cst_368 = arith.constant dense<0.000000e+00> : vector<8x32xf32>
    %974 = tpu.matmul %973, %965, %cst_368 {dimension_numbers = #tpu.dot_dimension_numbers<[1], [0], [0], [1], [0, 0, 1, 1], [], []>} : vector<8x64xf32>, vector<64x32xf32>, vector<8x32xf32> -> vector<8x32xf32>
    %975 = vector.shape_cast %967 : vector<32xf32> to vector<1x32xf32>
    %976 = vector.broadcast %975 : vector<1x32xf32> to vector<8x32xf32>
    %977 = arith.addf %974, %976 : vector<8x32xf32>
    %978 = arith.addf %932, %977 : vector<8x32xf32>
    %c0_369 = arith.constant 0 : index
    %c0_370 = arith.constant 0 : index
    %979 = vector.load %arg39[%c0_369, %c0_370] : memref<1x32xf32, #tpu.memory_space<vmem>>, vector<1x32xf32>
    %980 = vector.shape_cast %979 : vector<1x32xf32> to vector<32xf32>
    %c0_371 = arith.constant 0 : index
    %c0_372 = arith.constant 0 : index
    %981 = vector.load %arg40[%c0_371, %c0_372] : memref<1x32xf32, #tpu.memory_space<vmem>>, vector<1x32xf32>
    %982 = vector.shape_cast %981 : vector<1x32xf32> to vector<32xf32>
    %cst_373 = arith.constant dense<0.000000e+00> : vector<8xf32>
    %983 = vector.multi_reduction <add>, %978, %cst_373 [1] : vector<8x32xf32> to vector<8xf32>
    %984 = vector.shape_cast %983 : vector<8xf32> to vector<8x1xf32>
    %cst_374 = arith.constant 3.200000e+01 : f32
    %985 = vector.broadcast %cst_374 : f32 to vector<8x1xf32>
    %986 = arith.divf %984, %985 : vector<8x1xf32>
    %987 = vector.broadcast %986 : vector<8x1xf32> to vector<8x32xf32>
    %988 = arith.subf %978, %987 : vector<8x32xf32>
    %989 = arith.mulf %988, %988 : vector<8x32xf32>
    %cst_375 = arith.constant dense<0.000000e+00> : vector<8xf32>
    %990 = vector.multi_reduction <add>, %989, %cst_375 [1] : vector<8x32xf32> to vector<8xf32>
    %991 = vector.shape_cast %990 : vector<8xf32> to vector<8x1xf32>
    %cst_376 = arith.constant 0.0322580636 : f32
    %992 = vector.broadcast %cst_376 : f32 to vector<8x1xf32>
    %993 = arith.mulf %991, %992 : vector<8x1xf32>
    %994 = math.sqrt %993 : vector<8x1xf32>
    %cst_377 = arith.constant 9.99999997E-7 : f32
    %995 = vector.broadcast %cst_377 : f32 to vector<8x1xf32>
    %996 = arith.addf %994, %995 : vector<8x1xf32>
    %997 = tpu.reciprocal %996 {approx = true} : vector<8x1xf32> -> vector<8x1xf32>
    %998 = vector.shape_cast %980 : vector<32xf32> to vector<1x32xf32>
    %999 = vector.broadcast %998 : vector<1x32xf32> to vector<8x32xf32>
    %1000 = arith.mulf %999, %988 : vector<8x32xf32>
    %1001 = vector.broadcast %997 : vector<8x1xf32> to vector<8x32xf32>
    %1002 = arith.mulf %1000, %1001 : vector<8x32xf32>
    %1003 = vector.shape_cast %982 : vector<32xf32> to vector<1x32xf32>
    %1004 = vector.broadcast %1003 : vector<1x32xf32> to vector<8x32xf32>
    %1005 = arith.addf %1002, %1004 : vector<8x32xf32>
    %c0_378 = arith.constant 0 : index
    %c0_379 = arith.constant 0 : index
    %c0_380 = arith.constant 0 : index
    %1006 = vector.load %arg41[%c0_378, %c0_379, %c0_380] : memref<1x8x32xf32, #tpu.memory_space<vmem>>, vector<1x8x32xf32>
    %1007 = vector.shape_cast %1006 : vector<1x8x32xf32> to vector<8x32xf32>
    %1008 = vector.shape_cast %1005 : vector<8x32xf32> to vector<1x8x32xf32>
    tpu.vector_store %arg41[%c0_378, %c0_379, %c0_380], %1008 {strides = array<i32>} : memref<1x8x32xf32, #tpu.memory_space<vmem>>, vector<1x8x32xf32>,
    return
  }
  func.func @transform_0(%arg0: i32) -> (i32, i32, i32) {
    %c0_i32 = arith.constant 0 : i32
    %c0_i32_0 = arith.constant 0 : i32
    %c0_i32_1 = arith.constant 0 : i32
    return %arg0, %c0_i32, %c0_i32_0 : i32, i32, i32
  }
  func.func @transform_1(%arg0: i32) -> (i32, i32, i32) {
    %c0_i32 = arith.constant 0 : i32
    %c0_i32_0 = arith.constant 0 : i32
    %c0_i32_1 = arith.constant 0 : i32
    return %arg0, %c0_i32, %c0_i32_0 : i32, i32, i32
  }
  func.func @transform_2(%arg0: i32) -> (i32, i32, i32) {
    %c0_i32 = arith.constant 0 : i32
    %c0_i32_0 = arith.constant 0 : i32
    %c0_i32_1 = arith.constant 0 : i32
    return %arg0, %c0_i32, %c0_i32_0 : i32, i32, i32
  }
  func.func @transform_3(%arg0: i32) -> (i32, i32, i32) {
    %c0_i32 = arith.constant 0 : i32
    %c0_i32_0 = arith.constant 0 : i32
    %c0_i32_1 = arith.constant 0 : i32
    return %arg0, %c0_i32, %c0_i32_0 : i32, i32, i32
  }
  func.func @transform_4(%arg0: i32) -> (i32, i32) {
    %c0_i32 = arith.constant 0 : i32
    %c0_i32_0 = arith.constant 0 : i32
    %c0_i32_1 = arith.constant 0 : i32
    return %c0_i32, %c0_i32_0 : i32, i32
  }
  func.func @transform_5(%arg0: i32) -> (i32, i32) {
    %c0_i32 = arith.constant 0 : i32
    %c0_i32_0 = arith.constant 0 : i32
    %c0_i32_1 = arith.constant 0 : i32
    return %c0_i32, %c0_i32_0 : i32, i32
  }
  func.func @transform_6(%arg0: i32) -> (i32, i32, i32) {
    %c0_i32 = arith.constant 0 : i32
    %c0_i32_0 = arith.constant 0 : i32
    %c0_i32_1 = arith.constant 0 : i32
    %c0_i32_2 = arith.constant 0 : i32
    return %c0_i32, %c0_i32_0, %c0_i32_1 : i32, i32, i32
  }
  func.func @transform_7(%arg0: i32) -> (i32, i32) {
    %c0_i32 = arith.constant 0 : i32
    %c0_i32_0 = arith.constant 0 : i32
    %c0_i32_1 = arith.constant 0 : i32
    return %c0_i32, %c0_i32_0 : i32, i32
  }
  func.func @transform_8(%arg0: i32) -> (i32, i32, i32) {
    %c0_i32 = arith.constant 0 : i32
    %c0_i32_0 = arith.constant 0 : i32
    %c0_i32_1 = arith.constant 0 : i32
    %c0_i32_2 = arith.constant 0 : i32
    return %c0_i32, %c0_i32_0, %c0_i32_1 : i32, i32, i32
  }
  func.func @transform_9(%arg0: i32) -> (i32, i32) {
    %c0_i32 = arith.constant 0 : i32
    %c0_i32_0 = arith.constant 0 : i32
    %c0_i32_1 = arith.constant 0 : i32
    return %c0_i32, %c0_i32_0 : i32, i32
  }
  func.func @transform_10(%arg0: i32) -> (i32, i32) {
    %c0_i32 = arith.constant 0 : i32
    %c0_i32_0 = arith.constant 0 : i32
    %c0_i32_1 = arith.constant 0 : i32
    return %c0_i32, %c0_i32_0 : i32, i32
  }
  func.func @transform_11(%arg0: i32) -> (i32, i32) {
    %c0_i32 = arith.constant 0 : i32
    %c0_i32_0 = arith.constant 0 : i32
    %c0_i32_1 = arith.constant 0 : i32
    return %c0_i32, %c0_i32_0 : i32, i32
  }
  func.func @transform_12(%arg0: i32) -> (i32, i32, i32) {
    %c0_i32 = arith.constant 0 : i32
    %c0_i32_0 = arith.constant 0 : i32
    %c0_i32_1 = arith.constant 0 : i32
    %c0_i32_2 = arith.constant 0 : i32
    return %c0_i32, %c0_i32_0, %c0_i32_1 : i32, i32, i32
  }
  func.func @transform_13(%arg0: i32) -> (i32, i32) {
    %c0_i32 = arith.constant 0 : i32
    %c0_i32_0 = arith.constant 0 : i32
    %c0_i32_1 = arith.constant 0 : i32
    return %c0_i32, %c0_i32_0 : i32, i32
  }
  func.func @transform_14(%arg0: i32) -> (i32, i32, i32) {
    %c0_i32 = arith.constant 0 : i32
    %c0_i32_0 = arith.constant 0 : i32
    %c0_i32_1 = arith.constant 0 : i32
    %c0_i32_2 = arith.constant 0 : i32
    return %c0_i32, %c0_i32_0, %c0_i32_1 : i32, i32, i32
  }
  func.func @transform_15(%arg0: i32) -> (i32, i32) {
    %c0_i32 = arith.constant 0 : i32
    %c0_i32_0 = arith.constant 0 : i32
    %c0_i32_1 = arith.constant 0 : i32
    return %c0_i32, %c0_i32_0 : i32, i32
  }
  func.func @transform_16(%arg0: i32) -> (i32, i32) {
    %c0_i32 = arith.constant 0 : i32
    %c0_i32_0 = arith.constant 0 : i32
    %c0_i32_1 = arith.constant 0 : i32
    return %c0_i32, %c0_i32_0 : i32, i32
  }
  func.func @transform_17(%arg0: i32) -> (i32, i32) {
    %c0_i32 = arith.constant 0 : i32
    %c0_i32_0 = arith.constant 0 : i32
    %c0_i32_1 = arith.constant 0 : i32
    return %c0_i32, %c0_i32_0 : i32, i32
  }
  func.func @transform_18(%arg0: i32) -> (i32, i32) {
    %c0_i32 = arith.constant 0 : i32
    %c0_i32_0 = arith.constant 0 : i32
    %c0_i32_1 = arith.constant 0 : i32
    return %c0_i32, %c0_i32_0 : i32, i32
  }
  func.func @transform_19(%arg0: i32) -> (i32, i32) {
    %c0_i32 = arith.constant 0 : i32
    %c0_i32_0 = arith.constant 0 : i32
    %c0_i32_1 = arith.constant 0 : i32
    return %c0_i32, %c0_i32_0 : i32, i32
  }
  func.func @transform_20(%arg0: i32) -> (i32, i32, i32) {
    %c0_i32 = arith.constant 0 : i32
    %c0_i32_0 = arith.constant 0 : i32
    %c0_i32_1 = arith.constant 0 : i32
    %c0_i32_2 = arith.constant 0 : i32
    return %c0_i32, %c0_i32_0, %c0_i32_1 : i32, i32, i32
  }
  func.func @transform_21(%arg0: i32) -> (i32, i32) {
    %c0_i32 = arith.constant 0 : i32
    %c0_i32_0 = arith.constant 0 : i32
    %c0_i32_1 = arith.constant 0 : i32
    return %c0_i32, %c0_i32_0 : i32, i32
  }
  func.func @transform_22(%arg0: i32) -> (i32, i32, i32) {
    %c0_i32 = arith.constant 0 : i32
    %c0_i32_0 = arith.constant 0 : i32
    %c0_i32_1 = arith.constant 0 : i32
    %c0_i32_2 = arith.constant 0 : i32
    return %c0_i32, %c0_i32_0, %c0_i32_1 : i32, i32, i32
  }
  func.func @transform_23(%arg0: i32) -> (i32, i32) {
    %c0_i32 = arith.constant 0 : i32
    %c0_i32_0 = arith.constant 0 : i32
    %c0_i32_1 = arith.constant 0 : i32
    return %c0_i32, %c0_i32_0 : i32, i32
  }
  func.func @transform_24(%arg0: i32) -> (i32, i32) {
    %c0_i32 = arith.constant 0 : i32
    %c0_i32_0 = arith.constant 0 : i32
    %c0_i32_1 = arith.constant 0 : i32
    return %c0_i32, %c0_i32_0 : i32, i32
  }
  func.func @transform_25(%arg0: i32) -> (i32, i32) {
    %c0_i32 = arith.constant 0 : i32
    %c0_i32_0 = arith.constant 0 : i32
    %c0_i32_1 = arith.constant 0 : i32
    return %c0_i32, %c0_i32_0 : i32, i32
  }
  func.func @transform_26(%arg0: i32) -> (i32, i32, i32) {
    %c0_i32 = arith.constant 0 : i32
    %c0_i32_0 = arith.constant 0 : i32
    %c0_i32_1 = arith.constant 0 : i32
    %c0_i32_2 = arith.constant 0 : i32
    return %c0_i32, %c0_i32_0, %c0_i32_1 : i32, i32, i32
  }
  func.func @transform_27(%arg0: i32) -> (i32, i32) {
    %c0_i32 = arith.constant 0 : i32
    %c0_i32_0 = arith.constant 0 : i32
    %c0_i32_1 = arith.constant 0 : i32
    return %c0_i32, %c0_i32_0 : i32, i32
  }
  func.func @transform_28(%arg0: i32) -> (i32, i32, i32) {
    %c0_i32 = arith.constant 0 : i32
    %c0_i32_0 = arith.constant 0 : i32
    %c0_i32_1 = arith.constant 0 : i32
    %c0_i32_2 = arith.constant 0 : i32
    return %c0_i32, %c0_i32_0, %c0_i32_1 : i32, i32, i32
  }
  func.func @transform_29(%arg0: i32) -> (i32, i32) {
    %c0_i32 = arith.constant 0 : i32
    %c0_i32_0 = arith.constant 0 : i32
    %c0_i32_1 = arith.constant 0 : i32
    return %c0_i32, %c0_i32_0 : i32, i32
  }
  func.func @transform_30(%arg0: i32) -> (i32, i32, i32) {
    %c0_i32 = arith.constant 0 : i32
    %c0_i32_0 = arith.constant 0 : i32
    %c0_i32_1 = arith.constant 0 : i32
    %c0_i32_2 = arith.constant 0 : i32
    return %c0_i32, %c0_i32_0, %c0_i32_1 : i32, i32, i32
  }
  func.func @transform_31(%arg0: i32) -> (i32, i32) {
    %c0_i32 = arith.constant 0 : i32
    %c0_i32_0 = arith.constant 0 : i32
    %c0_i32_1 = arith.constant 0 : i32
    return %c0_i32, %c0_i32_0 : i32, i32
  }
  func.func @transform_32(%arg0: i32) -> (i32, i32) {
    %c0_i32 = arith.constant 0 : i32
    %c0_i32_0 = arith.constant 0 : i32
    %c0_i32_1 = arith.constant 0 : i32
    return %c0_i32, %c0_i32_0 : i32, i32
  }
  func.func @transform_33(%arg0: i32) -> (i32, i32) {
    %c0_i32 = arith.constant 0 : i32
    %c0_i32_0 = arith.constant 0 : i32
    %c0_i32_1 = arith.constant 0 : i32
    return %c0_i32, %c0_i32_0 : i32, i32
  }
  func.func @transform_34(%arg0: i32) -> (i32, i32, i32) {
    %c0_i32 = arith.constant 0 : i32
    %c0_i32_0 = arith.constant 0 : i32
    %c0_i32_1 = arith.constant 0 : i32
    %c0_i32_2 = arith.constant 0 : i32
    return %c0_i32, %c0_i32_0, %c0_i32_1 : i32, i32, i32
  }
  func.func @transform_35(%arg0: i32) -> (i32, i32) {
    %c0_i32 = arith.constant 0 : i32
    %c0_i32_0 = arith.constant 0 : i32
    %c0_i32_1 = arith.constant 0 : i32
    return %c0_i32, %c0_i32_0 : i32, i32
  }
  func.func @transform_36(%arg0: i32) -> (i32, i32, i32) {
    %c0_i32 = arith.constant 0 : i32
    %c0_i32_0 = arith.constant 0 : i32
    %c0_i32_1 = arith.constant 0 : i32
    %c0_i32_2 = arith.constant 0 : i32
    return %c0_i32, %c0_i32_0, %c0_i32_1 : i32, i32, i32
  }
  func.func @transform_37(%arg0: i32) -> (i32, i32) {
    %c0_i32 = arith.constant 0 : i32
    %c0_i32_0 = arith.constant 0 : i32
    %c0_i32_1 = arith.constant 0 : i32
    return %c0_i32, %c0_i32_0 : i32, i32
  }
  func.func @transform_38(%arg0: i32) -> (i32, i32) {
    %c0_i32 = arith.constant 0 : i32
    %c0_i32_0 = arith.constant 0 : i32
    %c0_i32_1 = arith.constant 0 : i32
    return %c0_i32, %c0_i32_0 : i32, i32
  }
  func.func @transform_39(%arg0: i32) -> (i32, i32) {
    %c0_i32 = arith.constant 0 : i32
    %c0_i32_0 = arith.constant 0 : i32
    %c0_i32_1 = arith.constant 0 : i32
    return %c0_i32, %c0_i32_0 : i32, i32
  }
  func.func @transform_40(%arg0: i32) -> (i32, i32, i32) {
    %c0_i32 = arith.constant 0 : i32
    %c0_i32_0 = arith.constant 0 : i32
    %c0_i32_1 = arith.constant 0 : i32
    return %arg0, %c0_i32, %c0_i32_0 : i32, i32, i32
  }
}

</mosaic_0001>

<llo_original>
// kernel: encoder_decoder_forward.1
$region0: #{encoder_decoder_forward.1}
  #allocation0 [shape = 'u32[]', space=smem, size = 0x4, offset = 0x4, fixed_abs, tag = 'smem constant byte address 0x4 - core index']
  #allocation1 [shape = 'u32[144,128]{1,0:T(1,128)}', space=vmem, size = 0x12000, scoped, tag = 'internal scratch']
  %s0 = inlined_call_operand.smem [shape: u32[41], index: -1, kind: input, shape index: {}]
  %s1 = sld [smem:[%s0]]
  %s2 = scalar_lea.smem %s0, 1
  %s3 = sld [smem:[%s2]]
  %s4 = scalar_lea.smem %s0, 2
  %s5 = sld [smem:[%s4]]
  %s6 = scalar_lea.smem %s0, 3
  %s7 = sld [smem:[%s6]]
  %s8 = scalar_lea.smem %s0, 4
  %s9 = sld [smem:[%s8]]
  %s10 = scalar_lea.smem %s0, 5
  %s11 = sld [smem:[%s10]]
  %s12 = scalar_lea.smem %s0, 6
  %s13 = sld [smem:[%s12]]
  %s14 = scalar_lea.smem %s0, 7
  %s15 = sld [smem:[%s14]]
  %s16 = scalar_lea.smem %s0, 8
  %s17 = sld [smem:[%s16]]
  %s18 = scalar_lea.smem %s0, 9
  %s19 = sld [smem:[%s18]]
  %s20 = scalar_lea.smem %s0, 10
  %s21 = sld [smem:[%s20]]
  %s22 = scalar_lea.smem %s0, 11
  %s23 = sld [smem:[%s22]]
  %s24 = scalar_lea.smem %s0, 12
  %s25 = sld [smem:[%s24]]
  %s26 = scalar_lea.smem %s0, 13
  %s27 = sld [smem:[%s26]]
  %s28 = scalar_lea.smem %s0, 14
  %s29 = sld [smem:[%s28]]
  %s30 = scalar_lea.smem %s0, 15
  %s31 = sld [smem:[%s30]]
  %s32 = scalar_lea.smem %s0, 16
  %s33 = sld [smem:[%s32]]
  %s34 = scalar_lea.smem %s0, 17
  %s35 = sld [smem:[%s34]]
  %s36 = scalar_lea.smem %s0, 18
  %s37 = sld [smem:[%s36]]
  %s38 = scalar_lea.smem %s0, 19
  %s39 = sld [smem:[%s38]]
  %s40 = scalar_lea.smem %s0, 20
  %s41 = sld [smem:[%s40]]
  %s42 = scalar_lea.smem %s0, 21
  %s43 = sld [smem:[%s42]]
  %s44 = scalar_lea.smem %s0, 22
  %s45 = sld [smem:[%s44]]
  %s46 = scalar_lea.smem %s0, 23
  %s47 = sld [smem:[%s46]]
  %s48 = scalar_lea.smem %s0, 24
  %s49 = sld [smem:[%s48]]
  %s50 = scalar_lea.smem %s0, 25
  %s51 = sld [smem:[%s50]]
  %s52 = scalar_lea.smem %s0, 26
  %s53 = sld [smem:[%s52]]
  %s54 = scalar_lea.smem %s0, 27
  %s55 = sld [smem:[%s54]]
  %s56 = scalar_lea.smem %s0, 28
  %s57 = sld [smem:[%s56]]
  %s58 = scalar_lea.smem %s0, 29
  %s59 = sld [smem:[%s58]]
  %s60 = scalar_lea.smem %s0, 30
  %s61 = sld [smem:[%s60]]
  %s62 = scalar_lea.smem %s0, 31
  %s63 = sld [smem:[%s62]]
  %s64 = scalar_lea.smem %s0, 32
  %s65 = sld [smem:[%s64]]
  %s66 = scalar_lea.smem %s0, 33
  %s67 = sld [smem:[%s66]]
  %s68 = scalar_lea.smem %s0, 34
  %s69 = sld [smem:[%s68]]
  %s70 = scalar_lea.smem %s0, 35
  %s71 = sld [smem:[%s70]]
  %s72 = scalar_lea.smem %s0, 36
  %s73 = sld [smem:[%s72]]
  %s74 = scalar_lea.smem %s0, 37
  %s75 = sld [smem:[%s74]]
  %s76 = scalar_lea.smem %s0, 38
  %s77 = sld [smem:[%s76]]
  %s78 = scalar_lea.smem %s0, 39
  %s79 = sld [smem:[%s78]]
  %s80 = scalar_lea.smem %s0, 40
  %s81 = sld [smem:[%s80]]
  %s82 = sld [smem:[#allocation0]]
  $region197: #{encoder_decoder_forward.1} parent=0
    _
  %s84 = ssub.s32 1, %s82
  %s85 = scalar_select 0, %s84, %s82
  $region1: #{encoder_decoder_forward.1} parent=0
    #allocation2 [shape = 'u8[512]{0}', space=vmem, size = 0x400, scoped, tag = 'input window, operand 39, single buffered']
    #allocation3 [shape = 's32[2]{0}', space=sflag, size = 0x8, scoped, tag = 'scoped memory for encoder_decoder_forward.1']
    #allocation4 [shape = 's32[2]{0}', space=sflag, size = 0x8, scoped, tag = 'scoped memory for encoder_decoder_forward.1']
    #allocation5 [shape = 'u8[8192]{0}', space=vmem, size = 0x2000, scoped, tag = 'output window, operand 0']
    %86 = vsyncpa [#allocation3], 0
    %87 = vsyncpa [#allocation4], 0
    %s88 = scalar_lea.sflag [#allocation4], 1
    %89 = vsyncpa %s88, 0
    loop: start=0, step=1, limit=4
    $region2: #{encoder_decoder_forward.1} parent=1 // loop_pre_header
      _
    $region3: #{encoder_decoder_forward.1} parent=1 // loop_header
      %s91 = sphi 0, %s95
      %p92 = scmp.ge.s32.totalorder %s91, 4
      %s101 = sphi 0, %s103
      %s104 = sphi 0, %s101
      %s105 = sphi 0, %s104
      %s121 = sphi 0, %s105
      %s127 = sphi 0, %s129
      %s130 = sphi 0, %s127
      %s131 = sphi 0, %s130
      %s147 = sphi 0, %s131
      %s153 = sphi 0, %s155
      %s156 = sphi 0, %s153
      %s157 = sphi 0, %s156
      %s173 = sphi 0, %s157
      %s179 = sphi 0, %s181
      %s182 = sphi 0, %s179
      %s183 = sphi 0, %s182
      %s199 = sphi 0, %s183
      %s203 = sphi 0, %s203
      %s205 = sphi 0, %s203
      %s206 = sphi 0, %s205
      %s220 = sphi 0, %s206
      %s224 = sphi 0, %s224
      %s226 = sphi 0, %s224
      %s227 = sphi 0, %s226
      %s241 = sphi 0, %s227
      %s245 = sphi 0, %s245
      %s247 = sphi 0, %s245
      %s248 = sphi 0, %s247
      %s262 = sphi 0, %s248
      %s266 = sphi 0, %s266
      %s268 = sphi 0, %s266
      %s269 = sphi 0, %s268
      %s283 = sphi 0, %s269
      %s287 = sphi 0, %s287
      %s289 = sphi 0, %s287
      %s290 = sphi 0, %s289
      %s304 = sphi 0, %s290
      %s308 = sphi 0, %s308
      %s310 = sphi 0, %s308
      %s311 = sphi 0, %s310
      %s325 = sphi 0, %s311
      %s329 = sphi 0, %s329
      %s331 = sphi 0, %s329
      %s332 = sphi 0, %s331
      %s346 = sphi 0, %s332
      %s350 = sphi 0, %s350
      %s352 = sphi 0, %s350
      %s353 = sphi 0, %s352
      %s367 = sphi 0, %s353
      %s371 = sphi 0, %s371
      %s373 = sphi 0, %s371
      %s374 = sphi 0, %s373
      %s388 = sphi 0, %s374
      %s392 = sphi 0, %s392
      %s394 = sphi 0, %s392
      %s395 = sphi 0, %s394
      %s409 = sphi 0, %s395
      %s413 = sphi 0, %s413
      %s415 = sphi 0, %s413
      %s416 = sphi 0, %s415
      %s430 = sphi 0, %s416
      %s434 = sphi 0, %s434
      %s436 = sphi 0, %s434
      %s437 = sphi 0, %s436
      %s451 = sphi 0, %s437
      %s455 = sphi 0, %s455
      %s457 = sphi 0, %s455
      %s458 = sphi 0, %s457
      %s472 = sphi 0, %s458
      %s476 = sphi 0, %s476
      %s478 = sphi 0, %s476
      %s479 = sphi 0, %s478
      %s493 = sphi 0, %s479
      %s497 = sphi 0, %s497
      %s499 = sphi 0, %s497
      %s500 = sphi 0, %s499
      %s514 = sphi 0, %s500
      %s518 = sphi 0, %s518
      %s520 = sphi 0, %s518
      %s521 = sphi 0, %s520
      %s535 = sphi 0, %s521
      %s539 = sphi 0, %s539
      %s541 = sphi 0, %s539
      %s542 = sphi 0, %s541
      %s556 = sphi 0, %s542
      %s560 = sphi 0, %s560
      %s562 = sphi 0, %s560
      %s563 = sphi 0, %s562
      %s577 = sphi 0, %s563
      %s581 = sphi 0, %s581
      %s583 = sphi 0, %s581
      %s584 = sphi 0, %s583
      %s598 = sphi 0, %s584
      %s602 = sphi 0, %s602
      %s604 = sphi 0, %s602
      %s605 = sphi 0, %s604
      %s619 = sphi 0, %s605
      %s623 = sphi 0, %s623
      %s625 = sphi 0, %s623
      %s626 = sphi 0, %s625
      %s640 = sphi 0, %s626
      %s644 = sphi 0, %s644
      %s646 = sphi 0, %s644
      %s647 = sphi 0, %s646
      %s661 = sphi 0, %s647
      %s665 = sphi 0, %s665
      %s667 = sphi 0, %s665
      %s668 = sphi 0, %s667
      %s682 = sphi 0, %s668
      %s686 = sphi 0, %s686
      %s688 = sphi 0, %s686
      %s689 = sphi 0, %s688
      %s703 = sphi 0, %s689
      %s707 = sphi 0, %s707
      %s709 = sphi 0, %s707
      %s710 = sphi 0, %s709
      %s724 = sphi 0, %s710
      %s728 = sphi 0, %s728
      %s730 = sphi 0, %s728
      %s731 = sphi 0, %s730
      %s745 = sphi 0, %s731
      %s749 = sphi 0, %s749
      %s751 = sphi 0, %s749
      %s752 = sphi 0, %s751
      %s766 = sphi 0, %s752
      %s770 = sphi 0, %s770
      %s772 = sphi 0, %s770
      %s773 = sphi 0, %s772
      %s787 = sphi 0, %s773
      %s791 = sphi 0, %s791
      %s793 = sphi 0, %s791
      %s794 = sphi 0, %s793
      %s808 = sphi 0, %s794
      %s812 = sphi 0, %s812
      %s814 = sphi 0, %s812
      %s815 = sphi 0, %s814
      %s829 = sphi 0, %s815
      %s833 = sphi 0, %s833
      %s835 = sphi 0, %s833
      %s836 = sphi 0, %s835
      %s850 = sphi 0, %s836
      %s854 = sphi 0, %s854
      %s856 = sphi 0, %s854
      %s857 = sphi 0, %s856
      %s871 = sphi 0, %s857
      %s875 = sphi 0, %s875
      %s877 = sphi 0, %s875
      %s878 = sphi 0, %s877
      %s892 = sphi 0, %s878
      %s896 = sphi 0, %s896
      %s898 = sphi 0, %s896
      %s899 = sphi 0, %s898
      %s913 = sphi 0, %s899
      %s917 = sphi 0, %s917
      %s919 = sphi 0, %s917
      %s920 = sphi 0, %s919
      %s934 = sphi 0, %s920
      %s938 = sphi 0, %s938
      %s940 = sphi 0, %s938
      %s941 = sphi 0, %s940
      %s955 = sphi 0, %s941
      %s961 = sphi 0, %s963
      %s964 = sphi 0, %s961
      %s965 = sphi 0, %s964
      %s981 = sphi 0, %s965
    $region4: #{encoder_decoder_forward.1} parent=1 // loop_header_branch
      %94 = sbr.rel (%p92) target = $region8
    $region5: #{encoder_decoder_forward.1} parent=1 // loop_body
      %s96 = ssub.s32 %s91, 1
      %s97 = ssub.s32 %s91, 2
      %s98 = sadd.s32 %s91, 1
      %s99 = ssub.s32 %s91, %s98
      %p100 = scmp.eq.s32.totalorder %s99, 0
      %s102 = sadd.s32 %s101, 1
      %s103 = scalar_select %p100, %s101, %s102
      %p106 = pneg %p100
      %p107 = scmp.eq.s32.totalorder %s91, 1
      %p108 = por %p106, %p107
      %p109 = scmp.ne.s32.totalorder %s101, %s104
      %p110 = scmp.eq.s32.totalorder %s91, 0
      %p111 = por %p109, %p110
      %p112 = scmp.ne.s32.totalorder %s101, %s104
      %p113 = scmp.eq.s32.totalorder %s96, 1
      %p114 = por %p112, %p113
      %p115 = scmp.ne.s32.totalorder %s104, %s105
      %p116 = scmp.eq.s32.totalorder %s96, 0
      %p117 = por %p115, %p116
      %p118 = scmp.ne.s32.totalorder %s104, %s105
      %p119 = scmp.eq.s32.totalorder %s97, 1
      %p120 = por %p118, %p119
      %p122 = scmp.ne.s32.totalorder %s105, %s121
      %p123 = scmp.eq.s32.totalorder %s97, 0
      %p124 = por %p122, %p123
      %s125 = ssub.s32 %s91, %s98
      %p126 = scmp.eq.s32.totalorder %s125, 0
      %s128 = sadd.s32 %s127, 1
      %s129 = scalar_select %p126, %s127, %s128
      %p132 = pneg %p126
      %p133 = scmp.eq.s32.totalorder %s91, 1
      %p134 = por %p132, %p133
      %p135 = scmp.ne.s32.totalorder %s127, %s130
      %p136 = scmp.eq.s32.totalorder %s91, 0
      %p137 = por %p135, %p136
      %p138 = scmp.ne.s32.totalorder %s127, %s130
      %p139 = scmp.eq.s32.totalorder %s96, 1
      %p140 = por %p138, %p139
      %p141 = scmp.ne.s32.totalorder %s130, %s131
      %p142 = scmp.eq.s32.totalorder %s96, 0
      %p143 = por %p141, %p142
      %p144 = scmp.ne.s32.totalorder %s130, %s131
      %p145 = scmp.eq.s32.totalorder %s97, 1
      %p146 = por %p144, %p145
      %p148 = scmp.ne.s32.totalorder %s131, %s147
      %p149 = scmp.eq.s32.totalorder %s97, 0
      %p150 = por %p148, %p149
      %s151 = ssub.s32 %s91, %s98
      %p152 = scmp.eq.s32.totalorder %s151, 0
      %s154 = sadd.s32 %s153, 1
      %s155 = scalar_select %p152, %s153, %s154
      %p158 = pneg %p152
      %p159 = scmp.eq.s32.totalorder %s91, 1
      %p160 = por %p158, %p159
      %p161 = scmp.ne.s32.totalorder %s153, %s156
      %p162 = scmp.eq.s32.totalorder %s91, 0
      %p163 = por %p161, %p162
      %p164 = scmp.ne.s32.totalorder %s153, %s156
      %p165 = scmp.eq.s32.totalorder %s96, 1
      %p166 = por %p164, %p165
      %p167 = scmp.ne.s32.totalorder %s156, %s157
      %p168 = scmp.eq.s32.totalorder %s96, 0
      %p169 = por %p167, %p168
      %p170 = scmp.ne.s32.totalorder %s156, %s157
      %p171 = scmp.eq.s32.totalorder %s97, 1
      %p172 = por %p170, %p171
      %p174 = scmp.ne.s32.totalorder %s157, %s173
      %p175 = scmp.eq.s32.totalorder %s97, 0
      %p176 = por %p174, %p175
      %s177 = ssub.s32 %s91, %s98
      %p178 = scmp.eq.s32.totalorder %s177, 0
      %s180 = sadd.s32 %s179, 1
      %s181 = scalar_select %p178, %s179, %s180
      %p184 = pneg %p178
      %p185 = scmp.eq.s32.totalorder %s91, 1
      %p186 = por %p184, %p185
      %p187 = scmp.ne.s32.totalorder %s179, %s182
      %p188 = scmp.eq.s32.totalorder %s91, 0
      %p189 = por %p187, %p188
      %p190 = scmp.ne.s32.totalorder %s179, %s182
      %p191 = scmp.eq.s32.totalorder %s96, 1
      %p192 = por %p190, %p191
      %p193 = scmp.ne.s32.totalorder %s182, %s183
      %p194 = scmp.eq.s32.totalorder %s96, 0
      %p195 = por %p193, %p194
      %p196 = scmp.ne.s32.totalorder %s182, %s183
      %p197 = scmp.eq.s32.totalorder %s97, 1
      %p198 = por %p196, %p197
      %p200 = scmp.ne.s32.totalorder %s183, %s199
      %p201 = scmp.eq.s32.totalorder %s97, 0
      %p202 = por %p200, %p201
      %s204 = sadd.s32 %s203, 1
      %p207 = scmp.eq.s32.totalorder %s91, 1
      %p208 = scmp.ne.s32.totalorder %s203, %s205
      %p209 = scmp.eq.s32.totalorder %s91, 0
      %p210 = por %p208, %p209
      %p211 = scmp.ne.s32.totalorder %s203, %s205
      %p212 = scmp.eq.s32.totalorder %s96, 1
      %p213 = por %p211, %p212
      %p214 = scmp.ne.s32.totalorder %s205, %s206
      %p215 = scmp.eq.s32.totalorder %s96, 0
      %p216 = por %p214, %p215
      %p217 = scmp.ne.s32.totalorder %s205, %s206
      %p218 = scmp.eq.s32.totalorder %s97, 1
      %p219 = por %p217, %p218
      %p221 = scmp.ne.s32.totalorder %s206, %s220
      %p222 = scmp.eq.s32.totalorder %s97, 0
      %p223 = por %p221, %p222
      %s225 = sadd.s32 %s224, 1
      %p228 = scmp.eq.s32.totalorder %s91, 1
      %p229 = scmp.ne.s32.totalorder %s224, %s226
      %p230 = scmp.eq.s32.totalorder %s91, 0
      %p231 = por %p229, %p230
      %p232 = scmp.ne.s32.totalorder %s224, %s226
      %p233 = scmp.eq.s32.totalorder %s96, 1
      %p234 = por %p232, %p233
      %p235 = scmp.ne.s32.totalorder %s226, %s227
      %p236 = scmp.eq.s32.totalorder %s96, 0
      %p237 = por %p235, %p236
      %p238 = scmp.ne.s32.totalorder %s226, %s227
      %p239 = scmp.eq.s32.totalorder %s97, 1
      %p240 = por %p238, %p239
      %p242 = scmp.ne.s32.totalorder %s227, %s241
      %p243 = scmp.eq.s32.totalorder %s97, 0
      %p244 = por %p242, %p243
      %s246 = sadd.s32 %s245, 1
      %p249 = scmp.eq.s32.totalorder %s91, 1
      %p250 = scmp.ne.s32.totalorder %s245, %s247
      %p251 = scmp.eq.s32.totalorder %s91, 0
      %p252 = por %p250, %p251
      %p253 = scmp.ne.s32.totalorder %s245, %s247
      %p254 = scmp.eq.s32.totalorder %s96, 1
      %p255 = por %p253, %p254
      %p256 = scmp.ne.s32.totalorder %s247, %s248
      %p257 = scmp.eq.s32.totalorder %s96, 0
      %p258 = por %p256, %p257
      %p259 = scmp.ne.s32.totalorder %s247, %s248
      %p260 = scmp.eq.s32.totalorder %s97, 1
      %p261 = por %p259, %p260
      %p263 = scmp.ne.s32.totalorder %s248, %s262
      %p264 = scmp.eq.s32.totalorder %s97, 0
      %p265 = por %p263, %p264
      %s267 = sadd.s32 %s266, 1
      %p270 = scmp.eq.s32.totalorder %s91, 1
      %p271 = scmp.ne.s32.totalorder %s266, %s268
      %p272 = scmp.eq.s32.totalorder %s91, 0
      %p273 = por %p271, %p272
      %p274 = scmp.ne.s32.totalorder %s266, %s268
      %p275 = scmp.eq.s32.totalorder %s96, 1
      %p276 = por %p274, %p275
      %p277 = scmp.ne.s32.totalorder %s268, %s269
      %p278 = scmp.eq.s32.totalorder %s96, 0
      %p279 = por %p277, %p278
      %p280 = scmp.ne.s32.totalorder %s268, %s269
      %p281 = scmp.eq.s32.totalorder %s97, 1
      %p282 = por %p280, %p281
      %p284 = scmp.ne.s32.totalorder %s269, %s283
      %p285 = scmp.eq.s32.totalorder %s97, 0
      %p286 = por %p284, %p285
      %s288 = sadd.s32 %s287, 1
      %p291 = scmp.eq.s32.totalorder %s91, 1
      %p292 = scmp.ne.s32.totalorder %s287, %s289
      %p293 = scmp.eq.s32.totalorder %s91, 0
      %p294 = por %p292, %p293
      %p295 = scmp.ne.s32.totalorder %s287, %s289
      %p296 = scmp.eq.s32.totalorder %s96, 1
      %p297 = por %p295, %p296
      %p298 = scmp.ne.s32.totalorder %s289, %s290
      %p299 = scmp.eq.s32.totalorder %s96, 0
      %p300 = por %p298, %p299
      %p301 = scmp.ne.s32.totalorder %s289, %s290
      %p302 = scmp.eq.s32.totalorder %s97, 1
      %p303 = por %p301, %p302
      %p305 = scmp.ne.s32.totalorder %s290, %s304
      %p306 = scmp.eq.s32.totalorder %s97, 0
      %p307 = por %p305, %p306
      %s309 = sadd.s32 %s308, 1
      %p312 = scmp.eq.s32.totalorder %s91, 1
      %p313 = scmp.ne.s32.totalorder %s308, %s310
      %p314 = scmp.eq.s32.totalorder %s91, 0
      %p315 = por %p313, %p314
      %p316 = scmp.ne.s32.totalorder %s308, %s310
      %p317 = scmp.eq.s32.totalorder %s96, 1
      %p318 = por %p316, %p317
      %p319 = scmp.ne.s32.totalorder %s310, %s311
      %p320 = scmp.eq.s32.totalorder %s96, 0
      %p321 = por %p319, %p320
      %p322 = scmp.ne.s32.totalorder %s310, %s311
      %p323 = scmp.eq.s32.totalorder %s97, 1
      %p324 = por %p322, %p323
      %p326 = scmp.ne.s32.totalorder %s311, %s325
      %p327 = scmp.eq.s32.totalorder %s97, 0
      %p328 = por %p326, %p327
      %s330 = sadd.s32 %s329, 1
      %p333 = scmp.eq.s32.totalorder %s91, 1
      %p334 = scmp.ne.s32.totalorder %s329, %s331
      %p335 = scmp.eq.s32.totalorder %s91, 0
      %p336 = por %p334, %p335
      %p337 = scmp.ne.s32.totalorder %s329, %s331
      %p338 = scmp.eq.s32.totalorder %s96, 1
      %p339 = por %p337, %p338
      %p340 = scmp.ne.s32.totalorder %s331, %s332
      %p341 = scmp.eq.s32.totalorder %s96, 0
      %p342 = por %p340, %p341
      %p343 = scmp.ne.s32.totalorder %s331, %s332
      %p344 = scmp.eq.s32.totalorder %s97, 1
      %p345 = por %p343, %p344
      %p347 = scmp.ne.s32.totalorder %s332, %s346
      %p348 = scmp.eq.s32.totalorder %s97, 0
      %p349 = por %p347, %p348
      %s351 = sadd.s32 %s350, 1
      %p354 = scmp.eq.s32.totalorder %s91, 1
      %p355 = scmp.ne.s32.totalorder %s350, %s352
      %p356 = scmp.eq.s32.totalorder %s91, 0
      %p357 = por %p355, %p356
      %p358 = scmp.ne.s32.totalorder %s350, %s352
      %p359 = scmp.eq.s32.totalorder %s96, 1
      %p360 = por %p358, %p359
      %p361 = scmp.ne.s32.totalorder %s352, %s353
      %p362 = scmp.eq.s32.totalorder %s96, 0
      %p363 = por %p361, %p362
      %p364 = scmp.ne.s32.totalorder %s352, %s353
      %p365 = scmp.eq.s32.totalorder %s97, 1
      %p366 = por %p364, %p365
      %p368 = scmp.ne.s32.totalorder %s353, %s367
      %p369 = scmp.eq.s32.totalorder %s97, 0
      %p370 = por %p368, %p369
      %s372 = sadd.s32 %s371, 1
      %p375 = scmp.eq.s32.totalorder %s91, 1
      %p376 = scmp.ne.s32.totalorder %s371, %s373
      %p377 = scmp.eq.s32.totalorder %s91, 0
      %p378 = por %p376, %p377
      %p379 = scmp.ne.s32.totalorder %s371, %s373
      %p380 = scmp.eq.s32.totalorder %s96, 1
      %p381 = por %p379, %p380
      %p382 = scmp.ne.s32.totalorder %s373, %s374
      %p383 = scmp.eq.s32.totalorder %s96, 0
      %p384 = por %p382, %p383
      %p385 = scmp.ne.s32.totalorder %s373, %s374
      %p386 = scmp.eq.s32.totalorder %s97, 1
      %p387 = por %p385, %p386
      %p389 = scmp.ne.s32.totalorder %s374, %s388
      %p390 = scmp.eq.s32.totalorder %s97, 0
      %p391 = por %p389, %p390
      %s393 = sadd.s32 %s392, 1
      %p396 = scmp.eq.s32.totalorder %s91, 1
      %p397 = scmp.ne.s32.totalorder %s392, %s394
      %p398 = scmp.eq.s32.totalorder %s91, 0
      %p399 = por %p397, %p398
      %p400 = scmp.ne.s32.totalorder %s392, %s394
      %p401 = scmp.eq.s32.totalorder %s96, 1
      %p402 = por %p400, %p401
      %p403 = scmp.ne.s32.totalorder %s394, %s395
      %p404 = scmp.eq.s32.totalorder %s96, 0
      %p405 = por %p403, %p404
      %p406 = scmp.ne.s32.totalorder %s394, %s395
      %p407 = scmp.eq.s32.totalorder %s97, 1
      %p408 = por %p406, %p407
      %p410 = scmp.ne.s32.totalorder %s395, %s409
      %p411 = scmp.eq.s32.totalorder %s97, 0
      %p412 = por %p410, %p411
      %s414 = sadd.s32 %s413, 1
      %p417 = scmp.eq.s32.totalorder %s91, 1
      %p418 = scmp.ne.s32.totalorder %s413, %s415
      %p419 = scmp.eq.s32.totalorder %s91, 0
      %p420 = por %p418, %p419
      %p421 = scmp.ne.s32.totalorder %s413, %s415
      %p422 = scmp.eq.s32.totalorder %s96, 1
      %p423 = por %p421, %p422
      %p424 = scmp.ne.s32.totalorder %s415, %s416
      %p425 = scmp.eq.s32.totalorder %s96, 0
      %p426 = por %p424, %p425
      %p427 = scmp.ne.s32.totalorder %s415, %s416
      %p428 = scmp.eq.s32.totalorder %s97, 1
      %p429 = por %p427, %p428
      %p431 = scmp.ne.s32.totalorder %s416, %s430
      %p432 = scmp.eq.s32.totalorder %s97, 0
      %p433 = por %p431, %p432
      %s435 = sadd.s32 %s434, 1
      %p438 = scmp.eq.s32.totalorder %s91, 1
      %p439 = scmp.ne.s32.totalorder %s434, %s436
      %p440 = scmp.eq.s32.totalorder %s91, 0
      %p441 = por %p439, %p440
      %p442 = scmp.ne.s32.totalorder %s434, %s436
      %p443 = scmp.eq.s32.totalorder %s96, 1
      %p444 = por %p442, %p443
      %p445 = scmp.ne.s32.totalorder %s436, %s437
      %p446 = scmp.eq.s32.totalorder %s96, 0
      %p447 = por %p445, %p446
      %p448 = scmp.ne.s32.totalorder %s436, %s437
      %p449 = scmp.eq.s32.totalorder %s97, 1
      %p450 = por %p448, %p449
      %p452 = scmp.ne.s32.totalorder %s437, %s451
      %p453 = scmp.eq.s32.totalorder %s97, 0
      %p454 = por %p452, %p453
      %s456 = sadd.s32 %s455, 1
      %p459 = scmp.eq.s32.totalorder %s91, 1
      %p460 = scmp.ne.s32.totalorder %s455, %s457
      %p461 = scmp.eq.s32.totalorder %s91, 0
      %p462 = por %p460, %p461
      %p463 = scmp.ne.s32.totalorder %s455, %s457
      %p464 = scmp.eq.s32.totalorder %s96, 1
      %p465 = por %p463, %p464
      %p466 = scmp.ne.s32.totalorder %s457, %s458
      %p467 = scmp.eq.s32.totalorder %s96, 0
      %p468 = por %p466, %p467
      %p469 = scmp.ne.s32.totalorder %s457, %s458
      %p470 = scmp.eq.s32.totalorder %s97, 1
      %p471 = por %p469, %p470
      %p473 = scmp.ne.s32.totalorder %s458, %s472
      %p474 = scmp.eq.s32.totalorder %s97, 0
      %p475 = por %p473, %p474
      %s477 = sadd.s32 %s476, 1
      %p480 = scmp.eq.s32.totalorder %s91, 1
      %p481 = scmp.ne.s32.totalorder %s476, %s478
      %p482 = scmp.eq.s32.totalorder %s91, 0
      %p483 = por %p481, %p482
      %p484 = scmp.ne.s32.totalorder %s476, %s478
      %p485 = scmp.eq.s32.totalorder %s96, 1
      %p486 = por %p484, %p485
      %p487 = scmp.ne.s32.totalorder %s478, %s479
      %p488 = scmp.eq.s32.totalorder %s96, 0
      %p489 = por %p487, %p488
      %p490 = scmp.ne.s32.totalorder %s478, %s479
      %p491 = scmp.eq.s32.totalorder %s97, 1
      %p492 = por %p490, %p491
      %p494 = scmp.ne.s32.totalorder %s479, %s493
      %p495 = scmp.eq.s32.totalorder %s97, 0
      %p496 = por %p494, %p495
      %s498 = sadd.s32 %s497, 1
      %p501 = scmp.eq.s32.totalorder %s91, 1
      %p502 = scmp.ne.s32.totalorder %s497, %s499
      %p503 = scmp.eq.s32.totalorder %s91, 0
      %p504 = por %p502, %p503
      %p505 = scmp.ne.s32.totalorder %s497, %s499
      %p506 = scmp.eq.s32.totalorder %s96, 1
      %p507 = por %p505, %p506
      %p508 = scmp.ne.s32.totalorder %s499, %s500
      %p509 = scmp.eq.s32.totalorder %s96, 0
      %p510 = por %p508, %p509
      %p511 = scmp.ne.s32.totalorder %s499, %s500
      %p512 = scmp.eq.s32.totalorder %s97, 1
      %p513 = por %p511, %p512
      %p515 = scmp.ne.s32.totalorder %s500, %s514
      %p516 = scmp.eq.s32.totalorder %s97, 0
      %p517 = por %p515, %p516
      %s519 = sadd.s32 %s518, 1
      %p522 = scmp.eq.s32.totalorder %s91, 1
      %p523 = scmp.ne.s32.totalorder %s518, %s520
      %p524 = scmp.eq.s32.totalorder %s91, 0
      %p525 = por %p523, %p524
      %p526 = scmp.ne.s32.totalorder %s518, %s520
      %p527 = scmp.eq.s32.totalorder %s96, 1
      %p528 = por %p526, %p527
      %p529 = scmp.ne.s32.totalorder %s520, %s521
      %p530 = scmp.eq.s32.totalorder %s96, 0
      %p531 = por %p529, %p530
      %p532 = scmp.ne.s32.totalorder %s520, %s521
      %p533 = scmp.eq.s32.totalorder %s97, 1
      %p534 = por %p532, %p533
      %p536 = scmp.ne.s32.totalorder %s521, %s535
      %p537 = scmp.eq.s32.totalorder %s97, 0
      %p538 = por %p536, %p537
      %s540 = sadd.s32 %s539, 1
      %p543 = scmp.eq.s32.totalorder %s91, 1
      %p544 = scmp.ne.s32.totalorder %s539, %s541
      %p545 = scmp.eq.s32.totalorder %s91, 0
      %p546 = por %p544, %p545
      %p547 = scmp.ne.s32.totalorder %s539, %s541
      %p548 = scmp.eq.s32.totalorder %s96, 1
      %p549 = por %p547, %p548
      %p550 = scmp.ne.s32.totalorder %s541, %s542
      %p551 = scmp.eq.s32.totalorder %s96, 0
      %p552 = por %p550, %p551
      %p553 = scmp.ne.s32.totalorder %s541, %s542
      %p554 = scmp.eq.s32.totalorder %s97, 1
      %p555 = por %p553, %p554
      %p557 = scmp.ne.s32.totalorder %s542, %s556
      %p558 = scmp.eq.s32.totalorder %s97, 0
      %p559 = por %p557, %p558
      %s561 = sadd.s32 %s560, 1
      %p564 = scmp.eq.s32.totalorder %s91, 1
      %p565 = scmp.ne.s32.totalorder %s560, %s562
      %p566 = scmp.eq.s32.totalorder %s91, 0
      %p567 = por %p565, %p566
      %p568 = scmp.ne.s32.totalorder %s560, %s562
      %p569 = scmp.eq.s32.totalorder %s96, 1
      %p570 = por %p568, %p569
      %p571 = scmp.ne.s32.totalorder %s562, %s563
      %p572 = scmp.eq.s32.totalorder %s96, 0
      %p573 = por %p571, %p572
      %p574 = scmp.ne.s32.totalorder %s562, %s563
      %p575 = scmp.eq.s32.totalorder %s97, 1
      %p576 = por %p574, %p575
      %p578 = scmp.ne.s32.totalorder %s563, %s577
      %p579 = scmp.eq.s32.totalorder %s97, 0
      %p580 = por %p578, %p579
      %s582 = sadd.s32 %s581, 1
      %p585 = scmp.eq.s32.totalorder %s91, 1
      %p586 = scmp.ne.s32.totalorder %s581, %s583
      %p587 = scmp.eq.s32.totalorder %s91, 0
      %p588 = por %p586, %p587
      %p589 = scmp.ne.s32.totalorder %s581, %s583
      %p590 = scmp.eq.s32.totalorder %s96, 1
      %p591 = por %p589, %p590
      %p592 = scmp.ne.s32.totalorder %s583, %s584
      %p593 = scmp.eq.s32.totalorder %s96, 0
      %p594 = por %p592, %p593
      %p595 = scmp.ne.s32.totalorder %s583, %s584
      %p596 = scmp.eq.s32.totalorder %s97, 1
      %p597 = por %p595, %p596
      %p599 = scmp.ne.s32.totalorder %s584, %s598
      %p600 = scmp.eq.s32.totalorder %s97, 0
      %p601 = por %p599, %p600
      %s603 = sadd.s32 %s602, 1
      %p606 = scmp.eq.s32.totalorder %s91, 1
      %p607 = scmp.ne.s32.totalorder %s602, %s604
      %p608 = scmp.eq.s32.totalorder %s91, 0
      %p609 = por %p607, %p608
      %p610 = scmp.ne.s32.totalorder %s602, %s604
      %p611 = scmp.eq.s32.totalorder %s96, 1
      %p612 = por %p610, %p611
      %p613 = scmp.ne.s32.totalorder %s604, %s605
      %p614 = scmp.eq.s32.totalorder %s96, 0
      %p615 = por %p613, %p614
      %p616 = scmp.ne.s32.totalorder %s604, %s605
      %p617 = scmp.eq.s32.totalorder %s97, 1
      %p618 = por %p616, %p617
      %p620 = scmp.ne.s32.totalorder %s605, %s619
      %p621 = scmp.eq.s32.totalorder %s97, 0
      %p622 = por %p620, %p621
      %s624 = sadd.s32 %s623, 1
      %p627 = scmp.eq.s32.totalorder %s91, 1
      %p628 = scmp.ne.s32.totalorder %s623, %s625
      %p629 = scmp.eq.s32.totalorder %s91, 0
      %p630 = por %p628, %p629
      %p631 = scmp.ne.s32.totalorder %s623, %s625
      %p632 = scmp.eq.s32.totalorder %s96, 1
      %p633 = por %p631, %p632
      %p634 = scmp.ne.s32.totalorder %s625, %s626
      %p635 = scmp.eq.s32.totalorder %s96, 0
      %p636 = por %p634, %p635
      %p637 = scmp.ne.s32.totalorder %s625, %s626
      %p638 = scmp.eq.s32.totalorder %s97, 1
      %p639 = por %p637, %p638
      %p641 = scmp.ne.s32.totalorder %s626, %s640
      %p642 = scmp.eq.s32.totalorder %s97, 0
      %p643 = por %p641, %p642
      %s645 = sadd.s32 %s644, 1
      %p648 = scmp.eq.s32.totalorder %s91, 1
      %p649 = scmp.ne.s32.totalorder %s644, %s646
      %p650 = scmp.eq.s32.totalorder %s91, 0
      %p651 = por %p649, %p650
      %p652 = scmp.ne.s32.totalorder %s644, %s646
      %p653 = scmp.eq.s32.totalorder %s96, 1
      %p654 = por %p652, %p653
      %p655 = scmp.ne.s32.totalorder %s646, %s647
      %p656 = scmp.eq.s32.totalorder %s96, 0
      %p657 = por %p655, %p656
      %p658 = scmp.ne.s32.totalorder %s646, %s647
      %p659 = scmp.eq.s32.totalorder %s97, 1
      %p660 = por %p658, %p659
      %p662 = scmp.ne.s32.totalorder %s647, %s661
      %p663 = scmp.eq.s32.totalorder %s97, 0
      %p664 = por %p662, %p663
      %s666 = sadd.s32 %s665, 1
      %p669 = scmp.eq.s32.totalorder %s91, 1
      %p670 = scmp.ne.s32.totalorder %s665, %s667
      %p671 = scmp.eq.s32.totalorder %s91, 0
      %p672 = por %p670, %p671
      %p673 = scmp.ne.s32.totalorder %s665, %s667
      %p674 = scmp.eq.s32.totalorder %s96, 1
      %p675 = por %p673, %p674
      %p676 = scmp.ne.s32.totalorder %s667, %s668
      %p677 = scmp.eq.s32.totalorder %s96, 0
      %p678 = por %p676, %p677
      %p679 = scmp.ne.s32.totalorder %s667, %s668
      %p680 = scmp.eq.s32.totalorder %s97, 1
      %p681 = por %p679, %p680
      %p683 = scmp.ne.s32.totalorder %s668, %s682
      %p684 = scmp.eq.s32.totalorder %s97, 0
      %p685 = por %p683, %p684
      %s687 = sadd.s32 %s686, 1
      %p690 = scmp.eq.s32.totalorder %s91, 1
      %p691 = scmp.ne.s32.totalorder %s686, %s688
      %p692 = scmp.eq.s32.totalorder %s91, 0
      %p693 = por %p691, %p692
      %p694 = scmp.ne.s32.totalorder %s686, %s688
      %p695 = scmp.eq.s32.totalorder %s96, 1
      %p696 = por %p694, %p695
      %p697 = scmp.ne.s32.totalorder %s688, %s689
      %p698 = scmp.eq.s32.totalorder %s96, 0
      %p699 = por %p697, %p698
      %p700 = scmp.ne.s32.totalorder %s688, %s689
      %p701 = scmp.eq.s32.totalorder %s97, 1
      %p702 = por %p700, %p701
      %p704 = scmp.ne.s32.totalorder %s689, %s703
      %p705 = scmp.eq.s32.totalorder %s97, 0
      %p706 = por %p704, %p705
      %s708 = sadd.s32 %s707, 1
      %p711 = scmp.eq.s32.totalorder %s91, 1
      %p712 = scmp.ne.s32.totalorder %s707, %s709
      %p713 = scmp.eq.s32.totalorder %s91, 0
      %p714 = por %p712, %p713
      %p715 = scmp.ne.s32.totalorder %s707, %s709
      %p716 = scmp.eq.s32.totalorder %s96, 1
      %p717 = por %p715, %p716
      %p718 = scmp.ne.s32.totalorder %s709, %s710
      %p719 = scmp.eq.s32.totalorder %s96, 0
      %p720 = por %p718, %p719
      %p721 = scmp.ne.s32.totalorder %s709, %s710
      %p722 = scmp.eq.s32.totalorder %s97, 1
      %p723 = por %p721, %p722
      %p725 = scmp.ne.s32.totalorder %s710, %s724
      %p726 = scmp.eq.s32.totalorder %s97, 0
      %p727 = por %p725, %p726
      %s729 = sadd.s32 %s728, 1
      %p732 = scmp.eq.s32.totalorder %s91, 1
      %p733 = scmp.ne.s32.totalorder %s728, %s730
      %p734 = scmp.eq.s32.totalorder %s91, 0
      %p735 = por %p733, %p734
      %p736 = scmp.ne.s32.totalorder %s728, %s730
      %p737 = scmp.eq.s32.totalorder %s96, 1
      %p738 = por %p736, %p737
      %p739 = scmp.ne.s32.totalorder %s730, %s731
      %p740 = scmp.eq.s32.totalorder %s96, 0
      %p741 = por %p739, %p740
      %p742 = scmp.ne.s32.totalorder %s730, %s731
      %p743 = scmp.eq.s32.totalorder %s97, 1
      %p744 = por %p742, %p743
      %p746 = scmp.ne.s32.totalorder %s731, %s745
      %p747 = scmp.eq.s32.totalorder %s97, 0
      %p748 = por %p746, %p747
      %s750 = sadd.s32 %s749, 1
      %p753 = scmp.eq.s32.totalorder %s91, 1
      %p754 = scmp.ne.s32.totalorder %s749, %s751
      %p755 = scmp.eq.s32.totalorder %s91, 0
      %p756 = por %p754, %p755
      %p757 = scmp.ne.s32.totalorder %s749, %s751
      %p758 = scmp.eq.s32.totalorder %s96, 1
      %p759 = por %p757, %p758
      %p760 = scmp.ne.s32.totalorder %s751, %s752
      %p761 = scmp.eq.s32.totalorder %s96, 0
      %p762 = por %p760, %p761
      %p763 = scmp.ne.s32.totalorder %s751, %s752
      %p764 = scmp.eq.s32.totalorder %s97, 1
      %p765 = por %p763, %p764
      %p767 = scmp.ne.s32.totalorder %s752, %s766
      %p768 = scmp.eq.s32.totalorder %s97, 0
      %p769 = por %p767, %p768
      %s771 = sadd.s32 %s770, 1
      %p774 = scmp.eq.s32.totalorder %s91, 1
      %p775 = scmp.ne.s32.totalorder %s770, %s772
      %p776 = scmp.eq.s32.totalorder %s91, 0
      %p777 = por %p775, %p776
      %p778 = scmp.ne.s32.totalorder %s770, %s772
      %p779 = scmp.eq.s32.totalorder %s96, 1
      %p780 = por %p778, %p779
      %p781 = scmp.ne.s32.totalorder %s772, %s773
      %p782 = scmp.eq.s32.totalorder %s96, 0
      %p783 = por %p781, %p782
      %p784 = scmp.ne.s32.totalorder %s772, %s773
      %p785 = scmp.eq.s32.totalorder %s97, 1
      %p786 = por %p784, %p785
      %p788 = scmp.ne.s32.totalorder %s773, %s787
      %p789 = scmp.eq.s32.totalorder %s97, 0
      %p790 = por %p788, %p789
      %s792 = sadd.s32 %s791, 1
      %p795 = scmp.eq.s32.totalorder %s91, 1
      %p796 = scmp.ne.s32.totalorder %s791, %s793
      %p797 = scmp.eq.s32.totalorder %s91, 0
      %p798 = por %p796, %p797
      %p799 = scmp.ne.s32.totalorder %s791, %s793
      %p800 = scmp.eq.s32.totalorder %s96, 1
      %p801 = por %p799, %p800
      %p802 = scmp.ne.s32.totalorder %s793, %s794
      %p803 = scmp.eq.s32.totalorder %s96, 0
      %p804 = por %p802, %p803
      %p805 = scmp.ne.s32.totalorder %s793, %s794
      %p806 = scmp.eq.s32.totalorder %s97, 1
      %p807 = por %p805, %p806
      %p809 = scmp.ne.s32.totalorder %s794, %s808
      %p810 = scmp.eq.s32.totalorder %s97, 0
      %p811 = por %p809, %p810
      %s813 = sadd.s32 %s812, 1
      %p816 = scmp.eq.s32.totalorder %s91, 1
      %p817 = scmp.ne.s32.totalorder %s812, %s814
      %p818 = scmp.eq.s32.totalorder %s91, 0
      %p819 = por %p817, %p818
      %p820 = scmp.ne.s32.totalorder %s812, %s814
      %p821 = scmp.eq.s32.totalorder %s96, 1
      %p822 = por %p820, %p821
      %p823 = scmp.ne.s32.totalorder %s814, %s815
      %p824 = scmp.eq.s32.totalorder %s96, 0
      %p825 = por %p823, %p824
      %p826 = scmp.ne.s32.totalorder %s814, %s815
      %p827 = scmp.eq.s32.totalorder %s97, 1
      %p828 = por %p826, %p827
      %p830 = scmp.ne.s32.totalorder %s815, %s829
      %p831 = scmp.eq.s32.totalorder %s97, 0
      %p832 = por %p830, %p831
      %s834 = sadd.s32 %s833, 1
      %p837 = scmp.eq.s32.totalorder %s91, 1
      %p838 = scmp.ne.s32.totalorder %s833, %s835
      %p839 = scmp.eq.s32.totalorder %s91, 0
      %p840 = por %p838, %p839
      %p841 = scmp.ne.s32.totalorder %s833, %s835
      %p842 = scmp.eq.s32.totalorder %s96, 1
      %p843 = por %p841, %p842
      %p844 = scmp.ne.s32.totalorder %s835, %s836
      %p845 = scmp.eq.s32.totalorder %s96, 0
      %p846 = por %p844, %p845
      %p847 = scmp.ne.s32.totalorder %s835, %s836
      %p848 = scmp.eq.s32.totalorder %s97, 1
      %p849 = por %p847, %p848
      %p851 = scmp.ne.s32.totalorder %s836, %s850
      %p852 = scmp.eq.s32.totalorder %s97, 0
      %p853 = por %p851, %p852
      %s855 = sadd.s32 %s854, 1
      %p858 = scmp.eq.s32.totalorder %s91, 1
      %p859 = scmp.ne.s32.totalorder %s854, %s856
      %p860 = scmp.eq.s32.totalorder %s91, 0
      %p861 = por %p859, %p860
      %p862 = scmp.ne.s32.totalorder %s854, %s856
      %p863 = scmp.eq.s32.totalorder %s96, 1
      %p864 = por %p862, %p863
      %p865 = scmp.ne.s32.totalorder %s856, %s857
      %p866 = scmp.eq.s32.totalorder %s96, 0
      %p867 = por %p865, %p866
      %p868 = scmp.ne.s32.totalorder %s856, %s857
      %p869 = scmp.eq.s32.totalorder %s97, 1
      %p870 = por %p868, %p869
      %p872 = scmp.ne.s32.totalorder %s857, %s871
      %p873 = scmp.eq.s32.totalorder %s97, 0
      %p874 = por %p872, %p873
      %s876 = sadd.s32 %s875, 1
      %p879 = scmp.eq.s32.totalorder %s91, 1
      %p880 = scmp.ne.s32.totalorder %s875, %s877
      %p881 = scmp.eq.s32.totalorder %s91, 0
      %p882 = por %p880, %p881
      %p883 = scmp.ne.s32.totalorder %s875, %s877
      %p884 = scmp.eq.s32.totalorder %s96, 1
      %p885 = por %p883, %p884
      %p886 = scmp.ne.s32.totalorder %s877, %s878
      %p887 = scmp.eq.s32.totalorder %s96, 0
      %p888 = por %p886, %p887
      %p889 = scmp.ne.s32.totalorder %s877, %s878
      %p890 = scmp.eq.s32.totalorder %s97, 1
      %p891 = por %p889, %p890
      %p893 = scmp.ne.s32.totalorder %s878, %s892
      %p894 = scmp.eq.s32.totalorder %s97, 0
      %p895 = por %p893, %p894
      %s897 = sadd.s32 %s896, 1
      %p900 = scmp.eq.s32.totalorder %s91, 1
      %p901 = scmp.ne.s32.totalorder %s896, %s898
      %p902 = scmp.eq.s32.totalorder %s91, 0
      %p903 = por %p901, %p902
      %p904 = scmp.ne.s32.totalorder %s896, %s898
      %p905 = scmp.eq.s32.totalorder %s96, 1
      %p906 = por %p904, %p905
      %p907 = scmp.ne.s32.totalorder %s898, %s899
      %p908 = scmp.eq.s32.totalorder %s96, 0
      %p909 = por %p907, %p908
      %p910 = scmp.ne.s32.totalorder %s898, %s899
      %p911 = scmp.eq.s32.totalorder %s97, 1
      %p912 = por %p910, %p911
      %p914 = scmp.ne.s32.totalorder %s899, %s913
      %p915 = scmp.eq.s32.totalorder %s97, 0
      %p916 = por %p914, %p915
      %s918 = sadd.s32 %s917, 1
      %p921 = scmp.eq.s32.totalorder %s91, 1
      %p922 = scmp.ne.s32.totalorder %s917, %s919
      %p923 = scmp.eq.s32.totalorder %s91, 0
      %p924 = por %p922, %p923
      %p925 = scmp.ne.s32.totalorder %s917, %s919
      %p926 = scmp.eq.s32.totalorder %s96, 1
      %p927 = por %p925, %p926
      %p928 = scmp.ne.s32.totalorder %s919, %s920
      %p929 = scmp.eq.s32.totalorder %s96, 0
      %p930 = por %p928, %p929
      %p931 = scmp.ne.s32.totalorder %s919, %s920
      %p932 = scmp.eq.s32.totalorder %s97, 1
      %p933 = por %p931, %p932
      %p935 = scmp.ne.s32.totalorder %s920, %s934
      %p936 = scmp.eq.s32.totalorder %s97, 0
      %p937 = por %p935, %p936
      %s939 = sadd.s32 %s938, 1
      %p942 = scmp.eq.s32.totalorder %s91, 1
      %p943 = scmp.ne.s32.totalorder %s938, %s940
      %p944 = scmp.eq.s32.totalorder %s91, 0
      %p945 = por %p943, %p944
      %p946 = scmp.ne.s32.totalorder %s938, %s940
      %p947 = scmp.eq.s32.totalorder %s96, 1
      %p948 = por %p946, %p947
      %p949 = scmp.ne.s32.totalorder %s940, %s941
      %p950 = scmp.eq.s32.totalorder %s96, 0
      %p951 = por %p949, %p950
      %p952 = scmp.ne.s32.totalorder %s940, %s941
      %p953 = scmp.eq.s32.totalorder %s97, 1
      %p954 = por %p952, %p953
      %p956 = scmp.ne.s32.totalorder %s941, %s955
      %p957 = scmp.eq.s32.totalorder %s97, 0
      %p958 = por %p956, %p957
      %s959 = ssub.s32 %s91, %s98
      %p960 = scmp.eq.s32.totalorder %s959, 0
      %s962 = sadd.s32 %s961, 1
      %s963 = scalar_select %p960, %s961, %s962
      %p966 = pneg %p960
      %p967 = scmp.eq.s32.totalorder %s91, 1
      %p968 = por %p966, %p967
      %p969 = scmp.ne.s32.totalorder %s961, %s964
      %p970 = scmp.eq.s32.totalorder %s91, 0
      %p971 = por %p969, %p970
      %p972 = scmp.ne.s32.totalorder %s961, %s964
      %p973 = scmp.eq.s32.totalorder %s96, 1
      %p974 = por %p972, %p973
      %p975 = scmp.ne.s32.totalorder %s964, %s965
      %p976 = scmp.eq.s32.totalorder %s96, 0
      %p977 = por %p975, %p976
      %p978 = scmp.ne.s32.totalorder %s964, %s965
      %p979 = scmp.eq.s32.totalorder %s97, 1
      %p980 = por %p978, %p979
      %p982 = scmp.ne.s32.totalorder %s965, %s981
      %p983 = scmp.eq.s32.totalorder %s97, 0
      %p984 = por %p982, %p983
      %p985 = scmp.le.s32.totalorder 1, %s91
      %p986 = scmp.lt.s32.totalorder %s91, 3
      %p987 = pnand %p985, %p986
      %p988 = pneg %p987
      // Predicated region
      $region9: #{encoder_decoder_forward.1} parent=5 // pred_check
        _
      $region10: #{encoder_decoder_forward.1} parent=5 // pred_check_branch
        %990 = sbr.rel (%p987) target = $region12
      $region11: #{encoder_decoder_forward.1} parent=5 // pred_region
        %s991 = ssub.s32 %s91, 1
        // Predicated region
        $region13: #{encoder_decoder_forward.1} parent=11 // pred_check
          %p992 = pneg %p216
        $region14: #{encoder_decoder_forward.1} parent=11 // pred_check_branch
          %994 = sbr.rel (%p992) target = $region16
        $region15: #{encoder_decoder_forward.1} parent=11 // pred_region
          _
        $region16: #{encoder_decoder_forward.1} parent=11 // pred_fallthru
          _
        // Predicated region
        $region17: #{encoder_decoder_forward.1} parent=11 // pred_check
          %p995 = pneg %p237
        $region18: #{encoder_decoder_forward.1} parent=11 // pred_check_branch
          %997 = sbr.rel (%p995) target = $region20
        $region19: #{encoder_decoder_forward.1} parent=11 // pred_region
          _
        $region20: #{encoder_decoder_forward.1} parent=11 // pred_fallthru
          _
        // Predicated region
        $region21: #{encoder_decoder_forward.1} parent=11 // pred_check
          %p998 = pneg %p258
        $region22: #{encoder_decoder_forward.1} parent=11 // pred_check_branch
          %1000 = sbr.rel (%p998) target = $region24
        $region23: #{encoder_decoder_forward.1} parent=11 // pred_region
          _
        $region24: #{encoder_decoder_forward.1} parent=11 // pred_fallthru
          _
        // Predicated region
        $region25: #{encoder_decoder_forward.1} parent=11 // pred_check
          %p1001 = pneg %p279
        $region26: #{encoder_decoder_forward.1} parent=11 // pred_check_branch
          %1003 = sbr.rel (%p1001) target = $region28
        $region27: #{encoder_decoder_forward.1} parent=11 // pred_region
          _
        $region28: #{encoder_decoder_forward.1} parent=11 // pred_fallthru
          _
        // Predicated region
        $region29: #{encoder_decoder_forward.1} parent=11 // pred_check
          %p1004 = pneg %p300
        $region30: #{encoder_decoder_forward.1} parent=11 // pred_check_branch
          %1006 = sbr.rel (%p1004) target = $region32
        $region31: #{encoder_decoder_forward.1} parent=11 // pred_region
          _
        $region32: #{encoder_decoder_forward.1} parent=11 // pred_fallthru
          _
        // Predicated region
        $region33: #{encoder_decoder_forward.1} parent=11 // pred_check
          %p1007 = pneg %p321
        $region34: #{encoder_decoder_forward.1} parent=11 // pred_check_branch
          %1009 = sbr.rel (%p1007) target = $region36
        $region35: #{encoder_decoder_forward.1} parent=11 // pred_region
          _
        $region36: #{encoder_decoder_forward.1} parent=11 // pred_fallthru
          _
        // Predicated region
        $region37: #{encoder_decoder_forward.1} parent=11 // pred_check
          %p1010 = pneg %p342
        $region38: #{encoder_decoder_forward.1} parent=11 // pred_check_branch
          %1012 = sbr.rel (%p1010) target = $region40
        $region39: #{encoder_decoder_forward.1} parent=11 // pred_region
          _
        $region40: #{encoder_decoder_forward.1} parent=11 // pred_fallthru
          _
        // Predicated region
        $region41: #{encoder_decoder_forward.1} parent=11 // pred_check
          %p1013 = pneg %p363
        $region42: #{encoder_decoder_forward.1} parent=11 // pred_check_branch
          %1015 = sbr.rel (%p1013) target = $region44
        $region43: #{encoder_decoder_forward.1} parent=11 // pred_region
          _
        $region44: #{encoder_decoder_forward.1} parent=11 // pred_fallthru
          _
        // Predicated region
        $region45: #{encoder_decoder_forward.1} parent=11 // pred_check
          %p1016 = pneg %p384
        $region46: #{encoder_decoder_forward.1} parent=11 // pred_check_branch
          %1018 = sbr.rel (%p1016) target = $region48
        $region47: #{encoder_decoder_forward.1} parent=11 // pred_region
          _
        $region48: #{encoder_decoder_forward.1} parent=11 // pred_fallthru
          _
        // Predicated region
        $region49: #{encoder_decoder_forward.1} parent=11 // pred_check
          %p1019 = pneg %p405
        $region50: #{encoder_decoder_forward.1} parent=11 // pred_check_branch
          %1021 = sbr.rel (%p1019) target = $region52
        $region51: #{encoder_decoder_forward.1} parent=11 // pred_region
          _
        $region52: #{encoder_decoder_forward.1} parent=11 // pred_fallthru
          _
        // Predicated region
        $region53: #{encoder_decoder_forward.1} parent=11 // pred_check
          %p1022 = pneg %p426
        $region54: #{encoder_decoder_forward.1} parent=11 // pred_check_branch
          %1024 = sbr.rel (%p1022) target = $region56
        $region55: #{encoder_decoder_forward.1} parent=11 // pred_region
          _
        $region56: #{encoder_decoder_forward.1} parent=11 // pred_fallthru
          _
        // Predicated region
        $region57: #{encoder_decoder_forward.1} parent=11 // pred_check
          %p1025 = pneg %p447
        $region58: #{encoder_decoder_forward.1} parent=11 // pred_check_branch
          %1027 = sbr.rel (%p1025) target = $region60
        $region59: #{encoder_decoder_forward.1} parent=11 // pred_region
          _
        $region60: #{encoder_decoder_forward.1} parent=11 // pred_fallthru
          _
        // Predicated region
        $region61: #{encoder_decoder_forward.1} parent=11 // pred_check
          %p1028 = pneg %p468
        $region62: #{encoder_decoder_forward.1} parent=11 // pred_check_branch
          %1030 = sbr.rel (%p1028) target = $region64
        $region63: #{encoder_decoder_forward.1} parent=11 // pred_region
          _
        $region64: #{encoder_decoder_forward.1} parent=11 // pred_fallthru
          _
        // Predicated region
        $region65: #{encoder_decoder_forward.1} parent=11 // pred_check
          %p1031 = pneg %p489
        $region66: #{encoder_decoder_forward.1} parent=11 // pred_check_branch
          %1033 = sbr.rel (%p1031) target = $region68
        $region67: #{encoder_decoder_forward.1} parent=11 // pred_region
          _
        $region68: #{encoder_decoder_forward.1} parent=11 // pred_fallthru
          _
        // Predicated region
        $region69: #{encoder_decoder_forward.1} parent=11 // pred_check
          %p1034 = pneg %p510
        $region70: #{encoder_decoder_forward.1} parent=11 // pred_check_branch
          %1036 = sbr.rel (%p1034) target = $region72
        $region71: #{encoder_decoder_forward.1} parent=11 // pred_region
          _
        $region72: #{encoder_decoder_forward.1} parent=11 // pred_fallthru
          _
        // Predicated region
        $region73: #{encoder_decoder_forward.1} parent=11 // pred_check
          %p1037 = pneg %p531
        $region74: #{encoder_decoder_forward.1} parent=11 // pred_check_branch
          %1039 = sbr.rel (%p1037) target = $region76
        $region75: #{encoder_decoder_forward.1} parent=11 // pred_region
          _
        $region76: #{encoder_decoder_forward.1} parent=11 // pred_fallthru
          _
        // Predicated region
        $region77: #{encoder_decoder_forward.1} parent=11 // pred_check
          %p1040 = pneg %p552
        $region78: #{encoder_decoder_forward.1} parent=11 // pred_check_branch
          %1042 = sbr.rel (%p1040) target = $region80
        $region79: #{encoder_decoder_forward.1} parent=11 // pred_region
          _
        $region80: #{encoder_decoder_forward.1} parent=11 // pred_fallthru
          _
        // Predicated region
        $region81: #{encoder_decoder_forward.1} parent=11 // pred_check
          %p1043 = pneg %p573
        $region82: #{encoder_decoder_forward.1} parent=11 // pred_check_branch
          %1045 = sbr.rel (%p1043) target = $region84
        $region83: #{encoder_decoder_forward.1} parent=11 // pred_region
          _
        $region84: #{encoder_decoder_forward.1} parent=11 // pred_fallthru
          _
        // Predicated region
        $region85: #{encoder_decoder_forward.1} parent=11 // pred_check
          %p1046 = pneg %p594
        $region86: #{encoder_decoder_forward.1} parent=11 // pred_check_branch
          %1048 = sbr.rel (%p1046) target = $region88
        $region87: #{encoder_decoder_forward.1} parent=11 // pred_region
          _
        $region88: #{encoder_decoder_forward.1} parent=11 // pred_fallthru
          _
        // Predicated region
        $region89: #{encoder_decoder_forward.1} parent=11 // pred_check
          %p1049 = pneg %p615
        $region90: #{encoder_decoder_forward.1} parent=11 // pred_check_branch
          %1051 = sbr.rel (%p1049) target = $region92
        $region91: #{encoder_decoder_forward.1} parent=11 // pred_region
          _
        $region92: #{encoder_decoder_forward.1} parent=11 // pred_fallthru
          _
        // Predicated region
        $region93: #{encoder_decoder_forward.1} parent=11 // pred_check
          %p1052 = pneg %p636
        $region94: #{encoder_decoder_forward.1} parent=11 // pred_check_branch
          %1054 = sbr.rel (%p1052) target = $region96
        $region95: #{encoder_decoder_forward.1} parent=11 // pred_region
          _
        $region96: #{encoder_decoder_forward.1} parent=11 // pred_fallthru
          _
        // Predicated region
        $region97: #{encoder_decoder_forward.1} parent=11 // pred_check
          %p1055 = pneg %p657
        $region98: #{encoder_decoder_forward.1} parent=11 // pred_check_branch
          %1057 = sbr.rel (%p1055) target = $region100
        $region99: #{encoder_decoder_forward.1} parent=11 // pred_region
          _
        $region100: #{encoder_decoder_forward.1} parent=11 // pred_fallthru
          _
        // Predicated region
        $region101: #{encoder_decoder_forward.1} parent=11 // pred_check
          %p1058 = pneg %p678
        $region102: #{encoder_decoder_forward.1} parent=11 // pred_check_branch
          %1060 = sbr.rel (%p1058) target = $region104
        $region103: #{encoder_decoder_forward.1} parent=11 // pred_region
          _
        $region104: #{encoder_decoder_forward.1} parent=11 // pred_fallthru
          _
        // Predicated region
        $region105: #{encoder_decoder_forward.1} parent=11 // pred_check
          %p1061 = pneg %p699
        $region106: #{encoder_decoder_forward.1} parent=11 // pred_check_branch
          %1063 = sbr.rel (%p1061) target = $region108
        $region107: #{encoder_decoder_forward.1} parent=11 // pred_region
          _
        $region108: #{encoder_decoder_forward.1} parent=11 // pred_fallthru
          _
        // Predicated region
        $region109: #{encoder_decoder_forward.1} parent=11 // pred_check
          %p1064 = pneg %p720
        $region110: #{encoder_decoder_forward.1} parent=11 // pred_check_branch
          %1066 = sbr.rel (%p1064) target = $region112
        $region111: #{encoder_decoder_forward.1} parent=11 // pred_region
          _
        $region112: #{encoder_decoder_forward.1} parent=11 // pred_fallthru
          _
        // Predicated region
        $region113: #{encoder_decoder_forward.1} parent=11 // pred_check
          %p1067 = pneg %p741
        $region114: #{encoder_decoder_forward.1} parent=11 // pred_check_branch
          %1069 = sbr.rel (%p1067) target = $region116
        $region115: #{encoder_decoder_forward.1} parent=11 // pred_region
          _
        $region116: #{encoder_decoder_forward.1} parent=11 // pred_fallthru
          _
        // Predicated region
        $region117: #{encoder_decoder_forward.1} parent=11 // pred_check
          %p1070 = pneg %p762
        $region118: #{encoder_decoder_forward.1} parent=11 // pred_check_branch
          %1072 = sbr.rel (%p1070) target = $region120
        $region119: #{encoder_decoder_forward.1} parent=11 // pred_region
          _
        $region120: #{encoder_decoder_forward.1} parent=11 // pred_fallthru
          _
        // Predicated region
        $region121: #{encoder_decoder_forward.1} parent=11 // pred_check
          %p1073 = pneg %p783
        $region122: #{encoder_decoder_forward.1} parent=11 // pred_check_branch
          %1075 = sbr.rel (%p1073) target = $region124
        $region123: #{encoder_decoder_forward.1} parent=11 // pred_region
          _
        $region124: #{encoder_decoder_forward.1} parent=11 // pred_fallthru
          _
        // Predicated region
        $region125: #{encoder_decoder_forward.1} parent=11 // pred_check
          %p1076 = pneg %p804
        $region126: #{encoder_decoder_forward.1} parent=11 // pred_check_branch
          %1078 = sbr.rel (%p1076) target = $region128
        $region127: #{encoder_decoder_forward.1} parent=11 // pred_region
          _
        $region128: #{encoder_decoder_forward.1} parent=11 // pred_fallthru
          _
        // Predicated region
        $region129: #{encoder_decoder_forward.1} parent=11 // pred_check
          %p1079 = pneg %p825
        $region130: #{encoder_decoder_forward.1} parent=11 // pred_check_branch
          %1081 = sbr.rel (%p1079) target = $region132
        $region131: #{encoder_decoder_forward.1} parent=11 // pred_region
          _
        $region132: #{encoder_decoder_forward.1} parent=11 // pred_fallthru
          _
        // Predicated region
        $region133: #{encoder_decoder_forward.1} parent=11 // pred_check
          %p1082 = pneg %p846
        $region134: #{encoder_decoder_forward.1} parent=11 // pred_check_branch
          %1084 = sbr.rel (%p1082) target = $region136
        $region135: #{encoder_decoder_forward.1} parent=11 // pred_region
          _
        $region136: #{encoder_decoder_forward.1} parent=11 // pred_fallthru
          _
        // Predicated region
        $region137: #{encoder_decoder_forward.1} parent=11 // pred_check
          %p1085 = pneg %p867
        $region138: #{encoder_decoder_forward.1} parent=11 // pred_check_branch
          %1087 = sbr.rel (%p1085) target = $region140
        $region139: #{encoder_decoder_forward.1} parent=11 // pred_region
          _
        $region140: #{encoder_decoder_forward.1} parent=11 // pred_fallthru
          _
        // Predicated region
        $region141: #{encoder_decoder_forward.1} parent=11 // pred_check
          %p1088 = pneg %p888
        $region142: #{encoder_decoder_forward.1} parent=11 // pred_check_branch
          %1090 = sbr.rel (%p1088) target = $region144
        $region143: #{encoder_decoder_forward.1} parent=11 // pred_region
          _
        $region144: #{encoder_decoder_forward.1} parent=11 // pred_fallthru
          _
        // Predicated region
        $region145: #{encoder_decoder_forward.1} parent=11 // pred_check
          %p1091 = pneg %p909
        $region146: #{encoder_decoder_forward.1} parent=11 // pred_check_branch
          %1093 = sbr.rel (%p1091) target = $region148
        $region147: #{encoder_decoder_forward.1} parent=11 // pred_region
          _
        $region148: #{encoder_decoder_forward.1} parent=11 // pred_fallthru
          _
        // Predicated region
        $region149: #{encoder_decoder_forward.1} parent=11 // pred_check
          %p1094 = pneg %p930
        $region150: #{encoder_decoder_forward.1} parent=11 // pred_check_branch
          %1096 = sbr.rel (%p1094) target = $region152
        $region151: #{encoder_decoder_forward.1} parent=11 // pred_region
          _
        $region152: #{encoder_decoder_forward.1} parent=11 // pred_fallthru
          _
        // Predicated region
        $region153: #{encoder_decoder_forward.1} parent=11 // pred_check
          %p1097 = pneg %p951
        $region154: #{encoder_decoder_forward.1} parent=11 // pred_check_branch
          %1099 = sbr.rel (%p1097) target = $region156
        $region155: #{encoder_decoder_forward.1} parent=11 // pred_region
          %s1101 = ssub.s32 16, 16
          %1102 = vsyncadd [#allocation3], %s1101
          %s1104 = sshll.u32 [#allocation2], 4
          %s1105 = int_to_ptr.vmem [resolvable:$true] %s1104
          %1107 = dma.hbm_to_vmem [thread:$0]  %s79, 16, %s1105, [#allocation3]
        $region156: #{encoder_decoder_forward.1} parent=11 // pred_fallthru
          _
      $region12: #{encoder_decoder_forward.1} parent=5 // pred_fallthru
        _
      %p1108 = scmp.lt.s32.totalorder %s91, 2
      // Predicated region
      $region157: #{encoder_decoder_forward.1} parent=5 // pred_check
        %p1109 = pneg %p1108
      $region158: #{encoder_decoder_forward.1} parent=5 // pred_check_branch
        %1111 = sbr.rel (%p1109) target = $region160
      $region159: #{encoder_decoder_forward.1} parent=5 // pred_region
        // Predicated region
        $region161: #{encoder_decoder_forward.1} parent=159 // pred_check
          %p1112 = pneg %p111
        $region162: #{encoder_decoder_forward.1} parent=159 // pred_check_branch
          %1114 = sbr.rel (%p1112) target = $region164
        $region163: #{encoder_decoder_forward.1} parent=159 // pred_region
          %p1115 = scmp.lt.s32.totalorder %s91, 1
          %s1116 = scalar_select %p1115, %s91, 1
          %s1117 = smul.addr %s1116, 8
          %s1118 = scalar_lea.vmem %s1, %s1117
        $region164: #{encoder_decoder_forward.1} parent=159 // pred_fallthru
          _
        // Predicated region
        $region165: #{encoder_decoder_forward.1} parent=159 // pred_check
          %p1119 = pneg %p137
        $region166: #{encoder_decoder_forward.1} parent=159 // pred_check_branch
          %1121 = sbr.rel (%p1119) target = $region168
        $region167: #{encoder_decoder_forward.1} parent=159 // pred_region
          %p1122 = scmp.lt.s32.totalorder %s91, 1
          %s1123 = scalar_select %p1122, %s91, 1
          %s1124 = smul.addr %s1123, 8
          %s1125 = scalar_lea.vmem %s3, %s1124
        $region168: #{encoder_decoder_forward.1} parent=159 // pred_fallthru
          _
        // Predicated region
        $region169: #{encoder_decoder_forward.1} parent=159 // pred_check
          %p1126 = pneg %p163
        $region170: #{encoder_decoder_forward.1} parent=159 // pred_check_branch
          %1128 = sbr.rel (%p1126) target = $region172
        $region171: #{encoder_decoder_forward.1} parent=159 // pred_region
          %p1129 = scmp.lt.s32.totalorder %s91, 1
          %s1130 = scalar_select %p1129, %s91, 1
          %s1131 = scalar_lea.vmem %s5, %s1130
        $region172: #{encoder_decoder_forward.1} parent=159 // pred_fallthru
          _
        // Predicated region
        $region173: #{encoder_decoder_forward.1} parent=159 // pred_check
          %p1132 = pneg %p189
        $region174: #{encoder_decoder_forward.1} parent=159 // pred_check_branch
          %1134 = sbr.rel (%p1132) target = $region176
        $region175: #{encoder_decoder_forward.1} parent=159 // pred_region
          %p1135 = scmp.lt.s32.totalorder %s91, 1
          %s1136 = scalar_select %p1135, %s91, 1
          %s1137 = smul.addr %s1136, 8
          %s1138 = scalar_lea.vmem %s7, %s1137
        $region176: #{encoder_decoder_forward.1} parent=159 // pred_fallthru
          _
      $region160: #{encoder_decoder_forward.1} parent=5 // pred_fallthru
        _
      %p1139 = scmp.le.s32.totalorder 1, %s91
      %p1140 = scmp.lt.s32.totalorder %s91, 3
      %p1141 = pnand %p1139, %p1140
      %p1142 = pneg %p1141
      // Predicated region
      $region177: #{encoder_decoder_forward.1} parent=5 // pred_check
        _
      $region178: #{encoder_decoder_forward.1} parent=5 // pred_check_branch
        %1144 = sbr.rel (%p1141) target = $region180
      $region179: #{encoder_decoder_forward.1} parent=5 // pred_region
        %s1145 = ssub.s32 %s91, 1
        // Predicated region
        $region181: #{encoder_decoder_forward.1} parent=179 // pred_check
          %p1146 = pneg %p951
        $region182: #{encoder_decoder_forward.1} parent=179 // pred_check_branch
          %1148 = sbr.rel (%p1146) target = $region184
        $region183: #{encoder_decoder_forward.1} parent=179 // pred_region
          %1149 = dma.done [#allocation3], 16
        $region184: #{encoder_decoder_forward.1} parent=179 // pred_fallthru
          _
        %p1150 = scmp.lt.s32.totalorder %s96, 1
        %s1151 = scalar_select %p1150, %s96, 1
        %s1152 = smul.addr %s1151, 8
        %s1153 = scalar_lea.vmem %s1, %s1152
        %p1154 = pneg %p117
        %p1155 = pneg %p114
        %p1156 = scmp.lt.s32.totalorder %s96, 1
        %s1157 = scalar_select %p1156, %s96, 1
        %s1158 = smul.addr %s1157, 8
        %s1159 = scalar_lea.vmem %s3, %s1158
        %p1160 = pneg %p143
        %p1161 = pneg %p140
        %p1162 = scmp.lt.s32.totalorder %s96, 1
        %s1163 = scalar_select %p1162, %s96, 1
        %s1164 = scalar_lea.vmem %s5, %s1163
        %p1165 = pneg %p169
        %p1166 = pneg %p166
        %p1167 = scmp.lt.s32.totalorder %s96, 1
        %s1168 = scalar_select %p1167, %s96, 1
        %s1169 = smul.addr %s1168, 8
        %s1170 = scalar_lea.vmem %s7, %s1169
        %p1171 = pneg %p195
        %p1172 = pneg %p192
        %p1173 = pneg %p216
        %p1174 = pneg %p213
        %p1175 = pneg %p237
        %p1176 = pneg %p234
        %p1177 = pneg %p258
        %p1178 = pneg %p255
        %p1179 = pneg %p279
        %p1180 = pneg %p276
        %p1181 = pneg %p300
        %p1182 = pneg %p297
        %p1183 = pneg %p321
        %p1184 = pneg %p318
        %p1185 = pneg %p342
        %p1186 = pneg %p339
        %p1187 = pneg %p363
        %p1188 = pneg %p360
        %p1189 = pneg %p384
        %p1190 = pneg %p381
        %p1191 = pneg %p405
        %p1192 = pneg %p402
        %p1193 = pneg %p426
        %p1194 = pneg %p423
        %p1195 = pneg %p447
        %p1196 = pneg %p444
        %p1197 = pneg %p468
        %p1198 = pneg %p465
        %p1199 = pneg %p489
        %p1200 = pneg %p486
        %p1201 = pneg %p510
        %p1202 = pneg %p507
        %p1203 = pneg %p531
        %p1204 = pneg %p528
        %p1205 = pneg %p552
        %p1206 = pneg %p549
        %p1207 = pneg %p573
        %p1208 = pneg %p570
        %p1209 = pneg %p594
        %p1210 = pneg %p591
        %p1211 = pneg %p615
        %p1212 = pneg %p612
        %p1213 = pneg %p636
        %p1214 = pneg %p633
        %p1215 = pneg %p657
        %p1216 = pneg %p654
        %p1217 = pneg %p678
        %p1218 = pneg %p675
        %p1219 = pneg %p699
        %p1220 = pneg %p696
        %p1221 = pneg %p720
        %p1222 = pneg %p717
        %p1223 = pneg %p741
        %p1224 = pneg %p738
        %p1225 = pneg %p762
        %p1226 = pneg %p759
        %p1227 = pneg %p783
        %p1228 = pneg %p780
        %p1229 = pneg %p804
        %p1230 = pneg %p801
        %p1231 = pneg %p825
        %p1232 = pneg %p822
        %p1233 = pneg %p846
        %p1234 = pneg %p843
        %p1235 = pneg %p867
        %p1236 = pneg %p864
        %p1237 = pneg %p888
        %p1238 = pneg %p885
        %p1239 = pneg %p909
        %p1240 = pneg %p906
        %p1241 = pneg %p930
        %p1242 = pneg %p927
        %p1243 = pneg %p951
        %p1244 = pneg %p948
        %p1245 = pneg %p977
        %p1246 = pneg %p974
        %s1247 = sand.u32 %s964, 1
        %s1248 = scalar_lea.sflag [#allocation4], %s1247
        %s1249 = sand.u32 %s964, 1
        %s1250 = smul.addr %s1249, 8
        %s1251 = scalar_lea.vmem [#allocation5], %s1250
        %p1252 = scmp.lt.s32.totalorder %s96, 1
        %s1253 = scalar_select %p1252, %s96, 1
        %s1254 = smul.addr %s1253, 8
        %s1255 = scalar_lea.vmem %s1, %s1254
        %p1256 = scmp.lt.s32.totalorder %s96, 1
        %s1257 = scalar_select %p1256, %s96, 1
        %s1258 = smul.addr %s1257, 8
        %s1259 = scalar_lea.vmem %s3, %s1258
        %p1260 = scmp.lt.s32.totalorder %s96, 1
        %s1261 = scalar_select %p1260, %s96, 1
        %s1262 = scalar_lea.vmem %s5, %s1261
        %p1263 = scmp.lt.s32.totalorder %s96, 1
        %s1264 = scalar_select %p1263, %s96, 1
        %s1265 = smul.addr %s1264, 8
        %s1266 = scalar_lea.vmem %s7, %s1265
        %v1267 = vld [vmem:[%s1262] sm:$0x1]
        %vm1268 = vcmp.ne.s32.totalorder %v1267, 0
        %v1269 = vsel %vm1268, 0.0, -1e+09
        %v1270 = vld [vmem:[%s1266] sm:$0xff]
        %vm1271 = vcmp.ne.s32.totalorder %v1270, 0
        %v1272 = vsel %vm1271, 0.0, -1e+09
        %v1273 = vld [vmem:[%s1255] sm:$0xff]
        %v1274 = vld [vmem:[%s9] sm:$0x1]
        %v1275 = vld [vmem:[%s11] sm:$0x1]
        %vm1276 = vcmask 261120
        %v1277 = vsel %vm1276, %v1273, 0.0
        %1278 = vadd.xlane.f32.xlu0 %v1277
        %v1279 = vpop.xlane.xlu0 %1278
        %v1280 = vrcp.pop 32.0
        %v1281 = vmul.f32 %v1279, %v1280
        %v1282 = vsub.f32 %v1273, %v1281
        %v1283 = vmul.f32 %v1282, %v1282
        %v1284 = vsel %vm1276, %v1283, 0.0
        %1285 = vadd.xlane.f32.xlu0 %v1284
        %v1286 = vpop.xlane.xlu0 %1285
        %v1287 = vmul.f32 %v1286, 0.032258064
        %v1288 = vrsqrt.pop %v1287
        %v1289 = vmul.f32 %v1287, %v1288
        %vm1290 = vcmp.eq.f32.partialorder %v1287, inf
        %v1291 = vsel %vm1290, %v1287, %v1289
        %vm1292 = vcmp.eq.f32.partialorder %v1287, 0.0
        %v1293 = vand.u32 %v1287, 2147483648
        %v1294 = vsel %vm1292, %v1293, %v1291
        %v1295 = vadd.f32 %v1294, 1e-06
        %v1296 = vrcp.pop %v1295
        %v1297 = vlaneseq
        %v1298 = vshrl.u32 %v1297, 7
        %v1299 = vsub.s32 0, %v1298
        %v1300 = vrot.slane %v1274, %v1299
        %v1301 = vmul.f32 %v1300, %v1282
        %v1302 = vmul.f32 %v1301, %v1296
        %v1303 = vlaneseq
        %v1304 = vshrl.u32 %v1303, 7
        %v1305 = vsub.s32 0, %v1304
        %v1306 = vrot.slane %v1275, %v1305
        %v1307 = vadd.f32 %v1302, %v1306
        %v1308 = vld [vmem:[%s13] sm:$0xff]
        %v1309 = vld [vmem:[%s13 + $0x8] sm:$0xff]
        %v1310 = vld [vmem:[%s13 + $0x10] sm:$0xff]
        %v1311 = vld [vmem:[%s13 + $0x18] sm:$0xff]
        %v1312 = vld [vmem:[%s15] sm:$0x1]
        %v1313 = vld [vmem:[%s17] sm:$0xff]
        %v1314 = vld [vmem:[%s17 + $0x8] sm:$0xff]
        %v1315 = vld [vmem:[%s17 + $0x10] sm:$0xff]
        %v1316 = vld [vmem:[%s17 + $0x18] sm:$0xff]
        %v1317 = vld [vmem:[%s19] sm:$0x1]
        %v1318 = vlaneseq
        %v1319 = vshrl.u32 %v1318, 7
        %v1320 = vsub.s32 0, %v1319
        %v1321 = vrot.slane %v1312, %v1320
        %v1323 = vsel %vm1276, %v1307, 0
        %1325 = vmatprep.subr.mxu0 0.0
        %1326 = vmatpush1.msra.mxu0 0.0
        %1327 = vmatprep.subr.mxu0 0.0
        %1328 = vmatpush1.msra.mxu0 0.0
        %1329 = vmatprep.subr.mxu0 0.0
        %1330 = vmatpush1.msra.mxu0 0.0
        %1331 = vmatprep.subr.mxu0 0.0
        %1332 = vmatpush1.msra.mxu0 0.0
        %1333 = vmatprep.subr.mxu0 0.0
        %1334 = vmatpush1.msra.mxu0 0.0
        %1335 = vmatprep.subr.mxu0 0.0
        %1336 = vmatpush1.msra.mxu0 0.0
        %1337 = vmatprep.subr.mxu0 0.0
        %1338 = vmatpush1.msra.mxu0 0.0
        %1339 = vmatprep.subr.mxu0 0.0
        %1340 = vmatpush1.msra.mxu0 0.0
        %1341 = vmatprep.subr.mxu0 0.0
        %1342 = vmatpush1.msra.mxu0 0.0
        %1343 = vmatprep.subr.mxu0 0.0
        %1344 = vmatpush1.msra.mxu0 0.0
        %1345 = vmatprep.subr.mxu0 0.0
        %1346 = vmatpush1.msra.mxu0 0.0
        %1347 = vmatprep.subr.mxu0 0.0
        %1348 = vmatpush1.msra.mxu0 0.0
        %1349 = vmatprep.subr.mxu0 0.0
        %1350 = vmatpush1.msra.mxu0 %v1311
        %1351 = vmatprep.subr.mxu0 0.0
        %1352 = vmatpush1.msra.mxu0 %v1310
        %1353 = vmatprep.subr.mxu0 0.0
        %1354 = vmatpush1.msra.mxu0 %v1309
        %1355 = vmatprep.subr.mxu0 0.0
        %1356 = vmatpush1.msra.mxu0 %v1308
        %1357 = vmatprep.subr.mxu0 0.0
        %1358 = vmatpush2.msra.mxu0 0.0
        %1359 = vmatprep.subr.mxu0 0.0
        %1360 = vmatpush2.msra.mxu0 0.0
        %1361 = vmatprep.subr.mxu0 0.0
        %1362 = vmatpush2.msra.mxu0 0.0
        %1363 = vmatprep.subr.mxu0 0.0
        %1364 = vmatpush2.msra.mxu0 0.0
        %1365 = vmatprep.subr.mxu0 0.0
        %1366 = vmatpush2.msra.mxu0 0.0
        %1367 = vmatprep.subr.mxu0 0.0
        %1368 = vmatpush2.msra.mxu0 0.0
        %1369 = vmatprep.subr.mxu0 0.0
        %1370 = vmatpush2.msra.mxu0 0.0
        %1371 = vmatprep.subr.mxu0 0.0
        %1372 = vmatpush2.msra.mxu0 0.0
        %1373 = vmatprep.subr.mxu0 0.0
        %1374 = vmatpush2.msra.mxu0 0.0
        %1375 = vmatprep.subr.mxu0 0.0
        %1376 = vmatpush2.msra.mxu0 0.0
        %1377 = vmatprep.subr.mxu0 0.0
        %1378 = vmatpush2.msra.mxu0 0.0
        %1379 = vmatprep.subr.mxu0 0.0
        %1380 = vmatpush2.msra.mxu0 0.0
        %1381 = vmatprep.subr.mxu0 0.0
        %1382 = vmatpush2.msra.mxu0 0.0
        %1383 = vmatprep.subr.mxu0 0.0
        %1384 = vmatpush2.msra.mxu0 0.0
        %1385 = vmatprep.subr.mxu0 0.0
        %1386 = vmatpush2.msra.mxu0 0.0
        %1387 = vmatprep.subr.mxu0 0.0
        %1388 = vmatpush2.msra.mxu0 0.0
        %1389 = vmatprep.mubr.f32.mxu0 0.0
        %1390 = vmatmul.mubr.f32.gmra.mxu0 %v1323
        %v1391 = vpop.f32.mrf.mxu0
        %v1392 = vadd.f32 %v1321, %v1391
        %v1393 = vpop.f32.mrf.mxu0
        %1394 = vdwg.mxu0
        %1396 = vrot.lane.b32.xlu0 %v1392, 96
        %v1397 = vpop.permute.xlu0 %1396
        %vm1398 = vcmask 64512
        %v1399 = vsel %vm1398, %v1392, 0
        %v1401 = vsel %vm1398, %v1397, 0
        %1403 = vmatprep.subr.mxu0 0.0
        %1404 = vmatpush1.xpose.msra.mxu0 0.0
        %1405 = vmatprep.subr.mxu0 0.0
        %1406 = vmatpush1.xpose.msra.mxu0 0.0
        %1407 = vmatprep.subr.mxu0 0.0
        %1408 = vmatpush1.xpose.msra.mxu0 0.0
        %1409 = vmatprep.subr.mxu0 0.0
        %1410 = vmatpush1.xpose.msra.mxu0 0.0
        %1411 = vmatprep.subr.mxu0 0.0
        %1412 = vmatpush1.xpose.msra.mxu0 0.0
        %1413 = vmatprep.subr.mxu0 0.0
        %1414 = vmatpush1.xpose.msra.mxu0 0.0
        %1415 = vmatprep.subr.mxu0 0.0
        %1416 = vmatpush1.xpose.msra.mxu0 0.0
        %1417 = vmatprep.subr.mxu0 0.0
        %1418 = vmatpush1.xpose.msra.mxu0 0.0
        %1419 = vmatprep.subr.mxu0 0.0
        %1420 = vmatpush1.xpose.msra.mxu0 0.0
        %1421 = vmatprep.subr.mxu0 0.0
        %1422 = vmatpush1.xpose.msra.mxu0 0.0
        %1423 = vmatprep.subr.mxu0 0.0
        %1424 = vmatpush1.xpose.msra.mxu0 0.0
        %1425 = vmatprep.subr.mxu0 0.0
        %1426 = vmatpush1.xpose.msra.mxu0 0.0
        %1427 = vmatprep.subr.mxu0 0.0
        %1428 = vmatpush1.xpose.msra.mxu0 0.0
        %1429 = vmatprep.subr.mxu0 0.0
        %1430 = vmatpush1.xpose.msra.mxu0 0.0
        %1431 = vmatprep.subr.mxu0 0.0
        %1432 = vmatpush1.xpose.msra.mxu0 0.0
        %1433 = vmatprep.subr.mxu0 0.0
        %1434 = vmatpush1.xpose.msra.mxu0 %v1401
        %1435 = vmatprep.subr.mxu0 0.0
        %1436 = vmatpush2.xpose.msra.mxu0 0.0
        %1437 = vmatprep.subr.mxu0 0.0
        %1438 = vmatpush2.xpose.msra.mxu0 0.0
        %1439 = vmatprep.subr.mxu0 0.0
        %1440 = vmatpush2.xpose.msra.mxu0 0.0
        %1441 = vmatprep.subr.mxu0 0.0
        %1442 = vmatpush2.xpose.msra.mxu0 0.0
        %1443 = vmatprep.subr.mxu0 0.0
        %1444 = vmatpush2.xpose.msra.mxu0 0.0
        %1445 = vmatprep.subr.mxu0 0.0
        %1446 = vmatpush2.xpose.msra.mxu0 0.0
        %1447 = vmatprep.subr.mxu0 0.0
        %1448 = vmatpush2.xpose.msra.mxu0 0.0
        %1449 = vmatprep.subr.mxu0 0.0
        %1450 = vmatpush2.xpose.msra.mxu0 0.0
        %1451 = vmatprep.subr.mxu0 0.0
        %1452 = vmatpush2.xpose.msra.mxu0 0.0
        %1453 = vmatprep.subr.mxu0 0.0
        %1454 = vmatpush2.xpose.msra.mxu0 0.0
        %1455 = vmatprep.subr.mxu0 0.0
        %1456 = vmatpush2.xpose.msra.mxu0 0.0
        %1457 = vmatprep.subr.mxu0 0.0
        %1458 = vmatpush2.xpose.msra.mxu0 0.0
        %1459 = vmatprep.subr.mxu0 0.0
        %1460 = vmatpush2.xpose.msra.mxu0 0.0
        %1461 = vmatprep.subr.mxu0 0.0
        %1462 = vmatpush2.xpose.msra.mxu0 0.0
        %1463 = vmatprep.subr.mxu0 0.0
        %1464 = vmatpush2.xpose.msra.mxu0 0.0
        %1465 = vmatprep.subr.mxu0 0.0
        %1466 = vmatpush2.xpose.msra.mxu0 0.0
        %1467 = vmatprep.mubr.f32.mxu0 0.0
        %1468 = vmatmul.mubr.f32.gmra.mxu0 %v1399
        %v1469 = vpop.f32.mrf.mxu0
        %v1470 = vadd.f32 0.0, %v1469
        %v1471 = vpop.f32.mrf.mxu0
        %1472 = vdwg.mxu0
        %v1473 = vmul.f32 %v1470, 0.35355338
        %v1475 = vlaneseq
        %v1476 = vshrl.u32 %v1475, 7
        %v1477 = vsub.s32 0, %v1476
        %v1478 = vrot.slane %v1269, %v1477
        %v1480 = vadd.f32 %v1473, %v1478
        %v1481 = vsel %vm1398, %v1480, -inf
        %1482 = vmax.xlane.f32.xlu0 %v1481
        %v1483 = vpop.xlane.xlu0 %1482
        %v1484 = vsub.f32 %v1480, %v1483
        %v1485 = vmul.f32 %v1484, 1.442695
        %v1486 = vpow.pop %v1485
        %v1487 = vsel %vm1398, %v1486, 0.0
        %1488 = vadd.xlane.f32.xlu0 %v1487
        %v1489 = vpop.xlane.xlu0 %1488
        %v1490 = vrcp.pop %v1489
        %v1491 = vmul.f32 %v1486, %v1490
        %1492 = vrot.lane.b32.xlu0 %v1392, 64
        %v1493 = vpop.permute.xlu0 %1492
        %v1496 = vsel %vm1398, %v1491, 0
        %1498 = vmatprep.subr.mxu0 0.0
        %1499 = vmatpush1.msra.mxu0 0.0
        %1500 = vmatprep.subr.mxu0 0.0
        %1501 = vmatpush1.msra.mxu0 0.0
        %1502 = vmatprep.subr.mxu0 0.0
        %1503 = vmatpush1.msra.mxu0 0.0
        %1504 = vmatprep.subr.mxu0 0.0
        %1505 = vmatpush1.msra.mxu0 0.0
        %1506 = vmatprep.subr.mxu0 0.0
        %1507 = vmatpush1.msra.mxu0 0.0
        %1508 = vmatprep.subr.mxu0 0.0
        %1509 = vmatpush1.msra.mxu0 0.0
        %1510 = vmatprep.subr.mxu0 0.0
        %1511 = vmatpush1.msra.mxu0 0.0
        %1512 = vmatprep.subr.mxu0 0.0
        %1513 = vmatpush1.msra.mxu0 0.0
        %1514 = vmatprep.subr.mxu0 0.0
        %1515 = vmatpush1.msra.mxu0 0.0
        %1516 = vmatprep.subr.mxu0 0.0
        %1517 = vmatpush1.msra.mxu0 0.0
        %1518 = vmatprep.subr.mxu0 0.0
        %1519 = vmatpush1.msra.mxu0 0.0
        %1520 = vmatprep.subr.mxu0 0.0
        %1521 = vmatpush1.msra.mxu0 0.0
        %1522 = vmatprep.subr.mxu0 0.0
        %1523 = vmatpush1.msra.mxu0 0.0
        %1524 = vmatprep.subr.mxu0 0.0
        %1525 = vmatpush1.msra.mxu0 0.0
        %1526 = vmatprep.subr.mxu0 0.0
        %1527 = vmatpush1.msra.mxu0 0.0
        %1528 = vmatprep.subr.mxu0 0.0
        %1529 = vmatpush1.msra.mxu0 %v1493
        %1530 = vmatprep.subr.mxu0 0.0
        %1531 = vmatpush2.msra.mxu0 0.0
        %1532 = vmatprep.subr.mxu0 0.0
        %1533 = vmatpush2.msra.mxu0 0.0
        %1534 = vmatprep.subr.mxu0 0.0
        %1535 = vmatpush2.msra.mxu0 0.0
        %1536 = vmatprep.subr.mxu0 0.0
        %1537 = vmatpush2.msra.mxu0 0.0
        %1538 = vmatprep.subr.mxu0 0.0
        %1539 = vmatpush2.msra.mxu0 0.0
        %1540 = vmatprep.subr.mxu0 0.0
        %1541 = vmatpush2.msra.mxu0 0.0
        %1542 = vmatprep.subr.mxu0 0.0
        %1543 = vmatpush2.msra.mxu0 0.0
        %1544 = vmatprep.subr.mxu0 0.0
        %1545 = vmatpush2.msra.mxu0 0.0
        %1546 = vmatprep.subr.mxu0 0.0
        %1547 = vmatpush2.msra.mxu0 0.0
        %1548 = vmatprep.subr.mxu0 0.0
        %1549 = vmatpush2.msra.mxu0 0.0
        %1550 = vmatprep.subr.mxu0 0.0
        %1551 = vmatpush2.msra.mxu0 0.0
        %1552 = vmatprep.subr.mxu0 0.0
        %1553 = vmatpush2.msra.mxu0 0.0
        %1554 = vmatprep.subr.mxu0 0.0
        %1555 = vmatpush2.msra.mxu0 0.0
        %1556 = vmatprep.subr.mxu0 0.0
        %1557 = vmatpush2.msra.mxu0 0.0
        %1558 = vmatprep.subr.mxu0 0.0
        %1559 = vmatpush2.msra.mxu0 0.0
        %1560 = vmatprep.subr.mxu0 0.0
        %1561 = vmatpush2.msra.mxu0 0.0
        %1562 = vmatprep.mubr.f32.mxu0 0.0
        %1563 = vmatmul.mubr.f32.gmra.mxu0 %v1496
        %v1564 = vpop.f32.mrf.mxu0
        %v1565 = vadd.f32 0.0, %v1564
        %v1566 = vpop.f32.mrf.mxu0
        %1567 = vdwg.mxu0
        %1568 = vrot.lane.b32.xlu0 %v1392, 120
        %v1569 = vpop.permute.xlu0 %1568
        %1570 = vrot.lane.b32.xlu0 %v1392, 88
        %v1571 = vpop.permute.xlu0 %1570
        %v1572 = vsel %vm1398, %v1569, 0
        %v1574 = vsel %vm1398, %v1571, 0
        %1576 = vmatprep.subr.mxu0 0.0
        %1577 = vmatpush1.xpose.msra.mxu0 0.0
        %1578 = vmatprep.subr.mxu0 0.0
        %1579 = vmatpush1.xpose.msra.mxu0 0.0
        %1580 = vmatprep.subr.mxu0 0.0
        %1581 = vmatpush1.xpose.msra.mxu0 0.0
        %1582 = vmatprep.subr.mxu0 0.0
        %1583 = vmatpush1.xpose.msra.mxu0 0.0
        %1584 = vmatprep.subr.mxu0 0.0
        %1585 = vmatpush1.xpose.msra.mxu0 0.0
        %1586 = vmatprep.subr.mxu0 0.0
        %1587 = vmatpush1.xpose.msra.mxu0 0.0
        %1588 = vmatprep.subr.mxu0 0.0
        %1589 = vmatpush1.xpose.msra.mxu0 0.0
        %1590 = vmatprep.subr.mxu0 0.0
        %1591 = vmatpush1.xpose.msra.mxu0 0.0
        %1592 = vmatprep.subr.mxu0 0.0
        %1593 = vmatpush1.xpose.msra.mxu0 0.0
        %1594 = vmatprep.subr.mxu0 0.0
        %1595 = vmatpush1.xpose.msra.mxu0 0.0
        %1596 = vmatprep.subr.mxu0 0.0
        %1597 = vmatpush1.xpose.msra.mxu0 0.0
        %1598 = vmatprep.subr.mxu0 0.0
        %1599 = vmatpush1.xpose.msra.mxu0 0.0
        %1600 = vmatprep.subr.mxu0 0.0
        %1601 = vmatpush1.xpose.msra.mxu0 0.0
        %1602 = vmatprep.subr.mxu0 0.0
        %1603 = vmatpush1.xpose.msra.mxu0 0.0
        %1604 = vmatprep.subr.mxu0 0.0
        %1605 = vmatpush1.xpose.msra.mxu0 0.0
        %1606 = vmatprep.subr.mxu0 0.0
        %1607 = vmatpush1.xpose.msra.mxu0 %v1574
        %1608 = vmatprep.subr.mxu0 0.0
        %1609 = vmatpush2.xpose.msra.mxu0 0.0
        %1610 = vmatprep.subr.mxu0 0.0
        %1611 = vmatpush2.xpose.msra.mxu0 0.0
        %1612 = vmatprep.subr.mxu0 0.0
        %1613 = vmatpush2.xpose.msra.mxu0 0.0
        %1614 = vmatprep.subr.mxu0 0.0
        %1615 = vmatpush2.xpose.msra.mxu0 0.0
        %1616 = vmatprep.subr.mxu0 0.0
        %1617 = vmatpush2.xpose.msra.mxu0 0.0
        %1618 = vmatprep.subr.mxu0 0.0
        %1619 = vmatpush2.xpose.msra.mxu0 0.0
        %1620 = vmatprep.subr.mxu0 0.0
        %1621 = vmatpush2.xpose.msra.mxu0 0.0
        %1622 = vmatprep.subr.mxu0 0.0
        %1623 = vmatpush2.xpose.msra.mxu0 0.0
        %1624 = vmatprep.subr.mxu0 0.0
        %1625 = vmatpush2.xpose.msra.mxu0 0.0
        %1626 = vmatprep.subr.mxu0 0.0
        %1627 = vmatpush2.xpose.msra.mxu0 0.0
        %1628 = vmatprep.subr.mxu0 0.0
        %1629 = vmatpush2.xpose.msra.mxu0 0.0
        %1630 = vmatprep.subr.mxu0 0.0
        %1631 = vmatpush2.xpose.msra.mxu0 0.0
        %1632 = vmatprep.subr.mxu0 0.0
        %1633 = vmatpush2.xpose.msra.mxu0 0.0
        %1634 = vmatprep.subr.mxu0 0.0
        %1635 = vmatpush2.xpose.msra.mxu0 0.0
        %1636 = vmatprep.subr.mxu0 0.0
        %1637 = vmatpush2.xpose.msra.mxu0 0.0
        %1638 = vmatprep.subr.mxu0 0.0
        %1639 = vmatpush2.xpose.msra.mxu0 0.0
        %1640 = vmatprep.mubr.f32.mxu0 0.0
        %1641 = vmatmul.mubr.f32.gmra.mxu0 %v1572
        %v1642 = vpop.f32.mrf.mxu0
        %v1643 = vadd.f32 0.0, %v1642
        %v1644 = vpop.f32.mrf.mxu0
        %1645 = vdwg.mxu0
        %v1646 = vmul.f32 %v1643, 0.35355338
        %v1647 = vadd.f32 %v1646, %v1478
        %v1648 = vsel %vm1398, %v1647, -inf
        %1649 = vmax.xlane.f32.xlu0 %v1648
        %v1650 = vpop.xlane.xlu0 %1649
        %v1651 = vsub.f32 %v1647, %v1650
        %v1652 = vmul.f32 %v1651, 1.442695
        %v1653 = vpow.pop %v1652
        %v1654 = vsel %vm1398, %v1653, 0.0
        %1655 = vadd.xlane.f32.xlu0 %v1654
        %v1656 = vpop.xlane.xlu0 %1655
        %v1657 = vrcp.pop %v1656
        %v1658 = vmul.f32 %v1653, %v1657
        %1659 = vrot.lane.b32.xlu0 %v1392, 56
        %v1660 = vpop.permute.xlu0 %1659
        %v1663 = vsel %vm1398, %v1658, 0
        %1665 = vmatprep.subr.mxu0 0.0
        %1666 = vmatpush1.msra.mxu0 0.0
        %1667 = vmatprep.subr.mxu0 0.0
        %1668 = vmatpush1.msra.mxu0 0.0
        %1669 = vmatprep.subr.mxu0 0.0
        %1670 = vmatpush1.msra.mxu0 0.0
        %1671 = vmatprep.subr.mxu0 0.0
        %1672 = vmatpush1.msra.mxu0 0.0
        %1673 = vmatprep.subr.mxu0 0.0
        %1674 = vmatpush1.msra.mxu0 0.0
        %1675 = vmatprep.subr.mxu0 0.0
        %1676 = vmatpush1.msra.mxu0 0.0
        %1677 = vmatprep.subr.mxu0 0.0
        %1678 = vmatpush1.msra.mxu0 0.0
        %1679 = vmatprep.subr.mxu0 0.0
        %1680 = vmatpush1.msra.mxu0 0.0
        %1681 = vmatprep.subr.mxu0 0.0
        %1682 = vmatpush1.msra.mxu0 0.0
        %1683 = vmatprep.subr.mxu0 0.0
        %1684 = vmatpush1.msra.mxu0 0.0
        %1685 = vmatprep.subr.mxu0 0.0
        %1686 = vmatpush1.msra.mxu0 0.0
        %1687 = vmatprep.subr.mxu0 0.0
        %1688 = vmatpush1.msra.mxu0 0.0
        %1689 = vmatprep.subr.mxu0 0.0
        %1690 = vmatpush1.msra.mxu0 0.0
        %1691 = vmatprep.subr.mxu0 0.0
        %1692 = vmatpush1.msra.mxu0 0.0
        %1693 = vmatprep.subr.mxu0 0.0
        %1694 = vmatpush1.msra.mxu0 0.0
        %1695 = vmatprep.subr.mxu0 0.0
        %1696 = vmatpush1.msra.mxu0 %v1660
        %1697 = vmatprep.subr.mxu0 0.0
        %1698 = vmatpush2.msra.mxu0 0.0
        %1699 = vmatprep.subr.mxu0 0.0
        %1700 = vmatpush2.msra.mxu0 0.0
        %1701 = vmatprep.subr.mxu0 0.0
        %1702 = vmatpush2.msra.mxu0 0.0
        %1703 = vmatprep.subr.mxu0 0.0
        %1704 = vmatpush2.msra.mxu0 0.0
        %1705 = vmatprep.subr.mxu0 0.0
        %1706 = vmatpush2.msra.mxu0 0.0
        %1707 = vmatprep.subr.mxu0 0.0
        %1708 = vmatpush2.msra.mxu0 0.0
        %1709 = vmatprep.subr.mxu0 0.0
        %1710 = vmatpush2.msra.mxu0 0.0
        %1711 = vmatprep.subr.mxu0 0.0
        %1712 = vmatpush2.msra.mxu0 0.0
        %1713 = vmatprep.subr.mxu0 0.0
        %1714 = vmatpush2.msra.mxu0 0.0
        %1715 = vmatprep.subr.mxu0 0.0
        %1716 = vmatpush2.msra.mxu0 0.0
        %1717 = vmatprep.subr.mxu0 0.0
        %1718 = vmatpush2.msra.mxu0 0.0
        %1719 = vmatprep.subr.mxu0 0.0
        %1720 = vmatpush2.msra.mxu0 0.0
        %1721 = vmatprep.subr.mxu0 0.0
        %1722 = vmatpush2.msra.mxu0 0.0
        %1723 = vmatprep.subr.mxu0 0.0
        %1724 = vmatpush2.msra.mxu0 0.0
        %1725 = vmatprep.subr.mxu0 0.0
        %1726 = vmatpush2.msra.mxu0 0.0
        %1727 = vmatprep.subr.mxu0 0.0
        %1728 = vmatpush2.msra.mxu0 0.0
        %1729 = vmatprep.mubr.f32.mxu0 0.0
        %1730 = vmatmul.mubr.f32.gmra.mxu0 %v1663
        %v1731 = vpop.f32.mrf.mxu0
        %v1732 = vadd.f32 0.0, %v1731
        %v1733 = vpop.f32.mrf.mxu0
        %1734 = vdwg.mxu0
        %1735 = vrot.lane.b32.xlu0 %v1392, 112
        %v1736 = vpop.permute.xlu0 %1735
        %1737 = vrot.lane.b32.xlu0 %v1392, 80
        %v1738 = vpop.permute.xlu0 %1737
        %v1739 = vsel %vm1398, %v1736, 0
        %v1741 = vsel %vm1398, %v1738, 0
        %1743 = vmatprep.subr.mxu0 0.0
        %1744 = vmatpush1.xpose.msra.mxu0 0.0
        %1745 = vmatprep.subr.mxu0 0.0
        %1746 = vmatpush1.xpose.msra.mxu0 0.0
        %1747 = vmatprep.subr.mxu0 0.0
        %1748 = vmatpush1.xpose.msra.mxu0 0.0
        %1749 = vmatprep.subr.mxu0 0.0
        %1750 = vmatpush1.xpose.msra.mxu0 0.0
        %1751 = vmatprep.subr.mxu0 0.0
        %1752 = vmatpush1.xpose.msra.mxu0 0.0
        %1753 = vmatprep.subr.mxu0 0.0
        %1754 = vmatpush1.xpose.msra.mxu0 0.0
        %1755 = vmatprep.subr.mxu0 0.0
        %1756 = vmatpush1.xpose.msra.mxu0 0.0
        %1757 = vmatprep.subr.mxu0 0.0
        %1758 = vmatpush1.xpose.msra.mxu0 0.0
        %1759 = vmatprep.subr.mxu0 0.0
        %1760 = vmatpush1.xpose.msra.mxu0 0.0
        %1761 = vmatprep.subr.mxu0 0.0
        %1762 = vmatpush1.xpose.msra.mxu0 0.0
        %1763 = vmatprep.subr.mxu0 0.0
        %1764 = vmatpush1.xpose.msra.mxu0 0.0
        %1765 = vmatprep.subr.mxu0 0.0
        %1766 = vmatpush1.xpose.msra.mxu0 0.0
        %1767 = vmatprep.subr.mxu0 0.0
        %1768 = vmatpush1.xpose.msra.mxu0 0.0
        %1769 = vmatprep.subr.mxu0 0.0
        %1770 = vmatpush1.xpose.msra.mxu0 0.0
        %1771 = vmatprep.subr.mxu0 0.0
        %1772 = vmatpush1.xpose.msra.mxu0 0.0
        %1773 = vmatprep.subr.mxu0 0.0
        %1774 = vmatpush1.xpose.msra.mxu0 %v1741
        %1775 = vmatprep.subr.mxu0 0.0
        %1776 = vmatpush2.xpose.msra.mxu0 0.0
        %1777 = vmatprep.subr.mxu0 0.0
        %1778 = vmatpush2.xpose.msra.mxu0 0.0
        %1779 = vmatprep.subr.mxu0 0.0
        %1780 = vmatpush2.xpose.msra.mxu0 0.0
        %1781 = vmatprep.subr.mxu0 0.0
        %1782 = vmatpush2.xpose.msra.mxu0 0.0
        %1783 = vmatprep.subr.mxu0 0.0
        %1784 = vmatpush2.xpose.msra.mxu0 0.0
        %1785 = vmatprep.subr.mxu0 0.0
        %1786 = vmatpush2.xpose.msra.mxu0 0.0
        %1787 = vmatprep.subr.mxu0 0.0
        %1788 = vmatpush2.xpose.msra.mxu0 0.0
        %1789 = vmatprep.subr.mxu0 0.0
        %1790 = vmatpush2.xpose.msra.mxu0 0.0
        %1791 = vmatprep.subr.mxu0 0.0
        %1792 = vmatpush2.xpose.msra.mxu0 0.0
        %1793 = vmatprep.subr.mxu0 0.0
        %1794 = vmatpush2.xpose.msra.mxu0 0.0
        %1795 = vmatprep.subr.mxu0 0.0
        %1796 = vmatpush2.xpose.msra.mxu0 0.0
        %1797 = vmatprep.subr.mxu0 0.0
        %1798 = vmatpush2.xpose.msra.mxu0 0.0
        %1799 = vmatprep.subr.mxu0 0.0
        %1800 = vmatpush2.xpose.msra.mxu0 0.0
        %1801 = vmatprep.subr.mxu0 0.0
        %1802 = vmatpush2.xpose.msra.mxu0 0.0
        %1803 = vmatprep.subr.mxu0 0.0
        %1804 = vmatpush2.xpose.msra.mxu0 0.0
        %1805 = vmatprep.subr.mxu0 0.0
        %1806 = vmatpush2.xpose.msra.mxu0 0.0
        %1807 = vmatprep.mubr.f32.mxu0 0.0
        %1808 = vmatmul.mubr.f32.gmra.mxu0 %v1739
        %v1809 = vpop.f32.mrf.mxu0
        %v1810 = vadd.f32 0.0, %v1809
        %v1811 = vpop.f32.mrf.mxu0
        %1812 = vdwg.mxu0
        %v1813 = vmul.f32 %v1810, 0.35355338
        %v1814 = vadd.f32 %v1813, %v1478
        %v1815 = vsel %vm1398, %v1814, -inf
        %1816 = vmax.xlane.f32.xlu0 %v1815
        %v1817 = vpop.xlane.xlu0 %1816
        %v1818 = vsub.f32 %v1814, %v1817
        %v1819 = vmul.f32 %v1818, 1.442695
        %v1820 = vpow.pop %v1819
        %v1821 = vsel %vm1398, %v1820, 0.0
        %1822 = vadd.xlane.f32.xlu0 %v1821
        %v1823 = vpop.xlane.xlu0 %1822
        %v1824 = vrcp.pop %v1823
        %v1825 = vmul.f32 %v1820, %v1824
        %1826 = vrot.lane.b32.xlu0 %v1392, 48
        %v1827 = vpop.permute.xlu0 %1826
        %v1830 = vsel %vm1398, %v1825, 0
        %1832 = vmatprep.subr.mxu0 0.0
        %1833 = vmatpush1.msra.mxu0 0.0
        %1834 = vmatprep.subr.mxu0 0.0
        %1835 = vmatpush1.msra.mxu0 0.0
        %1836 = vmatprep.subr.mxu0 0.0
        %1837 = vmatpush1.msra.mxu0 0.0
        %1838 = vmatprep.subr.mxu0 0.0
        %1839 = vmatpush1.msra.mxu0 0.0
        %1840 = vmatprep.subr.mxu0 0.0
        %1841 = vmatpush1.msra.mxu0 0.0
        %1842 = vmatprep.subr.mxu0 0.0
        %1843 = vmatpush1.msra.mxu0 0.0
        %1844 = vmatprep.subr.mxu0 0.0
        %1845 = vmatpush1.msra.mxu0 0.0
        %1846 = vmatprep.subr.mxu0 0.0
        %1847 = vmatpush1.msra.mxu0 0.0
        %1848 = vmatprep.subr.mxu0 0.0
        %1849 = vmatpush1.msra.mxu0 0.0
        %1850 = vmatprep.subr.mxu0 0.0
        %1851 = vmatpush1.msra.mxu0 0.0
        %1852 = vmatprep.subr.mxu0 0.0
        %1853 = vmatpush1.msra.mxu0 0.0
        %1854 = vmatprep.subr.mxu0 0.0
        %1855 = vmatpush1.msra.mxu0 0.0
        %1856 = vmatprep.subr.mxu0 0.0
        %1857 = vmatpush1.msra.mxu0 0.0
        %1858 = vmatprep.subr.mxu0 0.0
        %1859 = vmatpush1.msra.mxu0 0.0
        %1860 = vmatprep.subr.mxu0 0.0
        %1861 = vmatpush1.msra.mxu0 0.0
        %1862 = vmatprep.subr.mxu0 0.0
        %1863 = vmatpush1.msra.mxu0 %v1827
        %1864 = vmatprep.subr.mxu0 0.0
        %1865 = vmatpush2.msra.mxu0 0.0
        %1866 = vmatprep.subr.mxu0 0.0
        %1867 = vmatpush2.msra.mxu0 0.0
        %1868 = vmatprep.subr.mxu0 0.0
        %1869 = vmatpush2.msra.mxu0 0.0
        %1870 = vmatprep.subr.mxu0 0.0
        %1871 = vmatpush2.msra.mxu0 0.0
        %1872 = vmatprep.subr.mxu0 0.0
        %1873 = vmatpush2.msra.mxu0 0.0
        %1874 = vmatprep.subr.mxu0 0.0
        %1875 = vmatpush2.msra.mxu0 0.0
        %1876 = vmatprep.subr.mxu0 0.0
        %1877 = vmatpush2.msra.mxu0 0.0
        %1878 = vmatprep.subr.mxu0 0.0
        %1879 = vmatpush2.msra.mxu0 0.0
        %1880 = vmatprep.subr.mxu0 0.0
        %1881 = vmatpush2.msra.mxu0 0.0
        %1882 = vmatprep.subr.mxu0 0.0
        %1883 = vmatpush2.msra.mxu0 0.0
        %1884 = vmatprep.subr.mxu0 0.0
        %1885 = vmatpush2.msra.mxu0 0.0
        %1886 = vmatprep.subr.mxu0 0.0
        %1887 = vmatpush2.msra.mxu0 0.0
        %1888 = vmatprep.subr.mxu0 0.0
        %1889 = vmatpush2.msra.mxu0 0.0
        %1890 = vmatprep.subr.mxu0 0.0
        %1891 = vmatpush2.msra.mxu0 0.0
        %1892 = vmatprep.subr.mxu0 0.0
        %1893 = vmatpush2.msra.mxu0 0.0
        %1894 = vmatprep.subr.mxu0 0.0
        %1895 = vmatpush2.msra.mxu0 0.0
        %1896 = vmatprep.mubr.f32.mxu0 0.0
        %1897 = vmatmul.mubr.f32.gmra.mxu0 %v1830
        %v1898 = vpop.f32.mrf.mxu0
        %v1899 = vadd.f32 0.0, %v1898
        %v1900 = vpop.f32.mrf.mxu0
        %1901 = vdwg.mxu0
        %1902 = vrot.lane.b32.xlu0 %v1392, 104
        %v1903 = vpop.permute.xlu0 %1902
        %1904 = vrot.lane.b32.xlu0 %v1392, 72
        %v1905 = vpop.permute.xlu0 %1904
        %v1906 = vsel %vm1398, %v1903, 0
        %v1908 = vsel %vm1398, %v1905, 0
        %1910 = vmatprep.subr.mxu0 0.0
        %1911 = vmatpush1.xpose.msra.mxu0 0.0
        %1912 = vmatprep.subr.mxu0 0.0
        %1913 = vmatpush1.xpose.msra.mxu0 0.0
        %1914 = vmatprep.subr.mxu0 0.0
        %1915 = vmatpush1.xpose.msra.mxu0 0.0
        %1916 = vmatprep.subr.mxu0 0.0
        %1917 = vmatpush1.xpose.msra.mxu0 0.0
        %1918 = vmatprep.subr.mxu0 0.0
        %1919 = vmatpush1.xpose.msra.mxu0 0.0
        %1920 = vmatprep.subr.mxu0 0.0
        %1921 = vmatpush1.xpose.msra.mxu0 0.0
        %1922 = vmatprep.subr.mxu0 0.0
        %1923 = vmatpush1.xpose.msra.mxu0 0.0
        %1924 = vmatprep.subr.mxu0 0.0
        %1925 = vmatpush1.xpose.msra.mxu0 0.0
        %1926 = vmatprep.subr.mxu0 0.0
        %1927 = vmatpush1.xpose.msra.mxu0 0.0
        %1928 = vmatprep.subr.mxu0 0.0
        %1929 = vmatpush1.xpose.msra.mxu0 0.0
        %1930 = vmatprep.subr.mxu0 0.0
        %1931 = vmatpush1.xpose.msra.mxu0 0.0
        %1932 = vmatprep.subr.mxu0 0.0
        %1933 = vmatpush1.xpose.msra.mxu0 0.0
        %1934 = vmatprep.subr.mxu0 0.0
        %1935 = vmatpush1.xpose.msra.mxu0 0.0
        %1936 = vmatprep.subr.mxu0 0.0
        %1937 = vmatpush1.xpose.msra.mxu0 0.0
        %1938 = vmatprep.subr.mxu0 0.0
        %1939 = vmatpush1.xpose.msra.mxu0 0.0
        %1940 = vmatprep.subr.mxu0 0.0
        %1941 = vmatpush1.xpose.msra.mxu0 %v1908
        %1942 = vmatprep.subr.mxu0 0.0
        %1943 = vmatpush2.xpose.msra.mxu0 0.0
        %1944 = vmatprep.subr.mxu0 0.0
        %1945 = vmatpush2.xpose.msra.mxu0 0.0
        %1946 = vmatprep.subr.mxu0 0.0
        %1947 = vmatpush2.xpose.msra.mxu0 0.0
        %1948 = vmatprep.subr.mxu0 0.0
        %1949 = vmatpush2.xpose.msra.mxu0 0.0
        %1950 = vmatprep.subr.mxu0 0.0
        %1951 = vmatpush2.xpose.msra.mxu0 0.0
        %1952 = vmatprep.subr.mxu0 0.0
        %1953 = vmatpush2.xpose.msra.mxu0 0.0
        %1954 = vmatprep.subr.mxu0 0.0
        %1955 = vmatpush2.xpose.msra.mxu0 0.0
        %1956 = vmatprep.subr.mxu0 0.0
        %1957 = vmatpush2.xpose.msra.mxu0 0.0
        %1958 = vmatprep.subr.mxu0 0.0
        %1959 = vmatpush2.xpose.msra.mxu0 0.0
        %1960 = vmatprep.subr.mxu0 0.0
        %1961 = vmatpush2.xpose.msra.mxu0 0.0
        %1962 = vmatprep.subr.mxu0 0.0
        %1963 = vmatpush2.xpose.msra.mxu0 0.0
        %1964 = vmatprep.subr.mxu0 0.0
        %1965 = vmatpush2.xpose.msra.mxu0 0.0
        %1966 = vmatprep.subr.mxu0 0.0
        %1967 = vmatpush2.xpose.msra.mxu0 0.0
        %1968 = vmatprep.subr.mxu0 0.0
        %1969 = vmatpush2.xpose.msra.mxu0 0.0
        %1970 = vmatprep.subr.mxu0 0.0
        %1971 = vmatpush2.xpose.msra.mxu0 0.0
        %1972 = vmatprep.subr.mxu0 0.0
        %1973 = vmatpush2.xpose.msra.mxu0 0.0
        %1974 = vmatprep.mubr.f32.mxu0 0.0
        %1975 = vmatmul.mubr.f32.gmra.mxu0 %v1906
        %v1976 = vpop.f32.mrf.mxu0
        %v1977 = vadd.f32 0.0, %v1976
        %v1978 = vpop.f32.mrf.mxu0
        %1979 = vdwg.mxu0
        %v1980 = vmul.f32 %v1977, 0.35355338
        %v1981 = vadd.f32 %v1980, %v1478
        %v1982 = vsel %vm1398, %v1981, -inf
        %1983 = vmax.xlane.f32.xlu0 %v1982
        %v1984 = vpop.xlane.xlu0 %1983
        %v1985 = vsub.f32 %v1981, %v1984
        %v1986 = vmul.f32 %v1985, 1.442695
        %v1987 = vpow.pop %v1986
        %v1988 = vsel %vm1398, %v1987, 0.0
        %1989 = vadd.xlane.f32.xlu0 %v1988
        %v1990 = vpop.xlane.xlu0 %1989
        %v1991 = vrcp.pop %v1990
        %v1992 = vmul.f32 %v1987, %v1991
        %1993 = vrot.lane.b32.xlu0 %v1392, 40
        %v1994 = vpop.permute.xlu0 %1993
        %v1997 = vsel %vm1398, %v1992, 0
        %1999 = vmatprep.subr.mxu0 0.0
        %2000 = vmatpush1.msra.mxu0 0.0
        %2001 = vmatprep.subr.mxu0 0.0
        %2002 = vmatpush1.msra.mxu0 0.0
        %2003 = vmatprep.subr.mxu0 0.0
        %2004 = vmatpush1.msra.mxu0 0.0
        %2005 = vmatprep.subr.mxu0 0.0
        %2006 = vmatpush1.msra.mxu0 0.0
        %2007 = vmatprep.subr.mxu0 0.0
        %2008 = vmatpush1.msra.mxu0 0.0
        %2009 = vmatprep.subr.mxu0 0.0
        %2010 = vmatpush1.msra.mxu0 0.0
        %2011 = vmatprep.subr.mxu0 0.0
        %2012 = vmatpush1.msra.mxu0 0.0
        %2013 = vmatprep.subr.mxu0 0.0
        %2014 = vmatpush1.msra.mxu0 0.0
        %2015 = vmatprep.subr.mxu0 0.0
        %2016 = vmatpush1.msra.mxu0 0.0
        %2017 = vmatprep.subr.mxu0 0.0
        %2018 = vmatpush1.msra.mxu0 0.0
        %2019 = vmatprep.subr.mxu0 0.0
        %2020 = vmatpush1.msra.mxu0 0.0
        %2021 = vmatprep.subr.mxu0 0.0
        %2022 = vmatpush1.msra.mxu0 0.0
        %2023 = vmatprep.subr.mxu0 0.0
        %2024 = vmatpush1.msra.mxu0 0.0
        %2025 = vmatprep.subr.mxu0 0.0
        %2026 = vmatpush1.msra.mxu0 0.0
        %2027 = vmatprep.subr.mxu0 0.0
        %2028 = vmatpush1.msra.mxu0 0.0
        %2029 = vmatprep.subr.mxu0 0.0
        %2030 = vmatpush1.msra.mxu0 %v1994
        %2031 = vmatprep.subr.mxu0 0.0
        %2032 = vmatpush2.msra.mxu0 0.0
        %2033 = vmatprep.subr.mxu0 0.0
        %2034 = vmatpush2.msra.mxu0 0.0
        %2035 = vmatprep.subr.mxu0 0.0
        %2036 = vmatpush2.msra.mxu0 0.0
        %2037 = vmatprep.subr.mxu0 0.0
        %2038 = vmatpush2.msra.mxu0 0.0
        %2039 = vmatprep.subr.mxu0 0.0
        %2040 = vmatpush2.msra.mxu0 0.0
        %2041 = vmatprep.subr.mxu0 0.0
        %2042 = vmatpush2.msra.mxu0 0.0
        %2043 = vmatprep.subr.mxu0 0.0
        %2044 = vmatpush2.msra.mxu0 0.0
        %2045 = vmatprep.subr.mxu0 0.0
        %2046 = vmatpush2.msra.mxu0 0.0
        %2047 = vmatprep.subr.mxu0 0.0
        %2048 = vmatpush2.msra.mxu0 0.0
        %2049 = vmatprep.subr.mxu0 0.0
        %2050 = vmatpush2.msra.mxu0 0.0
        %2051 = vmatprep.subr.mxu0 0.0
        %2052 = vmatpush2.msra.mxu0 0.0
        %2053 = vmatprep.subr.mxu0 0.0
        %2054 = vmatpush2.msra.mxu0 0.0
        %2055 = vmatprep.subr.mxu0 0.0
        %2056 = vmatpush2.msra.mxu0 0.0
        %2057 = vmatprep.subr.mxu0 0.0
        %2058 = vmatpush2.msra.mxu0 0.0
        %2059 = vmatprep.subr.mxu0 0.0
        %2060 = vmatpush2.msra.mxu0 0.0
        %2061 = vmatprep.subr.mxu0 0.0
        %2062 = vmatpush2.msra.mxu0 0.0
        %2063 = vmatprep.mubr.f32.mxu0 0.0
        %2064 = vmatmul.mubr.f32.gmra.mxu0 %v1997
        %v2065 = vpop.f32.mrf.mxu0
        %v2066 = vadd.f32 0.0, %v2065
        %v2067 = vpop.f32.mrf.mxu0
        %2068 = vdwg.mxu0
        %2070 = vrot.lane.b32.xlu0 %v1732, 8
        %v2071 = vpop.permute.xlu0 %2070
        %2074 = vrot.lane.b32.xlu0 %v1899, 16
        %v2075 = vpop.permute.xlu0 %2074
        %2078 = vrot.lane.b32.xlu0 %v2066, 24
        %v2079 = vpop.permute.xlu0 %2078
        %v2081 = vsel %vm1398, %v1565, %v2071
        %vm2082 = vcmask 130048
        %v2083 = vsel %vm2082, %v2081, %v2075
        %vm2084 = vcmask 195584
        %v2085 = vsel %vm2084, %v2083, %v2079
        %v2086 = vlaneseq
        %v2087 = vshrl.u32 %v2086, 7
        %v2088 = vsub.s32 0, %v2087
        %v2089 = vrot.slane %v1317, %v2088
        %v2091 = vsel %vm1276, %v2085, 0
        %2093 = vmatprep.subr.mxu0 0.0
        %2094 = vmatpush1.msra.mxu0 0.0
        %2095 = vmatprep.subr.mxu0 0.0
        %2096 = vmatpush1.msra.mxu0 0.0
        %2097 = vmatprep.subr.mxu0 0.0
        %2098 = vmatpush1.msra.mxu0 0.0
        %2099 = vmatprep.subr.mxu0 0.0
        %2100 = vmatpush1.msra.mxu0 0.0
        %2101 = vmatprep.subr.mxu0 0.0
        %2102 = vmatpush1.msra.mxu0 0.0
        %2103 = vmatprep.subr.mxu0 0.0
        %2104 = vmatpush1.msra.mxu0 0.0
        %2105 = vmatprep.subr.mxu0 0.0
        %2106 = vmatpush1.msra.mxu0 0.0
        %2107 = vmatprep.subr.mxu0 0.0
        %2108 = vmatpush1.msra.mxu0 0.0
        %2109 = vmatprep.subr.mxu0 0.0
        %2110 = vmatpush1.msra.mxu0 0.0
        %2111 = vmatprep.subr.mxu0 0.0
        %2112 = vmatpush1.msra.mxu0 0.0
        %2113 = vmatprep.subr.mxu0 0.0
        %2114 = vmatpush1.msra.mxu0 0.0
        %2115 = vmatprep.subr.mxu0 0.0
        %2116 = vmatpush1.msra.mxu0 0.0
        %2117 = vmatprep.subr.mxu0 0.0
        %2118 = vmatpush1.msra.mxu0 %v1316
        %2119 = vmatprep.subr.mxu0 0.0
        %2120 = vmatpush1.msra.mxu0 %v1315
        %2121 = vmatprep.subr.mxu0 0.0
        %2122 = vmatpush1.msra.mxu0 %v1314
        %2123 = vmatprep.subr.mxu0 0.0
        %2124 = vmatpush1.msra.mxu0 %v1313
        %2125 = vmatprep.subr.mxu0 0.0
        %2126 = vmatpush2.msra.mxu0 0.0
        %2127 = vmatprep.subr.mxu0 0.0
        %2128 = vmatpush2.msra.mxu0 0.0
        %2129 = vmatprep.subr.mxu0 0.0
        %2130 = vmatpush2.msra.mxu0 0.0
        %2131 = vmatprep.subr.mxu0 0.0
        %2132 = vmatpush2.msra.mxu0 0.0
        %2133 = vmatprep.subr.mxu0 0.0
        %2134 = vmatpush2.msra.mxu0 0.0
        %2135 = vmatprep.subr.mxu0 0.0
        %2136 = vmatpush2.msra.mxu0 0.0
        %2137 = vmatprep.subr.mxu0 0.0
        %2138 = vmatpush2.msra.mxu0 0.0
        %2139 = vmatprep.subr.mxu0 0.0
        %2140 = vmatpush2.msra.mxu0 0.0
        %2141 = vmatprep.subr.mxu0 0.0
        %2142 = vmatpush2.msra.mxu0 0.0
        %2143 = vmatprep.subr.mxu0 0.0
        %2144 = vmatpush2.msra.mxu0 0.0
        %2145 = vmatprep.subr.mxu0 0.0
        %2146 = vmatpush2.msra.mxu0 0.0
        %2147 = vmatprep.subr.mxu0 0.0
        %2148 = vmatpush2.msra.mxu0 0.0
        %2149 = vmatprep.subr.mxu0 0.0
        %2150 = vmatpush2.msra.mxu0 0.0
        %2151 = vmatprep.subr.mxu0 0.0
        %2152 = vmatpush2.msra.mxu0 0.0
        %2153 = vmatprep.subr.mxu0 0.0
        %2154 = vmatpush2.msra.mxu0 0.0
        %2155 = vmatprep.subr.mxu0 0.0
        %2156 = vmatpush2.msra.mxu0 0.0
        %2157 = vmatprep.mubr.f32.mxu0 0.0
        %2158 = vmatmul.mubr.f32.gmra.mxu0 %v2091
        %v2159 = vpop.f32.mrf.mxu0
        %v2160 = vadd.f32 %v2089, %v2159
        %v2161 = vpop.f32.mrf.mxu0
        %2162 = vdwg.mxu0
        %v2163 = vadd.f32 %v1273, %v2160
        %v2164 = vld [vmem:[%s21] sm:$0x1]
        %v2165 = vld [vmem:[%s23] sm:$0x1]
        %v2166 = vsel %vm1276, %v2163, 0.0
        %2167 = vadd.xlane.f32.xlu0 %v2166
        %v2168 = vpop.xlane.xlu0 %2167
        %v2169 = vmul.f32 %v2168, %v1280
        %v2170 = vsub.f32 %v2163, %v2169
        %v2171 = vmul.f32 %v2170, %v2170
        %v2172 = vsel %vm1276, %v2171, 0.0
        %2173 = vadd.xlane.f32.xlu0 %v2172
        %v2174 = vpop.xlane.xlu0 %2173
        %v2175 = vmul.f32 %v2174, 0.032258064
        %v2176 = vrsqrt.pop %v2175
        %v2177 = vmul.f32 %v2175, %v2176
        %vm2178 = vcmp.eq.f32.partialorder %v2175, inf
        %v2179 = vsel %vm2178, %v2175, %v2177
        %vm2180 = vcmp.eq.f32.partialorder %v2175, 0.0
        %v2181 = vand.u32 %v2175, 2147483648
        %v2182 = vsel %vm2180, %v2181, %v2179
        %v2183 = vadd.f32 %v2182, 1e-06
        %v2184 = vrcp.pop %v2183
        %v2185 = vlaneseq
        %v2186 = vshrl.u32 %v2185, 7
        %v2187 = vsub.s32 0, %v2186
        %v2188 = vrot.slane %v2164, %v2187
        %v2189 = vmul.f32 %v2188, %v2170
        %v2190 = vmul.f32 %v2189, %v2184
        %v2191 = vlaneseq
        %v2192 = vshrl.u32 %v2191, 7
        %v2193 = vsub.s32 0, %v2192
        %v2194 = vrot.slane %v2165, %v2193
        %v2195 = vadd.f32 %v2190, %v2194
        %v2196 = vld [vmem:[%s25] sm:$0xff]
        %v2197 = vld [vmem:[%s25 + $0x8] sm:$0xff]
        %v2198 = vld [vmem:[%s25 + $0x10] sm:$0xff]
        %v2199 = vld [vmem:[%s25 + $0x18] sm:$0xff]
        %v2200 = vld [vmem:[%s27] sm:$0x1]
        %v2201 = vld [vmem:[%s29] sm:$0xff]
        %v2202 = vld [vmem:[%s29 + $0x8] sm:$0xff]
        %v2203 = vld [vmem:[%s29 + $0x10] sm:$0xff]
        %v2204 = vld [vmem:[%s29 + $0x18] sm:$0xff]
        %v2205 = vld [vmem:[%s29 + $0x20] sm:$0xff]
        %v2206 = vld [vmem:[%s29 + $0x28] sm:$0xff]
        %v2207 = vld [vmem:[%s29 + $0x30] sm:$0xff]
        %v2208 = vld [vmem:[%s29 + $0x38] sm:$0xff]
        %v2209 = vld [vmem:[%s31] sm:$0x1]
        %v2210 = vlaneseq
        %v2211 = vshrl.u32 %v2210, 7
        %v2212 = vsub.s32 0, %v2211
        %v2213 = vrot.slane %v2200, %v2212
        %v2215 = vsel %vm1276, %v2195, 0
        %2217 = vmatprep.subr.mxu0 0.0
        %2218 = vmatpush1.msra.mxu0 0.0
        %2219 = vmatprep.subr.mxu0 0.0
        %2220 = vmatpush1.msra.mxu0 0.0
        %2221 = vmatprep.subr.mxu0 0.0
        %2222 = vmatpush1.msra.mxu0 0.0
        %2223 = vmatprep.subr.mxu0 0.0
        %2224 = vmatpush1.msra.mxu0 0.0
        %2225 = vmatprep.subr.mxu0 0.0
        %2226 = vmatpush1.msra.mxu0 0.0
        %2227 = vmatprep.subr.mxu0 0.0
        %2228 = vmatpush1.msra.mxu0 0.0
        %2229 = vmatprep.subr.mxu0 0.0
        %2230 = vmatpush1.msra.mxu0 0.0
        %2231 = vmatprep.subr.mxu0 0.0
        %2232 = vmatpush1.msra.mxu0 0.0
        %2233 = vmatprep.subr.mxu0 0.0
        %2234 = vmatpush1.msra.mxu0 0.0
        %2235 = vmatprep.subr.mxu0 0.0
        %2236 = vmatpush1.msra.mxu0 0.0
        %2237 = vmatprep.subr.mxu0 0.0
        %2238 = vmatpush1.msra.mxu0 0.0
        %2239 = vmatprep.subr.mxu0 0.0
        %2240 = vmatpush1.msra.mxu0 0.0
        %2241 = vmatprep.subr.mxu0 0.0
        %2242 = vmatpush1.msra.mxu0 %v2199
        %2243 = vmatprep.subr.mxu0 0.0
        %2244 = vmatpush1.msra.mxu0 %v2198
        %2245 = vmatprep.subr.mxu0 0.0
        %2246 = vmatpush1.msra.mxu0 %v2197
        %2247 = vmatprep.subr.mxu0 0.0
        %2248 = vmatpush1.msra.mxu0 %v2196
        %2249 = vmatprep.subr.mxu0 0.0
        %2250 = vmatpush2.msra.mxu0 0.0
        %2251 = vmatprep.subr.mxu0 0.0
        %2252 = vmatpush2.msra.mxu0 0.0
        %2253 = vmatprep.subr.mxu0 0.0
        %2254 = vmatpush2.msra.mxu0 0.0
        %2255 = vmatprep.subr.mxu0 0.0
        %2256 = vmatpush2.msra.mxu0 0.0
        %2257 = vmatprep.subr.mxu0 0.0
        %2258 = vmatpush2.msra.mxu0 0.0
        %2259 = vmatprep.subr.mxu0 0.0
        %2260 = vmatpush2.msra.mxu0 0.0
        %2261 = vmatprep.subr.mxu0 0.0
        %2262 = vmatpush2.msra.mxu0 0.0
        %2263 = vmatprep.subr.mxu0 0.0
        %2264 = vmatpush2.msra.mxu0 0.0
        %2265 = vmatprep.subr.mxu0 0.0
        %2266 = vmatpush2.msra.mxu0 0.0
        %2267 = vmatprep.subr.mxu0 0.0
        %2268 = vmatpush2.msra.mxu0 0.0
        %2269 = vmatprep.subr.mxu0 0.0
        %2270 = vmatpush2.msra.mxu0 0.0
        %2271 = vmatprep.subr.mxu0 0.0
        %2272 = vmatpush2.msra.mxu0 0.0
        %2273 = vmatprep.subr.mxu0 0.0
        %2274 = vmatpush2.msra.mxu0 0.0
        %2275 = vmatprep.subr.mxu0 0.0
        %2276 = vmatpush2.msra.mxu0 0.0
        %2277 = vmatprep.subr.mxu0 0.0
        %2278 = vmatpush2.msra.mxu0 0.0
        %2279 = vmatprep.subr.mxu0 0.0
        %2280 = vmatpush2.msra.mxu0 0.0
        %2281 = vmatprep.mubr.f32.mxu0 0.0
        %2282 = vmatmul.mubr.f32.gmra.mxu0 %v2215
        %v2283 = vpop.f32.mrf.mxu0
        %v2284 = vadd.f32 %v2213, %v2283
        %v2285 = vpop.f32.mrf.mxu0
        %2286 = vdwg.mxu0
        %v2287 = vmax.f32 %v2284, 0.0
        %v2288 = vlaneseq
        %v2289 = vshrl.u32 %v2288, 7
        %v2290 = vsub.s32 0, %v2289
        %v2291 = vrot.slane %v2209, %v2290
        %vm2292 = vcmask 523264
        %v2294 = vsel %vm2292, %v2287, 0
        %2296 = vmatprep.subr.mxu0 0.0
        %2297 = vmatpush1.msra.mxu0 0.0
        %2298 = vmatprep.subr.mxu0 0.0
        %2299 = vmatpush1.msra.mxu0 0.0
        %2300 = vmatprep.subr.mxu0 0.0
        %2301 = vmatpush1.msra.mxu0 0.0
        %2302 = vmatprep.subr.mxu0 0.0
        %2303 = vmatpush1.msra.mxu0 0.0
        %2304 = vmatprep.subr.mxu0 0.0
        %2305 = vmatpush1.msra.mxu0 0.0
        %2306 = vmatprep.subr.mxu0 0.0
        %2307 = vmatpush1.msra.mxu0 0.0
        %2308 = vmatprep.subr.mxu0 0.0
        %2309 = vmatpush1.msra.mxu0 0.0
        %2310 = vmatprep.subr.mxu0 0.0
        %2311 = vmatpush1.msra.mxu0 0.0
        %2312 = vmatprep.subr.mxu0 0.0
        %2313 = vmatpush1.msra.mxu0 %v2208
        %2314 = vmatprep.subr.mxu0 0.0
        %2315 = vmatpush1.msra.mxu0 %v2207
        %2316 = vmatprep.subr.mxu0 0.0
        %2317 = vmatpush1.msra.mxu0 %v2206
        %2318 = vmatprep.subr.mxu0 0.0
        %2319 = vmatpush1.msra.mxu0 %v2205
        %2320 = vmatprep.subr.mxu0 0.0
        %2321 = vmatpush1.msra.mxu0 %v2204
        %2322 = vmatprep.subr.mxu0 0.0
        %2323 = vmatpush1.msra.mxu0 %v2203
        %2324 = vmatprep.subr.mxu0 0.0
        %2325 = vmatpush1.msra.mxu0 %v2202
        %2326 = vmatprep.subr.mxu0 0.0
        %2327 = vmatpush1.msra.mxu0 %v2201
        %2328 = vmatprep.subr.mxu0 0.0
        %2329 = vmatpush2.msra.mxu0 0.0
        %2330 = vmatprep.subr.mxu0 0.0
        %2331 = vmatpush2.msra.mxu0 0.0
        %2332 = vmatprep.subr.mxu0 0.0
        %2333 = vmatpush2.msra.mxu0 0.0
        %2334 = vmatprep.subr.mxu0 0.0
        %2335 = vmatpush2.msra.mxu0 0.0
        %2336 = vmatprep.subr.mxu0 0.0
        %2337 = vmatpush2.msra.mxu0 0.0
        %2338 = vmatprep.subr.mxu0 0.0
        %2339 = vmatpush2.msra.mxu0 0.0
        %2340 = vmatprep.subr.mxu0 0.0
        %2341 = vmatpush2.msra.mxu0 0.0
        %2342 = vmatprep.subr.mxu0 0.0
        %2343 = vmatpush2.msra.mxu0 0.0
        %2344 = vmatprep.subr.mxu0 0.0
        %2345 = vmatpush2.msra.mxu0 0.0
        %2346 = vmatprep.subr.mxu0 0.0
        %2347 = vmatpush2.msra.mxu0 0.0
        %2348 = vmatprep.subr.mxu0 0.0
        %2349 = vmatpush2.msra.mxu0 0.0
        %2350 = vmatprep.subr.mxu0 0.0
        %2351 = vmatpush2.msra.mxu0 0.0
        %2352 = vmatprep.subr.mxu0 0.0
        %2353 = vmatpush2.msra.mxu0 0.0
        %2354 = vmatprep.subr.mxu0 0.0
        %2355 = vmatpush2.msra.mxu0 0.0
        %2356 = vmatprep.subr.mxu0 0.0
        %2357 = vmatpush2.msra.mxu0 0.0
        %2358 = vmatprep.subr.mxu0 0.0
        %2359 = vmatpush2.msra.mxu0 0.0
        %2360 = vmatprep.mubr.f32.mxu0 0.0
        %2361 = vmatmul.mubr.f32.gmra.mxu0 %v2294
        %v2362 = vpop.f32.mrf.mxu0
        %v2363 = vadd.f32 %v2291, %v2362
        %v2364 = vpop.f32.mrf.mxu0
        %2365 = vdwg.mxu0
        %v2366 = vadd.f32 %v2163, %v2363
        %v2367 = vld [vmem:[%s9 + $0x1] sm:$0x1]
        %v2368 = vld [vmem:[%s11 + $0x1] sm:$0x1]
        %v2369 = vsel %vm1276, %v2366, 0.0
        %2370 = vadd.xlane.f32.xlu0 %v2369
        %v2371 = vpop.xlane.xlu0 %2370
        %v2372 = vmul.f32 %v2371, %v1280
        %v2373 = vsub.f32 %v2366, %v2372
        %v2374 = vmul.f32 %v2373, %v2373
        %v2375 = vsel %vm1276, %v2374, 0.0
        %2376 = vadd.xlane.f32.xlu0 %v2375
        %v2377 = vpop.xlane.xlu0 %2376
        %v2378 = vmul.f32 %v2377, 0.032258064
        %v2379 = vrsqrt.pop %v2378
        %v2380 = vmul.f32 %v2378, %v2379
        %vm2381 = vcmp.eq.f32.partialorder %v2378, inf
        %v2382 = vsel %vm2381, %v2378, %v2380
        %vm2383 = vcmp.eq.f32.partialorder %v2378, 0.0
        %v2384 = vand.u32 %v2378, 2147483648
        %v2385 = vsel %vm2383, %v2384, %v2382
        %v2386 = vadd.f32 %v2385, 1e-06
        %v2387 = vrcp.pop %v2386
        %v2388 = vlaneseq
        %v2389 = vshrl.u32 %v2388, 7
        %v2390 = vsub.s32 0, %v2389
        %v2391 = vrot.slane %v2367, %v2390
        %v2392 = vmul.f32 %v2391, %v2373
        %v2393 = vmul.f32 %v2392, %v2387
        %v2394 = vlaneseq
        %v2395 = vshrl.u32 %v2394, 7
        %v2396 = vsub.s32 0, %v2395
        %v2397 = vrot.slane %v2368, %v2396
        %v2398 = vadd.f32 %v2393, %v2397
        %s2399 = scalar_lea.vmem %s13, 32
        %v2400 = vld [vmem:[%s2399] sm:$0xff]
        %v2401 = vld [vmem:[%s2399 + $0x8] sm:$0xff]
        %v2402 = vld [vmem:[%s2399 + $0x10] sm:$0xff]
        %v2403 = vld [vmem:[%s2399 + $0x18] sm:$0xff]
        %v2404 = vld [vmem:[%s15 + $0x1] sm:$0x1]
        %s2405 = scalar_lea.vmem %s17, 32
        %v2406 = vld [vmem:[%s2405] sm:$0xff]
        %v2407 = vld [vmem:[%s2405 + $0x8] sm:$0xff]
        %v2408 = vld [vmem:[%s2405 + $0x10] sm:$0xff]
        %v2409 = vld [vmem:[%s2405 + $0x18] sm:$0xff]
        %v2410 = vld [vmem:[%s19 + $0x1] sm:$0x1]
        %v2411 = vlaneseq
        %v2412 = vshrl.u32 %v2411, 7
        %v2413 = vsub.s32 0, %v2412
        %v2414 = vrot.slane %v2404, %v2413
        %v2416 = vsel %vm1276, %v2398, 0
        %2418 = vmatprep.subr.mxu0 0.0
        %2419 = vmatpush1.msra.mxu0 0.0
        %2420 = vmatprep.subr.mxu0 0.0
        %2421 = vmatpush1.msra.mxu0 0.0
        %2422 = vmatprep.subr.mxu0 0.0
        %2423 = vmatpush1.msra.mxu0 0.0
        %2424 = vmatprep.subr.mxu0 0.0
        %2425 = vmatpush1.msra.mxu0 0.0
        %2426 = vmatprep.subr.mxu0 0.0
        %2427 = vmatpush1.msra.mxu0 0.0
        %2428 = vmatprep.subr.mxu0 0.0
        %2429 = vmatpush1.msra.mxu0 0.0
        %2430 = vmatprep.subr.mxu0 0.0
        %2431 = vmatpush1.msra.mxu0 0.0
        %2432 = vmatprep.subr.mxu0 0.0
        %2433 = vmatpush1.msra.mxu0 0.0
        %2434 = vmatprep.subr.mxu0 0.0
        %2435 = vmatpush1.msra.mxu0 0.0
        %2436 = vmatprep.subr.mxu0 0.0
        %2437 = vmatpush1.msra.mxu0 0.0
        %2438 = vmatprep.subr.mxu0 0.0
        %2439 = vmatpush1.msra.mxu0 0.0
        %2440 = vmatprep.subr.mxu0 0.0
        %2441 = vmatpush1.msra.mxu0 0.0
        %2442 = vmatprep.subr.mxu0 0.0
        %2443 = vmatpush1.msra.mxu0 %v2403
        %2444 = vmatprep.subr.mxu0 0.0
        %2445 = vmatpush1.msra.mxu0 %v2402
        %2446 = vmatprep.subr.mxu0 0.0
        %2447 = vmatpush1.msra.mxu0 %v2401
        %2448 = vmatprep.subr.mxu0 0.0
        %2449 = vmatpush1.msra.mxu0 %v2400
        %2450 = vmatprep.subr.mxu0 0.0
        %2451 = vmatpush2.msra.mxu0 0.0
        %2452 = vmatprep.subr.mxu0 0.0
        %2453 = vmatpush2.msra.mxu0 0.0
        %2454 = vmatprep.subr.mxu0 0.0
        %2455 = vmatpush2.msra.mxu0 0.0
        %2456 = vmatprep.subr.mxu0 0.0
        %2457 = vmatpush2.msra.mxu0 0.0
        %2458 = vmatprep.subr.mxu0 0.0
        %2459 = vmatpush2.msra.mxu0 0.0
        %2460 = vmatprep.subr.mxu0 0.0
        %2461 = vmatpush2.msra.mxu0 0.0
        %2462 = vmatprep.subr.mxu0 0.0
        %2463 = vmatpush2.msra.mxu0 0.0
        %2464 = vmatprep.subr.mxu0 0.0
        %2465 = vmatpush2.msra.mxu0 0.0
        %2466 = vmatprep.subr.mxu0 0.0
        %2467 = vmatpush2.msra.mxu0 0.0
        %2468 = vmatprep.subr.mxu0 0.0
        %2469 = vmatpush2.msra.mxu0 0.0
        %2470 = vmatprep.subr.mxu0 0.0
        %2471 = vmatpush2.msra.mxu0 0.0
        %2472 = vmatprep.subr.mxu0 0.0
        %2473 = vmatpush2.msra.mxu0 0.0
        %2474 = vmatprep.subr.mxu0 0.0
        %2475 = vmatpush2.msra.mxu0 0.0
        %2476 = vmatprep.subr.mxu0 0.0
        %2477 = vmatpush2.msra.mxu0 0.0
        %2478 = vmatprep.subr.mxu0 0.0
        %2479 = vmatpush2.msra.mxu0 0.0
        %2480 = vmatprep.subr.mxu0 0.0
        %2481 = vmatpush2.msra.mxu0 0.0
        %2482 = vmatprep.mubr.f32.mxu0 0.0
        %2483 = vmatmul.mubr.f32.gmra.mxu0 %v2416
        %v2484 = vpop.f32.mrf.mxu0
        %v2485 = vadd.f32 %v2414, %v2484
        %v2486 = vpop.f32.mrf.mxu0
        %2487 = vdwg.mxu0
        %2489 = vrot.lane.b32.xlu0 %v2485, 96
        %v2490 = vpop.permute.xlu0 %2489
        %v2491 = vsel %vm1398, %v2485, 0
        %v2493 = vsel %vm1398, %v2490, 0
        %2495 = vmatprep.subr.mxu0 0.0
        %2496 = vmatpush1.xpose.msra.mxu0 0.0
        %2497 = vmatprep.subr.mxu0 0.0
        %2498 = vmatpush1.xpose.msra.mxu0 0.0
        %2499 = vmatprep.subr.mxu0 0.0
        %2500 = vmatpush1.xpose.msra.mxu0 0.0
        %2501 = vmatprep.subr.mxu0 0.0
        %2502 = vmatpush1.xpose.msra.mxu0 0.0
        %2503 = vmatprep.subr.mxu0 0.0
        %2504 = vmatpush1.xpose.msra.mxu0 0.0
        %2505 = vmatprep.subr.mxu0 0.0
        %2506 = vmatpush1.xpose.msra.mxu0 0.0
        %2507 = vmatprep.subr.mxu0 0.0
        %2508 = vmatpush1.xpose.msra.mxu0 0.0
        %2509 = vmatprep.subr.mxu0 0.0
        %2510 = vmatpush1.xpose.msra.mxu0 0.0
        %2511 = vmatprep.subr.mxu0 0.0
        %2512 = vmatpush1.xpose.msra.mxu0 0.0
        %2513 = vmatprep.subr.mxu0 0.0
        %2514 = vmatpush1.xpose.msra.mxu0 0.0
        %2515 = vmatprep.subr.mxu0 0.0
        %2516 = vmatpush1.xpose.msra.mxu0 0.0
        %2517 = vmatprep.subr.mxu0 0.0
        %2518 = vmatpush1.xpose.msra.mxu0 0.0
        %2519 = vmatprep.subr.mxu0 0.0
        %2520 = vmatpush1.xpose.msra.mxu0 0.0
        %2521 = vmatprep.subr.mxu0 0.0
        %2522 = vmatpush1.xpose.msra.mxu0 0.0
        %2523 = vmatprep.subr.mxu0 0.0
        %2524 = vmatpush1.xpose.msra.mxu0 0.0
        %2525 = vmatprep.subr.mxu0 0.0
        %2526 = vmatpush1.xpose.msra.mxu0 %v2493
        %2527 = vmatprep.subr.mxu0 0.0
        %2528 = vmatpush2.xpose.msra.mxu0 0.0
        %2529 = vmatprep.subr.mxu0 0.0
        %2530 = vmatpush2.xpose.msra.mxu0 0.0
        %2531 = vmatprep.subr.mxu0 0.0
        %2532 = vmatpush2.xpose.msra.mxu0 0.0
        %2533 = vmatprep.subr.mxu0 0.0
        %2534 = vmatpush2.xpose.msra.mxu0 0.0
        %2535 = vmatprep.subr.mxu0 0.0
        %2536 = vmatpush2.xpose.msra.mxu0 0.0
        %2537 = vmatprep.subr.mxu0 0.0
        %2538 = vmatpush2.xpose.msra.mxu0 0.0
        %2539 = vmatprep.subr.mxu0 0.0
        %2540 = vmatpush2.xpose.msra.mxu0 0.0
        %2541 = vmatprep.subr.mxu0 0.0
        %2542 = vmatpush2.xpose.msra.mxu0 0.0
        %2543 = vmatprep.subr.mxu0 0.0
        %2544 = vmatpush2.xpose.msra.mxu0 0.0
        %2545 = vmatprep.subr.mxu0 0.0
        %2546 = vmatpush2.xpose.msra.mxu0 0.0
        %2547 = vmatprep.subr.mxu0 0.0
        %2548 = vmatpush2.xpose.msra.mxu0 0.0
        %2549 = vmatprep.subr.mxu0 0.0
        %2550 = vmatpush2.xpose.msra.mxu0 0.0
        %2551 = vmatprep.subr.mxu0 0.0
        %2552 = vmatpush2.xpose.msra.mxu0 0.0
        %2553 = vmatprep.subr.mxu0 0.0
        %2554 = vmatpush2.xpose.msra.mxu0 0.0
        %2555 = vmatprep.subr.mxu0 0.0
        %2556 = vmatpush2.xpose.msra.mxu0 0.0
        %2557 = vmatprep.subr.mxu0 0.0
        %2558 = vmatpush2.xpose.msra.mxu0 0.0
        %2559 = vmatprep.mubr.f32.mxu0 0.0
        %2560 = vmatmul.mubr.f32.gmra.mxu0 %v2491
        %v2561 = vpop.f32.mrf.mxu0
        %v2562 = vadd.f32 0.0, %v2561
        %v2563 = vpop.f32.mrf.mxu0
        %2564 = vdwg.mxu0
        %v2565 = vmul.f32 %v2562, 0.35355338
        %v2566 = vadd.f32 %v2565, %v1478
        %v2567 = vsel %vm1398, %v2566, -inf
        %2568 = vmax.xlane.f32.xlu0 %v2567
        %v2569 = vpop.xlane.xlu0 %2568
        %v2570 = vsub.f32 %v2566, %v2569
        %v2571 = vmul.f32 %v2570, 1.442695
        %v2572 = vpow.pop %v2571
        %v2573 = vsel %vm1398, %v2572, 0.0
        %2574 = vadd.xlane.f32.xlu0 %v2573
        %v2575 = vpop.xlane.xlu0 %2574
        %v2576 = vrcp.pop %v2575
        %v2577 = vmul.f32 %v2572, %v2576
        %2578 = vrot.lane.b32.xlu0 %v2485, 64
        %v2579 = vpop.permute.xlu0 %2578
        %v2582 = vsel %vm1398, %v2577, 0
        %2584 = vmatprep.subr.mxu0 0.0
        %2585 = vmatpush1.msra.mxu0 0.0
        %2586 = vmatprep.subr.mxu0 0.0
        %2587 = vmatpush1.msra.mxu0 0.0
        %2588 = vmatprep.subr.mxu0 0.0
        %2589 = vmatpush1.msra.mxu0 0.0
        %2590 = vmatprep.subr.mxu0 0.0
        %2591 = vmatpush1.msra.mxu0 0.0
        %2592 = vmatprep.subr.mxu0 0.0
        %2593 = vmatpush1.msra.mxu0 0.0
        %2594 = vmatprep.subr.mxu0 0.0
        %2595 = vmatpush1.msra.mxu0 0.0
        %2596 = vmatprep.subr.mxu0 0.0
        %2597 = vmatpush1.msra.mxu0 0.0
        %2598 = vmatprep.subr.mxu0 0.0
        %2599 = vmatpush1.msra.mxu0 0.0
        %2600 = vmatprep.subr.mxu0 0.0
        %2601 = vmatpush1.msra.mxu0 0.0
        %2602 = vmatprep.subr.mxu0 0.0
        %2603 = vmatpush1.msra.mxu0 0.0
        %2604 = vmatprep.subr.mxu0 0.0
        %2605 = vmatpush1.msra.mxu0 0.0
        %2606 = vmatprep.subr.mxu0 0.0
        %2607 = vmatpush1.msra.mxu0 0.0
        %2608 = vmatprep.subr.mxu0 0.0
        %2609 = vmatpush1.msra.mxu0 0.0
        %2610 = vmatprep.subr.mxu0 0.0
        %2611 = vmatpush1.msra.mxu0 0.0
        %2612 = vmatprep.subr.mxu0 0.0
        %2613 = vmatpush1.msra.mxu0 0.0
        %2614 = vmatprep.subr.mxu0 0.0
        %2615 = vmatpush1.msra.mxu0 %v2579
        %2616 = vmatprep.subr.mxu0 0.0
        %2617 = vmatpush2.msra.mxu0 0.0
        %2618 = vmatprep.subr.mxu0 0.0
        %2619 = vmatpush2.msra.mxu0 0.0
        %2620 = vmatprep.subr.mxu0 0.0
        %2621 = vmatpush2.msra.mxu0 0.0
        %2622 = vmatprep.subr.mxu0 0.0
        %2623 = vmatpush2.msra.mxu0 0.0
        %2624 = vmatprep.subr.mxu0 0.0
        %2625 = vmatpush2.msra.mxu0 0.0
        %2626 = vmatprep.subr.mxu0 0.0
        %2627 = vmatpush2.msra.mxu0 0.0
        %2628 = vmatprep.subr.mxu0 0.0
        %2629 = vmatpush2.msra.mxu0 0.0
        %2630 = vmatprep.subr.mxu0 0.0
        %2631 = vmatpush2.msra.mxu0 0.0
        %2632 = vmatprep.subr.mxu0 0.0
        %2633 = vmatpush2.msra.mxu0 0.0
        %2634 = vmatprep.subr.mxu0 0.0
        %2635 = vmatpush2.msra.mxu0 0.0
        %2636 = vmatprep.subr.mxu0 0.0
        %2637 = vmatpush2.msra.mxu0 0.0
        %2638 = vmatprep.subr.mxu0 0.0
        %2639 = vmatpush2.msra.mxu0 0.0
        %2640 = vmatprep.subr.mxu0 0.0
        %2641 = vmatpush2.msra.mxu0 0.0
        %2642 = vmatprep.subr.mxu0 0.0
        %2643 = vmatpush2.msra.mxu0 0.0
        %2644 = vmatprep.subr.mxu0 0.0
        %2645 = vmatpush2.msra.mxu0 0.0
        %2646 = vmatprep.subr.mxu0 0.0
        %2647 = vmatpush2.msra.mxu0 0.0
        %2648 = vmatprep.mubr.f32.mxu0 0.0
        %2649 = vmatmul.mubr.f32.gmra.mxu0 %v2582
        %v2650 = vpop.f32.mrf.mxu0
        %v2651 = vadd.f32 0.0, %v2650
        %v2652 = vpop.f32.mrf.mxu0
        %2653 = vdwg.mxu0
        %2654 = vrot.lane.b32.xlu0 %v2485, 120
        %v2655 = vpop.permute.xlu0 %2654
        %2656 = vrot.lane.b32.xlu0 %v2485, 88
        %v2657 = vpop.permute.xlu0 %2656
        %v2658 = vsel %vm1398, %v2655, 0
        %v2660 = vsel %vm1398, %v2657, 0
        %2662 = vmatprep.subr.mxu0 0.0
        %2663 = vmatpush1.xpose.msra.mxu0 0.0
        %2664 = vmatprep.subr.mxu0 0.0
        %2665 = vmatpush1.xpose.msra.mxu0 0.0
        %2666 = vmatprep.subr.mxu0 0.0
        %2667 = vmatpush1.xpose.msra.mxu0 0.0
        %2668 = vmatprep.subr.mxu0 0.0
        %2669 = vmatpush1.xpose.msra.mxu0 0.0
        %2670 = vmatprep.subr.mxu0 0.0
        %2671 = vmatpush1.xpose.msra.mxu0 0.0
        %2672 = vmatprep.subr.mxu0 0.0
        %2673 = vmatpush1.xpose.msra.mxu0 0.0
        %2674 = vmatprep.subr.mxu0 0.0
        %2675 = vmatpush1.xpose.msra.mxu0 0.0
        %2676 = vmatprep.subr.mxu0 0.0
        %2677 = vmatpush1.xpose.msra.mxu0 0.0
        %2678 = vmatprep.subr.mxu0 0.0
        %2679 = vmatpush1.xpose.msra.mxu0 0.0
        %2680 = vmatprep.subr.mxu0 0.0
        %2681 = vmatpush1.xpose.msra.mxu0 0.0
        %2682 = vmatprep.subr.mxu0 0.0
        %2683 = vmatpush1.xpose.msra.mxu0 0.0
        %2684 = vmatprep.subr.mxu0 0.0
        %2685 = vmatpush1.xpose.msra.mxu0 0.0
        %2686 = vmatprep.subr.mxu0 0.0
        %2687 = vmatpush1.xpose.msra.mxu0 0.0
        %2688 = vmatprep.subr.mxu0 0.0
        %2689 = vmatpush1.xpose.msra.mxu0 0.0
        %2690 = vmatprep.subr.mxu0 0.0
        %2691 = vmatpush1.xpose.msra.mxu0 0.0
        %2692 = vmatprep.subr.mxu0 0.0
        %2693 = vmatpush1.xpose.msra.mxu0 %v2660
        %2694 = vmatprep.subr.mxu0 0.0
        %2695 = vmatpush2.xpose.msra.mxu0 0.0
        %2696 = vmatprep.subr.mxu0 0.0
        %2697 = vmatpush2.xpose.msra.mxu0 0.0
        %2698 = vmatprep.subr.mxu0 0.0
        %2699 = vmatpush2.xpose.msra.mxu0 0.0
        %2700 = vmatprep.subr.mxu0 0.0
        %2701 = vmatpush2.xpose.msra.mxu0 0.0
        %2702 = vmatprep.subr.mxu0 0.0
        %2703 = vmatpush2.xpose.msra.mxu0 0.0
        %2704 = vmatprep.subr.mxu0 0.0
        %2705 = vmatpush2.xpose.msra.mxu0 0.0
        %2706 = vmatprep.subr.mxu0 0.0
        %2707 = vmatpush2.xpose.msra.mxu0 0.0
        %2708 = vmatprep.subr.mxu0 0.0
        %2709 = vmatpush2.xpose.msra.mxu0 0.0
        %2710 = vmatprep.subr.mxu0 0.0
        %2711 = vmatpush2.xpose.msra.mxu0 0.0
        %2712 = vmatprep.subr.mxu0 0.0
        %2713 = vmatpush2.xpose.msra.mxu0 0.0
        %2714 = vmatprep.subr.mxu0 0.0
        %2715 = vmatpush2.xpose.msra.mxu0 0.0
        %2716 = vmatprep.subr.mxu0 0.0
        %2717 = vmatpush2.xpose.msra.mxu0 0.0
        %2718 = vmatprep.subr.mxu0 0.0
        %2719 = vmatpush2.xpose.msra.mxu0 0.0
        %2720 = vmatprep.subr.mxu0 0.0
        %2721 = vmatpush2.xpose.msra.mxu0 0.0
        %2722 = vmatprep.subr.mxu0 0.0
        %2723 = vmatpush2.xpose.msra.mxu0 0.0
        %2724 = vmatprep.subr.mxu0 0.0
        %2725 = vmatpush2.xpose.msra.mxu0 0.0
        %2726 = vmatprep.mubr.f32.mxu0 0.0
        %2727 = vmatmul.mubr.f32.gmra.mxu0 %v2658
        %v2728 = vpop.f32.mrf.mxu0
        %v2729 = vadd.f32 0.0, %v2728
        %v2730 = vpop.f32.mrf.mxu0
        %2731 = vdwg.mxu0
        %v2732 = vmul.f32 %v2729, 0.35355338
        %v2733 = vadd.f32 %v2732, %v1478
        %v2734 = vsel %vm1398, %v2733, -inf
        %2735 = vmax.xlane.f32.xlu0 %v2734
        %v2736 = vpop.xlane.xlu0 %2735
        %v2737 = vsub.f32 %v2733, %v2736
        %v2738 = vmul.f32 %v2737, 1.442695
        %v2739 = vpow.pop %v2738
        %v2740 = vsel %vm1398, %v2739, 0.0
        %2741 = vadd.xlane.f32.xlu0 %v2740
        %v2742 = vpop.xlane.xlu0 %2741
        %v2743 = vrcp.pop %v2742
        %v2744 = vmul.f32 %v2739, %v2743
        %2745 = vrot.lane.b32.xlu0 %v2485, 56
        %v2746 = vpop.permute.xlu0 %2745
        %v2749 = vsel %vm1398, %v2744, 0
        %2751 = vmatprep.subr.mxu0 0.0
        %2752 = vmatpush1.msra.mxu0 0.0
        %2753 = vmatprep.subr.mxu0 0.0
        %2754 = vmatpush1.msra.mxu0 0.0
        %2755 = vmatprep.subr.mxu0 0.0
        %2756 = vmatpush1.msra.mxu0 0.0
        %2757 = vmatprep.subr.mxu0 0.0
        %2758 = vmatpush1.msra.mxu0 0.0
        %2759 = vmatprep.subr.mxu0 0.0
        %2760 = vmatpush1.msra.mxu0 0.0
        %2761 = vmatprep.subr.mxu0 0.0
        %2762 = vmatpush1.msra.mxu0 0.0
        %2763 = vmatprep.subr.mxu0 0.0
        %2764 = vmatpush1.msra.mxu0 0.0
        %2765 = vmatprep.subr.mxu0 0.0
        %2766 = vmatpush1.msra.mxu0 0.0
        %2767 = vmatprep.subr.mxu0 0.0
        %2768 = vmatpush1.msra.mxu0 0.0
        %2769 = vmatprep.subr.mxu0 0.0
        %2770 = vmatpush1.msra.mxu0 0.0
        %2771 = vmatprep.subr.mxu0 0.0
        %2772 = vmatpush1.msra.mxu0 0.0
        %2773 = vmatprep.subr.mxu0 0.0
        %2774 = vmatpush1.msra.mxu0 0.0
        %2775 = vmatprep.subr.mxu0 0.0
        %2776 = vmatpush1.msra.mxu0 0.0
        %2777 = vmatprep.subr.mxu0 0.0
        %2778 = vmatpush1.msra.mxu0 0.0
        %2779 = vmatprep.subr.mxu0 0.0
        %2780 = vmatpush1.msra.mxu0 0.0
        %2781 = vmatprep.subr.mxu0 0.0
        %2782 = vmatpush1.msra.mxu0 %v2746
        %2783 = vmatprep.subr.mxu0 0.0
        %2784 = vmatpush2.msra.mxu0 0.0
        %2785 = vmatprep.subr.mxu0 0.0
        %2786 = vmatpush2.msra.mxu0 0.0
        %2787 = vmatprep.subr.mxu0 0.0
        %2788 = vmatpush2.msra.mxu0 0.0
        %2789 = vmatprep.subr.mxu0 0.0
        %2790 = vmatpush2.msra.mxu0 0.0
        %2791 = vmatprep.subr.mxu0 0.0
        %2792 = vmatpush2.msra.mxu0 0.0
        %2793 = vmatprep.subr.mxu0 0.0
        %2794 = vmatpush2.msra.mxu0 0.0
        %2795 = vmatprep.subr.mxu0 0.0
        %2796 = vmatpush2.msra.mxu0 0.0
        %2797 = vmatprep.subr.mxu0 0.0
        %2798 = vmatpush2.msra.mxu0 0.0
        %2799 = vmatprep.subr.mxu0 0.0
        %2800 = vmatpush2.msra.mxu0 0.0
        %2801 = vmatprep.subr.mxu0 0.0
        %2802 = vmatpush2.msra.mxu0 0.0
        %2803 = vmatprep.subr.mxu0 0.0
        %2804 = vmatpush2.msra.mxu0 0.0
        %2805 = vmatprep.subr.mxu0 0.0
        %2806 = vmatpush2.msra.mxu0 0.0
        %2807 = vmatprep.subr.mxu0 0.0
        %2808 = vmatpush2.msra.mxu0 0.0
        %2809 = vmatprep.subr.mxu0 0.0
        %2810 = vmatpush2.msra.mxu0 0.0
        %2811 = vmatprep.subr.mxu0 0.0
        %2812 = vmatpush2.msra.mxu0 0.0
        %2813 = vmatprep.subr.mxu0 0.0
        %2814 = vmatpush2.msra.mxu0 0.0
        %2815 = vmatprep.mubr.f32.mxu0 0.0
        %2816 = vmatmul.mubr.f32.gmra.mxu0 %v2749
        %v2817 = vpop.f32.mrf.mxu0
        %v2818 = vadd.f32 0.0, %v2817
        %v2819 = vpop.f32.mrf.mxu0
        %2820 = vdwg.mxu0
        %2821 = vrot.lane.b32.xlu0 %v2485, 112
        %v2822 = vpop.permute.xlu0 %2821
        %2823 = vrot.lane.b32.xlu0 %v2485, 80
        %v2824 = vpop.permute.xlu0 %2823
        %v2825 = vsel %vm1398, %v2822, 0
        %v2827 = vsel %vm1398, %v2824, 0
        %2829 = vmatprep.subr.mxu0 0.0
        %2830 = vmatpush1.xpose.msra.mxu0 0.0
        %2831 = vmatprep.subr.mxu0 0.0
        %2832 = vmatpush1.xpose.msra.mxu0 0.0
        %2833 = vmatprep.subr.mxu0 0.0
        %2834 = vmatpush1.xpose.msra.mxu0 0.0
        %2835 = vmatprep.subr.mxu0 0.0
        %2836 = vmatpush1.xpose.msra.mxu0 0.0
        %2837 = vmatprep.subr.mxu0 0.0
        %2838 = vmatpush1.xpose.msra.mxu0 0.0
        %2839 = vmatprep.subr.mxu0 0.0
        %2840 = vmatpush1.xpose.msra.mxu0 0.0
        %2841 = vmatprep.subr.mxu0 0.0
        %2842 = vmatpush1.xpose.msra.mxu0 0.0
        %2843 = vmatprep.subr.mxu0 0.0
        %2844 = vmatpush1.xpose.msra.mxu0 0.0
        %2845 = vmatprep.subr.mxu0 0.0
        %2846 = vmatpush1.xpose.msra.mxu0 0.0
        %2847 = vmatprep.subr.mxu0 0.0
        %2848 = vmatpush1.xpose.msra.mxu0 0.0
        %2849 = vmatprep.subr.mxu0 0.0
        %2850 = vmatpush1.xpose.msra.mxu0 0.0
        %2851 = vmatprep.subr.mxu0 0.0
        %2852 = vmatpush1.xpose.msra.mxu0 0.0
        %2853 = vmatprep.subr.mxu0 0.0
        %2854 = vmatpush1.xpose.msra.mxu0 0.0
        %2855 = vmatprep.subr.mxu0 0.0
        %2856 = vmatpush1.xpose.msra.mxu0 0.0
        %2857 = vmatprep.subr.mxu0 0.0
        %2858 = vmatpush1.xpose.msra.mxu0 0.0
        %2859 = vmatprep.subr.mxu0 0.0
        %2860 = vmatpush1.xpose.msra.mxu0 %v2827
        %2861 = vmatprep.subr.mxu0 0.0
        %2862 = vmatpush2.xpose.msra.mxu0 0.0
        %2863 = vmatprep.subr.mxu0 0.0
        %2864 = vmatpush2.xpose.msra.mxu0 0.0
        %2865 = vmatprep.subr.mxu0 0.0
        %2866 = vmatpush2.xpose.msra.mxu0 0.0
        %2867 = vmatprep.subr.mxu0 0.0
        %2868 = vmatpush2.xpose.msra.mxu0 0.0
        %2869 = vmatprep.subr.mxu0 0.0
        %2870 = vmatpush2.xpose.msra.mxu0 0.0
        %2871 = vmatprep.subr.mxu0 0.0
        %2872 = vmatpush2.xpose.msra.mxu0 0.0
        %2873 = vmatprep.subr.mxu0 0.0
        %2874 = vmatpush2.xpose.msra.mxu0 0.0
        %2875 = vmatprep.subr.mxu0 0.0
        %2876 = vmatpush2.xpose.msra.mxu0 0.0
        %2877 = vmatprep.subr.mxu0 0.0
        %2878 = vmatpush2.xpose.msra.mxu0 0.0
        %2879 = vmatprep.subr.mxu0 0.0
        %2880 = vmatpush2.xpose.msra.mxu0 0.0
        %2881 = vmatprep.subr.mxu0 0.0
        %2882 = vmatpush2.xpose.msra.mxu0 0.0
        %2883 = vmatprep.subr.mxu0 0.0
        %2884 = vmatpush2.xpose.msra.mxu0 0.0
        %2885 = vmatprep.subr.mxu0 0.0
        %2886 = vmatpush2.xpose.msra.mxu0 0.0
        %2887 = vmatprep.subr.mxu0 0.0
        %2888 = vmatpush2.xpose.msra.mxu0 0.0
        %2889 = vmatprep.subr.mxu0 0.0
        %2890 = vmatpush2.xpose.msra.mxu0 0.0
        %2891 = vmatprep.subr.mxu0 0.0
        %2892 = vmatpush2.xpose.msra.mxu0 0.0
        %2893 = vmatprep.mubr.f32.mxu0 0.0
        %2894 = vmatmul.mubr.f32.gmra.mxu0 %v2825
        %v2895 = vpop.f32.mrf.mxu0
        %v2896 = vadd.f32 0.0, %v2895
        %v2897 = vpop.f32.mrf.mxu0
        %2898 = vdwg.mxu0
        %v2899 = vmul.f32 %v2896, 0.35355338
        %v2900 = vadd.f32 %v2899, %v1478
        %v2901 = vsel %vm1398, %v2900, -inf
        %2902 = vmax.xlane.f32.xlu0 %v2901
        %v2903 = vpop.xlane.xlu0 %2902
        %v2904 = vsub.f32 %v2900, %v2903
        %v2905 = vmul.f32 %v2904, 1.442695
        %v2906 = vpow.pop %v2905
        %v2907 = vsel %vm1398, %v2906, 0.0
        %2908 = vadd.xlane.f32.xlu0 %v2907
        %v2909 = vpop.xlane.xlu0 %2908
        %v2910 = vrcp.pop %v2909
        %v2911 = vmul.f32 %v2906, %v2910
        %2912 = vrot.lane.b32.xlu0 %v2485, 48
        %v2913 = vpop.permute.xlu0 %2912
        %v2916 = vsel %vm1398, %v2911, 0
        %2918 = vmatprep.subr.mxu0 0.0
        %2919 = vmatpush1.msra.mxu0 0.0
        %2920 = vmatprep.subr.mxu0 0.0
        %2921 = vmatpush1.msra.mxu0 0.0
        %2922 = vmatprep.subr.mxu0 0.0
        %2923 = vmatpush1.msra.mxu0 0.0
        %2924 = vmatprep.subr.mxu0 0.0
        %2925 = vmatpush1.msra.mxu0 0.0
        %2926 = vmatprep.subr.mxu0 0.0
        %2927 = vmatpush1.msra.mxu0 0.0
        %2928 = vmatprep.subr.mxu0 0.0
        %2929 = vmatpush1.msra.mxu0 0.0
        %2930 = vmatprep.subr.mxu0 0.0
        %2931 = vmatpush1.msra.mxu0 0.0
        %2932 = vmatprep.subr.mxu0 0.0
        %2933 = vmatpush1.msra.mxu0 0.0
        %2934 = vmatprep.subr.mxu0 0.0
        %2935 = vmatpush1.msra.mxu0 0.0
        %2936 = vmatprep.subr.mxu0 0.0
        %2937 = vmatpush1.msra.mxu0 0.0
        %2938 = vmatprep.subr.mxu0 0.0
        %2939 = vmatpush1.msra.mxu0 0.0
        %2940 = vmatprep.subr.mxu0 0.0
        %2941 = vmatpush1.msra.mxu0 0.0
        %2942 = vmatprep.subr.mxu0 0.0
        %2943 = vmatpush1.msra.mxu0 0.0
        %2944 = vmatprep.subr.mxu0 0.0
        %2945 = vmatpush1.msra.mxu0 0.0
        %2946 = vmatprep.subr.mxu0 0.0
        %2947 = vmatpush1.msra.mxu0 0.0
        %2948 = vmatprep.subr.mxu0 0.0
        %2949 = vmatpush1.msra.mxu0 %v2913
        %2950 = vmatprep.subr.mxu0 0.0
        %2951 = vmatpush2.msra.mxu0 0.0
        %2952 = vmatprep.subr.mxu0 0.0
        %2953 = vmatpush2.msra.mxu0 0.0
        %2954 = vmatprep.subr.mxu0 0.0
        %2955 = vmatpush2.msra.mxu0 0.0
        %2956 = vmatprep.subr.mxu0 0.0
        %2957 = vmatpush2.msra.mxu0 0.0
        %2958 = vmatprep.subr.mxu0 0.0
        %2959 = vmatpush2.msra.mxu0 0.0
        %2960 = vmatprep.subr.mxu0 0.0
        %2961 = vmatpush2.msra.mxu0 0.0
        %2962 = vmatprep.subr.mxu0 0.0
        %2963 = vmatpush2.msra.mxu0 0.0
        %2964 = vmatprep.subr.mxu0 0.0
        %2965 = vmatpush2.msra.mxu0 0.0
        %2966 = vmatprep.subr.mxu0 0.0
        %2967 = vmatpush2.msra.mxu0 0.0
        %2968 = vmatprep.subr.mxu0 0.0
        %2969 = vmatpush2.msra.mxu0 0.0
        %2970 = vmatprep.subr.mxu0 0.0
        %2971 = vmatpush2.msra.mxu0 0.0
        %2972 = vmatprep.subr.mxu0 0.0
        %2973 = vmatpush2.msra.mxu0 0.0
        %2974 = vmatprep.subr.mxu0 0.0
        %2975 = vmatpush2.msra.mxu0 0.0
        %2976 = vmatprep.subr.mxu0 0.0
        %2977 = vmatpush2.msra.mxu0 0.0
        %2978 = vmatprep.subr.mxu0 0.0
        %2979 = vmatpush2.msra.mxu0 0.0
        %2980 = vmatprep.subr.mxu0 0.0
        %2981 = vmatpush2.msra.mxu0 0.0
        %2982 = vmatprep.mubr.f32.mxu0 0.0
        %2983 = vmatmul.mubr.f32.gmra.mxu0 %v2916
        %v2984 = vpop.f32.mrf.mxu0
        %v2985 = vadd.f32 0.0, %v2984
        %v2986 = vpop.f32.mrf.mxu0
        %2987 = vdwg.mxu0
        %2988 = vrot.lane.b32.xlu0 %v2485, 104
        %v2989 = vpop.permute.xlu0 %2988
        %2990 = vrot.lane.b32.xlu0 %v2485, 72
        %v2991 = vpop.permute.xlu0 %2990
        %v2992 = vsel %vm1398, %v2989, 0
        %v2994 = vsel %vm1398, %v2991, 0
        %2996 = vmatprep.subr.mxu0 0.0
        %2997 = vmatpush1.xpose.msra.mxu0 0.0
        %2998 = vmatprep.subr.mxu0 0.0
        %2999 = vmatpush1.xpose.msra.mxu0 0.0
        %3000 = vmatprep.subr.mxu0 0.0
        %3001 = vmatpush1.xpose.msra.mxu0 0.0
        %3002 = vmatprep.subr.mxu0 0.0
        %3003 = vmatpush1.xpose.msra.mxu0 0.0
        %3004 = vmatprep.subr.mxu0 0.0
        %3005 = vmatpush1.xpose.msra.mxu0 0.0
        %3006 = vmatprep.subr.mxu0 0.0
        %3007 = vmatpush1.xpose.msra.mxu0 0.0
        %3008 = vmatprep.subr.mxu0 0.0
        %3009 = vmatpush1.xpose.msra.mxu0 0.0
        %3010 = vmatprep.subr.mxu0 0.0
        %3011 = vmatpush1.xpose.msra.mxu0 0.0
        %3012 = vmatprep.subr.mxu0 0.0
        %3013 = vmatpush1.xpose.msra.mxu0 0.0
        %3014 = vmatprep.subr.mxu0 0.0
        %3015 = vmatpush1.xpose.msra.mxu0 0.0
        %3016 = vmatprep.subr.mxu0 0.0
        %3017 = vmatpush1.xpose.msra.mxu0 0.0
        %3018 = vmatprep.subr.mxu0 0.0
        %3019 = vmatpush1.xpose.msra.mxu0 0.0
        %3020 = vmatprep.subr.mxu0 0.0
        %3021 = vmatpush1.xpose.msra.mxu0 0.0
        %3022 = vmatprep.subr.mxu0 0.0
        %3023 = vmatpush1.xpose.msra.mxu0 0.0
        %3024 = vmatprep.subr.mxu0 0.0
        %3025 = vmatpush1.xpose.msra.mxu0 0.0
        %3026 = vmatprep.subr.mxu0 0.0
        %3027 = vmatpush1.xpose.msra.mxu0 %v2994
        %3028 = vmatprep.subr.mxu0 0.0
        %3029 = vmatpush2.xpose.msra.mxu0 0.0
        %3030 = vmatprep.subr.mxu0 0.0
        %3031 = vmatpush2.xpose.msra.mxu0 0.0
        %3032 = vmatprep.subr.mxu0 0.0
        %3033 = vmatpush2.xpose.msra.mxu0 0.0
        %3034 = vmatprep.subr.mxu0 0.0
        %3035 = vmatpush2.xpose.msra.mxu0 0.0
        %3036 = vmatprep.subr.mxu0 0.0
        %3037 = vmatpush2.xpose.msra.mxu0 0.0
        %3038 = vmatprep.subr.mxu0 0.0
        %3039 = vmatpush2.xpose.msra.mxu0 0.0
        %3040 = vmatprep.subr.mxu0 0.0
        %3041 = vmatpush2.xpose.msra.mxu0 0.0
        %3042 = vmatprep.subr.mxu0 0.0
        %3043 = vmatpush2.xpose.msra.mxu0 0.0
        %3044 = vmatprep.subr.mxu0 0.0
        %3045 = vmatpush2.xpose.msra.mxu0 0.0
        %3046 = vmatprep.subr.mxu0 0.0
        %3047 = vmatpush2.xpose.msra.mxu0 0.0
        %3048 = vmatprep.subr.mxu0 0.0
        %3049 = vmatpush2.xpose.msra.mxu0 0.0
        %3050 = vmatprep.subr.mxu0 0.0
        %3051 = vmatpush2.xpose.msra.mxu0 0.0
        %3052 = vmatprep.subr.mxu0 0.0
        %3053 = vmatpush2.xpose.msra.mxu0 0.0
        %3054 = vmatprep.subr.mxu0 0.0
        %3055 = vmatpush2.xpose.msra.mxu0 0.0
        %3056 = vmatprep.subr.mxu0 0.0
        %3057 = vmatpush2.xpose.msra.mxu0 0.0
        %3058 = vmatprep.subr.mxu0 0.0
        %3059 = vmatpush2.xpose.msra.mxu0 0.0
        %3060 = vmatprep.mubr.f32.mxu0 0.0
        %3061 = vmatmul.mubr.f32.gmra.mxu0 %v2992
        %v3062 = vpop.f32.mrf.mxu0
        %v3063 = vadd.f32 0.0, %v3062
        %v3064 = vpop.f32.mrf.mxu0
        %3065 = vdwg.mxu0
        %v3066 = vmul.f32 %v3063, 0.35355338
        %v3067 = vadd.f32 %v3066, %v1478
        %v3068 = vsel %vm1398, %v3067, -inf
        %3069 = vmax.xlane.f32.xlu0 %v3068
        %v3070 = vpop.xlane.xlu0 %3069
        %v3071 = vsub.f32 %v3067, %v3070
        %v3072 = vmul.f32 %v3071, 1.442695
        %v3073 = vpow.pop %v3072
        %v3074 = vsel %vm1398, %v3073, 0.0
        %3075 = vadd.xlane.f32.xlu0 %v3074
        %v3076 = vpop.xlane.xlu0 %3075
        %v3077 = vrcp.pop %v3076
        %v3078 = vmul.f32 %v3073, %v3077
        %3079 = vrot.lane.b32.xlu0 %v2485, 40
        %v3080 = vpop.permute.xlu0 %3079
        %v3083 = vsel %vm1398, %v3078, 0
        %3085 = vmatprep.subr.mxu0 0.0
        %3086 = vmatpush1.msra.mxu0 0.0
        %3087 = vmatprep.subr.mxu0 0.0
        %3088 = vmatpush1.msra.mxu0 0.0
        %3089 = vmatprep.subr.mxu0 0.0
        %3090 = vmatpush1.msra.mxu0 0.0
        %3091 = vmatprep.subr.mxu0 0.0
        %3092 = vmatpush1.msra.mxu0 0.0
        %3093 = vmatprep.subr.mxu0 0.0
        %3094 = vmatpush1.msra.mxu0 0.0
        %3095 = vmatprep.subr.mxu0 0.0
        %3096 = vmatpush1.msra.mxu0 0.0
        %3097 = vmatprep.subr.mxu0 0.0
        %3098 = vmatpush1.msra.mxu0 0.0
        %3099 = vmatprep.subr.mxu0 0.0
        %3100 = vmatpush1.msra.mxu0 0.0
        %3101 = vmatprep.subr.mxu0 0.0
        %3102 = vmatpush1.msra.mxu0 0.0
        %3103 = vmatprep.subr.mxu0 0.0
        %3104 = vmatpush1.msra.mxu0 0.0
        %3105 = vmatprep.subr.mxu0 0.0
        %3106 = vmatpush1.msra.mxu0 0.0
        %3107 = vmatprep.subr.mxu0 0.0
        %3108 = vmatpush1.msra.mxu0 0.0
        %3109 = vmatprep.subr.mxu0 0.0
        %3110 = vmatpush1.msra.mxu0 0.0
        %3111 = vmatprep.subr.mxu0 0.0
        %3112 = vmatpush1.msra.mxu0 0.0
        %3113 = vmatprep.subr.mxu0 0.0
        %3114 = vmatpush1.msra.mxu0 0.0
        %3115 = vmatprep.subr.mxu0 0.0
        %3116 = vmatpush1.msra.mxu0 %v3080
        %3117 = vmatprep.subr.mxu0 0.0
        %3118 = vmatpush2.msra.mxu0 0.0
        %3119 = vmatprep.subr.mxu0 0.0
        %3120 = vmatpush2.msra.mxu0 0.0
        %3121 = vmatprep.subr.mxu0 0.0
        %3122 = vmatpush2.msra.mxu0 0.0
        %3123 = vmatprep.subr.mxu0 0.0
        %3124 = vmatpush2.msra.mxu0 0.0
        %3125 = vmatprep.subr.mxu0 0.0
        %3126 = vmatpush2.msra.mxu0 0.0
        %3127 = vmatprep.subr.mxu0 0.0
        %3128 = vmatpush2.msra.mxu0 0.0
        %3129 = vmatprep.subr.mxu0 0.0
        %3130 = vmatpush2.msra.mxu0 0.0
        %3131 = vmatprep.subr.mxu0 0.0
        %3132 = vmatpush2.msra.mxu0 0.0
        %3133 = vmatprep.subr.mxu0 0.0
        %3134 = vmatpush2.msra.mxu0 0.0
        %3135 = vmatprep.subr.mxu0 0.0
        %3136 = vmatpush2.msra.mxu0 0.0
        %3137 = vmatprep.subr.mxu0 0.0
        %3138 = vmatpush2.msra.mxu0 0.0
        %3139 = vmatprep.subr.mxu0 0.0
        %3140 = vmatpush2.msra.mxu0 0.0
        %3141 = vmatprep.subr.mxu0 0.0
        %3142 = vmatpush2.msra.mxu0 0.0
        %3143 = vmatprep.subr.mxu0 0.0
        %3144 = vmatpush2.msra.mxu0 0.0
        %3145 = vmatprep.subr.mxu0 0.0
        %3146 = vmatpush2.msra.mxu0 0.0
        %3147 = vmatprep.subr.mxu0 0.0
        %3148 = vmatpush2.msra.mxu0 0.0
        %3149 = vmatprep.mubr.f32.mxu0 0.0
        %3150 = vmatmul.mubr.f32.gmra.mxu0 %v3083
        %v3151 = vpop.f32.mrf.mxu0
        %v3152 = vadd.f32 0.0, %v3151
        %v3153 = vpop.f32.mrf.mxu0
        %3154 = vdwg.mxu0
        %3156 = vrot.lane.b32.xlu0 %v2818, 8
        %v3157 = vpop.permute.xlu0 %3156
        %3160 = vrot.lane.b32.xlu0 %v2985, 16
        %v3161 = vpop.permute.xlu0 %3160
        %3164 = vrot.lane.b32.xlu0 %v3152, 24
        %v3165 = vpop.permute.xlu0 %3164
        %v3167 = vsel %vm1398, %v2651, %v3157
        %v3168 = vsel %vm2082, %v3167, %v3161
        %v3169 = vsel %vm2084, %v3168, %v3165
        %v3170 = vlaneseq
        %v3171 = vshrl.u32 %v3170, 7
        %v3172 = vsub.s32 0, %v3171
        %v3173 = vrot.slane %v2410, %v3172
        %v3175 = vsel %vm1276, %v3169, 0
        %3177 = vmatprep.subr.mxu0 0.0
        %3178 = vmatpush1.msra.mxu0 0.0
        %3179 = vmatprep.subr.mxu0 0.0
        %3180 = vmatpush1.msra.mxu0 0.0
        %3181 = vmatprep.subr.mxu0 0.0
        %3182 = vmatpush1.msra.mxu0 0.0
        %3183 = vmatprep.subr.mxu0 0.0
        %3184 = vmatpush1.msra.mxu0 0.0
        %3185 = vmatprep.subr.mxu0 0.0
        %3186 = vmatpush1.msra.mxu0 0.0
        %3187 = vmatprep.subr.mxu0 0.0
        %3188 = vmatpush1.msra.mxu0 0.0
        %3189 = vmatprep.subr.mxu0 0.0
        %3190 = vmatpush1.msra.mxu0 0.0
        %3191 = vmatprep.subr.mxu0 0.0
        %3192 = vmatpush1.msra.mxu0 0.0
        %3193 = vmatprep.subr.mxu0 0.0
        %3194 = vmatpush1.msra.mxu0 0.0
        %3195 = vmatprep.subr.mxu0 0.0
        %3196 = vmatpush1.msra.mxu0 0.0
        %3197 = vmatprep.subr.mxu0 0.0
        %3198 = vmatpush1.msra.mxu0 0.0
        %3199 = vmatprep.subr.mxu0 0.0
        %3200 = vmatpush1.msra.mxu0 0.0
        %3201 = vmatprep.subr.mxu0 0.0
        %3202 = vmatpush1.msra.mxu0 %v2409
        %3203 = vmatprep.subr.mxu0 0.0
        %3204 = vmatpush1.msra.mxu0 %v2408
        %3205 = vmatprep.subr.mxu0 0.0
        %3206 = vmatpush1.msra.mxu0 %v2407
        %3207 = vmatprep.subr.mxu0 0.0
        %3208 = vmatpush1.msra.mxu0 %v2406
        %3209 = vmatprep.subr.mxu0 0.0
        %3210 = vmatpush2.msra.mxu0 0.0
        %3211 = vmatprep.subr.mxu0 0.0
        %3212 = vmatpush2.msra.mxu0 0.0
        %3213 = vmatprep.subr.mxu0 0.0
        %3214 = vmatpush2.msra.mxu0 0.0
        %3215 = vmatprep.subr.mxu0 0.0
        %3216 = vmatpush2.msra.mxu0 0.0
        %3217 = vmatprep.subr.mxu0 0.0
        %3218 = vmatpush2.msra.mxu0 0.0
        %3219 = vmatprep.subr.mxu0 0.0
        %3220 = vmatpush2.msra.mxu0 0.0
        %3221 = vmatprep.subr.mxu0 0.0
        %3222 = vmatpush2.msra.mxu0 0.0
        %3223 = vmatprep.subr.mxu0 0.0
        %3224 = vmatpush2.msra.mxu0 0.0
        %3225 = vmatprep.subr.mxu0 0.0
        %3226 = vmatpush2.msra.mxu0 0.0
        %3227 = vmatprep.subr.mxu0 0.0
        %3228 = vmatpush2.msra.mxu0 0.0
        %3229 = vmatprep.subr.mxu0 0.0
        %3230 = vmatpush2.msra.mxu0 0.0
        %3231 = vmatprep.subr.mxu0 0.0
        %3232 = vmatpush2.msra.mxu0 0.0
        %3233 = vmatprep.subr.mxu0 0.0
        %3234 = vmatpush2.msra.mxu0 0.0
        %3235 = vmatprep.subr.mxu0 0.0
        %3236 = vmatpush2.msra.mxu0 0.0
        %3237 = vmatprep.subr.mxu0 0.0
        %3238 = vmatpush2.msra.mxu0 0.0
        %3239 = vmatprep.subr.mxu0 0.0
        %3240 = vmatpush2.msra.mxu0 0.0
        %3241 = vmatprep.mubr.f32.mxu0 0.0
        %3242 = vmatmul.mubr.f32.gmra.mxu0 %v3175
        %v3243 = vpop.f32.mrf.mxu0
        %v3244 = vadd.f32 %v3173, %v3243
        %v3245 = vpop.f32.mrf.mxu0
        %3246 = vdwg.mxu0
        %v3247 = vadd.f32 %v2366, %v3244
        %v3248 = vld [vmem:[%s21 + $0x1] sm:$0x1]
        %v3249 = vld [vmem:[%s23 + $0x1] sm:$0x1]
        %v3250 = vsel %vm1276, %v3247, 0.0
        %3251 = vadd.xlane.f32.xlu0 %v3250
        %v3252 = vpop.xlane.xlu0 %3251
        %v3253 = vmul.f32 %v3252, %v1280
        %v3254 = vsub.f32 %v3247, %v3253
        %v3255 = vmul.f32 %v3254, %v3254
        %v3256 = vsel %vm1276, %v3255, 0.0
        %3257 = vadd.xlane.f32.xlu0 %v3256
        %v3258 = vpop.xlane.xlu0 %3257
        %v3259 = vmul.f32 %v3258, 0.032258064
        %v3260 = vrsqrt.pop %v3259
        %v3261 = vmul.f32 %v3259, %v3260
        %vm3262 = vcmp.eq.f32.partialorder %v3259, inf
        %v3263 = vsel %vm3262, %v3259, %v3261
        %vm3264 = vcmp.eq.f32.partialorder %v3259, 0.0
        %v3265 = vand.u32 %v3259, 2147483648
        %v3266 = vsel %vm3264, %v3265, %v3263
        %v3267 = vadd.f32 %v3266, 1e-06
        %v3268 = vrcp.pop %v3267
        %v3269 = vlaneseq
        %v3270 = vshrl.u32 %v3269, 7
        %v3271 = vsub.s32 0, %v3270
        %v3272 = vrot.slane %v3248, %v3271
        %v3273 = vmul.f32 %v3272, %v3254
        %v3274 = vmul.f32 %v3273, %v3268
        %v3275 = vlaneseq
        %v3276 = vshrl.u32 %v3275, 7
        %v3277 = vsub.s32 0, %v3276
        %v3278 = vrot.slane %v3249, %v3277
        %v3279 = vadd.f32 %v3274, %v3278
        %s3280 = scalar_lea.vmem %s25, 32
        %v3281 = vld [vmem:[%s3280] sm:$0xff]
        %v3282 = vld [vmem:[%s3280 + $0x8] sm:$0xff]
        %v3283 = vld [vmem:[%s3280 + $0x10] sm:$0xff]
        %v3284 = vld [vmem:[%s3280 + $0x18] sm:$0xff]
        %v3285 = vld [vmem:[%s27 + $0x1] sm:$0x1]
        %s3286 = scalar_lea.vmem %s29, 64
        %v3287 = vld [vmem:[%s3286] sm:$0xff]
        %v3288 = vld [vmem:[%s3286 + $0x8] sm:$0xff]
        %v3289 = vld [vmem:[%s3286 + $0x10] sm:$0xff]
        %v3290 = vld [vmem:[%s3286 + $0x18] sm:$0xff]
        %v3291 = vld [vmem:[%s3286 + $0x20] sm:$0xff]
        %v3292 = vld [vmem:[%s3286 + $0x28] sm:$0xff]
        %v3293 = vld [vmem:[%s3286 + $0x30] sm:$0xff]
        %v3294 = vld [vmem:[%s3286 + $0x38] sm:$0xff]
        %v3295 = vld [vmem:[%s31 + $0x1] sm:$0x1]
        %v3296 = vlaneseq
        %v3297 = vshrl.u32 %v3296, 7
        %v3298 = vsub.s32 0, %v3297
        %v3299 = vrot.slane %v3285, %v3298
        %v3301 = vsel %vm1276, %v3279, 0
        %3303 = vmatprep.subr.mxu0 0.0
        %3304 = vmatpush1.msra.mxu0 0.0
        %3305 = vmatprep.subr.mxu0 0.0
        %3306 = vmatpush1.msra.mxu0 0.0
        %3307 = vmatprep.subr.mxu0 0.0
        %3308 = vmatpush1.msra.mxu0 0.0
        %3309 = vmatprep.subr.mxu0 0.0
        %3310 = vmatpush1.msra.mxu0 0.0
        %3311 = vmatprep.subr.mxu0 0.0
        %3312 = vmatpush1.msra.mxu0 0.0
        %3313 = vmatprep.subr.mxu0 0.0
        %3314 = vmatpush1.msra.mxu0 0.0
        %3315 = vmatprep.subr.mxu0 0.0
        %3316 = vmatpush1.msra.mxu0 0.0
        %3317 = vmatprep.subr.mxu0 0.0
        %3318 = vmatpush1.msra.mxu0 0.0
        %3319 = vmatprep.subr.mxu0 0.0
        %3320 = vmatpush1.msra.mxu0 0.0
        %3321 = vmatprep.subr.mxu0 0.0
        %3322 = vmatpush1.msra.mxu0 0.0
        %3323 = vmatprep.subr.mxu0 0.0
        %3324 = vmatpush1.msra.mxu0 0.0
        %3325 = vmatprep.subr.mxu0 0.0
        %3326 = vmatpush1.msra.mxu0 0.0
        %3327 = vmatprep.subr.mxu0 0.0
        %3328 = vmatpush1.msra.mxu0 %v3284
        %3329 = vmatprep.subr.mxu0 0.0
        %3330 = vmatpush1.msra.mxu0 %v3283
        %3331 = vmatprep.subr.mxu0 0.0
        %3332 = vmatpush1.msra.mxu0 %v3282
        %3333 = vmatprep.subr.mxu0 0.0
        %3334 = vmatpush1.msra.mxu0 %v3281
        %3335 = vmatprep.subr.mxu0 0.0
        %3336 = vmatpush2.msra.mxu0 0.0
        %3337 = vmatprep.subr.mxu0 0.0
        %3338 = vmatpush2.msra.mxu0 0.0
        %3339 = vmatprep.subr.mxu0 0.0
        %3340 = vmatpush2.msra.mxu0 0.0
        %3341 = vmatprep.subr.mxu0 0.0
        %3342 = vmatpush2.msra.mxu0 0.0
        %3343 = vmatprep.subr.mxu0 0.0
        %3344 = vmatpush2.msra.mxu0 0.0
        %3345 = vmatprep.subr.mxu0 0.0
        %3346 = vmatpush2.msra.mxu0 0.0
        %3347 = vmatprep.subr.mxu0 0.0
        %3348 = vmatpush2.msra.mxu0 0.0
        %3349 = vmatprep.subr.mxu0 0.0
        %3350 = vmatpush2.msra.mxu0 0.0
        %3351 = vmatprep.subr.mxu0 0.0
        %3352 = vmatpush2.msra.mxu0 0.0
        %3353 = vmatprep.subr.mxu0 0.0
        %3354 = vmatpush2.msra.mxu0 0.0
        %3355 = vmatprep.subr.mxu0 0.0
        %3356 = vmatpush2.msra.mxu0 0.0
        %3357 = vmatprep.subr.mxu0 0.0
        %3358 = vmatpush2.msra.mxu0 0.0
        %3359 = vmatprep.subr.mxu0 0.0
        %3360 = vmatpush2.msra.mxu0 0.0
        %3361 = vmatprep.subr.mxu0 0.0
        %3362 = vmatpush2.msra.mxu0 0.0
        %3363 = vmatprep.subr.mxu0 0.0
        %3364 = vmatpush2.msra.mxu0 0.0
        %3365 = vmatprep.subr.mxu0 0.0
        %3366 = vmatpush2.msra.mxu0 0.0
        %3367 = vmatprep.mubr.f32.mxu0 0.0
        %3368 = vmatmul.mubr.f32.gmra.mxu0 %v3301
        %v3369 = vpop.f32.mrf.mxu0
        %v3370 = vadd.f32 %v3299, %v3369
        %v3371 = vpop.f32.mrf.mxu0
        %3372 = vdwg.mxu0
        %v3373 = vmax.f32 %v3370, 0.0
        %v3374 = vlaneseq
        %v3375 = vshrl.u32 %v3374, 7
        %v3376 = vsub.s32 0, %v3375
        %v3377 = vrot.slane %v3295, %v3376
        %v3379 = vsel %vm2292, %v3373, 0
        %3381 = vmatprep.subr.mxu0 0.0
        %3382 = vmatpush1.msra.mxu0 0.0
        %3383 = vmatprep.subr.mxu0 0.0
        %3384 = vmatpush1.msra.mxu0 0.0
        %3385 = vmatprep.subr.mxu0 0.0
        %3386 = vmatpush1.msra.mxu0 0.0
        %3387 = vmatprep.subr.mxu0 0.0
        %3388 = vmatpush1.msra.mxu0 0.0
        %3389 = vmatprep.subr.mxu0 0.0
        %3390 = vmatpush1.msra.mxu0 0.0
        %3391 = vmatprep.subr.mxu0 0.0
        %3392 = vmatpush1.msra.mxu0 0.0
        %3393 = vmatprep.subr.mxu0 0.0
        %3394 = vmatpush1.msra.mxu0 0.0
        %3395 = vmatprep.subr.mxu0 0.0
        %3396 = vmatpush1.msra.mxu0 0.0
        %3397 = vmatprep.subr.mxu0 0.0
        %3398 = vmatpush1.msra.mxu0 %v3294
        %3399 = vmatprep.subr.mxu0 0.0
        %3400 = vmatpush1.msra.mxu0 %v3293
        %3401 = vmatprep.subr.mxu0 0.0
        %3402 = vmatpush1.msra.mxu0 %v3292
        %3403 = vmatprep.subr.mxu0 0.0
        %3404 = vmatpush1.msra.mxu0 %v3291
        %3405 = vmatprep.subr.mxu0 0.0
        %3406 = vmatpush1.msra.mxu0 %v3290
        %3407 = vmatprep.subr.mxu0 0.0
        %3408 = vmatpush1.msra.mxu0 %v3289
        %3409 = vmatprep.subr.mxu0 0.0
        %3410 = vmatpush1.msra.mxu0 %v3288
        %3411 = vmatprep.subr.mxu0 0.0
        %3412 = vmatpush1.msra.mxu0 %v3287
        %3413 = vmatprep.subr.mxu0 0.0
        %3414 = vmatpush2.msra.mxu0 0.0
        %3415 = vmatprep.subr.mxu0 0.0
        %3416 = vmatpush2.msra.mxu0 0.0
        %3417 = vmatprep.subr.mxu0 0.0
        %3418 = vmatpush2.msra.mxu0 0.0
        %3419 = vmatprep.subr.mxu0 0.0
        %3420 = vmatpush2.msra.mxu0 0.0
        %3421 = vmatprep.subr.mxu0 0.0
        %3422 = vmatpush2.msra.mxu0 0.0
        %3423 = vmatprep.subr.mxu0 0.0
        %3424 = vmatpush2.msra.mxu0 0.0
        %3425 = vmatprep.subr.mxu0 0.0
        %3426 = vmatpush2.msra.mxu0 0.0
        %3427 = vmatprep.subr.mxu0 0.0
        %3428 = vmatpush2.msra.mxu0 0.0
        %3429 = vmatprep.subr.mxu0 0.0
        %3430 = vmatpush2.msra.mxu0 0.0
        %3431 = vmatprep.subr.mxu0 0.0
        %3432 = vmatpush2.msra.mxu0 0.0
        %3433 = vmatprep.subr.mxu0 0.0
        %3434 = vmatpush2.msra.mxu0 0.0
        %3435 = vmatprep.subr.mxu0 0.0
        %3436 = vmatpush2.msra.mxu0 0.0
        %3437 = vmatprep.subr.mxu0 0.0
        %3438 = vmatpush2.msra.mxu0 0.0
        %3439 = vmatprep.subr.mxu0 0.0
        %3440 = vmatpush2.msra.mxu0 0.0
        %3441 = vmatprep.subr.mxu0 0.0
        %3442 = vmatpush2.msra.mxu0 0.0
        %3443 = vmatprep.subr.mxu0 0.0
        %3444 = vmatpush2.msra.mxu0 0.0
        %3445 = vmatprep.mubr.f32.mxu0 0.0
        %3446 = vmatmul.mubr.f32.gmra.mxu0 %v3379
        %v3447 = vpop.f32.mrf.mxu0
        %v3448 = vadd.f32 %v3377, %v3447
        %v3449 = vpop.f32.mrf.mxu0
        %3450 = vdwg.mxu0
        %v3451 = vadd.f32 %v3247, %v3448
        %v3452 = vld [vmem:[%s33] sm:$0x1]
        %v3453 = vld [vmem:[%s35] sm:$0x1]
        %v3454 = vsel %vm1276, %v3451, 0.0
        %3455 = vadd.xlane.f32.xlu0 %v3454
        %v3456 = vpop.xlane.xlu0 %3455
        %v3457 = vmul.f32 %v3456, %v1280
        %v3458 = vsub.f32 %v3451, %v3457
        %v3459 = vmul.f32 %v3458, %v3458
        %v3460 = vsel %vm1276, %v3459, 0.0
        %3461 = vadd.xlane.f32.xlu0 %v3460
        %v3462 = vpop.xlane.xlu0 %3461
        %v3463 = vmul.f32 %v3462, 0.032258064
        %v3464 = vrsqrt.pop %v3463
        %v3465 = vmul.f32 %v3463, %v3464
        %vm3466 = vcmp.eq.f32.partialorder %v3463, inf
        %v3467 = vsel %vm3466, %v3463, %v3465
        %vm3468 = vcmp.eq.f32.partialorder %v3463, 0.0
        %v3469 = vand.u32 %v3463, 2147483648
        %v3470 = vsel %vm3468, %v3469, %v3467
        %v3471 = vadd.f32 %v3470, 1e-06
        %v3472 = vrcp.pop %v3471
        %v3474 = vlaneseq
        %v3475 = vshrl.u32 %v3474, 7
        %v3476 = vsub.s32 0, %v3475
        %v3477 = vrot.slane %v3452, %v3476
        %v3479 = vmul.f32 %v3477, %v3458
        %v3480 = vmul.f32 %v3479, %v3472
        %v3482 = vlaneseq
        %v3483 = vshrl.u32 %v3482, 7
        %v3484 = vsub.s32 0, %v3483
        %v3485 = vrot.slane %v3453, %v3484
        %v3487 = vadd.f32 %v3480, %v3485
        %v3488 = vld [vmem:[%s1259] sm:$0xff]
        %v3489 = vld [vmem:[%s37] sm:$0x1]
        %v3490 = vld [vmem:[%s39] sm:$0x1]
        %v3491 = vsel %vm1276, %v3488, 0.0
        %3492 = vadd.xlane.f32.xlu0 %v3491
        %v3493 = vpop.xlane.xlu0 %3492
        %v3494 = vmul.f32 %v3493, %v1280
        %v3495 = vsub.f32 %v3488, %v3494
        %v3496 = vmul.f32 %v3495, %v3495
        %v3497 = vsel %vm1276, %v3496, 0.0
        %3498 = vadd.xlane.f32.xlu0 %v3497
        %v3499 = vpop.xlane.xlu0 %3498
        %v3500 = vmul.f32 %v3499, 0.032258064
        %v3501 = vrsqrt.pop %v3500
        %v3502 = vmul.f32 %v3500, %v3501
        %vm3503 = vcmp.eq.f32.partialorder %v3500, inf
        %v3504 = vsel %vm3503, %v3500, %v3502
        %vm3505 = vcmp.eq.f32.partialorder %v3500, 0.0
        %v3506 = vand.u32 %v3500, 2147483648
        %v3507 = vsel %vm3505, %v3506, %v3504
        %v3508 = vadd.f32 %v3507, 1e-06
        %v3509 = vrcp.pop %v3508
        %v3510 = vlaneseq
        %v3511 = vshrl.u32 %v3510, 7
        %v3512 = vsub.s32 0, %v3511
        %v3513 = vrot.slane %v3489, %v3512
        %v3514 = vmul.f32 %v3513, %v3495
        %v3515 = vmul.f32 %v3514, %v3509
        %v3516 = vlaneseq
        %v3517 = vshrl.u32 %v3516, 7
        %v3518 = vsub.s32 0, %v3517
        %v3519 = vrot.slane %v3490, %v3518
        %v3520 = vadd.f32 %v3515, %v3519
        %v3521 = vld [vmem:[%s41] sm:$0xff]
        %v3522 = vld [vmem:[%s41 + $0x8] sm:$0xff]
        %v3523 = vld [vmem:[%s41 + $0x10] sm:$0xff]
        %v3524 = vld [vmem:[%s41 + $0x18] sm:$0xff]
        %v3525 = vld [vmem:[%s43] sm:$0x1]
        %v3526 = vld [vmem:[%s45] sm:$0xff]
        %v3527 = vld [vmem:[%s45 + $0x8] sm:$0xff]
        %v3528 = vld [vmem:[%s45 + $0x10] sm:$0xff]
        %v3529 = vld [vmem:[%s45 + $0x18] sm:$0xff]
        %v3530 = vld [vmem:[%s47] sm:$0x1]
        %v3531 = vlaneseq
        %v3532 = vshrl.u32 %v3531, 7
        %v3533 = vsub.s32 0, %v3532
        %v3534 = vrot.slane %v3525, %v3533
        %v3536 = vsel %vm1276, %v3520, 0
        %3538 = vmatprep.subr.mxu0 0.0
        %3539 = vmatpush1.msra.mxu0 0.0
        %3540 = vmatprep.subr.mxu0 0.0
        %3541 = vmatpush1.msra.mxu0 0.0
        %3542 = vmatprep.subr.mxu0 0.0
        %3543 = vmatpush1.msra.mxu0 0.0
        %3544 = vmatprep.subr.mxu0 0.0
        %3545 = vmatpush1.msra.mxu0 0.0
        %3546 = vmatprep.subr.mxu0 0.0
        %3547 = vmatpush1.msra.mxu0 0.0
        %3548 = vmatprep.subr.mxu0 0.0
        %3549 = vmatpush1.msra.mxu0 0.0
        %3550 = vmatprep.subr.mxu0 0.0
        %3551 = vmatpush1.msra.mxu0 0.0
        %3552 = vmatprep.subr.mxu0 0.0
        %3553 = vmatpush1.msra.mxu0 0.0
        %3554 = vmatprep.subr.mxu0 0.0
        %3555 = vmatpush1.msra.mxu0 0.0
        %3556 = vmatprep.subr.mxu0 0.0
        %3557 = vmatpush1.msra.mxu0 0.0
        %3558 = vmatprep.subr.mxu0 0.0
        %3559 = vmatpush1.msra.mxu0 0.0
        %3560 = vmatprep.subr.mxu0 0.0
        %3561 = vmatpush1.msra.mxu0 0.0
        %3562 = vmatprep.subr.mxu0 0.0
        %3563 = vmatpush1.msra.mxu0 %v3524
        %3564 = vmatprep.subr.mxu0 0.0
        %3565 = vmatpush1.msra.mxu0 %v3523
        %3566 = vmatprep.subr.mxu0 0.0
        %3567 = vmatpush1.msra.mxu0 %v3522
        %3568 = vmatprep.subr.mxu0 0.0
        %3569 = vmatpush1.msra.mxu0 %v3521
        %3570 = vmatprep.subr.mxu0 0.0
        %3571 = vmatpush2.msra.mxu0 0.0
        %3572 = vmatprep.subr.mxu0 0.0
        %3573 = vmatpush2.msra.mxu0 0.0
        %3574 = vmatprep.subr.mxu0 0.0
        %3575 = vmatpush2.msra.mxu0 0.0
        %3576 = vmatprep.subr.mxu0 0.0
        %3577 = vmatpush2.msra.mxu0 0.0
        %3578 = vmatprep.subr.mxu0 0.0
        %3579 = vmatpush2.msra.mxu0 0.0
        %3580 = vmatprep.subr.mxu0 0.0
        %3581 = vmatpush2.msra.mxu0 0.0
        %3582 = vmatprep.subr.mxu0 0.0
        %3583 = vmatpush2.msra.mxu0 0.0
        %3584 = vmatprep.subr.mxu0 0.0
        %3585 = vmatpush2.msra.mxu0 0.0
        %3586 = vmatprep.subr.mxu0 0.0
        %3587 = vmatpush2.msra.mxu0 0.0
        %3588 = vmatprep.subr.mxu0 0.0
        %3589 = vmatpush2.msra.mxu0 0.0
        %3590 = vmatprep.subr.mxu0 0.0
        %3591 = vmatpush2.msra.mxu0 0.0
        %3592 = vmatprep.subr.mxu0 0.0
        %3593 = vmatpush2.msra.mxu0 0.0
        %3594 = vmatprep.subr.mxu0 0.0
        %3595 = vmatpush2.msra.mxu0 0.0
        %3596 = vmatprep.subr.mxu0 0.0
        %3597 = vmatpush2.msra.mxu0 0.0
        %3598 = vmatprep.subr.mxu0 0.0
        %3599 = vmatpush2.msra.mxu0 0.0
        %3600 = vmatprep.subr.mxu0 0.0
        %3601 = vmatpush2.msra.mxu0 0.0
        %3602 = vmatprep.mubr.f32.mxu0 0.0
        %3603 = vmatmul.mubr.f32.gmra.mxu0 %v3536
        %v3604 = vpop.f32.mrf.mxu0
        %v3605 = vadd.f32 %v3534, %v3604
        %v3606 = vpop.f32.mrf.mxu0
        %3607 = vdwg.mxu0
        %3609 = vrot.lane.b32.xlu0 %v3605, 96
        %v3610 = vpop.permute.xlu0 %3609
        %v3611 = vsel %vm1398, %v3605, 0
        %v3613 = vsel %vm1398, %v3610, 0
        %3615 = vmatprep.subr.mxu0 0.0
        %3616 = vmatpush1.xpose.msra.mxu0 0.0
        %3617 = vmatprep.subr.mxu0 0.0
        %3618 = vmatpush1.xpose.msra.mxu0 0.0
        %3619 = vmatprep.subr.mxu0 0.0
        %3620 = vmatpush1.xpose.msra.mxu0 0.0
        %3621 = vmatprep.subr.mxu0 0.0
        %3622 = vmatpush1.xpose.msra.mxu0 0.0
        %3623 = vmatprep.subr.mxu0 0.0
        %3624 = vmatpush1.xpose.msra.mxu0 0.0
        %3625 = vmatprep.subr.mxu0 0.0
        %3626 = vmatpush1.xpose.msra.mxu0 0.0
        %3627 = vmatprep.subr.mxu0 0.0
        %3628 = vmatpush1.xpose.msra.mxu0 0.0
        %3629 = vmatprep.subr.mxu0 0.0
        %3630 = vmatpush1.xpose.msra.mxu0 0.0
        %3631 = vmatprep.subr.mxu0 0.0
        %3632 = vmatpush1.xpose.msra.mxu0 0.0
        %3633 = vmatprep.subr.mxu0 0.0
        %3634 = vmatpush1.xpose.msra.mxu0 0.0
        %3635 = vmatprep.subr.mxu0 0.0
        %3636 = vmatpush1.xpose.msra.mxu0 0.0
        %3637 = vmatprep.subr.mxu0 0.0
        %3638 = vmatpush1.xpose.msra.mxu0 0.0
        %3639 = vmatprep.subr.mxu0 0.0
        %3640 = vmatpush1.xpose.msra.mxu0 0.0
        %3641 = vmatprep.subr.mxu0 0.0
        %3642 = vmatpush1.xpose.msra.mxu0 0.0
        %3643 = vmatprep.subr.mxu0 0.0
        %3644 = vmatpush1.xpose.msra.mxu0 0.0
        %3645 = vmatprep.subr.mxu0 0.0
        %3646 = vmatpush1.xpose.msra.mxu0 %v3613
        %3647 = vmatprep.subr.mxu0 0.0
        %3648 = vmatpush2.xpose.msra.mxu0 0.0
        %3649 = vmatprep.subr.mxu0 0.0
        %3650 = vmatpush2.xpose.msra.mxu0 0.0
        %3651 = vmatprep.subr.mxu0 0.0
        %3652 = vmatpush2.xpose.msra.mxu0 0.0
        %3653 = vmatprep.subr.mxu0 0.0
        %3654 = vmatpush2.xpose.msra.mxu0 0.0
        %3655 = vmatprep.subr.mxu0 0.0
        %3656 = vmatpush2.xpose.msra.mxu0 0.0
        %3657 = vmatprep.subr.mxu0 0.0
        %3658 = vmatpush2.xpose.msra.mxu0 0.0
        %3659 = vmatprep.subr.mxu0 0.0
        %3660 = vmatpush2.xpose.msra.mxu0 0.0
        %3661 = vmatprep.subr.mxu0 0.0
        %3662 = vmatpush2.xpose.msra.mxu0 0.0
        %3663 = vmatprep.subr.mxu0 0.0
        %3664 = vmatpush2.xpose.msra.mxu0 0.0
        %3665 = vmatprep.subr.mxu0 0.0
        %3666 = vmatpush2.xpose.msra.mxu0 0.0
        %3667 = vmatprep.subr.mxu0 0.0
        %3668 = vmatpush2.xpose.msra.mxu0 0.0
        %3669 = vmatprep.subr.mxu0 0.0
        %3670 = vmatpush2.xpose.msra.mxu0 0.0
        %3671 = vmatprep.subr.mxu0 0.0
        %3672 = vmatpush2.xpose.msra.mxu0 0.0
        %3673 = vmatprep.subr.mxu0 0.0
        %3674 = vmatpush2.xpose.msra.mxu0 0.0
        %3675 = vmatprep.subr.mxu0 0.0
        %3676 = vmatpush2.xpose.msra.mxu0 0.0
        %3677 = vmatprep.subr.mxu0 0.0
        %3678 = vmatpush2.xpose.msra.mxu0 0.0
        %3679 = vmatprep.mubr.f32.mxu0 0.0
        %3680 = vmatmul.mubr.f32.gmra.mxu0 %v3611
        %v3681 = vpop.f32.mrf.mxu0
        %v3682 = vadd.f32 0.0, %v3681
        %v3683 = vpop.f32.mrf.mxu0
        %3684 = vdwg.mxu0
        %v3685 = vmul.f32 %v3682, 0.35355338
        %v3686 = vadd.f32 %v3685, %v1272
        %v3687 = vsel %vm1398, %v3686, -inf
        %3688 = vmax.xlane.f32.xlu0 %v3687
        %v3689 = vpop.xlane.xlu0 %3688
        %v3690 = vsub.f32 %v3686, %v3689
        %v3691 = vmul.f32 %v3690, 1.442695
        %v3692 = vpow.pop %v3691
        %v3693 = vsel %vm1398, %v3692, 0.0
        %3694 = vadd.xlane.f32.xlu0 %v3693
        %v3695 = vpop.xlane.xlu0 %3694
        %v3696 = vrcp.pop %v3695
        %v3697 = vmul.f32 %v3692, %v3696
        %3698 = vrot.lane.b32.xlu0 %v3605, 64
        %v3699 = vpop.permute.xlu0 %3698
        %v3702 = vsel %vm1398, %v3697, 0
        %3704 = vmatprep.subr.mxu0 0.0
        %3705 = vmatpush1.msra.mxu0 0.0
        %3706 = vmatprep.subr.mxu0 0.0
        %3707 = vmatpush1.msra.mxu0 0.0
        %3708 = vmatprep.subr.mxu0 0.0
        %3709 = vmatpush1.msra.mxu0 0.0
        %3710 = vmatprep.subr.mxu0 0.0
        %3711 = vmatpush1.msra.mxu0 0.0
        %3712 = vmatprep.subr.mxu0 0.0
        %3713 = vmatpush1.msra.mxu0 0.0
        %3714 = vmatprep.subr.mxu0 0.0
        %3715 = vmatpush1.msra.mxu0 0.0
        %3716 = vmatprep.subr.mxu0 0.0
        %3717 = vmatpush1.msra.mxu0 0.0
        %3718 = vmatprep.subr.mxu0 0.0
        %3719 = vmatpush1.msra.mxu0 0.0
        %3720 = vmatprep.subr.mxu0 0.0
        %3721 = vmatpush1.msra.mxu0 0.0
        %3722 = vmatprep.subr.mxu0 0.0
        %3723 = vmatpush1.msra.mxu0 0.0
        %3724 = vmatprep.subr.mxu0 0.0
        %3725 = vmatpush1.msra.mxu0 0.0
        %3726 = vmatprep.subr.mxu0 0.0
        %3727 = vmatpush1.msra.mxu0 0.0
        %3728 = vmatprep.subr.mxu0 0.0
        %3729 = vmatpush1.msra.mxu0 0.0
        %3730 = vmatprep.subr.mxu0 0.0
        %3731 = vmatpush1.msra.mxu0 0.0
        %3732 = vmatprep.subr.mxu0 0.0
        %3733 = vmatpush1.msra.mxu0 0.0
        %3734 = vmatprep.subr.mxu0 0.0
        %3735 = vmatpush1.msra.mxu0 %v3699
        %3736 = vmatprep.subr.mxu0 0.0
        %3737 = vmatpush2.msra.mxu0 0.0
        %3738 = vmatprep.subr.mxu0 0.0
        %3739 = vmatpush2.msra.mxu0 0.0
        %3740 = vmatprep.subr.mxu0 0.0
        %3741 = vmatpush2.msra.mxu0 0.0
        %3742 = vmatprep.subr.mxu0 0.0
        %3743 = vmatpush2.msra.mxu0 0.0
        %3744 = vmatprep.subr.mxu0 0.0
        %3745 = vmatpush2.msra.mxu0 0.0
        %3746 = vmatprep.subr.mxu0 0.0
        %3747 = vmatpush2.msra.mxu0 0.0
        %3748 = vmatprep.subr.mxu0 0.0
        %3749 = vmatpush2.msra.mxu0 0.0
        %3750 = vmatprep.subr.mxu0 0.0
        %3751 = vmatpush2.msra.mxu0 0.0
        %3752 = vmatprep.subr.mxu0 0.0
        %3753 = vmatpush2.msra.mxu0 0.0
        %3754 = vmatprep.subr.mxu0 0.0
        %3755 = vmatpush2.msra.mxu0 0.0
        %3756 = vmatprep.subr.mxu0 0.0
        %3757 = vmatpush2.msra.mxu0 0.0
        %3758 = vmatprep.subr.mxu0 0.0
        %3759 = vmatpush2.msra.mxu0 0.0
        %3760 = vmatprep.subr.mxu0 0.0
        %3761 = vmatpush2.msra.mxu0 0.0
        %3762 = vmatprep.subr.mxu0 0.0
        %3763 = vmatpush2.msra.mxu0 0.0
        %3764 = vmatprep.subr.mxu0 0.0
        %3765 = vmatpush2.msra.mxu0 0.0
        %3766 = vmatprep.subr.mxu0 0.0
        %3767 = vmatpush2.msra.mxu0 0.0
        %3768 = vmatprep.mubr.f32.mxu0 0.0
        %3769 = vmatmul.mubr.f32.gmra.mxu0 %v3702
        %v3770 = vpop.f32.mrf.mxu0
        %v3771 = vadd.f32 0.0, %v3770
        %v3772 = vpop.f32.mrf.mxu0
        %3773 = vdwg.mxu0
        %3774 = vrot.lane.b32.xlu0 %v3605, 120
        %v3775 = vpop.permute.xlu0 %3774
        %3776 = vrot.lane.b32.xlu0 %v3605, 88
        %v3777 = vpop.permute.xlu0 %3776
        %v3778 = vsel %vm1398, %v3775, 0
        %v3780 = vsel %vm1398, %v3777, 0
        %3782 = vmatprep.subr.mxu0 0.0
        %3783 = vmatpush1.xpose.msra.mxu0 0.0
        %3784 = vmatprep.subr.mxu0 0.0
        %3785 = vmatpush1.xpose.msra.mxu0 0.0
        %3786 = vmatprep.subr.mxu0 0.0
        %3787 = vmatpush1.xpose.msra.mxu0 0.0
        %3788 = vmatprep.subr.mxu0 0.0
        %3789 = vmatpush1.xpose.msra.mxu0 0.0
        %3790 = vmatprep.subr.mxu0 0.0
        %3791 = vmatpush1.xpose.msra.mxu0 0.0
        %3792 = vmatprep.subr.mxu0 0.0
        %3793 = vmatpush1.xpose.msra.mxu0 0.0
        %3794 = vmatprep.subr.mxu0 0.0
        %3795 = vmatpush1.xpose.msra.mxu0 0.0
        %3796 = vmatprep.subr.mxu0 0.0
        %3797 = vmatpush1.xpose.msra.mxu0 0.0
        %3798 = vmatprep.subr.mxu0 0.0
        %3799 = vmatpush1.xpose.msra.mxu0 0.0
        %3800 = vmatprep.subr.mxu0 0.0
        %3801 = vmatpush1.xpose.msra.mxu0 0.0
        %3802 = vmatprep.subr.mxu0 0.0
        %3803 = vmatpush1.xpose.msra.mxu0 0.0
        %3804 = vmatprep.subr.mxu0 0.0
        %3805 = vmatpush1.xpose.msra.mxu0 0.0
        %3806 = vmatprep.subr.mxu0 0.0
        %3807 = vmatpush1.xpose.msra.mxu0 0.0
        %3808 = vmatprep.subr.mxu0 0.0
        %3809 = vmatpush1.xpose.msra.mxu0 0.0
        %3810 = vmatprep.subr.mxu0 0.0
        %3811 = vmatpush1.xpose.msra.mxu0 0.0
        %3812 = vmatprep.subr.mxu0 0.0
        %3813 = vmatpush1.xpose.msra.mxu0 %v3780
        %3814 = vmatprep.subr.mxu0 0.0
        %3815 = vmatpush2.xpose.msra.mxu0 0.0
        %3816 = vmatprep.subr.mxu0 0.0
        %3817 = vmatpush2.xpose.msra.mxu0 0.0
        %3818 = vmatprep.subr.mxu0 0.0
        %3819 = vmatpush2.xpose.msra.mxu0 0.0
        %3820 = vmatprep.subr.mxu0 0.0
        %3821 = vmatpush2.xpose.msra.mxu0 0.0
        %3822 = vmatprep.subr.mxu0 0.0
        %3823 = vmatpush2.xpose.msra.mxu0 0.0
        %3824 = vmatprep.subr.mxu0 0.0
        %3825 = vmatpush2.xpose.msra.mxu0 0.0
        %3826 = vmatprep.subr.mxu0 0.0
        %3827 = vmatpush2.xpose.msra.mxu0 0.0
        %3828 = vmatprep.subr.mxu0 0.0
        %3829 = vmatpush2.xpose.msra.mxu0 0.0
        %3830 = vmatprep.subr.mxu0 0.0
        %3831 = vmatpush2.xpose.msra.mxu0 0.0
        %3832 = vmatprep.subr.mxu0 0.0
        %3833 = vmatpush2.xpose.msra.mxu0 0.0
        %3834 = vmatprep.subr.mxu0 0.0
        %3835 = vmatpush2.xpose.msra.mxu0 0.0
        %3836 = vmatprep.subr.mxu0 0.0
        %3837 = vmatpush2.xpose.msra.mxu0 0.0
        %3838 = vmatprep.subr.mxu0 0.0
        %3839 = vmatpush2.xpose.msra.mxu0 0.0
        %3840 = vmatprep.subr.mxu0 0.0
        %3841 = vmatpush2.xpose.msra.mxu0 0.0
        %3842 = vmatprep.subr.mxu0 0.0
        %3843 = vmatpush2.xpose.msra.mxu0 0.0
        %3844 = vmatprep.subr.mxu0 0.0
        %3845 = vmatpush2.xpose.msra.mxu0 0.0
        %3846 = vmatprep.mubr.f32.mxu0 0.0
        %3847 = vmatmul.mubr.f32.gmra.mxu0 %v3778
        %v3848 = vpop.f32.mrf.mxu0
        %v3849 = vadd.f32 0.0, %v3848
        %v3850 = vpop.f32.mrf.mxu0
        %3851 = vdwg.mxu0
        %v3852 = vmul.f32 %v3849, 0.35355338
        %v3853 = vadd.f32 %v3852, %v1272
        %v3854 = vsel %vm1398, %v3853, -inf
        %3855 = vmax.xlane.f32.xlu0 %v3854
        %v3856 = vpop.xlane.xlu0 %3855
        %v3857 = vsub.f32 %v3853, %v3856
        %v3858 = vmul.f32 %v3857, 1.442695
        %v3859 = vpow.pop %v3858
        %v3860 = vsel %vm1398, %v3859, 0.0
        %3861 = vadd.xlane.f32.xlu0 %v3860
        %v3862 = vpop.xlane.xlu0 %3861
        %v3863 = vrcp.pop %v3862
        %v3864 = vmul.f32 %v3859, %v3863
        %3865 = vrot.lane.b32.xlu0 %v3605, 56
        %v3866 = vpop.permute.xlu0 %3865
        %v3869 = vsel %vm1398, %v3864, 0
        %3871 = vmatprep.subr.mxu0 0.0
        %3872 = vmatpush1.msra.mxu0 0.0
        %3873 = vmatprep.subr.mxu0 0.0
        %3874 = vmatpush1.msra.mxu0 0.0
        %3875 = vmatprep.subr.mxu0 0.0
        %3876 = vmatpush1.msra.mxu0 0.0
        %3877 = vmatprep.subr.mxu0 0.0
        %3878 = vmatpush1.msra.mxu0 0.0
        %3879 = vmatprep.subr.mxu0 0.0
        %3880 = vmatpush1.msra.mxu0 0.0
        %3881 = vmatprep.subr.mxu0 0.0
        %3882 = vmatpush1.msra.mxu0 0.0
        %3883 = vmatprep.subr.mxu0 0.0
        %3884 = vmatpush1.msra.mxu0 0.0
        %3885 = vmatprep.subr.mxu0 0.0
        %3886 = vmatpush1.msra.mxu0 0.0
        %3887 = vmatprep.subr.mxu0 0.0
        %3888 = vmatpush1.msra.mxu0 0.0
        %3889 = vmatprep.subr.mxu0 0.0
        %3890 = vmatpush1.msra.mxu0 0.0
        %3891 = vmatprep.subr.mxu0 0.0
        %3892 = vmatpush1.msra.mxu0 0.0
        %3893 = vmatprep.subr.mxu0 0.0
        %3894 = vmatpush1.msra.mxu0 0.0
        %3895 = vmatprep.subr.mxu0 0.0
        %3896 = vmatpush1.msra.mxu0 0.0
        %3897 = vmatprep.subr.mxu0 0.0
        %3898 = vmatpush1.msra.mxu0 0.0
        %3899 = vmatprep.subr.mxu0 0.0
        %3900 = vmatpush1.msra.mxu0 0.0
        %3901 = vmatprep.subr.mxu0 0.0
        %3902 = vmatpush1.msra.mxu0 %v3866
        %3903 = vmatprep.subr.mxu0 0.0
        %3904 = vmatpush2.msra.mxu0 0.0
        %3905 = vmatprep.subr.mxu0 0.0
        %3906 = vmatpush2.msra.mxu0 0.0
        %3907 = vmatprep.subr.mxu0 0.0
        %3908 = vmatpush2.msra.mxu0 0.0
        %3909 = vmatprep.subr.mxu0 0.0
        %3910 = vmatpush2.msra.mxu0 0.0
        %3911 = vmatprep.subr.mxu0 0.0
        %3912 = vmatpush2.msra.mxu0 0.0
        %3913 = vmatprep.subr.mxu0 0.0
        %3914 = vmatpush2.msra.mxu0 0.0
        %3915 = vmatprep.subr.mxu0 0.0
        %3916 = vmatpush2.msra.mxu0 0.0
        %3917 = vmatprep.subr.mxu0 0.0
        %3918 = vmatpush2.msra.mxu0 0.0
        %3919 = vmatprep.subr.mxu0 0.0
        %3920 = vmatpush2.msra.mxu0 0.0
        %3921 = vmatprep.subr.mxu0 0.0
        %3922 = vmatpush2.msra.mxu0 0.0
        %3923 = vmatprep.subr.mxu0 0.0
        %3924 = vmatpush2.msra.mxu0 0.0
        %3925 = vmatprep.subr.mxu0 0.0
        %3926 = vmatpush2.msra.mxu0 0.0
        %3927 = vmatprep.subr.mxu0 0.0
        %3928 = vmatpush2.msra.mxu0 0.0
        %3929 = vmatprep.subr.mxu0 0.0
        %3930 = vmatpush2.msra.mxu0 0.0
        %3931 = vmatprep.subr.mxu0 0.0
        %3932 = vmatpush2.msra.mxu0 0.0
        %3933 = vmatprep.subr.mxu0 0.0
        %3934 = vmatpush2.msra.mxu0 0.0
        %3935 = vmatprep.mubr.f32.mxu0 0.0
        %3936 = vmatmul.mubr.f32.gmra.mxu0 %v3869
        %v3937 = vpop.f32.mrf.mxu0
        %v3938 = vadd.f32 0.0, %v3937
        %v3939 = vpop.f32.mrf.mxu0
        %3940 = vdwg.mxu0
        %3941 = vrot.lane.b32.xlu0 %v3605, 112
        %v3942 = vpop.permute.xlu0 %3941
        %3943 = vrot.lane.b32.xlu0 %v3605, 80
        %v3944 = vpop.permute.xlu0 %3943
        %v3945 = vsel %vm1398, %v3942, 0
        %v3947 = vsel %vm1398, %v3944, 0
        %3949 = vmatprep.subr.mxu0 0.0
        %3950 = vmatpush1.xpose.msra.mxu0 0.0
        %3951 = vmatprep.subr.mxu0 0.0
        %3952 = vmatpush1.xpose.msra.mxu0 0.0
        %3953 = vmatprep.subr.mxu0 0.0
        %3954 = vmatpush1.xpose.msra.mxu0 0.0
        %3955 = vmatprep.subr.mxu0 0.0
        %3956 = vmatpush1.xpose.msra.mxu0 0.0
        %3957 = vmatprep.subr.mxu0 0.0
        %3958 = vmatpush1.xpose.msra.mxu0 0.0
        %3959 = vmatprep.subr.mxu0 0.0
        %3960 = vmatpush1.xpose.msra.mxu0 0.0
        %3961 = vmatprep.subr.mxu0 0.0
        %3962 = vmatpush1.xpose.msra.mxu0 0.0
        %3963 = vmatprep.subr.mxu0 0.0
        %3964 = vmatpush1.xpose.msra.mxu0 0.0
        %3965 = vmatprep.subr.mxu0 0.0
        %3966 = vmatpush1.xpose.msra.mxu0 0.0
        %3967 = vmatprep.subr.mxu0 0.0
        %3968 = vmatpush1.xpose.msra.mxu0 0.0
        %3969 = vmatprep.subr.mxu0 0.0
        %3970 = vmatpush1.xpose.msra.mxu0 0.0
        %3971 = vmatprep.subr.mxu0 0.0
        %3972 = vmatpush1.xpose.msra.mxu0 0.0
        %3973 = vmatprep.subr.mxu0 0.0
        %3974 = vmatpush1.xpose.msra.mxu0 0.0
        %3975 = vmatprep.subr.mxu0 0.0
        %3976 = vmatpush1.xpose.msra.mxu0 0.0
        %3977 = vmatprep.subr.mxu0 0.0
        %3978 = vmatpush1.xpose.msra.mxu0 0.0
        %3979 = vmatprep.subr.mxu0 0.0
        %3980 = vmatpush1.xpose.msra.mxu0 %v3947
        %3981 = vmatprep.subr.mxu0 0.0
        %3982 = vmatpush2.xpose.msra.mxu0 0.0
        %3983 = vmatprep.subr.mxu0 0.0
        %3984 = vmatpush2.xpose.msra.mxu0 0.0
        %3985 = vmatprep.subr.mxu0 0.0
        %3986 = vmatpush2.xpose.msra.mxu0 0.0
        %3987 = vmatprep.subr.mxu0 0.0
        %3988 = vmatpush2.xpose.msra.mxu0 0.0
        %3989 = vmatprep.subr.mxu0 0.0
        %3990 = vmatpush2.xpose.msra.mxu0 0.0
        %3991 = vmatprep.subr.mxu0 0.0
        %3992 = vmatpush2.xpose.msra.mxu0 0.0
        %3993 = vmatprep.subr.mxu0 0.0
        %3994 = vmatpush2.xpose.msra.mxu0 0.0
        %3995 = vmatprep.subr.mxu0 0.0
        %3996 = vmatpush2.xpose.msra.mxu0 0.0
        %3997 = vmatprep.subr.mxu0 0.0
        %3998 = vmatpush2.xpose.msra.mxu0 0.0
        %3999 = vmatprep.subr.mxu0 0.0
        %4000 = vmatpush2.xpose.msra.mxu0 0.0
        %4001 = vmatprep.subr.mxu0 0.0
        %4002 = vmatpush2.xpose.msra.mxu0 0.0
        %4003 = vmatprep.subr.mxu0 0.0
        %4004 = vmatpush2.xpose.msra.mxu0 0.0
        %4005 = vmatprep.subr.mxu0 0.0
        %4006 = vmatpush2.xpose.msra.mxu0 0.0
        %4007 = vmatprep.subr.mxu0 0.0
        %4008 = vmatpush2.xpose.msra.mxu0 0.0
        %4009 = vmatprep.subr.mxu0 0.0
        %4010 = vmatpush2.xpose.msra.mxu0 0.0
        %4011 = vmatprep.subr.mxu0 0.0
        %4012 = vmatpush2.xpose.msra.mxu0 0.0
        %4013 = vmatprep.mubr.f32.mxu0 0.0
        %4014 = vmatmul.mubr.f32.gmra.mxu0 %v3945
        %v4015 = vpop.f32.mrf.mxu0
        %v4016 = vadd.f32 0.0, %v4015
        %v4017 = vpop.f32.mrf.mxu0
        %4018 = vdwg.mxu0
        %v4019 = vmul.f32 %v4016, 0.35355338
        %v4020 = vadd.f32 %v4019, %v1272
        %v4021 = vsel %vm1398, %v4020, -inf
        %4022 = vmax.xlane.f32.xlu0 %v4021
        %v4023 = vpop.xlane.xlu0 %4022
        %v4024 = vsub.f32 %v4020, %v4023
        %v4025 = vmul.f32 %v4024, 1.442695
        %v4026 = vpow.pop %v4025
        %v4027 = vsel %vm1398, %v4026, 0.0
        %4028 = vadd.xlane.f32.xlu0 %v4027
        %v4029 = vpop.xlane.xlu0 %4028
        %v4030 = vrcp.pop %v4029
        %v4031 = vmul.f32 %v4026, %v4030
        %4032 = vrot.lane.b32.xlu0 %v3605, 48
        %v4033 = vpop.permute.xlu0 %4032
        %v4036 = vsel %vm1398, %v4031, 0
        %4038 = vmatprep.subr.mxu0 0.0
        %4039 = vmatpush1.msra.mxu0 0.0
        %4040 = vmatprep.subr.mxu0 0.0
        %4041 = vmatpush1.msra.mxu0 0.0
        %4042 = vmatprep.subr.mxu0 0.0
        %4043 = vmatpush1.msra.mxu0 0.0
        %4044 = vmatprep.subr.mxu0 0.0
        %4045 = vmatpush1.msra.mxu0 0.0
        %4046 = vmatprep.subr.mxu0 0.0
        %4047 = vmatpush1.msra.mxu0 0.0
        %4048 = vmatprep.subr.mxu0 0.0
        %4049 = vmatpush1.msra.mxu0 0.0
        %4050 = vmatprep.subr.mxu0 0.0
        %4051 = vmatpush1.msra.mxu0 0.0
        %4052 = vmatprep.subr.mxu0 0.0
        %4053 = vmatpush1.msra.mxu0 0.0
        %4054 = vmatprep.subr.mxu0 0.0
        %4055 = vmatpush1.msra.mxu0 0.0
        %4056 = vmatprep.subr.mxu0 0.0
        %4057 = vmatpush1.msra.mxu0 0.0
        %4058 = vmatprep.subr.mxu0 0.0
        %4059 = vmatpush1.msra.mxu0 0.0
        %4060 = vmatprep.subr.mxu0 0.0
        %4061 = vmatpush1.msra.mxu0 0.0
        %4062 = vmatprep.subr.mxu0 0.0
        %4063 = vmatpush1.msra.mxu0 0.0
        %4064 = vmatprep.subr.mxu0 0.0
        %4065 = vmatpush1.msra.mxu0 0.0
        %4066 = vmatprep.subr.mxu0 0.0
        %4067 = vmatpush1.msra.mxu0 0.0
        %4068 = vmatprep.subr.mxu0 0.0
        %4069 = vmatpush1.msra.mxu0 %v4033
        %4070 = vmatprep.subr.mxu0 0.0
        %4071 = vmatpush2.msra.mxu0 0.0
        %4072 = vmatprep.subr.mxu0 0.0
        %4073 = vmatpush2.msra.mxu0 0.0
        %4074 = vmatprep.subr.mxu0 0.0
        %4075 = vmatpush2.msra.mxu0 0.0
        %4076 = vmatprep.subr.mxu0 0.0
        %4077 = vmatpush2.msra.mxu0 0.0
        %4078 = vmatprep.subr.mxu0 0.0
        %4079 = vmatpush2.msra.mxu0 0.0
        %4080 = vmatprep.subr.mxu0 0.0
        %4081 = vmatpush2.msra.mxu0 0.0
        %4082 = vmatprep.subr.mxu0 0.0
        %4083 = vmatpush2.msra.mxu0 0.0
        %4084 = vmatprep.subr.mxu0 0.0
        %4085 = vmatpush2.msra.mxu0 0.0
        %4086 = vmatprep.subr.mxu0 0.0
        %4087 = vmatpush2.msra.mxu0 0.0
        %4088 = vmatprep.subr.mxu0 0.0
        %4089 = vmatpush2.msra.mxu0 0.0
        %4090 = vmatprep.subr.mxu0 0.0
        %4091 = vmatpush2.msra.mxu0 0.0
        %4092 = vmatprep.subr.mxu0 0.0
        %4093 = vmatpush2.msra.mxu0 0.0
        %4094 = vmatprep.subr.mxu0 0.0
        %4095 = vmatpush2.msra.mxu0 0.0
        %4096 = vmatprep.subr.mxu0 0.0
        %4097 = vmatpush2.msra.mxu0 0.0
        %4098 = vmatprep.subr.mxu0 0.0
        %4099 = vmatpush2.msra.mxu0 0.0
        %4100 = vmatprep.subr.mxu0 0.0
        %4101 = vmatpush2.msra.mxu0 0.0
        %4102 = vmatprep.mubr.f32.mxu0 0.0
        %4103 = vmatmul.mubr.f32.gmra.mxu0 %v4036
        %v4104 = vpop.f32.mrf.mxu0
        %v4105 = vadd.f32 0.0, %v4104
        %v4106 = vpop.f32.mrf.mxu0
        %4107 = vdwg.mxu0
        %4108 = vrot.lane.b32.xlu0 %v3605, 104
        %v4109 = vpop.permute.xlu0 %4108
        %4110 = vrot.lane.b32.xlu0 %v3605, 72
        %v4111 = vpop.permute.xlu0 %4110
        %v4112 = vsel %vm1398, %v4109, 0
        %v4114 = vsel %vm1398, %v4111, 0
        %4116 = vmatprep.subr.mxu0 0.0
        %4117 = vmatpush1.xpose.msra.mxu0 0.0
        %4118 = vmatprep.subr.mxu0 0.0
        %4119 = vmatpush1.xpose.msra.mxu0 0.0
        %4120 = vmatprep.subr.mxu0 0.0
        %4121 = vmatpush1.xpose.msra.mxu0 0.0
        %4122 = vmatprep.subr.mxu0 0.0
        %4123 = vmatpush1.xpose.msra.mxu0 0.0
        %4124 = vmatprep.subr.mxu0 0.0
        %4125 = vmatpush1.xpose.msra.mxu0 0.0
        %4126 = vmatprep.subr.mxu0 0.0
        %4127 = vmatpush1.xpose.msra.mxu0 0.0
        %4128 = vmatprep.subr.mxu0 0.0
        %4129 = vmatpush1.xpose.msra.mxu0 0.0
        %4130 = vmatprep.subr.mxu0 0.0
        %4131 = vmatpush1.xpose.msra.mxu0 0.0
        %4132 = vmatprep.subr.mxu0 0.0
        %4133 = vmatpush1.xpose.msra.mxu0 0.0
        %4134 = vmatprep.subr.mxu0 0.0
        %4135 = vmatpush1.xpose.msra.mxu0 0.0
        %4136 = vmatprep.subr.mxu0 0.0
        %4137 = vmatpush1.xpose.msra.mxu0 0.0
        %4138 = vmatprep.subr.mxu0 0.0
        %4139 = vmatpush1.xpose.msra.mxu0 0.0
        %4140 = vmatprep.subr.mxu0 0.0
        %4141 = vmatpush1.xpose.msra.mxu0 0.0
        %4142 = vmatprep.subr.mxu0 0.0
        %4143 = vmatpush1.xpose.msra.mxu0 0.0
        %4144 = vmatprep.subr.mxu0 0.0
        %4145 = vmatpush1.xpose.msra.mxu0 0.0
        %4146 = vmatprep.subr.mxu0 0.0
        %4147 = vmatpush1.xpose.msra.mxu0 %v4114
        %4148 = vmatprep.subr.mxu0 0.0
        %4149 = vmatpush2.xpose.msra.mxu0 0.0
        %4150 = vmatprep.subr.mxu0 0.0
        %4151 = vmatpush2.xpose.msra.mxu0 0.0
        %4152 = vmatprep.subr.mxu0 0.0
        %4153 = vmatpush2.xpose.msra.mxu0 0.0
        %4154 = vmatprep.subr.mxu0 0.0
        %4155 = vmatpush2.xpose.msra.mxu0 0.0
        %4156 = vmatprep.subr.mxu0 0.0
        %4157 = vmatpush2.xpose.msra.mxu0 0.0
        %4158 = vmatprep.subr.mxu0 0.0
        %4159 = vmatpush2.xpose.msra.mxu0 0.0
        %4160 = vmatprep.subr.mxu0 0.0
        %4161 = vmatpush2.xpose.msra.mxu0 0.0
        %4162 = vmatprep.subr.mxu0 0.0
        %4163 = vmatpush2.xpose.msra.mxu0 0.0
        %4164 = vmatprep.subr.mxu0 0.0
        %4165 = vmatpush2.xpose.msra.mxu0 0.0
        %4166 = vmatprep.subr.mxu0 0.0
        %4167 = vmatpush2.xpose.msra.mxu0 0.0
        %4168 = vmatprep.subr.mxu0 0.0
        %4169 = vmatpush2.xpose.msra.mxu0 0.0
        %4170 = vmatprep.subr.mxu0 0.0
        %4171 = vmatpush2.xpose.msra.mxu0 0.0
        %4172 = vmatprep.subr.mxu0 0.0
        %4173 = vmatpush2.xpose.msra.mxu0 0.0
        %4174 = vmatprep.subr.mxu0 0.0
        %4175 = vmatpush2.xpose.msra.mxu0 0.0
        %4176 = vmatprep.subr.mxu0 0.0
        %4177 = vmatpush2.xpose.msra.mxu0 0.0
        %4178 = vmatprep.subr.mxu0 0.0
        %4179 = vmatpush2.xpose.msra.mxu0 0.0
        %4180 = vmatprep.mubr.f32.mxu0 0.0
        %4181 = vmatmul.mubr.f32.gmra.mxu0 %v4112
        %v4182 = vpop.f32.mrf.mxu0
        %v4183 = vadd.f32 0.0, %v4182
        %v4184 = vpop.f32.mrf.mxu0
        %4185 = vdwg.mxu0
        %v4186 = vmul.f32 %v4183, 0.35355338
        %v4187 = vadd.f32 %v4186, %v1272
        %v4188 = vsel %vm1398, %v4187, -inf
        %4189 = vmax.xlane.f32.xlu0 %v4188
        %v4190 = vpop.xlane.xlu0 %4189
        %v4191 = vsub.f32 %v4187, %v4190
        %v4192 = vmul.f32 %v4191, 1.442695
        %v4193 = vpow.pop %v4192
        %v4194 = vsel %vm1398, %v4193, 0.0
        %4195 = vadd.xlane.f32.xlu0 %v4194
        %v4196 = vpop.xlane.xlu0 %4195
        %v4197 = vrcp.pop %v4196
        %v4198 = vmul.f32 %v4193, %v4197
        %4199 = vrot.lane.b32.xlu0 %v3605, 40
        %v4200 = vpop.permute.xlu0 %4199
        %v4203 = vsel %vm1398, %v4198, 0
        %4205 = vmatprep.subr.mxu0 0.0
        %4206 = vmatpush1.msra.mxu0 0.0
        %4207 = vmatprep.subr.mxu0 0.0
        %4208 = vmatpush1.msra.mxu0 0.0
        %4209 = vmatprep.subr.mxu0 0.0
        %4210 = vmatpush1.msra.mxu0 0.0
        %4211 = vmatprep.subr.mxu0 0.0
        %4212 = vmatpush1.msra.mxu0 0.0
        %4213 = vmatprep.subr.mxu0 0.0
        %4214 = vmatpush1.msra.mxu0 0.0
        %4215 = vmatprep.subr.mxu0 0.0
        %4216 = vmatpush1.msra.mxu0 0.0
        %4217 = vmatprep.subr.mxu0 0.0
        %4218 = vmatpush1.msra.mxu0 0.0
        %4219 = vmatprep.subr.mxu0 0.0
        %4220 = vmatpush1.msra.mxu0 0.0
        %4221 = vmatprep.subr.mxu0 0.0
        %4222 = vmatpush1.msra.mxu0 0.0
        %4223 = vmatprep.subr.mxu0 0.0
        %4224 = vmatpush1.msra.mxu0 0.0
        %4225 = vmatprep.subr.mxu0 0.0
        %4226 = vmatpush1.msra.mxu0 0.0
        %4227 = vmatprep.subr.mxu0 0.0
        %4228 = vmatpush1.msra.mxu0 0.0
        %4229 = vmatprep.subr.mxu0 0.0
        %4230 = vmatpush1.msra.mxu0 0.0
        %4231 = vmatprep.subr.mxu0 0.0
        %4232 = vmatpush1.msra.mxu0 0.0
        %4233 = vmatprep.subr.mxu0 0.0
        %4234 = vmatpush1.msra.mxu0 0.0
        %4235 = vmatprep.subr.mxu0 0.0
        %4236 = vmatpush1.msra.mxu0 %v4200
        %4237 = vmatprep.subr.mxu0 0.0
        %4238 = vmatpush2.msra.mxu0 0.0
        %4239 = vmatprep.subr.mxu0 0.0
        %4240 = vmatpush2.msra.mxu0 0.0
        %4241 = vmatprep.subr.mxu0 0.0
        %4242 = vmatpush2.msra.mxu0 0.0
        %4243 = vmatprep.subr.mxu0 0.0
        %4244 = vmatpush2.msra.mxu0 0.0
        %4245 = vmatprep.subr.mxu0 0.0
        %4246 = vmatpush2.msra.mxu0 0.0
        %4247 = vmatprep.subr.mxu0 0.0
        %4248 = vmatpush2.msra.mxu0 0.0
        %4249 = vmatprep.subr.mxu0 0.0
        %4250 = vmatpush2.msra.mxu0 0.0
        %4251 = vmatprep.subr.mxu0 0.0
        %4252 = vmatpush2.msra.mxu0 0.0
        %4253 = vmatprep.subr.mxu0 0.0
        %4254 = vmatpush2.msra.mxu0 0.0
        %4255 = vmatprep.subr.mxu0 0.0
        %4256 = vmatpush2.msra.mxu0 0.0
        %4257 = vmatprep.subr.mxu0 0.0
        %4258 = vmatpush2.msra.mxu0 0.0
        %4259 = vmatprep.subr.mxu0 0.0
        %4260 = vmatpush2.msra.mxu0 0.0
        %4261 = vmatprep.subr.mxu0 0.0
        %4262 = vmatpush2.msra.mxu0 0.0
        %4263 = vmatprep.subr.mxu0 0.0
        %4264 = vmatpush2.msra.mxu0 0.0
        %4265 = vmatprep.subr.mxu0 0.0
        %4266 = vmatpush2.msra.mxu0 0.0
        %4267 = vmatprep.subr.mxu0 0.0
        %4268 = vmatpush2.msra.mxu0 0.0
        %4269 = vmatprep.mubr.f32.mxu0 0.0
        %4270 = vmatmul.mubr.f32.gmra.mxu0 %v4203
        %v4271 = vpop.f32.mrf.mxu0
        %v4272 = vadd.f32 0.0, %v4271
        %v4273 = vpop.f32.mrf.mxu0
        %4274 = vdwg.mxu0
        %4276 = vrot.lane.b32.xlu0 %v3938, 8
        %v4277 = vpop.permute.xlu0 %4276
        %4280 = vrot.lane.b32.xlu0 %v4105, 16
        %v4281 = vpop.permute.xlu0 %4280
        %4284 = vrot.lane.b32.xlu0 %v4272, 24
        %v4285 = vpop.permute.xlu0 %4284
        %v4287 = vsel %vm1398, %v3771, %v4277
        %v4288 = vsel %vm2082, %v4287, %v4281
        %v4289 = vsel %vm2084, %v4288, %v4285
        %v4290 = vlaneseq
        %v4291 = vshrl.u32 %v4290, 7
        %v4292 = vsub.s32 0, %v4291
        %v4293 = vrot.slane %v3530, %v4292
        %v4295 = vsel %vm1276, %v4289, 0
        %4297 = vmatprep.subr.mxu0 0.0
        %4298 = vmatpush1.msra.mxu0 0.0
        %4299 = vmatprep.subr.mxu0 0.0
        %4300 = vmatpush1.msra.mxu0 0.0
        %4301 = vmatprep.subr.mxu0 0.0
        %4302 = vmatpush1.msra.mxu0 0.0
        %4303 = vmatprep.subr.mxu0 0.0
        %4304 = vmatpush1.msra.mxu0 0.0
        %4305 = vmatprep.subr.mxu0 0.0
        %4306 = vmatpush1.msra.mxu0 0.0
        %4307 = vmatprep.subr.mxu0 0.0
        %4308 = vmatpush1.msra.mxu0 0.0
        %4309 = vmatprep.subr.mxu0 0.0
        %4310 = vmatpush1.msra.mxu0 0.0
        %4311 = vmatprep.subr.mxu0 0.0
        %4312 = vmatpush1.msra.mxu0 0.0
        %4313 = vmatprep.subr.mxu0 0.0
        %4314 = vmatpush1.msra.mxu0 0.0
        %4315 = vmatprep.subr.mxu0 0.0
        %4316 = vmatpush1.msra.mxu0 0.0
        %4317 = vmatprep.subr.mxu0 0.0
        %4318 = vmatpush1.msra.mxu0 0.0
        %4319 = vmatprep.subr.mxu0 0.0
        %4320 = vmatpush1.msra.mxu0 0.0
        %4321 = vmatprep.subr.mxu0 0.0
        %4322 = vmatpush1.msra.mxu0 %v3529
        %4323 = vmatprep.subr.mxu0 0.0
        %4324 = vmatpush1.msra.mxu0 %v3528
        %4325 = vmatprep.subr.mxu0 0.0
        %4326 = vmatpush1.msra.mxu0 %v3527
        %4327 = vmatprep.subr.mxu0 0.0
        %4328 = vmatpush1.msra.mxu0 %v3526
        %4329 = vmatprep.subr.mxu0 0.0
        %4330 = vmatpush2.msra.mxu0 0.0
        %4331 = vmatprep.subr.mxu0 0.0
        %4332 = vmatpush2.msra.mxu0 0.0
        %4333 = vmatprep.subr.mxu0 0.0
        %4334 = vmatpush2.msra.mxu0 0.0
        %4335 = vmatprep.subr.mxu0 0.0
        %4336 = vmatpush2.msra.mxu0 0.0
        %4337 = vmatprep.subr.mxu0 0.0
        %4338 = vmatpush2.msra.mxu0 0.0
        %4339 = vmatprep.subr.mxu0 0.0
        %4340 = vmatpush2.msra.mxu0 0.0
        %4341 = vmatprep.subr.mxu0 0.0
        %4342 = vmatpush2.msra.mxu0 0.0
        %4343 = vmatprep.subr.mxu0 0.0
        %4344 = vmatpush2.msra.mxu0 0.0
        %4345 = vmatprep.subr.mxu0 0.0
        %4346 = vmatpush2.msra.mxu0 0.0
        %4347 = vmatprep.subr.mxu0 0.0
        %4348 = vmatpush2.msra.mxu0 0.0
        %4349 = vmatprep.subr.mxu0 0.0
        %4350 = vmatpush2.msra.mxu0 0.0
        %4351 = vmatprep.subr.mxu0 0.0
        %4352 = vmatpush2.msra.mxu0 0.0
        %4353 = vmatprep.subr.mxu0 0.0
        %4354 = vmatpush2.msra.mxu0 0.0
        %4355 = vmatprep.subr.mxu0 0.0
        %4356 = vmatpush2.msra.mxu0 0.0
        %4357 = vmatprep.subr.mxu0 0.0
        %4358 = vmatpush2.msra.mxu0 0.0
        %4359 = vmatprep.subr.mxu0 0.0
        %4360 = vmatpush2.msra.mxu0 0.0
        %4361 = vmatprep.mubr.f32.mxu0 0.0
        %4362 = vmatmul.mubr.f32.gmra.mxu0 %v4295
        %v4363 = vpop.f32.mrf.mxu0
        %v4364 = vadd.f32 %v4293, %v4363
        %v4365 = vpop.f32.mrf.mxu0
        %4366 = vdwg.mxu0
        %v4367 = vadd.f32 %v3488, %v4364
        %v4368 = vld [vmem:[%s49] sm:$0x1]
        %v4369 = vld [vmem:[%s51] sm:$0x1]
        %v4370 = vsel %vm1276, %v4367, 0.0
        %4371 = vadd.xlane.f32.xlu0 %v4370
        %v4372 = vpop.xlane.xlu0 %4371
        %v4373 = vmul.f32 %v4372, %v1280
        %v4374 = vsub.f32 %v4367, %v4373
        %v4375 = vmul.f32 %v4374, %v4374
        %v4376 = vsel %vm1276, %v4375, 0.0
        %4377 = vadd.xlane.f32.xlu0 %v4376
        %v4378 = vpop.xlane.xlu0 %4377
        %v4379 = vmul.f32 %v4378, 0.032258064
        %v4380 = vrsqrt.pop %v4379
        %v4381 = vmul.f32 %v4379, %v4380
        %vm4382 = vcmp.eq.f32.partialorder %v4379, inf
        %v4383 = vsel %vm4382, %v4379, %v4381
        %vm4384 = vcmp.eq.f32.partialorder %v4379, 0.0
        %v4385 = vand.u32 %v4379, 2147483648
        %v4386 = vsel %vm4384, %v4385, %v4383
        %v4387 = vadd.f32 %v4386, 1e-06
        %v4388 = vrcp.pop %v4387
        %v4389 = vlaneseq
        %v4390 = vshrl.u32 %v4389, 7
        %v4391 = vsub.s32 0, %v4390
        %v4392 = vrot.slane %v4368, %v4391
        %v4393 = vmul.f32 %v4392, %v4374
        %v4394 = vmul.f32 %v4393, %v4388
        %v4395 = vlaneseq
        %v4396 = vshrl.u32 %v4395, 7
        %v4397 = vsub.s32 0, %v4396
        %v4398 = vrot.slane %v4369, %v4397
        %v4399 = vadd.f32 %v4394, %v4398
        %v4400 = vld [vmem:[%s53] sm:$0xff]
        %v4401 = vld [vmem:[%s53 + $0x8] sm:$0xff]
        %v4402 = vld [vmem:[%s53 + $0x10] sm:$0xff]
        %v4403 = vld [vmem:[%s53 + $0x18] sm:$0xff]
        %v4404 = vld [vmem:[%s55] sm:$0x1]
        %v4405 = vlaneseq
        %v4406 = vshrl.u32 %v4405, 7
        %v4407 = vsub.s32 0, %v4406
        %v4408 = vrot.slane %v4404, %v4407
        %v4410 = vsel %vm1276, %v4399, 0
        %4412 = vmatprep.subr.mxu0 0.0
        %4413 = vmatpush1.msra.mxu0 0.0
        %4414 = vmatprep.subr.mxu0 0.0
        %4415 = vmatpush1.msra.mxu0 0.0
        %4416 = vmatprep.subr.mxu0 0.0
        %4417 = vmatpush1.msra.mxu0 0.0
        %4418 = vmatprep.subr.mxu0 0.0
        %4419 = vmatpush1.msra.mxu0 0.0
        %4420 = vmatprep.subr.mxu0 0.0
        %4421 = vmatpush1.msra.mxu0 0.0
        %4422 = vmatprep.subr.mxu0 0.0
        %4423 = vmatpush1.msra.mxu0 0.0
        %4424 = vmatprep.subr.mxu0 0.0
        %4425 = vmatpush1.msra.mxu0 0.0
        %4426 = vmatprep.subr.mxu0 0.0
        %4427 = vmatpush1.msra.mxu0 0.0
        %4428 = vmatprep.subr.mxu0 0.0
        %4429 = vmatpush1.msra.mxu0 0.0
        %4430 = vmatprep.subr.mxu0 0.0
        %4431 = vmatpush1.msra.mxu0 0.0
        %4432 = vmatprep.subr.mxu0 0.0
        %4433 = vmatpush1.msra.mxu0 0.0
        %4434 = vmatprep.subr.mxu0 0.0
        %4435 = vmatpush1.msra.mxu0 0.0
        %4436 = vmatprep.subr.mxu0 0.0
        %4437 = vmatpush1.msra.mxu0 %v4403
        %4438 = vmatprep.subr.mxu0 0.0
        %4439 = vmatpush1.msra.mxu0 %v4402
        %4440 = vmatprep.subr.mxu0 0.0
        %4441 = vmatpush1.msra.mxu0 %v4401
        %4442 = vmatprep.subr.mxu0 0.0
        %4443 = vmatpush1.msra.mxu0 %v4400
        %4444 = vmatprep.subr.mxu0 0.0
        %4445 = vmatpush2.msra.mxu0 0.0
        %4446 = vmatprep.subr.mxu0 0.0
        %4447 = vmatpush2.msra.mxu0 0.0
        %4448 = vmatprep.subr.mxu0 0.0
        %4449 = vmatpush2.msra.mxu0 0.0
        %4450 = vmatprep.subr.mxu0 0.0
        %4451 = vmatpush2.msra.mxu0 0.0
        %4452 = vmatprep.subr.mxu0 0.0
        %4453 = vmatpush2.msra.mxu0 0.0
        %4454 = vmatprep.subr.mxu0 0.0
        %4455 = vmatpush2.msra.mxu0 0.0
        %4456 = vmatprep.subr.mxu0 0.0
        %4457 = vmatpush2.msra.mxu0 0.0
        %4458 = vmatprep.subr.mxu0 0.0
        %4459 = vmatpush2.msra.mxu0 0.0
        %4460 = vmatprep.subr.mxu0 0.0
        %4461 = vmatpush2.msra.mxu0 0.0
        %4462 = vmatprep.subr.mxu0 0.0
        %4463 = vmatpush2.msra.mxu0 0.0
        %4464 = vmatprep.subr.mxu0 0.0
        %4465 = vmatpush2.msra.mxu0 0.0
        %4466 = vmatprep.subr.mxu0 0.0
        %4467 = vmatpush2.msra.mxu0 0.0
        %4468 = vmatprep.subr.mxu0 0.0
        %4469 = vmatpush2.msra.mxu0 0.0
        %4470 = vmatprep.subr.mxu0 0.0
        %4471 = vmatpush2.msra.mxu0 0.0
        %4472 = vmatprep.subr.mxu0 0.0
        %4473 = vmatpush2.msra.mxu0 0.0
        %4474 = vmatprep.subr.mxu0 0.0
        %4475 = vmatpush2.msra.mxu0 0.0
        %4476 = vmatprep.mubr.f32.mxu0 0.0
        %4477 = vmatmul.mubr.f32.gmra.mxu0 %v4410
        %v4478 = vpop.f32.mrf.mxu0
        %v4479 = vadd.f32 %v4408, %v4478
        %v4480 = vpop.f32.mrf.mxu0
        %4481 = vdwg.mxu0
        %v4482 = vld [vmem:[%s57] sm:$0xff]
        %v4483 = vld [vmem:[%s57 + $0x8] sm:$0xff]
        %v4484 = vld [vmem:[%s57 + $0x10] sm:$0xff]
        %v4485 = vld [vmem:[%s57 + $0x18] sm:$0xff]
        %v4486 = vld [vmem:[%s59] sm:$0x1]
        %v4487 = vlaneseq
        %v4488 = vshrl.u32 %v4487, 7
        %v4489 = vsub.s32 0, %v4488
        %v4490 = vrot.slane %v4486, %v4489
        %v4492 = vsel %vm1276, %v3487, 0
        %4494 = vmatprep.subr.mxu0 0.0
        %4495 = vmatpush1.msra.mxu0 0.0
        %4496 = vmatprep.subr.mxu0 0.0
        %4497 = vmatpush1.msra.mxu0 0.0
        %4498 = vmatprep.subr.mxu0 0.0
        %4499 = vmatpush1.msra.mxu0 0.0
        %4500 = vmatprep.subr.mxu0 0.0
        %4501 = vmatpush1.msra.mxu0 0.0
        %4502 = vmatprep.subr.mxu0 0.0
        %4503 = vmatpush1.msra.mxu0 0.0
        %4504 = vmatprep.subr.mxu0 0.0
        %4505 = vmatpush1.msra.mxu0 0.0
        %4506 = vmatprep.subr.mxu0 0.0
        %4507 = vmatpush1.msra.mxu0 0.0
        %4508 = vmatprep.subr.mxu0 0.0
        %4509 = vmatpush1.msra.mxu0 0.0
        %4510 = vmatprep.subr.mxu0 0.0
        %4511 = vmatpush1.msra.mxu0 0.0
        %4512 = vmatprep.subr.mxu0 0.0
        %4513 = vmatpush1.msra.mxu0 0.0
        %4514 = vmatprep.subr.mxu0 0.0
        %4515 = vmatpush1.msra.mxu0 0.0
        %4516 = vmatprep.subr.mxu0 0.0
        %4517 = vmatpush1.msra.mxu0 0.0
        %4518 = vmatprep.subr.mxu0 0.0
        %4519 = vmatpush1.msra.mxu0 %v4485
        %4520 = vmatprep.subr.mxu0 0.0
        %4521 = vmatpush1.msra.mxu0 %v4484
        %4522 = vmatprep.subr.mxu0 0.0
        %4523 = vmatpush1.msra.mxu0 %v4483
        %4524 = vmatprep.subr.mxu0 0.0
        %4525 = vmatpush1.msra.mxu0 %v4482
        %4526 = vmatprep.subr.mxu0 0.0
        %4527 = vmatpush2.msra.mxu0 0.0
        %4528 = vmatprep.subr.mxu0 0.0
        %4529 = vmatpush2.msra.mxu0 0.0
        %4530 = vmatprep.subr.mxu0 0.0
        %4531 = vmatpush2.msra.mxu0 0.0
        %4532 = vmatprep.subr.mxu0 0.0
        %4533 = vmatpush2.msra.mxu0 0.0
        %4534 = vmatprep.subr.mxu0 0.0
        %4535 = vmatpush2.msra.mxu0 0.0
        %4536 = vmatprep.subr.mxu0 0.0
        %4537 = vmatpush2.msra.mxu0 0.0
        %4538 = vmatprep.subr.mxu0 0.0
        %4539 = vmatpush2.msra.mxu0 0.0
        %4540 = vmatprep.subr.mxu0 0.0
        %4541 = vmatpush2.msra.mxu0 0.0
        %4542 = vmatprep.subr.mxu0 0.0
        %4543 = vmatpush2.msra.mxu0 0.0
        %4544 = vmatprep.subr.mxu0 0.0
        %4545 = vmatpush2.msra.mxu0 0.0
        %4546 = vmatprep.subr.mxu0 0.0
        %4547 = vmatpush2.msra.mxu0 0.0
        %4548 = vmatprep.subr.mxu0 0.0
        %4549 = vmatpush2.msra.mxu0 0.0
        %4550 = vmatprep.subr.mxu0 0.0
        %4551 = vmatpush2.msra.mxu0 0.0
        %4552 = vmatprep.subr.mxu0 0.0
        %4553 = vmatpush2.msra.mxu0 0.0
        %4554 = vmatprep.subr.mxu0 0.0
        %4555 = vmatpush2.msra.mxu0 0.0
        %4556 = vmatprep.subr.mxu0 0.0
        %4557 = vmatpush2.msra.mxu0 0.0
        %4558 = vmatprep.mubr.f32.mxu0 0.0
        %4559 = vmatmul.mubr.f32.gmra.mxu0 %v4492
        %v4560 = vpop.f32.mrf.mxu0
        %v4561 = vadd.f32 %v4490, %v4560
        %v4562 = vpop.f32.mrf.mxu0
        %4563 = vdwg.mxu0
        %v4565 = vsel %vm1398, %v4479, 0
        %v4568 = vsel %vm1398, %v4561, 0
        %4570 = vmatprep.subr.mxu0 0.0
        %4571 = vmatpush1.xpose.msra.mxu0 0.0
        %4572 = vmatprep.subr.mxu0 0.0
        %4573 = vmatpush1.xpose.msra.mxu0 0.0
        %4574 = vmatprep.subr.mxu0 0.0
        %4575 = vmatpush1.xpose.msra.mxu0 0.0
        %4576 = vmatprep.subr.mxu0 0.0
        %4577 = vmatpush1.xpose.msra.mxu0 0.0
        %4578 = vmatprep.subr.mxu0 0.0
        %4579 = vmatpush1.xpose.msra.mxu0 0.0
        %4580 = vmatprep.subr.mxu0 0.0
        %4581 = vmatpush1.xpose.msra.mxu0 0.0
        %4582 = vmatprep.subr.mxu0 0.0
        %4583 = vmatpush1.xpose.msra.mxu0 0.0
        %4584 = vmatprep.subr.mxu0 0.0
        %4585 = vmatpush1.xpose.msra.mxu0 0.0
        %4586 = vmatprep.subr.mxu0 0.0
        %4587 = vmatpush1.xpose.msra.mxu0 0.0
        %4588 = vmatprep.subr.mxu0 0.0
        %4589 = vmatpush1.xpose.msra.mxu0 0.0
        %4590 = vmatprep.subr.mxu0 0.0
        %4591 = vmatpush1.xpose.msra.mxu0 0.0
        %4592 = vmatprep.subr.mxu0 0.0
        %4593 = vmatpush1.xpose.msra.mxu0 0.0
        %4594 = vmatprep.subr.mxu0 0.0
        %4595 = vmatpush1.xpose.msra.mxu0 0.0
        %4596 = vmatprep.subr.mxu0 0.0
        %4597 = vmatpush1.xpose.msra.mxu0 0.0
        %4598 = vmatprep.subr.mxu0 0.0
        %4599 = vmatpush1.xpose.msra.mxu0 0.0
        %4600 = vmatprep.subr.mxu0 0.0
        %4601 = vmatpush1.xpose.msra.mxu0 %v4568
        %4602 = vmatprep.subr.mxu0 0.0
        %4603 = vmatpush2.xpose.msra.mxu0 0.0
        %4604 = vmatprep.subr.mxu0 0.0
        %4605 = vmatpush2.xpose.msra.mxu0 0.0
        %4606 = vmatprep.subr.mxu0 0.0
        %4607 = vmatpush2.xpose.msra.mxu0 0.0
        %4608 = vmatprep.subr.mxu0 0.0
        %4609 = vmatpush2.xpose.msra.mxu0 0.0
        %4610 = vmatprep.subr.mxu0 0.0
        %4611 = vmatpush2.xpose.msra.mxu0 0.0
        %4612 = vmatprep.subr.mxu0 0.0
        %4613 = vmatpush2.xpose.msra.mxu0 0.0
        %4614 = vmatprep.subr.mxu0 0.0
        %4615 = vmatpush2.xpose.msra.mxu0 0.0
        %4616 = vmatprep.subr.mxu0 0.0
        %4617 = vmatpush2.xpose.msra.mxu0 0.0
        %4618 = vmatprep.subr.mxu0 0.0
        %4619 = vmatpush2.xpose.msra.mxu0 0.0
        %4620 = vmatprep.subr.mxu0 0.0
        %4621 = vmatpush2.xpose.msra.mxu0 0.0
        %4622 = vmatprep.subr.mxu0 0.0
        %4623 = vmatpush2.xpose.msra.mxu0 0.0
        %4624 = vmatprep.subr.mxu0 0.0
        %4625 = vmatpush2.xpose.msra.mxu0 0.0
        %4626 = vmatprep.subr.mxu0 0.0
        %4627 = vmatpush2.xpose.msra.mxu0 0.0
        %4628 = vmatprep.subr.mxu0 0.0
        %4629 = vmatpush2.xpose.msra.mxu0 0.0
        %4630 = vmatprep.subr.mxu0 0.0
        %4631 = vmatpush2.xpose.msra.mxu0 0.0
        %4632 = vmatprep.subr.mxu0 0.0
        %4633 = vmatpush2.xpose.msra.mxu0 0.0
        %4634 = vmatprep.mubr.f32.mxu0 0.0
        %4635 = vmatmul.mubr.f32.gmra.mxu0 %v4565
        %v4636 = vpop.f32.mrf.mxu0
        %v4637 = vadd.f32 0.0, %v4636
        %v4638 = vpop.f32.mrf.mxu0
        %4639 = vdwg.mxu0
        %v4640 = vmul.f32 %v4637, 0.35355338
        %v4641 = vadd.f32 %v4640, %v1478
        %v4642 = vsel %vm1398, %v4641, -inf
        %4643 = vmax.xlane.f32.xlu0 %v4642
        %v4644 = vpop.xlane.xlu0 %4643
        %v4645 = vsub.f32 %v4641, %v4644
        %v4646 = vmul.f32 %v4645, 1.442695
        %v4647 = vpow.pop %v4646
        %v4648 = vsel %vm1398, %v4647, 0.0
        %4649 = vadd.xlane.f32.xlu0 %v4648
        %v4650 = vpop.xlane.xlu0 %4649
        %v4651 = vrcp.pop %v4650
        %v4652 = vmul.f32 %v4647, %v4651
        %4653 = vrot.lane.b32.xlu0 %v4561, 96
        %v4654 = vpop.permute.xlu0 %4653
        %v4657 = vsel %vm1398, %v4652, 0
        %4659 = vmatprep.subr.mxu0 0.0
        %4660 = vmatpush1.msra.mxu0 0.0
        %4661 = vmatprep.subr.mxu0 0.0
        %4662 = vmatpush1.msra.mxu0 0.0
        %4663 = vmatprep.subr.mxu0 0.0
        %4664 = vmatpush1.msra.mxu0 0.0
        %4665 = vmatprep.subr.mxu0 0.0
        %4666 = vmatpush1.msra.mxu0 0.0
        %4667 = vmatprep.subr.mxu0 0.0
        %4668 = vmatpush1.msra.mxu0 0.0
        %4669 = vmatprep.subr.mxu0 0.0
        %4670 = vmatpush1.msra.mxu0 0.0
        %4671 = vmatprep.subr.mxu0 0.0
        %4672 = vmatpush1.msra.mxu0 0.0
        %4673 = vmatprep.subr.mxu0 0.0
        %4674 = vmatpush1.msra.mxu0 0.0
        %4675 = vmatprep.subr.mxu0 0.0
        %4676 = vmatpush1.msra.mxu0 0.0
        %4677 = vmatprep.subr.mxu0 0.0
        %4678 = vmatpush1.msra.mxu0 0.0
        %4679 = vmatprep.subr.mxu0 0.0
        %4680 = vmatpush1.msra.mxu0 0.0
        %4681 = vmatprep.subr.mxu0 0.0
        %4682 = vmatpush1.msra.mxu0 0.0
        %4683 = vmatprep.subr.mxu0 0.0
        %4684 = vmatpush1.msra.mxu0 0.0
        %4685 = vmatprep.subr.mxu0 0.0
        %4686 = vmatpush1.msra.mxu0 0.0
        %4687 = vmatprep.subr.mxu0 0.0
        %4688 = vmatpush1.msra.mxu0 0.0
        %4689 = vmatprep.subr.mxu0 0.0
        %4690 = vmatpush1.msra.mxu0 %v4654
        %4691 = vmatprep.subr.mxu0 0.0
        %4692 = vmatpush2.msra.mxu0 0.0
        %4693 = vmatprep.subr.mxu0 0.0
        %4694 = vmatpush2.msra.mxu0 0.0
        %4695 = vmatprep.subr.mxu0 0.0
        %4696 = vmatpush2.msra.mxu0 0.0
        %4697 = vmatprep.subr.mxu0 0.0
        %4698 = vmatpush2.msra.mxu0 0.0
        %4699 = vmatprep.subr.mxu0 0.0
        %4700 = vmatpush2.msra.mxu0 0.0
        %4701 = vmatprep.subr.mxu0 0.0
        %4702 = vmatpush2.msra.mxu0 0.0
        %4703 = vmatprep.subr.mxu0 0.0
        %4704 = vmatpush2.msra.mxu0 0.0
        %4705 = vmatprep.subr.mxu0 0.0
        %4706 = vmatpush2.msra.mxu0 0.0
        %4707 = vmatprep.subr.mxu0 0.0
        %4708 = vmatpush2.msra.mxu0 0.0
        %4709 = vmatprep.subr.mxu0 0.0
        %4710 = vmatpush2.msra.mxu0 0.0
        %4711 = vmatprep.subr.mxu0 0.0
        %4712 = vmatpush2.msra.mxu0 0.0
        %4713 = vmatprep.subr.mxu0 0.0
        %4714 = vmatpush2.msra.mxu0 0.0
        %4715 = vmatprep.subr.mxu0 0.0
        %4716 = vmatpush2.msra.mxu0 0.0
        %4717 = vmatprep.subr.mxu0 0.0
        %4718 = vmatpush2.msra.mxu0 0.0
        %4719 = vmatprep.subr.mxu0 0.0
        %4720 = vmatpush2.msra.mxu0 0.0
        %4721 = vmatprep.subr.mxu0 0.0
        %4722 = vmatpush2.msra.mxu0 0.0
        %4723 = vmatprep.mubr.f32.mxu0 0.0
        %4724 = vmatmul.mubr.f32.gmra.mxu0 %v4657
        %v4725 = vpop.f32.mrf.mxu0
        %v4726 = vadd.f32 0.0, %v4725
        %v4727 = vpop.f32.mrf.mxu0
        %4728 = vdwg.mxu0
        %4729 = vrot.lane.b32.xlu0 %v4479, 120
        %v4730 = vpop.permute.xlu0 %4729
        %4731 = vrot.lane.b32.xlu0 %v4561, 120
        %v4732 = vpop.permute.xlu0 %4731
        %v4733 = vsel %vm1398, %v4730, 0
        %v4735 = vsel %vm1398, %v4732, 0
        %4737 = vmatprep.subr.mxu0 0.0
        %4738 = vmatpush1.xpose.msra.mxu0 0.0
        %4739 = vmatprep.subr.mxu0 0.0
        %4740 = vmatpush1.xpose.msra.mxu0 0.0
        %4741 = vmatprep.subr.mxu0 0.0
        %4742 = vmatpush1.xpose.msra.mxu0 0.0
        %4743 = vmatprep.subr.mxu0 0.0
        %4744 = vmatpush1.xpose.msra.mxu0 0.0
        %4745 = vmatprep.subr.mxu0 0.0
        %4746 = vmatpush1.xpose.msra.mxu0 0.0
        %4747 = vmatprep.subr.mxu0 0.0
        %4748 = vmatpush1.xpose.msra.mxu0 0.0
        %4749 = vmatprep.subr.mxu0 0.0
        %4750 = vmatpush1.xpose.msra.mxu0 0.0
        %4751 = vmatprep.subr.mxu0 0.0
        %4752 = vmatpush1.xpose.msra.mxu0 0.0
        %4753 = vmatprep.subr.mxu0 0.0
        %4754 = vmatpush1.xpose.msra.mxu0 0.0
        %4755 = vmatprep.subr.mxu0 0.0
        %4756 = vmatpush1.xpose.msra.mxu0 0.0
        %4757 = vmatprep.subr.mxu0 0.0
        %4758 = vmatpush1.xpose.msra.mxu0 0.0
        %4759 = vmatprep.subr.mxu0 0.0
        %4760 = vmatpush1.xpose.msra.mxu0 0.0
        %4761 = vmatprep.subr.mxu0 0.0
        %4762 = vmatpush1.xpose.msra.mxu0 0.0
        %4763 = vmatprep.subr.mxu0 0.0
        %4764 = vmatpush1.xpose.msra.mxu0 0.0
        %4765 = vmatprep.subr.mxu0 0.0
        %4766 = vmatpush1.xpose.msra.mxu0 0.0
        %4767 = vmatprep.subr.mxu0 0.0
        %4768 = vmatpush1.xpose.msra.mxu0 %v4735
        %4769 = vmatprep.subr.mxu0 0.0
        %4770 = vmatpush2.xpose.msra.mxu0 0.0
        %4771 = vmatprep.subr.mxu0 0.0
        %4772 = vmatpush2.xpose.msra.mxu0 0.0
        %4773 = vmatprep.subr.mxu0 0.0
        %4774 = vmatpush2.xpose.msra.mxu0 0.0
        %4775 = vmatprep.subr.mxu0 0.0
        %4776 = vmatpush2.xpose.msra.mxu0 0.0
        %4777 = vmatprep.subr.mxu0 0.0
        %4778 = vmatpush2.xpose.msra.mxu0 0.0
        %4779 = vmatprep.subr.mxu0 0.0
        %4780 = vmatpush2.xpose.msra.mxu0 0.0
        %4781 = vmatprep.subr.mxu0 0.0
        %4782 = vmatpush2.xpose.msra.mxu0 0.0
        %4783 = vmatprep.subr.mxu0 0.0
        %4784 = vmatpush2.xpose.msra.mxu0 0.0
        %4785 = vmatprep.subr.mxu0 0.0
        %4786 = vmatpush2.xpose.msra.mxu0 0.0
        %4787 = vmatprep.subr.mxu0 0.0
        %4788 = vmatpush2.xpose.msra.mxu0 0.0
        %4789 = vmatprep.subr.mxu0 0.0
        %4790 = vmatpush2.xpose.msra.mxu0 0.0
        %4791 = vmatprep.subr.mxu0 0.0
        %4792 = vmatpush2.xpose.msra.mxu0 0.0
        %4793 = vmatprep.subr.mxu0 0.0
        %4794 = vmatpush2.xpose.msra.mxu0 0.0
        %4795 = vmatprep.subr.mxu0 0.0
        %4796 = vmatpush2.xpose.msra.mxu0 0.0
        %4797 = vmatprep.subr.mxu0 0.0
        %4798 = vmatpush2.xpose.msra.mxu0 0.0
        %4799 = vmatprep.subr.mxu0 0.0
        %4800 = vmatpush2.xpose.msra.mxu0 0.0
        %4801 = vmatprep.mubr.f32.mxu0 0.0
        %4802 = vmatmul.mubr.f32.gmra.mxu0 %v4733
        %v4803 = vpop.f32.mrf.mxu0
        %v4804 = vadd.f32 0.0, %v4803
        %v4805 = vpop.f32.mrf.mxu0
        %4806 = vdwg.mxu0
        %v4807 = vmul.f32 %v4804, 0.35355338
        %v4808 = vadd.f32 %v4807, %v1478
        %v4809 = vsel %vm1398, %v4808, -inf
        %4810 = vmax.xlane.f32.xlu0 %v4809
        %v4811 = vpop.xlane.xlu0 %4810
        %v4812 = vsub.f32 %v4808, %v4811
        %v4813 = vmul.f32 %v4812, 1.442695
        %v4814 = vpow.pop %v4813
        %v4815 = vsel %vm1398, %v4814, 0.0
        %4816 = vadd.xlane.f32.xlu0 %v4815
        %v4817 = vpop.xlane.xlu0 %4816
        %v4818 = vrcp.pop %v4817
        %v4819 = vmul.f32 %v4814, %v4818
        %4820 = vrot.lane.b32.xlu0 %v4561, 88
        %v4821 = vpop.permute.xlu0 %4820
        %v4824 = vsel %vm1398, %v4819, 0
        %4826 = vmatprep.subr.mxu0 0.0
        %4827 = vmatpush1.msra.mxu0 0.0
        %4828 = vmatprep.subr.mxu0 0.0
        %4829 = vmatpush1.msra.mxu0 0.0
        %4830 = vmatprep.subr.mxu0 0.0
        %4831 = vmatpush1.msra.mxu0 0.0
        %4832 = vmatprep.subr.mxu0 0.0
        %4833 = vmatpush1.msra.mxu0 0.0
        %4834 = vmatprep.subr.mxu0 0.0
        %4835 = vmatpush1.msra.mxu0 0.0
        %4836 = vmatprep.subr.mxu0 0.0
        %4837 = vmatpush1.msra.mxu0 0.0
        %4838 = vmatprep.subr.mxu0 0.0
        %4839 = vmatpush1.msra.mxu0 0.0
        %4840 = vmatprep.subr.mxu0 0.0
        %4841 = vmatpush1.msra.mxu0 0.0
        %4842 = vmatprep.subr.mxu0 0.0
        %4843 = vmatpush1.msra.mxu0 0.0
        %4844 = vmatprep.subr.mxu0 0.0
        %4845 = vmatpush1.msra.mxu0 0.0
        %4846 = vmatprep.subr.mxu0 0.0
        %4847 = vmatpush1.msra.mxu0 0.0
        %4848 = vmatprep.subr.mxu0 0.0
        %4849 = vmatpush1.msra.mxu0 0.0
        %4850 = vmatprep.subr.mxu0 0.0
        %4851 = vmatpush1.msra.mxu0 0.0
        %4852 = vmatprep.subr.mxu0 0.0
        %4853 = vmatpush1.msra.mxu0 0.0
        %4854 = vmatprep.subr.mxu0 0.0
        %4855 = vmatpush1.msra.mxu0 0.0
        %4856 = vmatprep.subr.mxu0 0.0
        %4857 = vmatpush1.msra.mxu0 %v4821
        %4858 = vmatprep.subr.mxu0 0.0
        %4859 = vmatpush2.msra.mxu0 0.0
        %4860 = vmatprep.subr.mxu0 0.0
        %4861 = vmatpush2.msra.mxu0 0.0
        %4862 = vmatprep.subr.mxu0 0.0
        %4863 = vmatpush2.msra.mxu0 0.0
        %4864 = vmatprep.subr.mxu0 0.0
        %4865 = vmatpush2.msra.mxu0 0.0
        %4866 = vmatprep.subr.mxu0 0.0
        %4867 = vmatpush2.msra.mxu0 0.0
        %4868 = vmatprep.subr.mxu0 0.0
        %4869 = vmatpush2.msra.mxu0 0.0
        %4870 = vmatprep.subr.mxu0 0.0
        %4871 = vmatpush2.msra.mxu0 0.0
        %4872 = vmatprep.subr.mxu0 0.0
        %4873 = vmatpush2.msra.mxu0 0.0
        %4874 = vmatprep.subr.mxu0 0.0
        %4875 = vmatpush2.msra.mxu0 0.0
        %4876 = vmatprep.subr.mxu0 0.0
        %4877 = vmatpush2.msra.mxu0 0.0
        %4878 = vmatprep.subr.mxu0 0.0
        %4879 = vmatpush2.msra.mxu0 0.0
        %4880 = vmatprep.subr.mxu0 0.0
        %4881 = vmatpush2.msra.mxu0 0.0
        %4882 = vmatprep.subr.mxu0 0.0
        %4883 = vmatpush2.msra.mxu0 0.0
        %4884 = vmatprep.subr.mxu0 0.0
        %4885 = vmatpush2.msra.mxu0 0.0
        %4886 = vmatprep.subr.mxu0 0.0
        %4887 = vmatpush2.msra.mxu0 0.0
        %4888 = vmatprep.subr.mxu0 0.0
        %4889 = vmatpush2.msra.mxu0 0.0
        %4890 = vmatprep.mubr.f32.mxu0 0.0
        %4891 = vmatmul.mubr.f32.gmra.mxu0 %v4824
        %v4892 = vpop.f32.mrf.mxu0
        %v4893 = vadd.f32 0.0, %v4892
        %v4894 = vpop.f32.mrf.mxu0
        %4895 = vdwg.mxu0
        %4896 = vrot.lane.b32.xlu0 %v4479, 112
        %v4897 = vpop.permute.xlu0 %4896
        %4898 = vrot.lane.b32.xlu0 %v4561, 112
        %v4899 = vpop.permute.xlu0 %4898
        %v4900 = vsel %vm1398, %v4897, 0
        %v4902 = vsel %vm1398, %v4899, 0
        %4904 = vmatprep.subr.mxu0 0.0
        %4905 = vmatpush1.xpose.msra.mxu0 0.0
        %4906 = vmatprep.subr.mxu0 0.0
        %4907 = vmatpush1.xpose.msra.mxu0 0.0
        %4908 = vmatprep.subr.mxu0 0.0
        %4909 = vmatpush1.xpose.msra.mxu0 0.0
        %4910 = vmatprep.subr.mxu0 0.0
        %4911 = vmatpush1.xpose.msra.mxu0 0.0
        %4912 = vmatprep.subr.mxu0 0.0
        %4913 = vmatpush1.xpose.msra.mxu0 0.0
        %4914 = vmatprep.subr.mxu0 0.0
        %4915 = vmatpush1.xpose.msra.mxu0 0.0
        %4916 = vmatprep.subr.mxu0 0.0
        %4917 = vmatpush1.xpose.msra.mxu0 0.0
        %4918 = vmatprep.subr.mxu0 0.0
        %4919 = vmatpush1.xpose.msra.mxu0 0.0
        %4920 = vmatprep.subr.mxu0 0.0
        %4921 = vmatpush1.xpose.msra.mxu0 0.0
        %4922 = vmatprep.subr.mxu0 0.0
        %4923 = vmatpush1.xpose.msra.mxu0 0.0
        %4924 = vmatprep.subr.mxu0 0.0
        %4925 = vmatpush1.xpose.msra.mxu0 0.0
        %4926 = vmatprep.subr.mxu0 0.0
        %4927 = vmatpush1.xpose.msra.mxu0 0.0
        %4928 = vmatprep.subr.mxu0 0.0
        %4929 = vmatpush1.xpose.msra.mxu0 0.0
        %4930 = vmatprep.subr.mxu0 0.0
        %4931 = vmatpush1.xpose.msra.mxu0 0.0
        %4932 = vmatprep.subr.mxu0 0.0
        %4933 = vmatpush1.xpose.msra.mxu0 0.0
        %4934 = vmatprep.subr.mxu0 0.0
        %4935 = vmatpush1.xpose.msra.mxu0 %v4902
        %4936 = vmatprep.subr.mxu0 0.0
        %4937 = vmatpush2.xpose.msra.mxu0 0.0
        %4938 = vmatprep.subr.mxu0 0.0
        %4939 = vmatpush2.xpose.msra.mxu0 0.0
        %4940 = vmatprep.subr.mxu0 0.0
        %4941 = vmatpush2.xpose.msra.mxu0 0.0
        %4942 = vmatprep.subr.mxu0 0.0
        %4943 = vmatpush2.xpose.msra.mxu0 0.0
        %4944 = vmatprep.subr.mxu0 0.0
        %4945 = vmatpush2.xpose.msra.mxu0 0.0
        %4946 = vmatprep.subr.mxu0 0.0
        %4947 = vmatpush2.xpose.msra.mxu0 0.0
        %4948 = vmatprep.subr.mxu0 0.0
        %4949 = vmatpush2.xpose.msra.mxu0 0.0
        %4950 = vmatprep.subr.mxu0 0.0
        %4951 = vmatpush2.xpose.msra.mxu0 0.0
        %4952 = vmatprep.subr.mxu0 0.0
        %4953 = vmatpush2.xpose.msra.mxu0 0.0
        %4954 = vmatprep.subr.mxu0 0.0
        %4955 = vmatpush2.xpose.msra.mxu0 0.0
        %4956 = vmatprep.subr.mxu0 0.0
        %4957 = vmatpush2.xpose.msra.mxu0 0.0
        %4958 = vmatprep.subr.mxu0 0.0
        %4959 = vmatpush2.xpose.msra.mxu0 0.0
        %4960 = vmatprep.subr.mxu0 0.0
        %4961 = vmatpush2.xpose.msra.mxu0 0.0
        %4962 = vmatprep.subr.mxu0 0.0
        %4963 = vmatpush2.xpose.msra.mxu0 0.0
        %4964 = vmatprep.subr.mxu0 0.0
        %4965 = vmatpush2.xpose.msra.mxu0 0.0
        %4966 = vmatprep.subr.mxu0 0.0
        %4967 = vmatpush2.xpose.msra.mxu0 0.0
        %4968 = vmatprep.mubr.f32.mxu0 0.0
        %4969 = vmatmul.mubr.f32.gmra.mxu0 %v4900
        %v4970 = vpop.f32.mrf.mxu0
        %v4971 = vadd.f32 0.0, %v4970
        %v4972 = vpop.f32.mrf.mxu0
        %4973 = vdwg.mxu0
        %v4974 = vmul.f32 %v4971, 0.35355338
        %v4975 = vadd.f32 %v4974, %v1478
        %v4976 = vsel %vm1398, %v4975, -inf
        %4977 = vmax.xlane.f32.xlu0 %v4976
        %v4978 = vpop.xlane.xlu0 %4977
        %v4979 = vsub.f32 %v4975, %v4978
        %v4980 = vmul.f32 %v4979, 1.442695
        %v4981 = vpow.pop %v4980
        %v4982 = vsel %vm1398, %v4981, 0.0
        %4983 = vadd.xlane.f32.xlu0 %v4982
        %v4984 = vpop.xlane.xlu0 %4983
        %v4985 = vrcp.pop %v4984
        %v4986 = vmul.f32 %v4981, %v4985
        %4987 = vrot.lane.b32.xlu0 %v4561, 80
        %v4988 = vpop.permute.xlu0 %4987
        %v4991 = vsel %vm1398, %v4986, 0
        %4993 = vmatprep.subr.mxu0 0.0
        %4994 = vmatpush1.msra.mxu0 0.0
        %4995 = vmatprep.subr.mxu0 0.0
        %4996 = vmatpush1.msra.mxu0 0.0
        %4997 = vmatprep.subr.mxu0 0.0
        %4998 = vmatpush1.msra.mxu0 0.0
        %4999 = vmatprep.subr.mxu0 0.0
        %5000 = vmatpush1.msra.mxu0 0.0
        %5001 = vmatprep.subr.mxu0 0.0
        %5002 = vmatpush1.msra.mxu0 0.0
        %5003 = vmatprep.subr.mxu0 0.0
        %5004 = vmatpush1.msra.mxu0 0.0
        %5005 = vmatprep.subr.mxu0 0.0
        %5006 = vmatpush1.msra.mxu0 0.0
        %5007 = vmatprep.subr.mxu0 0.0
        %5008 = vmatpush1.msra.mxu0 0.0
        %5009 = vmatprep.subr.mxu0 0.0
        %5010 = vmatpush1.msra.mxu0 0.0
        %5011 = vmatprep.subr.mxu0 0.0
        %5012 = vmatpush1.msra.mxu0 0.0
        %5013 = vmatprep.subr.mxu0 0.0
        %5014 = vmatpush1.msra.mxu0 0.0
        %5015 = vmatprep.subr.mxu0 0.0
        %5016 = vmatpush1.msra.mxu0 0.0
        %5017 = vmatprep.subr.mxu0 0.0
        %5018 = vmatpush1.msra.mxu0 0.0
        %5019 = vmatprep.subr.mxu0 0.0
        %5020 = vmatpush1.msra.mxu0 0.0
        %5021 = vmatprep.subr.mxu0 0.0
        %5022 = vmatpush1.msra.mxu0 0.0
        %5023 = vmatprep.subr.mxu0 0.0
        %5024 = vmatpush1.msra.mxu0 %v4988
        %5025 = vmatprep.subr.mxu0 0.0
        %5026 = vmatpush2.msra.mxu0 0.0
        %5027 = vmatprep.subr.mxu0 0.0
        %5028 = vmatpush2.msra.mxu0 0.0
        %5029 = vmatprep.subr.mxu0 0.0
        %5030 = vmatpush2.msra.mxu0 0.0
        %5031 = vmatprep.subr.mxu0 0.0
        %5032 = vmatpush2.msra.mxu0 0.0
        %5033 = vmatprep.subr.mxu0 0.0
        %5034 = vmatpush2.msra.mxu0 0.0
        %5035 = vmatprep.subr.mxu0 0.0
        %5036 = vmatpush2.msra.mxu0 0.0
        %5037 = vmatprep.subr.mxu0 0.0
        %5038 = vmatpush2.msra.mxu0 0.0
        %5039 = vmatprep.subr.mxu0 0.0
        %5040 = vmatpush2.msra.mxu0 0.0
        %5041 = vmatprep.subr.mxu0 0.0
        %5042 = vmatpush2.msra.mxu0 0.0
        %5043 = vmatprep.subr.mxu0 0.0
        %5044 = vmatpush2.msra.mxu0 0.0
        %5045 = vmatprep.subr.mxu0 0.0
        %5046 = vmatpush2.msra.mxu0 0.0
        %5047 = vmatprep.subr.mxu0 0.0
        %5048 = vmatpush2.msra.mxu0 0.0
        %5049 = vmatprep.subr.mxu0 0.0
        %5050 = vmatpush2.msra.mxu0 0.0
        %5051 = vmatprep.subr.mxu0 0.0
        %5052 = vmatpush2.msra.mxu0 0.0
        %5053 = vmatprep.subr.mxu0 0.0
        %5054 = vmatpush2.msra.mxu0 0.0
        %5055 = vmatprep.subr.mxu0 0.0
        %5056 = vmatpush2.msra.mxu0 0.0
        %5057 = vmatprep.mubr.f32.mxu0 0.0
        %5058 = vmatmul.mubr.f32.gmra.mxu0 %v4991
        %v5059 = vpop.f32.mrf.mxu0
        %v5060 = vadd.f32 0.0, %v5059
        %v5061 = vpop.f32.mrf.mxu0
        %5062 = vdwg.mxu0
        %5063 = vrot.lane.b32.xlu0 %v4479, 104
        %v5064 = vpop.permute.xlu0 %5063
        %5065 = vrot.lane.b32.xlu0 %v4561, 104
        %v5066 = vpop.permute.xlu0 %5065
        %v5067 = vsel %vm1398, %v5064, 0
        %v5069 = vsel %vm1398, %v5066, 0
        %5071 = vmatprep.subr.mxu0 0.0
        %5072 = vmatpush1.xpose.msra.mxu0 0.0
        %5073 = vmatprep.subr.mxu0 0.0
        %5074 = vmatpush1.xpose.msra.mxu0 0.0
        %5075 = vmatprep.subr.mxu0 0.0
        %5076 = vmatpush1.xpose.msra.mxu0 0.0
        %5077 = vmatprep.subr.mxu0 0.0
        %5078 = vmatpush1.xpose.msra.mxu0 0.0
        %5079 = vmatprep.subr.mxu0 0.0
        %5080 = vmatpush1.xpose.msra.mxu0 0.0
        %5081 = vmatprep.subr.mxu0 0.0
        %5082 = vmatpush1.xpose.msra.mxu0 0.0
        %5083 = vmatprep.subr.mxu0 0.0
        %5084 = vmatpush1.xpose.msra.mxu0 0.0
        %5085 = vmatprep.subr.mxu0 0.0
        %5086 = vmatpush1.xpose.msra.mxu0 0.0
        %5087 = vmatprep.subr.mxu0 0.0
        %5088 = vmatpush1.xpose.msra.mxu0 0.0
        %5089 = vmatprep.subr.mxu0 0.0
        %5090 = vmatpush1.xpose.msra.mxu0 0.0
        %5091 = vmatprep.subr.mxu0 0.0
        %5092 = vmatpush1.xpose.msra.mxu0 0.0
        %5093 = vmatprep.subr.mxu0 0.0
        %5094 = vmatpush1.xpose.msra.mxu0 0.0
        %5095 = vmatprep.subr.mxu0 0.0
        %5096 = vmatpush1.xpose.msra.mxu0 0.0
        %5097 = vmatprep.subr.mxu0 0.0
        %5098 = vmatpush1.xpose.msra.mxu0 0.0
        %5099 = vmatprep.subr.mxu0 0.0
        %5100 = vmatpush1.xpose.msra.mxu0 0.0
        %5101 = vmatprep.subr.mxu0 0.0
        %5102 = vmatpush1.xpose.msra.mxu0 %v5069
        %5103 = vmatprep.subr.mxu0 0.0
        %5104 = vmatpush2.xpose.msra.mxu0 0.0
        %5105 = vmatprep.subr.mxu0 0.0
        %5106 = vmatpush2.xpose.msra.mxu0 0.0
        %5107 = vmatprep.subr.mxu0 0.0
        %5108 = vmatpush2.xpose.msra.mxu0 0.0
        %5109 = vmatprep.subr.mxu0 0.0
        %5110 = vmatpush2.xpose.msra.mxu0 0.0
        %5111 = vmatprep.subr.mxu0 0.0
        %5112 = vmatpush2.xpose.msra.mxu0 0.0
        %5113 = vmatprep.subr.mxu0 0.0
        %5114 = vmatpush2.xpose.msra.mxu0 0.0
        %5115 = vmatprep.subr.mxu0 0.0
        %5116 = vmatpush2.xpose.msra.mxu0 0.0
        %5117 = vmatprep.subr.mxu0 0.0
        %5118 = vmatpush2.xpose.msra.mxu0 0.0
        %5119 = vmatprep.subr.mxu0 0.0
        %5120 = vmatpush2.xpose.msra.mxu0 0.0
        %5121 = vmatprep.subr.mxu0 0.0
        %5122 = vmatpush2.xpose.msra.mxu0 0.0
        %5123 = vmatprep.subr.mxu0 0.0
        %5124 = vmatpush2.xpose.msra.mxu0 0.0
        %5125 = vmatprep.subr.mxu0 0.0
        %5126 = vmatpush2.xpose.msra.mxu0 0.0
        %5127 = vmatprep.subr.mxu0 0.0
        %5128 = vmatpush2.xpose.msra.mxu0 0.0
        %5129 = vmatprep.subr.mxu0 0.0
        %5130 = vmatpush2.xpose.msra.mxu0 0.0
        %5131 = vmatprep.subr.mxu0 0.0
        %5132 = vmatpush2.xpose.msra.mxu0 0.0
        %5133 = vmatprep.subr.mxu0 0.0
        %5134 = vmatpush2.xpose.msra.mxu0 0.0
        %5135 = vmatprep.mubr.f32.mxu0 0.0
        %5136 = vmatmul.mubr.f32.gmra.mxu0 %v5067
        %v5137 = vpop.f32.mrf.mxu0
        %v5138 = vadd.f32 0.0, %v5137
        %v5139 = vpop.f32.mrf.mxu0
        %5140 = vdwg.mxu0
        %v5141 = vmul.f32 %v5138, 0.35355338
        %v5142 = vadd.f32 %v5141, %v1478
        %v5143 = vsel %vm1398, %v5142, -inf
        %5144 = vmax.xlane.f32.xlu0 %v5143
        %v5145 = vpop.xlane.xlu0 %5144
        %v5146 = vsub.f32 %v5142, %v5145
        %v5147 = vmul.f32 %v5146, 1.442695
        %v5148 = vpow.pop %v5147
        %v5149 = vsel %vm1398, %v5148, 0.0
        %5150 = vadd.xlane.f32.xlu0 %v5149
        %v5151 = vpop.xlane.xlu0 %5150
        %v5152 = vrcp.pop %v5151
        %v5153 = vmul.f32 %v5148, %v5152
        %5154 = vrot.lane.b32.xlu0 %v4561, 72
        %v5155 = vpop.permute.xlu0 %5154
        %v5158 = vsel %vm1398, %v5153, 0
        %5160 = vmatprep.subr.mxu0 0.0
        %5161 = vmatpush1.msra.mxu0 0.0
        %5162 = vmatprep.subr.mxu0 0.0
        %5163 = vmatpush1.msra.mxu0 0.0
        %5164 = vmatprep.subr.mxu0 0.0
        %5165 = vmatpush1.msra.mxu0 0.0
        %5166 = vmatprep.subr.mxu0 0.0
        %5167 = vmatpush1.msra.mxu0 0.0
        %5168 = vmatprep.subr.mxu0 0.0
        %5169 = vmatpush1.msra.mxu0 0.0
        %5170 = vmatprep.subr.mxu0 0.0
        %5171 = vmatpush1.msra.mxu0 0.0
        %5172 = vmatprep.subr.mxu0 0.0
        %5173 = vmatpush1.msra.mxu0 0.0
        %5174 = vmatprep.subr.mxu0 0.0
        %5175 = vmatpush1.msra.mxu0 0.0
        %5176 = vmatprep.subr.mxu0 0.0
        %5177 = vmatpush1.msra.mxu0 0.0
        %5178 = vmatprep.subr.mxu0 0.0
        %5179 = vmatpush1.msra.mxu0 0.0
        %5180 = vmatprep.subr.mxu0 0.0
        %5181 = vmatpush1.msra.mxu0 0.0
        %5182 = vmatprep.subr.mxu0 0.0
        %5183 = vmatpush1.msra.mxu0 0.0
        %5184 = vmatprep.subr.mxu0 0.0
        %5185 = vmatpush1.msra.mxu0 0.0
        %5186 = vmatprep.subr.mxu0 0.0
        %5187 = vmatpush1.msra.mxu0 0.0
        %5188 = vmatprep.subr.mxu0 0.0
        %5189 = vmatpush1.msra.mxu0 0.0
        %5190 = vmatprep.subr.mxu0 0.0
        %5191 = vmatpush1.msra.mxu0 %v5155
        %5192 = vmatprep.subr.mxu0 0.0
        %5193 = vmatpush2.msra.mxu0 0.0
        %5194 = vmatprep.subr.mxu0 0.0
        %5195 = vmatpush2.msra.mxu0 0.0
        %5196 = vmatprep.subr.mxu0 0.0
        %5197 = vmatpush2.msra.mxu0 0.0
        %5198 = vmatprep.subr.mxu0 0.0
        %5199 = vmatpush2.msra.mxu0 0.0
        %5200 = vmatprep.subr.mxu0 0.0
        %5201 = vmatpush2.msra.mxu0 0.0
        %5202 = vmatprep.subr.mxu0 0.0
        %5203 = vmatpush2.msra.mxu0 0.0
        %5204 = vmatprep.subr.mxu0 0.0
        %5205 = vmatpush2.msra.mxu0 0.0
        %5206 = vmatprep.subr.mxu0 0.0
        %5207 = vmatpush2.msra.mxu0 0.0
        %5208 = vmatprep.subr.mxu0 0.0
        %5209 = vmatpush2.msra.mxu0 0.0
        %5210 = vmatprep.subr.mxu0 0.0
        %5211 = vmatpush2.msra.mxu0 0.0
        %5212 = vmatprep.subr.mxu0 0.0
        %5213 = vmatpush2.msra.mxu0 0.0
        %5214 = vmatprep.subr.mxu0 0.0
        %5215 = vmatpush2.msra.mxu0 0.0
        %5216 = vmatprep.subr.mxu0 0.0
        %5217 = vmatpush2.msra.mxu0 0.0
        %5218 = vmatprep.subr.mxu0 0.0
        %5219 = vmatpush2.msra.mxu0 0.0
        %5220 = vmatprep.subr.mxu0 0.0
        %5221 = vmatpush2.msra.mxu0 0.0
        %5222 = vmatprep.subr.mxu0 0.0
        %5223 = vmatpush2.msra.mxu0 0.0
        %5224 = vmatprep.mubr.f32.mxu0 0.0
        %5225 = vmatmul.mubr.f32.gmra.mxu0 %v5158
        %v5226 = vpop.f32.mrf.mxu0
        %v5227 = vadd.f32 0.0, %v5226
        %v5228 = vpop.f32.mrf.mxu0
        %5229 = vdwg.mxu0
        %5231 = vrot.lane.b32.xlu0 %v4893, 8
        %v5232 = vpop.permute.xlu0 %5231
        %5235 = vrot.lane.b32.xlu0 %v5060, 16
        %v5236 = vpop.permute.xlu0 %5235
        %5239 = vrot.lane.b32.xlu0 %v5227, 24
        %v5240 = vpop.permute.xlu0 %5239
        %v5242 = vsel %vm1398, %v4726, %v5232
        %v5243 = vsel %vm2082, %v5242, %v5236
        %v5244 = vsel %vm2084, %v5243, %v5240
        %v5245 = vld [vmem:[%s61] sm:$0xff]
        %v5246 = vld [vmem:[%s61 + $0x8] sm:$0xff]
        %v5247 = vld [vmem:[%s61 + $0x10] sm:$0xff]
        %v5248 = vld [vmem:[%s61 + $0x18] sm:$0xff]
        %v5249 = vld [vmem:[%s63] sm:$0x1]
        %v5250 = vlaneseq
        %v5251 = vshrl.u32 %v5250, 7
        %v5252 = vsub.s32 0, %v5251
        %v5253 = vrot.slane %v5249, %v5252
        %v5255 = vsel %vm1276, %v5244, 0
        %5257 = vmatprep.subr.mxu0 0.0
        %5258 = vmatpush1.msra.mxu0 0.0
        %5259 = vmatprep.subr.mxu0 0.0
        %5260 = vmatpush1.msra.mxu0 0.0
        %5261 = vmatprep.subr.mxu0 0.0
        %5262 = vmatpush1.msra.mxu0 0.0
        %5263 = vmatprep.subr.mxu0 0.0
        %5264 = vmatpush1.msra.mxu0 0.0
        %5265 = vmatprep.subr.mxu0 0.0
        %5266 = vmatpush1.msra.mxu0 0.0
        %5267 = vmatprep.subr.mxu0 0.0
        %5268 = vmatpush1.msra.mxu0 0.0
        %5269 = vmatprep.subr.mxu0 0.0
        %5270 = vmatpush1.msra.mxu0 0.0
        %5271 = vmatprep.subr.mxu0 0.0
        %5272 = vmatpush1.msra.mxu0 0.0
        %5273 = vmatprep.subr.mxu0 0.0
        %5274 = vmatpush1.msra.mxu0 0.0
        %5275 = vmatprep.subr.mxu0 0.0
        %5276 = vmatpush1.msra.mxu0 0.0
        %5277 = vmatprep.subr.mxu0 0.0
        %5278 = vmatpush1.msra.mxu0 0.0
        %5279 = vmatprep.subr.mxu0 0.0
        %5280 = vmatpush1.msra.mxu0 0.0
        %5281 = vmatprep.subr.mxu0 0.0
        %5282 = vmatpush1.msra.mxu0 %v5248
        %5283 = vmatprep.subr.mxu0 0.0
        %5284 = vmatpush1.msra.mxu0 %v5247
        %5285 = vmatprep.subr.mxu0 0.0
        %5286 = vmatpush1.msra.mxu0 %v5246
        %5287 = vmatprep.subr.mxu0 0.0
        %5288 = vmatpush1.msra.mxu0 %v5245
        %5289 = vmatprep.subr.mxu0 0.0
        %5290 = vmatpush2.msra.mxu0 0.0
        %5291 = vmatprep.subr.mxu0 0.0
        %5292 = vmatpush2.msra.mxu0 0.0
        %5293 = vmatprep.subr.mxu0 0.0
        %5294 = vmatpush2.msra.mxu0 0.0
        %5295 = vmatprep.subr.mxu0 0.0
        %5296 = vmatpush2.msra.mxu0 0.0
        %5297 = vmatprep.subr.mxu0 0.0
        %5298 = vmatpush2.msra.mxu0 0.0
        %5299 = vmatprep.subr.mxu0 0.0
        %5300 = vmatpush2.msra.mxu0 0.0
        %5301 = vmatprep.subr.mxu0 0.0
        %5302 = vmatpush2.msra.mxu0 0.0
        %5303 = vmatprep.subr.mxu0 0.0
        %5304 = vmatpush2.msra.mxu0 0.0
        %5305 = vmatprep.subr.mxu0 0.0
        %5306 = vmatpush2.msra.mxu0 0.0
        %5307 = vmatprep.subr.mxu0 0.0
        %5308 = vmatpush2.msra.mxu0 0.0
        %5309 = vmatprep.subr.mxu0 0.0
        %5310 = vmatpush2.msra.mxu0 0.0
        %5311 = vmatprep.subr.mxu0 0.0
        %5312 = vmatpush2.msra.mxu0 0.0
        %5313 = vmatprep.subr.mxu0 0.0
        %5314 = vmatpush2.msra.mxu0 0.0
        %5315 = vmatprep.subr.mxu0 0.0
        %5316 = vmatpush2.msra.mxu0 0.0
        %5317 = vmatprep.subr.mxu0 0.0
        %5318 = vmatpush2.msra.mxu0 0.0
        %5319 = vmatprep.subr.mxu0 0.0
        %5320 = vmatpush2.msra.mxu0 0.0
        %5321 = vmatprep.mubr.f32.mxu0 0.0
        %5322 = vmatmul.mubr.f32.gmra.mxu0 %v5255
        %v5323 = vpop.f32.mrf.mxu0
        %v5324 = vadd.f32 %v5253, %v5323
        %v5325 = vpop.f32.mrf.mxu0
        %5326 = vdwg.mxu0
        %v5327 = vadd.f32 %v4367, %v5324
        %v5328 = vld [vmem:[%s65] sm:$0x1]
        %v5329 = vld [vmem:[%s67] sm:$0x1]
        %v5330 = vsel %vm1276, %v5327, 0.0
        %5331 = vadd.xlane.f32.xlu0 %v5330
        %v5332 = vpop.xlane.xlu0 %5331
        %v5333 = vmul.f32 %v5332, %v1280
        %v5334 = vsub.f32 %v5327, %v5333
        %v5335 = vmul.f32 %v5334, %v5334
        %v5336 = vsel %vm1276, %v5335, 0.0
        %5337 = vadd.xlane.f32.xlu0 %v5336
        %v5338 = vpop.xlane.xlu0 %5337
        %v5339 = vmul.f32 %v5338, 0.032258064
        %v5340 = vrsqrt.pop %v5339
        %v5341 = vmul.f32 %v5339, %v5340
        %vm5342 = vcmp.eq.f32.partialorder %v5339, inf
        %v5343 = vsel %vm5342, %v5339, %v5341
        %vm5344 = vcmp.eq.f32.partialorder %v5339, 0.0
        %v5345 = vand.u32 %v5339, 2147483648
        %v5346 = vsel %vm5344, %v5345, %v5343
        %v5347 = vadd.f32 %v5346, 1e-06
        %v5348 = vrcp.pop %v5347
        %v5349 = vlaneseq
        %v5350 = vshrl.u32 %v5349, 7
        %v5351 = vsub.s32 0, %v5350
        %v5352 = vrot.slane %v5328, %v5351
        %v5353 = vmul.f32 %v5352, %v5334
        %v5354 = vmul.f32 %v5353, %v5348
        %v5355 = vlaneseq
        %v5356 = vshrl.u32 %v5355, 7
        %v5357 = vsub.s32 0, %v5356
        %v5358 = vrot.slane %v5329, %v5357
        %v5359 = vadd.f32 %v5354, %v5358
        %v5360 = vld [vmem:[%s69] sm:$0xff]
        %v5361 = vld [vmem:[%s69 + $0x8] sm:$0xff]
        %v5362 = vld [vmem:[%s69 + $0x10] sm:$0xff]
        %v5363 = vld [vmem:[%s69 + $0x18] sm:$0xff]
        %v5364 = vld [vmem:[%s71] sm:$0x1]
        %v5365 = vld [vmem:[%s73] sm:$0xff]
        %v5366 = vld [vmem:[%s73 + $0x8] sm:$0xff]
        %v5367 = vld [vmem:[%s73 + $0x10] sm:$0xff]
        %v5368 = vld [vmem:[%s73 + $0x18] sm:$0xff]
        %v5369 = vld [vmem:[%s73 + $0x20] sm:$0xff]
        %v5370 = vld [vmem:[%s73 + $0x28] sm:$0xff]
        %v5371 = vld [vmem:[%s73 + $0x30] sm:$0xff]
        %v5372 = vld [vmem:[%s73 + $0x38] sm:$0xff]
        %v5373 = vld [vmem:[%s75] sm:$0x1]
        %v5374 = vlaneseq
        %v5375 = vshrl.u32 %v5374, 7
        %v5376 = vsub.s32 0, %v5375
        %v5377 = vrot.slane %v5364, %v5376
        %v5379 = vsel %vm1276, %v5359, 0
        %5381 = vmatprep.subr.mxu0 0.0
        %5382 = vmatpush1.msra.mxu0 0.0
        %5383 = vmatprep.subr.mxu0 0.0
        %5384 = vmatpush1.msra.mxu0 0.0
        %5385 = vmatprep.subr.mxu0 0.0
        %5386 = vmatpush1.msra.mxu0 0.0
        %5387 = vmatprep.subr.mxu0 0.0
        %5388 = vmatpush1.msra.mxu0 0.0
        %5389 = vmatprep.subr.mxu0 0.0
        %5390 = vmatpush1.msra.mxu0 0.0
        %5391 = vmatprep.subr.mxu0 0.0
        %5392 = vmatpush1.msra.mxu0 0.0
        %5393 = vmatprep.subr.mxu0 0.0
        %5394 = vmatpush1.msra.mxu0 0.0
        %5395 = vmatprep.subr.mxu0 0.0
        %5396 = vmatpush1.msra.mxu0 0.0
        %5397 = vmatprep.subr.mxu0 0.0
        %5398 = vmatpush1.msra.mxu0 0.0
        %5399 = vmatprep.subr.mxu0 0.0
        %5400 = vmatpush1.msra.mxu0 0.0
        %5401 = vmatprep.subr.mxu0 0.0
        %5402 = vmatpush1.msra.mxu0 0.0
        %5403 = vmatprep.subr.mxu0 0.0
        %5404 = vmatpush1.msra.mxu0 0.0
        %5405 = vmatprep.subr.mxu0 0.0
        %5406 = vmatpush1.msra.mxu0 %v5363
        %5407 = vmatprep.subr.mxu0 0.0
        %5408 = vmatpush1.msra.mxu0 %v5362
        %5409 = vmatprep.subr.mxu0 0.0
        %5410 = vmatpush1.msra.mxu0 %v5361
        %5411 = vmatprep.subr.mxu0 0.0
        %5412 = vmatpush1.msra.mxu0 %v5360
        %5413 = vmatprep.subr.mxu0 0.0
        %5414 = vmatpush2.msra.mxu0 0.0
        %5415 = vmatprep.subr.mxu0 0.0
        %5416 = vmatpush2.msra.mxu0 0.0
        %5417 = vmatprep.subr.mxu0 0.0
        %5418 = vmatpush2.msra.mxu0 0.0
        %5419 = vmatprep.subr.mxu0 0.0
        %5420 = vmatpush2.msra.mxu0 0.0
        %5421 = vmatprep.subr.mxu0 0.0
        %5422 = vmatpush2.msra.mxu0 0.0
        %5423 = vmatprep.subr.mxu0 0.0
        %5424 = vmatpush2.msra.mxu0 0.0
        %5425 = vmatprep.subr.mxu0 0.0
        %5426 = vmatpush2.msra.mxu0 0.0
        %5427 = vmatprep.subr.mxu0 0.0
        %5428 = vmatpush2.msra.mxu0 0.0
        %5429 = vmatprep.subr.mxu0 0.0
        %5430 = vmatpush2.msra.mxu0 0.0
        %5431 = vmatprep.subr.mxu0 0.0
        %5432 = vmatpush2.msra.mxu0 0.0
        %5433 = vmatprep.subr.mxu0 0.0
        %5434 = vmatpush2.msra.mxu0 0.0
        %5435 = vmatprep.subr.mxu0 0.0
        %5436 = vmatpush2.msra.mxu0 0.0
        %5437 = vmatprep.subr.mxu0 0.0
        %5438 = vmatpush2.msra.mxu0 0.0
        %5439 = vmatprep.subr.mxu0 0.0
        %5440 = vmatpush2.msra.mxu0 0.0
        %5441 = vmatprep.subr.mxu0 0.0
        %5442 = vmatpush2.msra.mxu0 0.0
        %5443 = vmatprep.subr.mxu0 0.0
        %5444 = vmatpush2.msra.mxu0 0.0
        %5445 = vmatprep.mubr.f32.mxu0 0.0
        %5446 = vmatmul.mubr.f32.gmra.mxu0 %v5379
        %v5447 = vpop.f32.mrf.mxu0
        %v5448 = vadd.f32 %v5377, %v5447
        %v5449 = vpop.f32.mrf.mxu0
        %5450 = vdwg.mxu0
        %v5451 = vmax.f32 %v5448, 0.0
        %v5452 = vlaneseq
        %v5453 = vshrl.u32 %v5452, 7
        %v5454 = vsub.s32 0, %v5453
        %v5455 = vrot.slane %v5373, %v5454
        %v5457 = vsel %vm2292, %v5451, 0
        %5459 = vmatprep.subr.mxu0 0.0
        %5460 = vmatpush1.msra.mxu0 0.0
        %5461 = vmatprep.subr.mxu0 0.0
        %5462 = vmatpush1.msra.mxu0 0.0
        %5463 = vmatprep.subr.mxu0 0.0
        %5464 = vmatpush1.msra.mxu0 0.0
        %5465 = vmatprep.subr.mxu0 0.0
        %5466 = vmatpush1.msra.mxu0 0.0
        %5467 = vmatprep.subr.mxu0 0.0
        %5468 = vmatpush1.msra.mxu0 0.0
        %5469 = vmatprep.subr.mxu0 0.0
        %5470 = vmatpush1.msra.mxu0 0.0
        %5471 = vmatprep.subr.mxu0 0.0
        %5472 = vmatpush1.msra.mxu0 0.0
        %5473 = vmatprep.subr.mxu0 0.0
        %5474 = vmatpush1.msra.mxu0 0.0
        %5475 = vmatprep.subr.mxu0 0.0
        %5476 = vmatpush1.msra.mxu0 %v5372
        %5477 = vmatprep.subr.mxu0 0.0
        %5478 = vmatpush1.msra.mxu0 %v5371
        %5479 = vmatprep.subr.mxu0 0.0
        %5480 = vmatpush1.msra.mxu0 %v5370
        %5481 = vmatprep.subr.mxu0 0.0
        %5482 = vmatpush1.msra.mxu0 %v5369
        %5483 = vmatprep.subr.mxu0 0.0
        %5484 = vmatpush1.msra.mxu0 %v5368
        %5485 = vmatprep.subr.mxu0 0.0
        %5486 = vmatpush1.msra.mxu0 %v5367
        %5487 = vmatprep.subr.mxu0 0.0
        %5488 = vmatpush1.msra.mxu0 %v5366
        %5489 = vmatprep.subr.mxu0 0.0
        %5490 = vmatpush1.msra.mxu0 %v5365
        %5491 = vmatprep.subr.mxu0 0.0
        %5492 = vmatpush2.msra.mxu0 0.0
        %5493 = vmatprep.subr.mxu0 0.0
        %5494 = vmatpush2.msra.mxu0 0.0
        %5495 = vmatprep.subr.mxu0 0.0
        %5496 = vmatpush2.msra.mxu0 0.0
        %5497 = vmatprep.subr.mxu0 0.0
        %5498 = vmatpush2.msra.mxu0 0.0
        %5499 = vmatprep.subr.mxu0 0.0
        %5500 = vmatpush2.msra.mxu0 0.0
        %5501 = vmatprep.subr.mxu0 0.0
        %5502 = vmatpush2.msra.mxu0 0.0
        %5503 = vmatprep.subr.mxu0 0.0
        %5504 = vmatpush2.msra.mxu0 0.0
        %5505 = vmatprep.subr.mxu0 0.0
        %5506 = vmatpush2.msra.mxu0 0.0
        %5507 = vmatprep.subr.mxu0 0.0
        %5508 = vmatpush2.msra.mxu0 0.0
        %5509 = vmatprep.subr.mxu0 0.0
        %5510 = vmatpush2.msra.mxu0 0.0
        %5511 = vmatprep.subr.mxu0 0.0
        %5512 = vmatpush2.msra.mxu0 0.0
        %5513 = vmatprep.subr.mxu0 0.0
        %5514 = vmatpush2.msra.mxu0 0.0
        %5515 = vmatprep.subr.mxu0 0.0
        %5516 = vmatpush2.msra.mxu0 0.0
        %5517 = vmatprep.subr.mxu0 0.0
        %5518 = vmatpush2.msra.mxu0 0.0
        %5519 = vmatprep.subr.mxu0 0.0
        %5520 = vmatpush2.msra.mxu0 0.0
        %5521 = vmatprep.subr.mxu0 0.0
        %5522 = vmatpush2.msra.mxu0 0.0
        %5523 = vmatprep.mubr.f32.mxu0 0.0
        %5524 = vmatmul.mubr.f32.gmra.mxu0 %v5457
        %v5525 = vpop.f32.mrf.mxu0
        %v5526 = vadd.f32 %v5455, %v5525
        %v5527 = vpop.f32.mrf.mxu0
        %5528 = vdwg.mxu0
        %v5529 = vadd.f32 %v5327, %v5526
        %v5530 = vld [vmem:[%s37 + $0x1] sm:$0x1]
        %v5531 = vld [vmem:[%s39 + $0x1] sm:$0x1]
        %v5532 = vsel %vm1276, %v5529, 0.0
        %5533 = vadd.xlane.f32.xlu0 %v5532
        %v5534 = vpop.xlane.xlu0 %5533
        %v5535 = vmul.f32 %v5534, %v1280
        %v5536 = vsub.f32 %v5529, %v5535
        %v5537 = vmul.f32 %v5536, %v5536
        %v5538 = vsel %vm1276, %v5537, 0.0
        %5539 = vadd.xlane.f32.xlu0 %v5538
        %v5540 = vpop.xlane.xlu0 %5539
        %v5541 = vmul.f32 %v5540, 0.032258064
        %v5542 = vrsqrt.pop %v5541
        %v5543 = vmul.f32 %v5541, %v5542
        %vm5544 = vcmp.eq.f32.partialorder %v5541, inf
        %v5545 = vsel %vm5544, %v5541, %v5543
        %vm5546 = vcmp.eq.f32.partialorder %v5541, 0.0
        %v5547 = vand.u32 %v5541, 2147483648
        %v5548 = vsel %vm5546, %v5547, %v5545
        %v5549 = vadd.f32 %v5548, 1e-06
        %v5550 = vrcp.pop %v5549
        %v5551 = vlaneseq
        %v5552 = vshrl.u32 %v5551, 7
        %v5553 = vsub.s32 0, %v5552
        %v5554 = vrot.slane %v5530, %v5553
        %v5555 = vmul.f32 %v5554, %v5536
        %v5556 = vmul.f32 %v5555, %v5550
        %v5557 = vlaneseq
        %v5558 = vshrl.u32 %v5557, 7
        %v5559 = vsub.s32 0, %v5558
        %v5560 = vrot.slane %v5531, %v5559
        %v5561 = vadd.f32 %v5556, %v5560
        %s5562 = scalar_lea.vmem %s41, 32
        %v5563 = vld [vmem:[%s5562] sm:$0xff]
        %v5564 = vld [vmem:[%s5562 + $0x8] sm:$0xff]
        %v5565 = vld [vmem:[%s5562 + $0x10] sm:$0xff]
        %v5566 = vld [vmem:[%s5562 + $0x18] sm:$0xff]
        %v5567 = vld [vmem:[%s43 + $0x1] sm:$0x1]
        %s5568 = scalar_lea.vmem %s45, 32
        %v5569 = vld [vmem:[%s5568] sm:$0xff]
        %v5570 = vld [vmem:[%s5568 + $0x8] sm:$0xff]
        %v5571 = vld [vmem:[%s5568 + $0x10] sm:$0xff]
        %v5572 = vld [vmem:[%s5568 + $0x18] sm:$0xff]
        %v5573 = vld [vmem:[%s47 + $0x1] sm:$0x1]
        %v5574 = vlaneseq
        %v5575 = vshrl.u32 %v5574, 7
        %v5576 = vsub.s32 0, %v5575
        %v5577 = vrot.slane %v5567, %v5576
        %v5579 = vsel %vm1276, %v5561, 0
        %5581 = vmatprep.subr.mxu0 0.0
        %5582 = vmatpush1.msra.mxu0 0.0
        %5583 = vmatprep.subr.mxu0 0.0
        %5584 = vmatpush1.msra.mxu0 0.0
        %5585 = vmatprep.subr.mxu0 0.0
        %5586 = vmatpush1.msra.mxu0 0.0
        %5587 = vmatprep.subr.mxu0 0.0
        %5588 = vmatpush1.msra.mxu0 0.0
        %5589 = vmatprep.subr.mxu0 0.0
        %5590 = vmatpush1.msra.mxu0 0.0
        %5591 = vmatprep.subr.mxu0 0.0
        %5592 = vmatpush1.msra.mxu0 0.0
        %5593 = vmatprep.subr.mxu0 0.0
        %5594 = vmatpush1.msra.mxu0 0.0
        %5595 = vmatprep.subr.mxu0 0.0
        %5596 = vmatpush1.msra.mxu0 0.0
        %5597 = vmatprep.subr.mxu0 0.0
        %5598 = vmatpush1.msra.mxu0 0.0
        %5599 = vmatprep.subr.mxu0 0.0
        %5600 = vmatpush1.msra.mxu0 0.0
        %5601 = vmatprep.subr.mxu0 0.0
        %5602 = vmatpush1.msra.mxu0 0.0
        %5603 = vmatprep.subr.mxu0 0.0
        %5604 = vmatpush1.msra.mxu0 0.0
        %5605 = vmatprep.subr.mxu0 0.0
        %5606 = vmatpush1.msra.mxu0 %v5566
        %5607 = vmatprep.subr.mxu0 0.0
        %5608 = vmatpush1.msra.mxu0 %v5565
        %5609 = vmatprep.subr.mxu0 0.0
        %5610 = vmatpush1.msra.mxu0 %v5564
        %5611 = vmatprep.subr.mxu0 0.0
        %5612 = vmatpush1.msra.mxu0 %v5563
        %5613 = vmatprep.subr.mxu0 0.0
        %5614 = vmatpush2.msra.mxu0 0.0
        %5615 = vmatprep.subr.mxu0 0.0
        %5616 = vmatpush2.msra.mxu0 0.0
        %5617 = vmatprep.subr.mxu0 0.0
        %5618 = vmatpush2.msra.mxu0 0.0
        %5619 = vmatprep.subr.mxu0 0.0
        %5620 = vmatpush2.msra.mxu0 0.0
        %5621 = vmatprep.subr.mxu0 0.0
        %5622 = vmatpush2.msra.mxu0 0.0
        %5623 = vmatprep.subr.mxu0 0.0
        %5624 = vmatpush2.msra.mxu0 0.0
        %5625 = vmatprep.subr.mxu0 0.0
        %5626 = vmatpush2.msra.mxu0 0.0
        %5627 = vmatprep.subr.mxu0 0.0
        %5628 = vmatpush2.msra.mxu0 0.0
        %5629 = vmatprep.subr.mxu0 0.0
        %5630 = vmatpush2.msra.mxu0 0.0
        %5631 = vmatprep.subr.mxu0 0.0
        %5632 = vmatpush2.msra.mxu0 0.0
        %5633 = vmatprep.subr.mxu0 0.0
        %5634 = vmatpush2.msra.mxu0 0.0
        %5635 = vmatprep.subr.mxu0 0.0
        %5636 = vmatpush2.msra.mxu0 0.0
        %5637 = vmatprep.subr.mxu0 0.0
        %5638 = vmatpush2.msra.mxu0 0.0
        %5639 = vmatprep.subr.mxu0 0.0
        %5640 = vmatpush2.msra.mxu0 0.0
        %5641 = vmatprep.subr.mxu0 0.0
        %5642 = vmatpush2.msra.mxu0 0.0
        %5643 = vmatprep.subr.mxu0 0.0
        %5644 = vmatpush2.msra.mxu0 0.0
        %5645 = vmatprep.mubr.f32.mxu0 0.0
        %5646 = vmatmul.mubr.f32.gmra.mxu0 %v5579
        %v5647 = vpop.f32.mrf.mxu0
        %v5648 = vadd.f32 %v5577, %v5647
        %v5649 = vpop.f32.mrf.mxu0
        %5650 = vdwg.mxu0
        %5652 = vrot.lane.b32.xlu0 %v5648, 96
        %v5653 = vpop.permute.xlu0 %5652
        %v5654 = vsel %vm1398, %v5648, 0
        %v5656 = vsel %vm1398, %v5653, 0
        %5658 = vmatprep.subr.mxu0 0.0
        %5659 = vmatpush1.xpose.msra.mxu0 0.0
        %5660 = vmatprep.subr.mxu0 0.0
        %5661 = vmatpush1.xpose.msra.mxu0 0.0
        %5662 = vmatprep.subr.mxu0 0.0
        %5663 = vmatpush1.xpose.msra.mxu0 0.0
        %5664 = vmatprep.subr.mxu0 0.0
        %5665 = vmatpush1.xpose.msra.mxu0 0.0
        %5666 = vmatprep.subr.mxu0 0.0
        %5667 = vmatpush1.xpose.msra.mxu0 0.0
        %5668 = vmatprep.subr.mxu0 0.0
        %5669 = vmatpush1.xpose.msra.mxu0 0.0
        %5670 = vmatprep.subr.mxu0 0.0
        %5671 = vmatpush1.xpose.msra.mxu0 0.0
        %5672 = vmatprep.subr.mxu0 0.0
        %5673 = vmatpush1.xpose.msra.mxu0 0.0
        %5674 = vmatprep.subr.mxu0 0.0
        %5675 = vmatpush1.xpose.msra.mxu0 0.0
        %5676 = vmatprep.subr.mxu0 0.0
        %5677 = vmatpush1.xpose.msra.mxu0 0.0
        %5678 = vmatprep.subr.mxu0 0.0
        %5679 = vmatpush1.xpose.msra.mxu0 0.0
        %5680 = vmatprep.subr.mxu0 0.0
        %5681 = vmatpush1.xpose.msra.mxu0 0.0
        %5682 = vmatprep.subr.mxu0 0.0
        %5683 = vmatpush1.xpose.msra.mxu0 0.0
        %5684 = vmatprep.subr.mxu0 0.0
        %5685 = vmatpush1.xpose.msra.mxu0 0.0
        %5686 = vmatprep.subr.mxu0 0.0
        %5687 = vmatpush1.xpose.msra.mxu0 0.0
        %5688 = vmatprep.subr.mxu0 0.0
        %5689 = vmatpush1.xpose.msra.mxu0 %v5656
        %5690 = vmatprep.subr.mxu0 0.0
        %5691 = vmatpush2.xpose.msra.mxu0 0.0
        %5692 = vmatprep.subr.mxu0 0.0
        %5693 = vmatpush2.xpose.msra.mxu0 0.0
        %5694 = vmatprep.subr.mxu0 0.0
        %5695 = vmatpush2.xpose.msra.mxu0 0.0
        %5696 = vmatprep.subr.mxu0 0.0
        %5697 = vmatpush2.xpose.msra.mxu0 0.0
        %5698 = vmatprep.subr.mxu0 0.0
        %5699 = vmatpush2.xpose.msra.mxu0 0.0
        %5700 = vmatprep.subr.mxu0 0.0
        %5701 = vmatpush2.xpose.msra.mxu0 0.0
        %5702 = vmatprep.subr.mxu0 0.0
        %5703 = vmatpush2.xpose.msra.mxu0 0.0
        %5704 = vmatprep.subr.mxu0 0.0
        %5705 = vmatpush2.xpose.msra.mxu0 0.0
        %5706 = vmatprep.subr.mxu0 0.0
        %5707 = vmatpush2.xpose.msra.mxu0 0.0
        %5708 = vmatprep.subr.mxu0 0.0
        %5709 = vmatpush2.xpose.msra.mxu0 0.0
        %5710 = vmatprep.subr.mxu0 0.0
        %5711 = vmatpush2.xpose.msra.mxu0 0.0
        %5712 = vmatprep.subr.mxu0 0.0
        %5713 = vmatpush2.xpose.msra.mxu0 0.0
        %5714 = vmatprep.subr.mxu0 0.0
        %5715 = vmatpush2.xpose.msra.mxu0 0.0
        %5716 = vmatprep.subr.mxu0 0.0
        %5717 = vmatpush2.xpose.msra.mxu0 0.0
        %5718 = vmatprep.subr.mxu0 0.0
        %5719 = vmatpush2.xpose.msra.mxu0 0.0
        %5720 = vmatprep.subr.mxu0 0.0
        %5721 = vmatpush2.xpose.msra.mxu0 0.0
        %5722 = vmatprep.mubr.f32.mxu0 0.0
        %5723 = vmatmul.mubr.f32.gmra.mxu0 %v5654
        %v5724 = vpop.f32.mrf.mxu0
        %v5725 = vadd.f32 0.0, %v5724
        %v5726 = vpop.f32.mrf.mxu0
        %5727 = vdwg.mxu0
        %v5728 = vmul.f32 %v5725, 0.35355338
        %v5729 = vadd.f32 %v5728, %v1272
        %v5730 = vsel %vm1398, %v5729, -inf
        %5731 = vmax.xlane.f32.xlu0 %v5730
        %v5732 = vpop.xlane.xlu0 %5731
        %v5733 = vsub.f32 %v5729, %v5732
        %v5734 = vmul.f32 %v5733, 1.442695
        %v5735 = vpow.pop %v5734
        %v5736 = vsel %vm1398, %v5735, 0.0
        %5737 = vadd.xlane.f32.xlu0 %v5736
        %v5738 = vpop.xlane.xlu0 %5737
        %v5739 = vrcp.pop %v5738
        %v5740 = vmul.f32 %v5735, %v5739
        %5741 = vrot.lane.b32.xlu0 %v5648, 64
        %v5742 = vpop.permute.xlu0 %5741
        %v5745 = vsel %vm1398, %v5740, 0
        %5747 = vmatprep.subr.mxu0 0.0
        %5748 = vmatpush1.msra.mxu0 0.0
        %5749 = vmatprep.subr.mxu0 0.0
        %5750 = vmatpush1.msra.mxu0 0.0
        %5751 = vmatprep.subr.mxu0 0.0
        %5752 = vmatpush1.msra.mxu0 0.0
        %5753 = vmatprep.subr.mxu0 0.0
        %5754 = vmatpush1.msra.mxu0 0.0
        %5755 = vmatprep.subr.mxu0 0.0
        %5756 = vmatpush1.msra.mxu0 0.0
        %5757 = vmatprep.subr.mxu0 0.0
        %5758 = vmatpush1.msra.mxu0 0.0
        %5759 = vmatprep.subr.mxu0 0.0
        %5760 = vmatpush1.msra.mxu0 0.0
        %5761 = vmatprep.subr.mxu0 0.0
        %5762 = vmatpush1.msra.mxu0 0.0
        %5763 = vmatprep.subr.mxu0 0.0
        %5764 = vmatpush1.msra.mxu0 0.0
        %5765 = vmatprep.subr.mxu0 0.0
        %5766 = vmatpush1.msra.mxu0 0.0
        %5767 = vmatprep.subr.mxu0 0.0
        %5768 = vmatpush1.msra.mxu0 0.0
        %5769 = vmatprep.subr.mxu0 0.0
        %5770 = vmatpush1.msra.mxu0 0.0
        %5771 = vmatprep.subr.mxu0 0.0
        %5772 = vmatpush1.msra.mxu0 0.0
        %5773 = vmatprep.subr.mxu0 0.0
        %5774 = vmatpush1.msra.mxu0 0.0
        %5775 = vmatprep.subr.mxu0 0.0
        %5776 = vmatpush1.msra.mxu0 0.0
        %5777 = vmatprep.subr.mxu0 0.0
        %5778 = vmatpush1.msra.mxu0 %v5742
        %5779 = vmatprep.subr.mxu0 0.0
        %5780 = vmatpush2.msra.mxu0 0.0
        %5781 = vmatprep.subr.mxu0 0.0
        %5782 = vmatpush2.msra.mxu0 0.0
        %5783 = vmatprep.subr.mxu0 0.0
        %5784 = vmatpush2.msra.mxu0 0.0
        %5785 = vmatprep.subr.mxu0 0.0
        %5786 = vmatpush2.msra.mxu0 0.0
        %5787 = vmatprep.subr.mxu0 0.0
        %5788 = vmatpush2.msra.mxu0 0.0
        %5789 = vmatprep.subr.mxu0 0.0
        %5790 = vmatpush2.msra.mxu0 0.0
        %5791 = vmatprep.subr.mxu0 0.0
        %5792 = vmatpush2.msra.mxu0 0.0
        %5793 = vmatprep.subr.mxu0 0.0
        %5794 = vmatpush2.msra.mxu0 0.0
        %5795 = vmatprep.subr.mxu0 0.0
        %5796 = vmatpush2.msra.mxu0 0.0
        %5797 = vmatprep.subr.mxu0 0.0
        %5798 = vmatpush2.msra.mxu0 0.0
        %5799 = vmatprep.subr.mxu0 0.0
        %5800 = vmatpush2.msra.mxu0 0.0
        %5801 = vmatprep.subr.mxu0 0.0
        %5802 = vmatpush2.msra.mxu0 0.0
        %5803 = vmatprep.subr.mxu0 0.0
        %5804 = vmatpush2.msra.mxu0 0.0
        %5805 = vmatprep.subr.mxu0 0.0
        %5806 = vmatpush2.msra.mxu0 0.0
        %5807 = vmatprep.subr.mxu0 0.0
        %5808 = vmatpush2.msra.mxu0 0.0
        %5809 = vmatprep.subr.mxu0 0.0
        %5810 = vmatpush2.msra.mxu0 0.0
        %5811 = vmatprep.mubr.f32.mxu0 0.0
        %5812 = vmatmul.mubr.f32.gmra.mxu0 %v5745
        %v5813 = vpop.f32.mrf.mxu0
        %v5814 = vadd.f32 0.0, %v5813
        %v5815 = vpop.f32.mrf.mxu0
        %5816 = vdwg.mxu0
        %5817 = vrot.lane.b32.xlu0 %v5648, 120
        %v5818 = vpop.permute.xlu0 %5817
        %5819 = vrot.lane.b32.xlu0 %v5648, 88
        %v5820 = vpop.permute.xlu0 %5819
        %v5821 = vsel %vm1398, %v5818, 0
        %v5823 = vsel %vm1398, %v5820, 0
        %5825 = vmatprep.subr.mxu0 0.0
        %5826 = vmatpush1.xpose.msra.mxu0 0.0
        %5827 = vmatprep.subr.mxu0 0.0
        %5828 = vmatpush1.xpose.msra.mxu0 0.0
        %5829 = vmatprep.subr.mxu0 0.0
        %5830 = vmatpush1.xpose.msra.mxu0 0.0
        %5831 = vmatprep.subr.mxu0 0.0
        %5832 = vmatpush1.xpose.msra.mxu0 0.0
        %5833 = vmatprep.subr.mxu0 0.0
        %5834 = vmatpush1.xpose.msra.mxu0 0.0
        %5835 = vmatprep.subr.mxu0 0.0
        %5836 = vmatpush1.xpose.msra.mxu0 0.0
        %5837 = vmatprep.subr.mxu0 0.0
        %5838 = vmatpush1.xpose.msra.mxu0 0.0
        %5839 = vmatprep.subr.mxu0 0.0
        %5840 = vmatpush1.xpose.msra.mxu0 0.0
        %5841 = vmatprep.subr.mxu0 0.0
        %5842 = vmatpush1.xpose.msra.mxu0 0.0
        %5843 = vmatprep.subr.mxu0 0.0
        %5844 = vmatpush1.xpose.msra.mxu0 0.0
        %5845 = vmatprep.subr.mxu0 0.0
        %5846 = vmatpush1.xpose.msra.mxu0 0.0
        %5847 = vmatprep.subr.mxu0 0.0
        %5848 = vmatpush1.xpose.msra.mxu0 0.0
        %5849 = vmatprep.subr.mxu0 0.0
        %5850 = vmatpush1.xpose.msra.mxu0 0.0
        %5851 = vmatprep.subr.mxu0 0.0
        %5852 = vmatpush1.xpose.msra.mxu0 0.0
        %5853 = vmatprep.subr.mxu0 0.0
        %5854 = vmatpush1.xpose.msra.mxu0 0.0
        %5855 = vmatprep.subr.mxu0 0.0
        %5856 = vmatpush1.xpose.msra.mxu0 %v5823
        %5857 = vmatprep.subr.mxu0 0.0
        %5858 = vmatpush2.xpose.msra.mxu0 0.0
        %5859 = vmatprep.subr.mxu0 0.0
        %5860 = vmatpush2.xpose.msra.mxu0 0.0
        %5861 = vmatprep.subr.mxu0 0.0
        %5862 = vmatpush2.xpose.msra.mxu0 0.0
        %5863 = vmatprep.subr.mxu0 0.0
        %5864 = vmatpush2.xpose.msra.mxu0 0.0
        %5865 = vmatprep.subr.mxu0 0.0
        %5866 = vmatpush2.xpose.msra.mxu0 0.0
        %5867 = vmatprep.subr.mxu0 0.0
        %5868 = vmatpush2.xpose.msra.mxu0 0.0
        %5869 = vmatprep.subr.mxu0 0.0
        %5870 = vmatpush2.xpose.msra.mxu0 0.0
        %5871 = vmatprep.subr.mxu0 0.0
        %5872 = vmatpush2.xpose.msra.mxu0 0.0
        %5873 = vmatprep.subr.mxu0 0.0
        %5874 = vmatpush2.xpose.msra.mxu0 0.0
        %5875 = vmatprep.subr.mxu0 0.0
        %5876 = vmatpush2.xpose.msra.mxu0 0.0
        %5877 = vmatprep.subr.mxu0 0.0
        %5878 = vmatpush2.xpose.msra.mxu0 0.0
        %5879 = vmatprep.subr.mxu0 0.0
        %5880 = vmatpush2.xpose.msra.mxu0 0.0
        %5881 = vmatprep.subr.mxu0 0.0
        %5882 = vmatpush2.xpose.msra.mxu0 0.0
        %5883 = vmatprep.subr.mxu0 0.0
        %5884 = vmatpush2.xpose.msra.mxu0 0.0
        %5885 = vmatprep.subr.mxu0 0.0
        %5886 = vmatpush2.xpose.msra.mxu0 0.0
        %5887 = vmatprep.subr.mxu0 0.0
        %5888 = vmatpush2.xpose.msra.mxu0 0.0
        %5889 = vmatprep.mubr.f32.mxu0 0.0
        %5890 = vmatmul.mubr.f32.gmra.mxu0 %v5821
        %v5891 = vpop.f32.mrf.mxu0
        %v5892 = vadd.f32 0.0, %v5891
        %v5893 = vpop.f32.mrf.mxu0
        %5894 = vdwg.mxu0
        %v5895 = vmul.f32 %v5892, 0.35355338
        %v5896 = vadd.f32 %v5895, %v1272
        %v5897 = vsel %vm1398, %v5896, -inf
        %5898 = vmax.xlane.f32.xlu0 %v5897
        %v5899 = vpop.xlane.xlu0 %5898
        %v5900 = vsub.f32 %v5896, %v5899
        %v5901 = vmul.f32 %v5900, 1.442695
        %v5902 = vpow.pop %v5901
        %v5903 = vsel %vm1398, %v5902, 0.0
        %5904 = vadd.xlane.f32.xlu0 %v5903
        %v5905 = vpop.xlane.xlu0 %5904
        %v5906 = vrcp.pop %v5905
        %v5907 = vmul.f32 %v5902, %v5906
        %5908 = vrot.lane.b32.xlu0 %v5648, 56
        %v5909 = vpop.permute.xlu0 %5908
        %v5912 = vsel %vm1398, %v5907, 0
        %5914 = vmatprep.subr.mxu0 0.0
        %5915 = vmatpush1.msra.mxu0 0.0
        %5916 = vmatprep.subr.mxu0 0.0
        %5917 = vmatpush1.msra.mxu0 0.0
        %5918 = vmatprep.subr.mxu0 0.0
        %5919 = vmatpush1.msra.mxu0 0.0
        %5920 = vmatprep.subr.mxu0 0.0
        %5921 = vmatpush1.msra.mxu0 0.0
        %5922 = vmatprep.subr.mxu0 0.0
        %5923 = vmatpush1.msra.mxu0 0.0
        %5924 = vmatprep.subr.mxu0 0.0
        %5925 = vmatpush1.msra.mxu0 0.0
        %5926 = vmatprep.subr.mxu0 0.0
        %5927 = vmatpush1.msra.mxu0 0.0
        %5928 = vmatprep.subr.mxu0 0.0
        %5929 = vmatpush1.msra.mxu0 0.0
        %5930 = vmatprep.subr.mxu0 0.0
        %5931 = vmatpush1.msra.mxu0 0.0
        %5932 = vmatprep.subr.mxu0 0.0
        %5933 = vmatpush1.msra.mxu0 0.0
        %5934 = vmatprep.subr.mxu0 0.0
        %5935 = vmatpush1.msra.mxu0 0.0
        %5936 = vmatprep.subr.mxu0 0.0
        %5937 = vmatpush1.msra.mxu0 0.0
        %5938 = vmatprep.subr.mxu0 0.0
        %5939 = vmatpush1.msra.mxu0 0.0
        %5940 = vmatprep.subr.mxu0 0.0
        %5941 = vmatpush1.msra.mxu0 0.0
        %5942 = vmatprep.subr.mxu0 0.0
        %5943 = vmatpush1.msra.mxu0 0.0
        %5944 = vmatprep.subr.mxu0 0.0
        %5945 = vmatpush1.msra.mxu0 %v5909
        %5946 = vmatprep.subr.mxu0 0.0
        %5947 = vmatpush2.msra.mxu0 0.0
        %5948 = vmatprep.subr.mxu0 0.0
        %5949 = vmatpush2.msra.mxu0 0.0
        %5950 = vmatprep.subr.mxu0 0.0
        %5951 = vmatpush2.msra.mxu0 0.0
        %5952 = vmatprep.subr.mxu0 0.0
        %5953 = vmatpush2.msra.mxu0 0.0
        %5954 = vmatprep.subr.mxu0 0.0
        %5955 = vmatpush2.msra.mxu0 0.0
        %5956 = vmatprep.subr.mxu0 0.0
        %5957 = vmatpush2.msra.mxu0 0.0
        %5958 = vmatprep.subr.mxu0 0.0
        %5959 = vmatpush2.msra.mxu0 0.0
        %5960 = vmatprep.subr.mxu0 0.0
        %5961 = vmatpush2.msra.mxu0 0.0
        %5962 = vmatprep.subr.mxu0 0.0
        %5963 = vmatpush2.msra.mxu0 0.0
        %5964 = vmatprep.subr.mxu0 0.0
        %5965 = vmatpush2.msra.mxu0 0.0
        %5966 = vmatprep.subr.mxu0 0.0
        %5967 = vmatpush2.msra.mxu0 0.0
        %5968 = vmatprep.subr.mxu0 0.0
        %5969 = vmatpush2.msra.mxu0 0.0
        %5970 = vmatprep.subr.mxu0 0.0
        %5971 = vmatpush2.msra.mxu0 0.0
        %5972 = vmatprep.subr.mxu0 0.0
        %5973 = vmatpush2.msra.mxu0 0.0
        %5974 = vmatprep.subr.mxu0 0.0
        %5975 = vmatpush2.msra.mxu0 0.0
        %5976 = vmatprep.subr.mxu0 0.0
        %5977 = vmatpush2.msra.mxu0 0.0
        %5978 = vmatprep.mubr.f32.mxu0 0.0
        %5979 = vmatmul.mubr.f32.gmra.mxu0 %v5912
        %v5980 = vpop.f32.mrf.mxu0
        %v5981 = vadd.f32 0.0, %v5980
        %v5982 = vpop.f32.mrf.mxu0
        %5983 = vdwg.mxu0
        %5984 = vrot.lane.b32.xlu0 %v5648, 112
        %v5985 = vpop.permute.xlu0 %5984
        %5986 = vrot.lane.b32.xlu0 %v5648, 80
        %v5987 = vpop.permute.xlu0 %5986
        %v5988 = vsel %vm1398, %v5985, 0
        %v5990 = vsel %vm1398, %v5987, 0
        %5992 = vmatprep.subr.mxu0 0.0
        %5993 = vmatpush1.xpose.msra.mxu0 0.0
        %5994 = vmatprep.subr.mxu0 0.0
        %5995 = vmatpush1.xpose.msra.mxu0 0.0
        %5996 = vmatprep.subr.mxu0 0.0
        %5997 = vmatpush1.xpose.msra.mxu0 0.0
        %5998 = vmatprep.subr.mxu0 0.0
        %5999 = vmatpush1.xpose.msra.mxu0 0.0
        %6000 = vmatprep.subr.mxu0 0.0
        %6001 = vmatpush1.xpose.msra.mxu0 0.0
        %6002 = vmatprep.subr.mxu0 0.0
        %6003 = vmatpush1.xpose.msra.mxu0 0.0
        %6004 = vmatprep.subr.mxu0 0.0
        %6005 = vmatpush1.xpose.msra.mxu0 0.0
        %6006 = vmatprep.subr.mxu0 0.0
        %6007 = vmatpush1.xpose.msra.mxu0 0.0
        %6008 = vmatprep.subr.mxu0 0.0
        %6009 = vmatpush1.xpose.msra.mxu0 0.0
        %6010 = vmatprep.subr.mxu0 0.0
        %6011 = vmatpush1.xpose.msra.mxu0 0.0
        %6012 = vmatprep.subr.mxu0 0.0
        %6013 = vmatpush1.xpose.msra.mxu0 0.0
        %6014 = vmatprep.subr.mxu0 0.0
        %6015 = vmatpush1.xpose.msra.mxu0 0.0
        %6016 = vmatprep.subr.mxu0 0.0
        %6017 = vmatpush1.xpose.msra.mxu0 0.0
        %6018 = vmatprep.subr.mxu0 0.0
        %6019 = vmatpush1.xpose.msra.mxu0 0.0
        %6020 = vmatprep.subr.mxu0 0.0
        %6021 = vmatpush1.xpose.msra.mxu0 0.0
        %6022 = vmatprep.subr.mxu0 0.0
        %6023 = vmatpush1.xpose.msra.mxu0 %v5990
        %6024 = vmatprep.subr.mxu0 0.0
        %6025 = vmatpush2.xpose.msra.mxu0 0.0
        %6026 = vmatprep.subr.mxu0 0.0
        %6027 = vmatpush2.xpose.msra.mxu0 0.0
        %6028 = vmatprep.subr.mxu0 0.0
        %6029 = vmatpush2.xpose.msra.mxu0 0.0
        %6030 = vmatprep.subr.mxu0 0.0
        %6031 = vmatpush2.xpose.msra.mxu0 0.0
        %6032 = vmatprep.subr.mxu0 0.0
        %6033 = vmatpush2.xpose.msra.mxu0 0.0
        %6034 = vmatprep.subr.mxu0 0.0
        %6035 = vmatpush2.xpose.msra.mxu0 0.0
        %6036 = vmatprep.subr.mxu0 0.0
        %6037 = vmatpush2.xpose.msra.mxu0 0.0
        %6038 = vmatprep.subr.mxu0 0.0
        %6039 = vmatpush2.xpose.msra.mxu0 0.0
        %6040 = vmatprep.subr.mxu0 0.0
        %6041 = vmatpush2.xpose.msra.mxu0 0.0
        %6042 = vmatprep.subr.mxu0 0.0
        %6043 = vmatpush2.xpose.msra.mxu0 0.0
        %6044 = vmatprep.subr.mxu0 0.0
        %6045 = vmatpush2.xpose.msra.mxu0 0.0
        %6046 = vmatprep.subr.mxu0 0.0
        %6047 = vmatpush2.xpose.msra.mxu0 0.0
        %6048 = vmatprep.subr.mxu0 0.0
        %6049 = vmatpush2.xpose.msra.mxu0 0.0
        %6050 = vmatprep.subr.mxu0 0.0
        %6051 = vmatpush2.xpose.msra.mxu0 0.0
        %6052 = vmatprep.subr.mxu0 0.0
        %6053 = vmatpush2.xpose.msra.mxu0 0.0
        %6054 = vmatprep.subr.mxu0 0.0
        %6055 = vmatpush2.xpose.msra.mxu0 0.0
        %6056 = vmatprep.mubr.f32.mxu0 0.0
        %6057 = vmatmul.mubr.f32.gmra.mxu0 %v5988
        %v6058 = vpop.f32.mrf.mxu0
        %v6059 = vadd.f32 0.0, %v6058
        %v6060 = vpop.f32.mrf.mxu0
        %6061 = vdwg.mxu0
        %v6062 = vmul.f32 %v6059, 0.35355338
        %v6063 = vadd.f32 %v6062, %v1272
        %v6064 = vsel %vm1398, %v6063, -inf
        %6065 = vmax.xlane.f32.xlu0 %v6064
        %v6066 = vpop.xlane.xlu0 %6065
        %v6067 = vsub.f32 %v6063, %v6066
        %v6068 = vmul.f32 %v6067, 1.442695
        %v6069 = vpow.pop %v6068
        %v6070 = vsel %vm1398, %v6069, 0.0
        %6071 = vadd.xlane.f32.xlu0 %v6070
        %v6072 = vpop.xlane.xlu0 %6071
        %v6073 = vrcp.pop %v6072
        %v6074 = vmul.f32 %v6069, %v6073
        %6075 = vrot.lane.b32.xlu0 %v5648, 48
        %v6076 = vpop.permute.xlu0 %6075
        %v6079 = vsel %vm1398, %v6074, 0
        %6081 = vmatprep.subr.mxu0 0.0
        %6082 = vmatpush1.msra.mxu0 0.0
        %6083 = vmatprep.subr.mxu0 0.0
        %6084 = vmatpush1.msra.mxu0 0.0
        %6085 = vmatprep.subr.mxu0 0.0
        %6086 = vmatpush1.msra.mxu0 0.0
        %6087 = vmatprep.subr.mxu0 0.0
        %6088 = vmatpush1.msra.mxu0 0.0
        %6089 = vmatprep.subr.mxu0 0.0
        %6090 = vmatpush1.msra.mxu0 0.0
        %6091 = vmatprep.subr.mxu0 0.0
        %6092 = vmatpush1.msra.mxu0 0.0
        %6093 = vmatprep.subr.mxu0 0.0
        %6094 = vmatpush1.msra.mxu0 0.0
        %6095 = vmatprep.subr.mxu0 0.0
        %6096 = vmatpush1.msra.mxu0 0.0
        %6097 = vmatprep.subr.mxu0 0.0
        %6098 = vmatpush1.msra.mxu0 0.0
        %6099 = vmatprep.subr.mxu0 0.0
        %6100 = vmatpush1.msra.mxu0 0.0
        %6101 = vmatprep.subr.mxu0 0.0
        %6102 = vmatpush1.msra.mxu0 0.0
        %6103 = vmatprep.subr.mxu0 0.0
        %6104 = vmatpush1.msra.mxu0 0.0
        %6105 = vmatprep.subr.mxu0 0.0
        %6106 = vmatpush1.msra.mxu0 0.0
        %6107 = vmatprep.subr.mxu0 0.0
        %6108 = vmatpush1.msra.mxu0 0.0
        %6109 = vmatprep.subr.mxu0 0.0
        %6110 = vmatpush1.msra.mxu0 0.0
        %6111 = vmatprep.subr.mxu0 0.0
        %6112 = vmatpush1.msra.mxu0 %v6076
        %6113 = vmatprep.subr.mxu0 0.0
        %6114 = vmatpush2.msra.mxu0 0.0
        %6115 = vmatprep.subr.mxu0 0.0
        %6116 = vmatpush2.msra.mxu0 0.0
        %6117 = vmatprep.subr.mxu0 0.0
        %6118 = vmatpush2.msra.mxu0 0.0
        %6119 = vmatprep.subr.mxu0 0.0
        %6120 = vmatpush2.msra.mxu0 0.0
        %6121 = vmatprep.subr.mxu0 0.0
        %6122 = vmatpush2.msra.mxu0 0.0
        %6123 = vmatprep.subr.mxu0 0.0
        %6124 = vmatpush2.msra.mxu0 0.0
        %6125 = vmatprep.subr.mxu0 0.0
        %6126 = vmatpush2.msra.mxu0 0.0
        %6127 = vmatprep.subr.mxu0 0.0
        %6128 = vmatpush2.msra.mxu0 0.0
        %6129 = vmatprep.subr.mxu0 0.0
        %6130 = vmatpush2.msra.mxu0 0.0
        %6131 = vmatprep.subr.mxu0 0.0
        %6132 = vmatpush2.msra.mxu0 0.0
        %6133 = vmatprep.subr.mxu0 0.0
        %6134 = vmatpush2.msra.mxu0 0.0
        %6135 = vmatprep.subr.mxu0 0.0
        %6136 = vmatpush2.msra.mxu0 0.0
        %6137 = vmatprep.subr.mxu0 0.0
        %6138 = vmatpush2.msra.mxu0 0.0
        %6139 = vmatprep.subr.mxu0 0.0
        %6140 = vmatpush2.msra.mxu0 0.0
        %6141 = vmatprep.subr.mxu0 0.0
        %6142 = vmatpush2.msra.mxu0 0.0
        %6143 = vmatprep.subr.mxu0 0.0
        %6144 = vmatpush2.msra.mxu0 0.0
        %6145 = vmatprep.mubr.f32.mxu0 0.0
        %6146 = vmatmul.mubr.f32.gmra.mxu0 %v6079
        %v6147 = vpop.f32.mrf.mxu0
        %v6148 = vadd.f32 0.0, %v6147
        %v6149 = vpop.f32.mrf.mxu0
        %6150 = vdwg.mxu0
        %6151 = vrot.lane.b32.xlu0 %v5648, 104
        %v6152 = vpop.permute.xlu0 %6151
        %6153 = vrot.lane.b32.xlu0 %v5648, 72
        %v6154 = vpop.permute.xlu0 %6153
        %v6155 = vsel %vm1398, %v6152, 0
        %v6157 = vsel %vm1398, %v6154, 0
        %6159 = vmatprep.subr.mxu0 0.0
        %6160 = vmatpush1.xpose.msra.mxu0 0.0
        %6161 = vmatprep.subr.mxu0 0.0
        %6162 = vmatpush1.xpose.msra.mxu0 0.0
        %6163 = vmatprep.subr.mxu0 0.0
        %6164 = vmatpush1.xpose.msra.mxu0 0.0
        %6165 = vmatprep.subr.mxu0 0.0
        %6166 = vmatpush1.xpose.msra.mxu0 0.0
        %6167 = vmatprep.subr.mxu0 0.0
        %6168 = vmatpush1.xpose.msra.mxu0 0.0
        %6169 = vmatprep.subr.mxu0 0.0
        %6170 = vmatpush1.xpose.msra.mxu0 0.0
        %6171 = vmatprep.subr.mxu0 0.0
        %6172 = vmatpush1.xpose.msra.mxu0 0.0
        %6173 = vmatprep.subr.mxu0 0.0
        %6174 = vmatpush1.xpose.msra.mxu0 0.0
        %6175 = vmatprep.subr.mxu0 0.0
        %6176 = vmatpush1.xpose.msra.mxu0 0.0
        %6177 = vmatprep.subr.mxu0 0.0
        %6178 = vmatpush1.xpose.msra.mxu0 0.0
        %6179 = vmatprep.subr.mxu0 0.0
        %6180 = vmatpush1.xpose.msra.mxu0 0.0
        %6181 = vmatprep.subr.mxu0 0.0
        %6182 = vmatpush1.xpose.msra.mxu0 0.0
        %6183 = vmatprep.subr.mxu0 0.0
        %6184 = vmatpush1.xpose.msra.mxu0 0.0
        %6185 = vmatprep.subr.mxu0 0.0
        %6186 = vmatpush1.xpose.msra.mxu0 0.0
        %6187 = vmatprep.subr.mxu0 0.0
        %6188 = vmatpush1.xpose.msra.mxu0 0.0
        %6189 = vmatprep.subr.mxu0 0.0
        %6190 = vmatpush1.xpose.msra.mxu0 %v6157
        %6191 = vmatprep.subr.mxu0 0.0
        %6192 = vmatpush2.xpose.msra.mxu0 0.0
        %6193 = vmatprep.subr.mxu0 0.0
        %6194 = vmatpush2.xpose.msra.mxu0 0.0
        %6195 = vmatprep.subr.mxu0 0.0
        %6196 = vmatpush2.xpose.msra.mxu0 0.0
        %6197 = vmatprep.subr.mxu0 0.0
        %6198 = vmatpush2.xpose.msra.mxu0 0.0
        %6199 = vmatprep.subr.mxu0 0.0
        %6200 = vmatpush2.xpose.msra.mxu0 0.0
        %6201 = vmatprep.subr.mxu0 0.0
        %6202 = vmatpush2.xpose.msra.mxu0 0.0
        %6203 = vmatprep.subr.mxu0 0.0
        %6204 = vmatpush2.xpose.msra.mxu0 0.0
        %6205 = vmatprep.subr.mxu0 0.0
        %6206 = vmatpush2.xpose.msra.mxu0 0.0
        %6207 = vmatprep.subr.mxu0 0.0
        %6208 = vmatpush2.xpose.msra.mxu0 0.0
        %6209 = vmatprep.subr.mxu0 0.0
        %6210 = vmatpush2.xpose.msra.mxu0 0.0
        %6211 = vmatprep.subr.mxu0 0.0
        %6212 = vmatpush2.xpose.msra.mxu0 0.0
        %6213 = vmatprep.subr.mxu0 0.0
        %6214 = vmatpush2.xpose.msra.mxu0 0.0
        %6215 = vmatprep.subr.mxu0 0.0
        %6216 = vmatpush2.xpose.msra.mxu0 0.0
        %6217 = vmatprep.subr.mxu0 0.0
        %6218 = vmatpush2.xpose.msra.mxu0 0.0
        %6219 = vmatprep.subr.mxu0 0.0
        %6220 = vmatpush2.xpose.msra.mxu0 0.0
        %6221 = vmatprep.subr.mxu0 0.0
        %6222 = vmatpush2.xpose.msra.mxu0 0.0
        %6223 = vmatprep.mubr.f32.mxu0 0.0
        %6224 = vmatmul.mubr.f32.gmra.mxu0 %v6155
        %v6225 = vpop.f32.mrf.mxu0
        %v6226 = vadd.f32 0.0, %v6225
        %v6227 = vpop.f32.mrf.mxu0
        %6228 = vdwg.mxu0
        %v6229 = vmul.f32 %v6226, 0.35355338
        %v6230 = vadd.f32 %v6229, %v1272
        %v6231 = vsel %vm1398, %v6230, -inf
        %6232 = vmax.xlane.f32.xlu0 %v6231
        %v6233 = vpop.xlane.xlu0 %6232
        %v6234 = vsub.f32 %v6230, %v6233
        %v6235 = vmul.f32 %v6234, 1.442695
        %v6236 = vpow.pop %v6235
        %v6237 = vsel %vm1398, %v6236, 0.0
        %6238 = vadd.xlane.f32.xlu0 %v6237
        %v6239 = vpop.xlane.xlu0 %6238
        %v6240 = vrcp.pop %v6239
        %v6241 = vmul.f32 %v6236, %v6240
        %6242 = vrot.lane.b32.xlu0 %v5648, 40
        %v6243 = vpop.permute.xlu0 %6242
        %v6246 = vsel %vm1398, %v6241, 0
        %6248 = vmatprep.subr.mxu0 0.0
        %6249 = vmatpush1.msra.mxu0 0.0
        %6250 = vmatprep.subr.mxu0 0.0
        %6251 = vmatpush1.msra.mxu0 0.0
        %6252 = vmatprep.subr.mxu0 0.0
        %6253 = vmatpush1.msra.mxu0 0.0
        %6254 = vmatprep.subr.mxu0 0.0
        %6255 = vmatpush1.msra.mxu0 0.0
        %6256 = vmatprep.subr.mxu0 0.0
        %6257 = vmatpush1.msra.mxu0 0.0
        %6258 = vmatprep.subr.mxu0 0.0
        %6259 = vmatpush1.msra.mxu0 0.0
        %6260 = vmatprep.subr.mxu0 0.0
        %6261 = vmatpush1.msra.mxu0 0.0
        %6262 = vmatprep.subr.mxu0 0.0
        %6263 = vmatpush1.msra.mxu0 0.0
        %6264 = vmatprep.subr.mxu0 0.0
        %6265 = vmatpush1.msra.mxu0 0.0
        %6266 = vmatprep.subr.mxu0 0.0
        %6267 = vmatpush1.msra.mxu0 0.0
        %6268 = vmatprep.subr.mxu0 0.0
        %6269 = vmatpush1.msra.mxu0 0.0
        %6270 = vmatprep.subr.mxu0 0.0
        %6271 = vmatpush1.msra.mxu0 0.0
        %6272 = vmatprep.subr.mxu0 0.0
        %6273 = vmatpush1.msra.mxu0 0.0
        %6274 = vmatprep.subr.mxu0 0.0
        %6275 = vmatpush1.msra.mxu0 0.0
        %6276 = vmatprep.subr.mxu0 0.0
        %6277 = vmatpush1.msra.mxu0 0.0
        %6278 = vmatprep.subr.mxu0 0.0
        %6279 = vmatpush1.msra.mxu0 %v6243
        %6280 = vmatprep.subr.mxu0 0.0
        %6281 = vmatpush2.msra.mxu0 0.0
        %6282 = vmatprep.subr.mxu0 0.0
        %6283 = vmatpush2.msra.mxu0 0.0
        %6284 = vmatprep.subr.mxu0 0.0
        %6285 = vmatpush2.msra.mxu0 0.0
        %6286 = vmatprep.subr.mxu0 0.0
        %6287 = vmatpush2.msra.mxu0 0.0
        %6288 = vmatprep.subr.mxu0 0.0
        %6289 = vmatpush2.msra.mxu0 0.0
        %6290 = vmatprep.subr.mxu0 0.0
        %6291 = vmatpush2.msra.mxu0 0.0
        %6292 = vmatprep.subr.mxu0 0.0
        %6293 = vmatpush2.msra.mxu0 0.0
        %6294 = vmatprep.subr.mxu0 0.0
        %6295 = vmatpush2.msra.mxu0 0.0
        %6296 = vmatprep.subr.mxu0 0.0
        %6297 = vmatpush2.msra.mxu0 0.0
        %6298 = vmatprep.subr.mxu0 0.0
        %6299 = vmatpush2.msra.mxu0 0.0
        %6300 = vmatprep.subr.mxu0 0.0
        %6301 = vmatpush2.msra.mxu0 0.0
        %6302 = vmatprep.subr.mxu0 0.0
        %6303 = vmatpush2.msra.mxu0 0.0
        %6304 = vmatprep.subr.mxu0 0.0
        %6305 = vmatpush2.msra.mxu0 0.0
        %6306 = vmatprep.subr.mxu0 0.0
        %6307 = vmatpush2.msra.mxu0 0.0
        %6308 = vmatprep.subr.mxu0 0.0
        %6309 = vmatpush2.msra.mxu0 0.0
        %6310 = vmatprep.subr.mxu0 0.0
        %6311 = vmatpush2.msra.mxu0 0.0
        %6312 = vmatprep.mubr.f32.mxu0 0.0
        %6313 = vmatmul.mubr.f32.gmra.mxu0 %v6246
        %v6314 = vpop.f32.mrf.mxu0
        %v6315 = vadd.f32 0.0, %v6314
        %v6316 = vpop.f32.mrf.mxu0
        %6317 = vdwg.mxu0
        %6319 = vrot.lane.b32.xlu0 %v5981, 8
        %v6320 = vpop.permute.xlu0 %6319
        %6323 = vrot.lane.b32.xlu0 %v6148, 16
        %v6324 = vpop.permute.xlu0 %6323
        %6327 = vrot.lane.b32.xlu0 %v6315, 24
        %v6328 = vpop.permute.xlu0 %6327
        %v6330 = vsel %vm1398, %v5814, %v6320
        %v6331 = vsel %vm2082, %v6330, %v6324
        %v6332 = vsel %vm2084, %v6331, %v6328
        %v6333 = vlaneseq
        %v6334 = vshrl.u32 %v6333, 7
        %v6335 = vsub.s32 0, %v6334
        %v6336 = vrot.slane %v5573, %v6335
        %v6338 = vsel %vm1276, %v6332, 0
        %6340 = vmatprep.subr.mxu0 0.0
        %6341 = vmatpush1.msra.mxu0 0.0
        %6342 = vmatprep.subr.mxu0 0.0
        %6343 = vmatpush1.msra.mxu0 0.0
        %6344 = vmatprep.subr.mxu0 0.0
        %6345 = vmatpush1.msra.mxu0 0.0
        %6346 = vmatprep.subr.mxu0 0.0
        %6347 = vmatpush1.msra.mxu0 0.0
        %6348 = vmatprep.subr.mxu0 0.0
        %6349 = vmatpush1.msra.mxu0 0.0
        %6350 = vmatprep.subr.mxu0 0.0
        %6351 = vmatpush1.msra.mxu0 0.0
        %6352 = vmatprep.subr.mxu0 0.0
        %6353 = vmatpush1.msra.mxu0 0.0
        %6354 = vmatprep.subr.mxu0 0.0
        %6355 = vmatpush1.msra.mxu0 0.0
        %6356 = vmatprep.subr.mxu0 0.0
        %6357 = vmatpush1.msra.mxu0 0.0
        %6358 = vmatprep.subr.mxu0 0.0
        %6359 = vmatpush1.msra.mxu0 0.0
        %6360 = vmatprep.subr.mxu0 0.0
        %6361 = vmatpush1.msra.mxu0 0.0
        %6362 = vmatprep.subr.mxu0 0.0
        %6363 = vmatpush1.msra.mxu0 0.0
        %6364 = vmatprep.subr.mxu0 0.0
        %6365 = vmatpush1.msra.mxu0 %v5572
        %6366 = vmatprep.subr.mxu0 0.0
        %6367 = vmatpush1.msra.mxu0 %v5571
        %6368 = vmatprep.subr.mxu0 0.0
        %6369 = vmatpush1.msra.mxu0 %v5570
        %6370 = vmatprep.subr.mxu0 0.0
        %6371 = vmatpush1.msra.mxu0 %v5569
        %6372 = vmatprep.subr.mxu0 0.0
        %6373 = vmatpush2.msra.mxu0 0.0
        %6374 = vmatprep.subr.mxu0 0.0
        %6375 = vmatpush2.msra.mxu0 0.0
        %6376 = vmatprep.subr.mxu0 0.0
        %6377 = vmatpush2.msra.mxu0 0.0
        %6378 = vmatprep.subr.mxu0 0.0
        %6379 = vmatpush2.msra.mxu0 0.0
        %6380 = vmatprep.subr.mxu0 0.0
        %6381 = vmatpush2.msra.mxu0 0.0
        %6382 = vmatprep.subr.mxu0 0.0
        %6383 = vmatpush2.msra.mxu0 0.0
        %6384 = vmatprep.subr.mxu0 0.0
        %6385 = vmatpush2.msra.mxu0 0.0
        %6386 = vmatprep.subr.mxu0 0.0
        %6387 = vmatpush2.msra.mxu0 0.0
        %6388 = vmatprep.subr.mxu0 0.0
        %6389 = vmatpush2.msra.mxu0 0.0
        %6390 = vmatprep.subr.mxu0 0.0
        %6391 = vmatpush2.msra.mxu0 0.0
        %6392 = vmatprep.subr.mxu0 0.0
        %6393 = vmatpush2.msra.mxu0 0.0
        %6394 = vmatprep.subr.mxu0 0.0
        %6395 = vmatpush2.msra.mxu0 0.0
        %6396 = vmatprep.subr.mxu0 0.0
        %6397 = vmatpush2.msra.mxu0 0.0
        %6398 = vmatprep.subr.mxu0 0.0
        %6399 = vmatpush2.msra.mxu0 0.0
        %6400 = vmatprep.subr.mxu0 0.0
        %6401 = vmatpush2.msra.mxu0 0.0
        %6402 = vmatprep.subr.mxu0 0.0
        %6403 = vmatpush2.msra.mxu0 0.0
        %6404 = vmatprep.mubr.f32.mxu0 0.0
        %6405 = vmatmul.mubr.f32.gmra.mxu0 %v6338
        %v6406 = vpop.f32.mrf.mxu0
        %v6407 = vadd.f32 %v6336, %v6406
        %v6408 = vpop.f32.mrf.mxu0
        %6409 = vdwg.mxu0
        %v6410 = vadd.f32 %v5529, %v6407
        %v6411 = vld [vmem:[%s49 + $0x1] sm:$0x1]
        %v6412 = vld [vmem:[%s51 + $0x1] sm:$0x1]
        %v6413 = vsel %vm1276, %v6410, 0.0
        %6414 = vadd.xlane.f32.xlu0 %v6413
        %v6415 = vpop.xlane.xlu0 %6414
        %v6416 = vmul.f32 %v6415, %v1280
        %v6417 = vsub.f32 %v6410, %v6416
        %v6418 = vmul.f32 %v6417, %v6417
        %v6419 = vsel %vm1276, %v6418, 0.0
        %6420 = vadd.xlane.f32.xlu0 %v6419
        %v6421 = vpop.xlane.xlu0 %6420
        %v6422 = vmul.f32 %v6421, 0.032258064
        %v6423 = vrsqrt.pop %v6422
        %v6424 = vmul.f32 %v6422, %v6423
        %vm6425 = vcmp.eq.f32.partialorder %v6422, inf
        %v6426 = vsel %vm6425, %v6422, %v6424
        %vm6427 = vcmp.eq.f32.partialorder %v6422, 0.0
        %v6428 = vand.u32 %v6422, 2147483648
        %v6429 = vsel %vm6427, %v6428, %v6426
        %v6430 = vadd.f32 %v6429, 1e-06
        %v6431 = vrcp.pop %v6430
        %v6432 = vlaneseq
        %v6433 = vshrl.u32 %v6432, 7
        %v6434 = vsub.s32 0, %v6433
        %v6435 = vrot.slane %v6411, %v6434
        %v6436 = vmul.f32 %v6435, %v6417
        %v6437 = vmul.f32 %v6436, %v6431
        %v6438 = vlaneseq
        %v6439 = vshrl.u32 %v6438, 7
        %v6440 = vsub.s32 0, %v6439
        %v6441 = vrot.slane %v6412, %v6440
        %v6442 = vadd.f32 %v6437, %v6441
        %s6443 = scalar_lea.vmem %s53, 32
        %v6444 = vld [vmem:[%s6443] sm:$0xff]
        %v6445 = vld [vmem:[%s6443 + $0x8] sm:$0xff]
        %v6446 = vld [vmem:[%s6443 + $0x10] sm:$0xff]
        %v6447 = vld [vmem:[%s6443 + $0x18] sm:$0xff]
        %v6448 = vld [vmem:[%s55 + $0x1] sm:$0x1]
        %v6449 = vlaneseq
        %v6450 = vshrl.u32 %v6449, 7
        %v6451 = vsub.s32 0, %v6450
        %v6452 = vrot.slane %v6448, %v6451
        %v6454 = vsel %vm1276, %v6442, 0
        %6456 = vmatprep.subr.mxu0 0.0
        %6457 = vmatpush1.msra.mxu0 0.0
        %6458 = vmatprep.subr.mxu0 0.0
        %6459 = vmatpush1.msra.mxu0 0.0
        %6460 = vmatprep.subr.mxu0 0.0
        %6461 = vmatpush1.msra.mxu0 0.0
        %6462 = vmatprep.subr.mxu0 0.0
        %6463 = vmatpush1.msra.mxu0 0.0
        %6464 = vmatprep.subr.mxu0 0.0
        %6465 = vmatpush1.msra.mxu0 0.0
        %6466 = vmatprep.subr.mxu0 0.0
        %6467 = vmatpush1.msra.mxu0 0.0
        %6468 = vmatprep.subr.mxu0 0.0
        %6469 = vmatpush1.msra.mxu0 0.0
        %6470 = vmatprep.subr.mxu0 0.0
        %6471 = vmatpush1.msra.mxu0 0.0
        %6472 = vmatprep.subr.mxu0 0.0
        %6473 = vmatpush1.msra.mxu0 0.0
        %6474 = vmatprep.subr.mxu0 0.0
        %6475 = vmatpush1.msra.mxu0 0.0
        %6476 = vmatprep.subr.mxu0 0.0
        %6477 = vmatpush1.msra.mxu0 0.0
        %6478 = vmatprep.subr.mxu0 0.0
        %6479 = vmatpush1.msra.mxu0 0.0
        %6480 = vmatprep.subr.mxu0 0.0
        %6481 = vmatpush1.msra.mxu0 %v6447
        %6482 = vmatprep.subr.mxu0 0.0
        %6483 = vmatpush1.msra.mxu0 %v6446
        %6484 = vmatprep.subr.mxu0 0.0
        %6485 = vmatpush1.msra.mxu0 %v6445
        %6486 = vmatprep.subr.mxu0 0.0
        %6487 = vmatpush1.msra.mxu0 %v6444
        %6488 = vmatprep.subr.mxu0 0.0
        %6489 = vmatpush2.msra.mxu0 0.0
        %6490 = vmatprep.subr.mxu0 0.0
        %6491 = vmatpush2.msra.mxu0 0.0
        %6492 = vmatprep.subr.mxu0 0.0
        %6493 = vmatpush2.msra.mxu0 0.0
        %6494 = vmatprep.subr.mxu0 0.0
        %6495 = vmatpush2.msra.mxu0 0.0
        %6496 = vmatprep.subr.mxu0 0.0
        %6497 = vmatpush2.msra.mxu0 0.0
        %6498 = vmatprep.subr.mxu0 0.0
        %6499 = vmatpush2.msra.mxu0 0.0
        %6500 = vmatprep.subr.mxu0 0.0
        %6501 = vmatpush2.msra.mxu0 0.0
        %6502 = vmatprep.subr.mxu0 0.0
        %6503 = vmatpush2.msra.mxu0 0.0
        %6504 = vmatprep.subr.mxu0 0.0
        %6505 = vmatpush2.msra.mxu0 0.0
        %6506 = vmatprep.subr.mxu0 0.0
        %6507 = vmatpush2.msra.mxu0 0.0
        %6508 = vmatprep.subr.mxu0 0.0
        %6509 = vmatpush2.msra.mxu0 0.0
        %6510 = vmatprep.subr.mxu0 0.0
        %6511 = vmatpush2.msra.mxu0 0.0
        %6512 = vmatprep.subr.mxu0 0.0
        %6513 = vmatpush2.msra.mxu0 0.0
        %6514 = vmatprep.subr.mxu0 0.0
        %6515 = vmatpush2.msra.mxu0 0.0
        %6516 = vmatprep.subr.mxu0 0.0
        %6517 = vmatpush2.msra.mxu0 0.0
        %6518 = vmatprep.subr.mxu0 0.0
        %6519 = vmatpush2.msra.mxu0 0.0
        %6520 = vmatprep.mubr.f32.mxu0 0.0
        %6521 = vmatmul.mubr.f32.gmra.mxu0 %v6454
        %v6522 = vpop.f32.mrf.mxu0
        %v6523 = vadd.f32 %v6452, %v6522
        %v6524 = vpop.f32.mrf.mxu0
        %6525 = vdwg.mxu0
        %s6526 = scalar_lea.vmem %s57, 32
        %v6527 = vld [vmem:[%s6526] sm:$0xff]
        %v6528 = vld [vmem:[%s6526 + $0x8] sm:$0xff]
        %v6529 = vld [vmem:[%s6526 + $0x10] sm:$0xff]
        %v6530 = vld [vmem:[%s6526 + $0x18] sm:$0xff]
        %v6531 = vld [vmem:[%s59 + $0x1] sm:$0x1]
        %v6532 = vlaneseq
        %v6533 = vshrl.u32 %v6532, 7
        %v6534 = vsub.s32 0, %v6533
        %v6535 = vrot.slane %v6531, %v6534
        %6536 = vmatprep.subr.mxu0 0.0
        %6537 = vmatpush1.msra.mxu0 0.0
        %6538 = vmatprep.subr.mxu0 0.0
        %6539 = vmatpush1.msra.mxu0 0.0
        %6540 = vmatprep.subr.mxu0 0.0
        %6541 = vmatpush1.msra.mxu0 0.0
        %6542 = vmatprep.subr.mxu0 0.0
        %6543 = vmatpush1.msra.mxu0 0.0
        %6544 = vmatprep.subr.mxu0 0.0
        %6545 = vmatpush1.msra.mxu0 0.0
        %6546 = vmatprep.subr.mxu0 0.0
        %6547 = vmatpush1.msra.mxu0 0.0
        %6548 = vmatprep.subr.mxu0 0.0
        %6549 = vmatpush1.msra.mxu0 0.0
        %6550 = vmatprep.subr.mxu0 0.0
        %6551 = vmatpush1.msra.mxu0 0.0
        %6552 = vmatprep.subr.mxu0 0.0
        %6553 = vmatpush1.msra.mxu0 0.0
        %6554 = vmatprep.subr.mxu0 0.0
        %6555 = vmatpush1.msra.mxu0 0.0
        %6556 = vmatprep.subr.mxu0 0.0
        %6557 = vmatpush1.msra.mxu0 0.0
        %6558 = vmatprep.subr.mxu0 0.0
        %6559 = vmatpush1.msra.mxu0 0.0
        %6560 = vmatprep.subr.mxu0 0.0
        %6561 = vmatpush1.msra.mxu0 %v6530
        %6562 = vmatprep.subr.mxu0 0.0
        %6563 = vmatpush1.msra.mxu0 %v6529
        %6564 = vmatprep.subr.mxu0 0.0
        %6565 = vmatpush1.msra.mxu0 %v6528
        %6566 = vmatprep.subr.mxu0 0.0
        %6567 = vmatpush1.msra.mxu0 %v6527
        %6568 = vmatprep.subr.mxu0 0.0
        %6569 = vmatpush2.msra.mxu0 0.0
        %6570 = vmatprep.subr.mxu0 0.0
        %6571 = vmatpush2.msra.mxu0 0.0
        %6572 = vmatprep.subr.mxu0 0.0
        %6573 = vmatpush2.msra.mxu0 0.0
        %6574 = vmatprep.subr.mxu0 0.0
        %6575 = vmatpush2.msra.mxu0 0.0
        %6576 = vmatprep.subr.mxu0 0.0
        %6577 = vmatpush2.msra.mxu0 0.0
        %6578 = vmatprep.subr.mxu0 0.0
        %6579 = vmatpush2.msra.mxu0 0.0
        %6580 = vmatprep.subr.mxu0 0.0
        %6581 = vmatpush2.msra.mxu0 0.0
        %6582 = vmatprep.subr.mxu0 0.0
        %6583 = vmatpush2.msra.mxu0 0.0
        %6584 = vmatprep.subr.mxu0 0.0
        %6585 = vmatpush2.msra.mxu0 0.0
        %6586 = vmatprep.subr.mxu0 0.0
        %6587 = vmatpush2.msra.mxu0 0.0
        %6588 = vmatprep.subr.mxu0 0.0
        %6589 = vmatpush2.msra.mxu0 0.0
        %6590 = vmatprep.subr.mxu0 0.0
        %6591 = vmatpush2.msra.mxu0 0.0
        %6592 = vmatprep.subr.mxu0 0.0
        %6593 = vmatpush2.msra.mxu0 0.0
        %6594 = vmatprep.subr.mxu0 0.0
        %6595 = vmatpush2.msra.mxu0 0.0
        %6596 = vmatprep.subr.mxu0 0.0
        %6597 = vmatpush2.msra.mxu0 0.0
        %6598 = vmatprep.subr.mxu0 0.0
        %6599 = vmatpush2.msra.mxu0 0.0
        %6600 = vmatprep.mubr.f32.mxu0 0.0
        %6601 = vmatmul.mubr.f32.gmra.mxu0 %v4492
        %v6602 = vpop.f32.mrf.mxu0
        %v6603 = vadd.f32 %v6535, %v6602
        %v6604 = vpop.f32.mrf.mxu0
        %6605 = vdwg.mxu0
        %v6607 = vsel %vm1398, %v6523, 0
        %v6610 = vsel %vm1398, %v6603, 0
        %6612 = vmatprep.subr.mxu0 0.0
        %6613 = vmatpush1.xpose.msra.mxu0 0.0
        %6614 = vmatprep.subr.mxu0 0.0
        %6615 = vmatpush1.xpose.msra.mxu0 0.0
        %6616 = vmatprep.subr.mxu0 0.0
        %6617 = vmatpush1.xpose.msra.mxu0 0.0
        %6618 = vmatprep.subr.mxu0 0.0
        %6619 = vmatpush1.xpose.msra.mxu0 0.0
        %6620 = vmatprep.subr.mxu0 0.0
        %6621 = vmatpush1.xpose.msra.mxu0 0.0
        %6622 = vmatprep.subr.mxu0 0.0
        %6623 = vmatpush1.xpose.msra.mxu0 0.0
        %6624 = vmatprep.subr.mxu0 0.0
        %6625 = vmatpush1.xpose.msra.mxu0 0.0
        %6626 = vmatprep.subr.mxu0 0.0
        %6627 = vmatpush1.xpose.msra.mxu0 0.0
        %6628 = vmatprep.subr.mxu0 0.0
        %6629 = vmatpush1.xpose.msra.mxu0 0.0
        %6630 = vmatprep.subr.mxu0 0.0
        %6631 = vmatpush1.xpose.msra.mxu0 0.0
        %6632 = vmatprep.subr.mxu0 0.0
        %6633 = vmatpush1.xpose.msra.mxu0 0.0
        %6634 = vmatprep.subr.mxu0 0.0
        %6635 = vmatpush1.xpose.msra.mxu0 0.0
        %6636 = vmatprep.subr.mxu0 0.0
        %6637 = vmatpush1.xpose.msra.mxu0 0.0
        %6638 = vmatprep.subr.mxu0 0.0
        %6639 = vmatpush1.xpose.msra.mxu0 0.0
        %6640 = vmatprep.subr.mxu0 0.0
        %6641 = vmatpush1.xpose.msra.mxu0 0.0
        %6642 = vmatprep.subr.mxu0 0.0
        %6643 = vmatpush1.xpose.msra.mxu0 %v6610
        %6644 = vmatprep.subr.mxu0 0.0
        %6645 = vmatpush2.xpose.msra.mxu0 0.0
        %6646 = vmatprep.subr.mxu0 0.0
        %6647 = vmatpush2.xpose.msra.mxu0 0.0
        %6648 = vmatprep.subr.mxu0 0.0
        %6649 = vmatpush2.xpose.msra.mxu0 0.0
        %6650 = vmatprep.subr.mxu0 0.0
        %6651 = vmatpush2.xpose.msra.mxu0 0.0
        %6652 = vmatprep.subr.mxu0 0.0
        %6653 = vmatpush2.xpose.msra.mxu0 0.0
        %6654 = vmatprep.subr.mxu0 0.0
        %6655 = vmatpush2.xpose.msra.mxu0 0.0
        %6656 = vmatprep.subr.mxu0 0.0
        %6657 = vmatpush2.xpose.msra.mxu0 0.0
        %6658 = vmatprep.subr.mxu0 0.0
        %6659 = vmatpush2.xpose.msra.mxu0 0.0
        %6660 = vmatprep.subr.mxu0 0.0
        %6661 = vmatpush2.xpose.msra.mxu0 0.0
        %6662 = vmatprep.subr.mxu0 0.0
        %6663 = vmatpush2.xpose.msra.mxu0 0.0
        %6664 = vmatprep.subr.mxu0 0.0
        %6665 = vmatpush2.xpose.msra.mxu0 0.0
        %6666 = vmatprep.subr.mxu0 0.0
        %6667 = vmatpush2.xpose.msra.mxu0 0.0
        %6668 = vmatprep.subr.mxu0 0.0
        %6669 = vmatpush2.xpose.msra.mxu0 0.0
        %6670 = vmatprep.subr.mxu0 0.0
        %6671 = vmatpush2.xpose.msra.mxu0 0.0
        %6672 = vmatprep.subr.mxu0 0.0
        %6673 = vmatpush2.xpose.msra.mxu0 0.0
        %6674 = vmatprep.subr.mxu0 0.0
        %6675 = vmatpush2.xpose.msra.mxu0 0.0
        %6676 = vmatprep.mubr.f32.mxu0 0.0
        %6677 = vmatmul.mubr.f32.gmra.mxu0 %v6607
        %v6678 = vpop.f32.mrf.mxu0
        %v6679 = vadd.f32 0.0, %v6678
        %v6680 = vpop.f32.mrf.mxu0
        %6681 = vdwg.mxu0
        %v6682 = vmul.f32 %v6679, 0.35355338
        %v6683 = vadd.f32 %v6682, %v1478
        %v6684 = vsel %vm1398, %v6683, -inf
        %6685 = vmax.xlane.f32.xlu0 %v6684
        %v6686 = vpop.xlane.xlu0 %6685
        %v6687 = vsub.f32 %v6683, %v6686
        %v6688 = vmul.f32 %v6687, 1.442695
        %v6689 = vpow.pop %v6688
        %v6690 = vsel %vm1398, %v6689, 0.0
        %6691 = vadd.xlane.f32.xlu0 %v6690
        %v6692 = vpop.xlane.xlu0 %6691
        %v6693 = vrcp.pop %v6692
        %v6694 = vmul.f32 %v6689, %v6693
        %6695 = vrot.lane.b32.xlu0 %v6603, 96
        %v6696 = vpop.permute.xlu0 %6695
        %v6699 = vsel %vm1398, %v6694, 0
        %6701 = vmatprep.subr.mxu0 0.0
        %6702 = vmatpush1.msra.mxu0 0.0
        %6703 = vmatprep.subr.mxu0 0.0
        %6704 = vmatpush1.msra.mxu0 0.0
        %6705 = vmatprep.subr.mxu0 0.0
        %6706 = vmatpush1.msra.mxu0 0.0
        %6707 = vmatprep.subr.mxu0 0.0
        %6708 = vmatpush1.msra.mxu0 0.0
        %6709 = vmatprep.subr.mxu0 0.0
        %6710 = vmatpush1.msra.mxu0 0.0
        %6711 = vmatprep.subr.mxu0 0.0
        %6712 = vmatpush1.msra.mxu0 0.0
        %6713 = vmatprep.subr.mxu0 0.0
        %6714 = vmatpush1.msra.mxu0 0.0
        %6715 = vmatprep.subr.mxu0 0.0
        %6716 = vmatpush1.msra.mxu0 0.0
        %6717 = vmatprep.subr.mxu0 0.0
        %6718 = vmatpush1.msra.mxu0 0.0
        %6719 = vmatprep.subr.mxu0 0.0
        %6720 = vmatpush1.msra.mxu0 0.0
        %6721 = vmatprep.subr.mxu0 0.0
        %6722 = vmatpush1.msra.mxu0 0.0
        %6723 = vmatprep.subr.mxu0 0.0
        %6724 = vmatpush1.msra.mxu0 0.0
        %6725 = vmatprep.subr.mxu0 0.0
        %6726 = vmatpush1.msra.mxu0 0.0
        %6727 = vmatprep.subr.mxu0 0.0
        %6728 = vmatpush1.msra.mxu0 0.0
        %6729 = vmatprep.subr.mxu0 0.0
        %6730 = vmatpush1.msra.mxu0 0.0
        %6731 = vmatprep.subr.mxu0 0.0
        %6732 = vmatpush1.msra.mxu0 %v6696
        %6733 = vmatprep.subr.mxu0 0.0
        %6734 = vmatpush2.msra.mxu0 0.0
        %6735 = vmatprep.subr.mxu0 0.0
        %6736 = vmatpush2.msra.mxu0 0.0
        %6737 = vmatprep.subr.mxu0 0.0
        %6738 = vmatpush2.msra.mxu0 0.0
        %6739 = vmatprep.subr.mxu0 0.0
        %6740 = vmatpush2.msra.mxu0 0.0
        %6741 = vmatprep.subr.mxu0 0.0
        %6742 = vmatpush2.msra.mxu0 0.0
        %6743 = vmatprep.subr.mxu0 0.0
        %6744 = vmatpush2.msra.mxu0 0.0
        %6745 = vmatprep.subr.mxu0 0.0
        %6746 = vmatpush2.msra.mxu0 0.0
        %6747 = vmatprep.subr.mxu0 0.0
        %6748 = vmatpush2.msra.mxu0 0.0
        %6749 = vmatprep.subr.mxu0 0.0
        %6750 = vmatpush2.msra.mxu0 0.0
        %6751 = vmatprep.subr.mxu0 0.0
        %6752 = vmatpush2.msra.mxu0 0.0
        %6753 = vmatprep.subr.mxu0 0.0
        %6754 = vmatpush2.msra.mxu0 0.0
        %6755 = vmatprep.subr.mxu0 0.0
        %6756 = vmatpush2.msra.mxu0 0.0
        %6757 = vmatprep.subr.mxu0 0.0
        %6758 = vmatpush2.msra.mxu0 0.0
        %6759 = vmatprep.subr.mxu0 0.0
        %6760 = vmatpush2.msra.mxu0 0.0
        %6761 = vmatprep.subr.mxu0 0.0
        %6762 = vmatpush2.msra.mxu0 0.0
        %6763 = vmatprep.subr.mxu0 0.0
        %6764 = vmatpush2.msra.mxu0 0.0
        %6765 = vmatprep.mubr.f32.mxu0 0.0
        %6766 = vmatmul.mubr.f32.gmra.mxu0 %v6699
        %v6767 = vpop.f32.mrf.mxu0
        %v6768 = vadd.f32 0.0, %v6767
        %v6769 = vpop.f32.mrf.mxu0
        %6770 = vdwg.mxu0
        %6771 = vrot.lane.b32.xlu0 %v6523, 120
        %v6772 = vpop.permute.xlu0 %6771
        %6773 = vrot.lane.b32.xlu0 %v6603, 120
        %v6774 = vpop.permute.xlu0 %6773
        %v6775 = vsel %vm1398, %v6772, 0
        %v6777 = vsel %vm1398, %v6774, 0
        %6779 = vmatprep.subr.mxu0 0.0
        %6780 = vmatpush1.xpose.msra.mxu0 0.0
        %6781 = vmatprep.subr.mxu0 0.0
        %6782 = vmatpush1.xpose.msra.mxu0 0.0
        %6783 = vmatprep.subr.mxu0 0.0
        %6784 = vmatpush1.xpose.msra.mxu0 0.0
        %6785 = vmatprep.subr.mxu0 0.0
        %6786 = vmatpush1.xpose.msra.mxu0 0.0
        %6787 = vmatprep.subr.mxu0 0.0
        %6788 = vmatpush1.xpose.msra.mxu0 0.0
        %6789 = vmatprep.subr.mxu0 0.0
        %6790 = vmatpush1.xpose.msra.mxu0 0.0
        %6791 = vmatprep.subr.mxu0 0.0
        %6792 = vmatpush1.xpose.msra.mxu0 0.0
        %6793 = vmatprep.subr.mxu0 0.0
        %6794 = vmatpush1.xpose.msra.mxu0 0.0
        %6795 = vmatprep.subr.mxu0 0.0
        %6796 = vmatpush1.xpose.msra.mxu0 0.0
        %6797 = vmatprep.subr.mxu0 0.0
        %6798 = vmatpush1.xpose.msra.mxu0 0.0
        %6799 = vmatprep.subr.mxu0 0.0
        %6800 = vmatpush1.xpose.msra.mxu0 0.0
        %6801 = vmatprep.subr.mxu0 0.0
        %6802 = vmatpush1.xpose.msra.mxu0 0.0
        %6803 = vmatprep.subr.mxu0 0.0
        %6804 = vmatpush1.xpose.msra.mxu0 0.0
        %6805 = vmatprep.subr.mxu0 0.0
        %6806 = vmatpush1.xpose.msra.mxu0 0.0
        %6807 = vmatprep.subr.mxu0 0.0
        %6808 = vmatpush1.xpose.msra.mxu0 0.0
        %6809 = vmatprep.subr.mxu0 0.0
        %6810 = vmatpush1.xpose.msra.mxu0 %v6777
        %6811 = vmatprep.subr.mxu0 0.0
        %6812 = vmatpush2.xpose.msra.mxu0 0.0
        %6813 = vmatprep.subr.mxu0 0.0
        %6814 = vmatpush2.xpose.msra.mxu0 0.0
        %6815 = vmatprep.subr.mxu0 0.0
        %6816 = vmatpush2.xpose.msra.mxu0 0.0
        %6817 = vmatprep.subr.mxu0 0.0
        %6818 = vmatpush2.xpose.msra.mxu0 0.0
        %6819 = vmatprep.subr.mxu0 0.0
        %6820 = vmatpush2.xpose.msra.mxu0 0.0
        %6821 = vmatprep.subr.mxu0 0.0
        %6822 = vmatpush2.xpose.msra.mxu0 0.0
        %6823 = vmatprep.subr.mxu0 0.0
        %6824 = vmatpush2.xpose.msra.mxu0 0.0
        %6825 = vmatprep.subr.mxu0 0.0
        %6826 = vmatpush2.xpose.msra.mxu0 0.0
        %6827 = vmatprep.subr.mxu0 0.0
        %6828 = vmatpush2.xpose.msra.mxu0 0.0
        %6829 = vmatprep.subr.mxu0 0.0
        %6830 = vmatpush2.xpose.msra.mxu0 0.0
        %6831 = vmatprep.subr.mxu0 0.0
        %6832 = vmatpush2.xpose.msra.mxu0 0.0
        %6833 = vmatprep.subr.mxu0 0.0
        %6834 = vmatpush2.xpose.msra.mxu0 0.0
        %6835 = vmatprep.subr.mxu0 0.0
        %6836 = vmatpush2.xpose.msra.mxu0 0.0
        %6837 = vmatprep.subr.mxu0 0.0
        %6838 = vmatpush2.xpose.msra.mxu0 0.0
        %6839 = vmatprep.subr.mxu0 0.0
        %6840 = vmatpush2.xpose.msra.mxu0 0.0
        %6841 = vmatprep.subr.mxu0 0.0
        %6842 = vmatpush2.xpose.msra.mxu0 0.0
        %6843 = vmatprep.mubr.f32.mxu0 0.0
        %6844 = vmatmul.mubr.f32.gmra.mxu0 %v6775
        %v6845 = vpop.f32.mrf.mxu0
        %v6846 = vadd.f32 0.0, %v6845
        %v6847 = vpop.f32.mrf.mxu0
        %6848 = vdwg.mxu0
        %v6849 = vmul.f32 %v6846, 0.35355338
        %v6850 = vadd.f32 %v6849, %v1478
        %v6851 = vsel %vm1398, %v6850, -inf
        %6852 = vmax.xlane.f32.xlu0 %v6851
        %v6853 = vpop.xlane.xlu0 %6852
        %v6854 = vsub.f32 %v6850, %v6853
        %v6855 = vmul.f32 %v6854, 1.442695
        %v6856 = vpow.pop %v6855
        %v6857 = vsel %vm1398, %v6856, 0.0
        %6858 = vadd.xlane.f32.xlu0 %v6857
        %v6859 = vpop.xlane.xlu0 %6858
        %v6860 = vrcp.pop %v6859
        %v6861 = vmul.f32 %v6856, %v6860
        %6862 = vrot.lane.b32.xlu0 %v6603, 88
        %v6863 = vpop.permute.xlu0 %6862
        %v6866 = vsel %vm1398, %v6861, 0
        %6868 = vmatprep.subr.mxu0 0.0
        %6869 = vmatpush1.msra.mxu0 0.0
        %6870 = vmatprep.subr.mxu0 0.0
        %6871 = vmatpush1.msra.mxu0 0.0
        %6872 = vmatprep.subr.mxu0 0.0
        %6873 = vmatpush1.msra.mxu0 0.0
        %6874 = vmatprep.subr.mxu0 0.0
        %6875 = vmatpush1.msra.mxu0 0.0
        %6876 = vmatprep.subr.mxu0 0.0
        %6877 = vmatpush1.msra.mxu0 0.0
        %6878 = vmatprep.subr.mxu0 0.0
        %6879 = vmatpush1.msra.mxu0 0.0
        %6880 = vmatprep.subr.mxu0 0.0
        %6881 = vmatpush1.msra.mxu0 0.0
        %6882 = vmatprep.subr.mxu0 0.0
        %6883 = vmatpush1.msra.mxu0 0.0
        %6884 = vmatprep.subr.mxu0 0.0
        %6885 = vmatpush1.msra.mxu0 0.0
        %6886 = vmatprep.subr.mxu0 0.0
        %6887 = vmatpush1.msra.mxu0 0.0
        %6888 = vmatprep.subr.mxu0 0.0
        %6889 = vmatpush1.msra.mxu0 0.0
        %6890 = vmatprep.subr.mxu0 0.0
        %6891 = vmatpush1.msra.mxu0 0.0
        %6892 = vmatprep.subr.mxu0 0.0
        %6893 = vmatpush1.msra.mxu0 0.0
        %6894 = vmatprep.subr.mxu0 0.0
        %6895 = vmatpush1.msra.mxu0 0.0
        %6896 = vmatprep.subr.mxu0 0.0
        %6897 = vmatpush1.msra.mxu0 0.0
        %6898 = vmatprep.subr.mxu0 0.0
        %6899 = vmatpush1.msra.mxu0 %v6863
        %6900 = vmatprep.subr.mxu0 0.0
        %6901 = vmatpush2.msra.mxu0 0.0
        %6902 = vmatprep.subr.mxu0 0.0
        %6903 = vmatpush2.msra.mxu0 0.0
        %6904 = vmatprep.subr.mxu0 0.0
        %6905 = vmatpush2.msra.mxu0 0.0
        %6906 = vmatprep.subr.mxu0 0.0
        %6907 = vmatpush2.msra.mxu0 0.0
        %6908 = vmatprep.subr.mxu0 0.0
        %6909 = vmatpush2.msra.mxu0 0.0
        %6910 = vmatprep.subr.mxu0 0.0
        %6911 = vmatpush2.msra.mxu0 0.0
        %6912 = vmatprep.subr.mxu0 0.0
        %6913 = vmatpush2.msra.mxu0 0.0
        %6914 = vmatprep.subr.mxu0 0.0
        %6915 = vmatpush2.msra.mxu0 0.0
        %6916 = vmatprep.subr.mxu0 0.0
        %6917 = vmatpush2.msra.mxu0 0.0
        %6918 = vmatprep.subr.mxu0 0.0
        %6919 = vmatpush2.msra.mxu0 0.0
        %6920 = vmatprep.subr.mxu0 0.0
        %6921 = vmatpush2.msra.mxu0 0.0
        %6922 = vmatprep.subr.mxu0 0.0
        %6923 = vmatpush2.msra.mxu0 0.0
        %6924 = vmatprep.subr.mxu0 0.0
        %6925 = vmatpush2.msra.mxu0 0.0
        %6926 = vmatprep.subr.mxu0 0.0
        %6927 = vmatpush2.msra.mxu0 0.0
        %6928 = vmatprep.subr.mxu0 0.0
        %6929 = vmatpush2.msra.mxu0 0.0
        %6930 = vmatprep.subr.mxu0 0.0
        %6931 = vmatpush2.msra.mxu0 0.0
        %6932 = vmatprep.mubr.f32.mxu0 0.0
        %6933 = vmatmul.mubr.f32.gmra.mxu0 %v6866
        %v6934 = vpop.f32.mrf.mxu0
        %v6935 = vadd.f32 0.0, %v6934
        %v6936 = vpop.f32.mrf.mxu0
        %6937 = vdwg.mxu0
        %6938 = vrot.lane.b32.xlu0 %v6523, 112
        %v6939 = vpop.permute.xlu0 %6938
        %6940 = vrot.lane.b32.xlu0 %v6603, 112
        %v6941 = vpop.permute.xlu0 %6940
        %v6942 = vsel %vm1398, %v6939, 0
        %v6944 = vsel %vm1398, %v6941, 0
        %6946 = vmatprep.subr.mxu0 0.0
        %6947 = vmatpush1.xpose.msra.mxu0 0.0
        %6948 = vmatprep.subr.mxu0 0.0
        %6949 = vmatpush1.xpose.msra.mxu0 0.0
        %6950 = vmatprep.subr.mxu0 0.0
        %6951 = vmatpush1.xpose.msra.mxu0 0.0
        %6952 = vmatprep.subr.mxu0 0.0
        %6953 = vmatpush1.xpose.msra.mxu0 0.0
        %6954 = vmatprep.subr.mxu0 0.0
        %6955 = vmatpush1.xpose.msra.mxu0 0.0
        %6956 = vmatprep.subr.mxu0 0.0
        %6957 = vmatpush1.xpose.msra.mxu0 0.0
        %6958 = vmatprep.subr.mxu0 0.0
        %6959 = vmatpush1.xpose.msra.mxu0 0.0
        %6960 = vmatprep.subr.mxu0 0.0
        %6961 = vmatpush1.xpose.msra.mxu0 0.0
        %6962 = vmatprep.subr.mxu0 0.0
        %6963 = vmatpush1.xpose.msra.mxu0 0.0
        %6964 = vmatprep.subr.mxu0 0.0
        %6965 = vmatpush1.xpose.msra.mxu0 0.0
        %6966 = vmatprep.subr.mxu0 0.0
        %6967 = vmatpush1.xpose.msra.mxu0 0.0
        %6968 = vmatprep.subr.mxu0 0.0
        %6969 = vmatpush1.xpose.msra.mxu0 0.0
        %6970 = vmatprep.subr.mxu0 0.0
        %6971 = vmatpush1.xpose.msra.mxu0 0.0
        %6972 = vmatprep.subr.mxu0 0.0
        %6973 = vmatpush1.xpose.msra.mxu0 0.0
        %6974 = vmatprep.subr.mxu0 0.0
        %6975 = vmatpush1.xpose.msra.mxu0 0.0
        %6976 = vmatprep.subr.mxu0 0.0
        %6977 = vmatpush1.xpose.msra.mxu0 %v6944
        %6978 = vmatprep.subr.mxu0 0.0
        %6979 = vmatpush2.xpose.msra.mxu0 0.0
        %6980 = vmatprep.subr.mxu0 0.0
        %6981 = vmatpush2.xpose.msra.mxu0 0.0
        %6982 = vmatprep.subr.mxu0 0.0
        %6983 = vmatpush2.xpose.msra.mxu0 0.0
        %6984 = vmatprep.subr.mxu0 0.0
        %6985 = vmatpush2.xpose.msra.mxu0 0.0
        %6986 = vmatprep.subr.mxu0 0.0
        %6987 = vmatpush2.xpose.msra.mxu0 0.0
        %6988 = vmatprep.subr.mxu0 0.0
        %6989 = vmatpush2.xpose.msra.mxu0 0.0
        %6990 = vmatprep.subr.mxu0 0.0
        %6991 = vmatpush2.xpose.msra.mxu0 0.0
        %6992 = vmatprep.subr.mxu0 0.0
        %6993 = vmatpush2.xpose.msra.mxu0 0.0
        %6994 = vmatprep.subr.mxu0 0.0
        %6995 = vmatpush2.xpose.msra.mxu0 0.0
        %6996 = vmatprep.subr.mxu0 0.0
        %6997 = vmatpush2.xpose.msra.mxu0 0.0
        %6998 = vmatprep.subr.mxu0 0.0
        %6999 = vmatpush2.xpose.msra.mxu0 0.0
        %7000 = vmatprep.subr.mxu0 0.0
        %7001 = vmatpush2.xpose.msra.mxu0 0.0
        %7002 = vmatprep.subr.mxu0 0.0
        %7003 = vmatpush2.xpose.msra.mxu0 0.0
        %7004 = vmatprep.subr.mxu0 0.0
        %7005 = vmatpush2.xpose.msra.mxu0 0.0
        %7006 = vmatprep.subr.mxu0 0.0
        %7007 = vmatpush2.xpose.msra.mxu0 0.0
        %7008 = vmatprep.subr.mxu0 0.0
        %7009 = vmatpush2.xpose.msra.mxu0 0.0
        %7010 = vmatprep.mubr.f32.mxu0 0.0
        %7011 = vmatmul.mubr.f32.gmra.mxu0 %v6942
        %v7012 = vpop.f32.mrf.mxu0
        %v7013 = vadd.f32 0.0, %v7012
        %v7014 = vpop.f32.mrf.mxu0
        %7015 = vdwg.mxu0
        %v7016 = vmul.f32 %v7013, 0.35355338
        %v7017 = vadd.f32 %v7016, %v1478
        %v7018 = vsel %vm1398, %v7017, -inf
        %7019 = vmax.xlane.f32.xlu0 %v7018
        %v7020 = vpop.xlane.xlu0 %7019
        %v7021 = vsub.f32 %v7017, %v7020
        %v7022 = vmul.f32 %v7021, 1.442695
        %v7023 = vpow.pop %v7022
        %v7024 = vsel %vm1398, %v7023, 0.0
        %7025 = vadd.xlane.f32.xlu0 %v7024
        %v7026 = vpop.xlane.xlu0 %7025
        %v7027 = vrcp.pop %v7026
        %v7028 = vmul.f32 %v7023, %v7027
        %7029 = vrot.lane.b32.xlu0 %v6603, 80
        %v7030 = vpop.permute.xlu0 %7029
        %v7033 = vsel %vm1398, %v7028, 0
        %7035 = vmatprep.subr.mxu0 0.0
        %7036 = vmatpush1.msra.mxu0 0.0
        %7037 = vmatprep.subr.mxu0 0.0
        %7038 = vmatpush1.msra.mxu0 0.0
        %7039 = vmatprep.subr.mxu0 0.0
        %7040 = vmatpush1.msra.mxu0 0.0
        %7041 = vmatprep.subr.mxu0 0.0
        %7042 = vmatpush1.msra.mxu0 0.0
        %7043 = vmatprep.subr.mxu0 0.0
        %7044 = vmatpush1.msra.mxu0 0.0
        %7045 = vmatprep.subr.mxu0 0.0
        %7046 = vmatpush1.msra.mxu0 0.0
        %7047 = vmatprep.subr.mxu0 0.0
        %7048 = vmatpush1.msra.mxu0 0.0
        %7049 = vmatprep.subr.mxu0 0.0
        %7050 = vmatpush1.msra.mxu0 0.0
        %7051 = vmatprep.subr.mxu0 0.0
        %7052 = vmatpush1.msra.mxu0 0.0
        %7053 = vmatprep.subr.mxu0 0.0
        %7054 = vmatpush1.msra.mxu0 0.0
        %7055 = vmatprep.subr.mxu0 0.0
        %7056 = vmatpush1.msra.mxu0 0.0
        %7057 = vmatprep.subr.mxu0 0.0
        %7058 = vmatpush1.msra.mxu0 0.0
        %7059 = vmatprep.subr.mxu0 0.0
        %7060 = vmatpush1.msra.mxu0 0.0
        %7061 = vmatprep.subr.mxu0 0.0
        %7062 = vmatpush1.msra.mxu0 0.0
        %7063 = vmatprep.subr.mxu0 0.0
        %7064 = vmatpush1.msra.mxu0 0.0
        %7065 = vmatprep.subr.mxu0 0.0
        %7066 = vmatpush1.msra.mxu0 %v7030
        %7067 = vmatprep.subr.mxu0 0.0
        %7068 = vmatpush2.msra.mxu0 0.0
        %7069 = vmatprep.subr.mxu0 0.0
        %7070 = vmatpush2.msra.mxu0 0.0
        %7071 = vmatprep.subr.mxu0 0.0
        %7072 = vmatpush2.msra.mxu0 0.0
        %7073 = vmatprep.subr.mxu0 0.0
        %7074 = vmatpush2.msra.mxu0 0.0
        %7075 = vmatprep.subr.mxu0 0.0
        %7076 = vmatpush2.msra.mxu0 0.0
        %7077 = vmatprep.subr.mxu0 0.0
        %7078 = vmatpush2.msra.mxu0 0.0
        %7079 = vmatprep.subr.mxu0 0.0
        %7080 = vmatpush2.msra.mxu0 0.0
        %7081 = vmatprep.subr.mxu0 0.0
        %7082 = vmatpush2.msra.mxu0 0.0
        %7083 = vmatprep.subr.mxu0 0.0
        %7084 = vmatpush2.msra.mxu0 0.0
        %7085 = vmatprep.subr.mxu0 0.0
        %7086 = vmatpush2.msra.mxu0 0.0
        %7087 = vmatprep.subr.mxu0 0.0
        %7088 = vmatpush2.msra.mxu0 0.0
        %7089 = vmatprep.subr.mxu0 0.0
        %7090 = vmatpush2.msra.mxu0 0.0
        %7091 = vmatprep.subr.mxu0 0.0
        %7092 = vmatpush2.msra.mxu0 0.0
        %7093 = vmatprep.subr.mxu0 0.0
        %7094 = vmatpush2.msra.mxu0 0.0
        %7095 = vmatprep.subr.mxu0 0.0
        %7096 = vmatpush2.msra.mxu0 0.0
        %7097 = vmatprep.subr.mxu0 0.0
        %7098 = vmatpush2.msra.mxu0 0.0
        %7099 = vmatprep.mubr.f32.mxu0 0.0
        %7100 = vmatmul.mubr.f32.gmra.mxu0 %v7033
        %v7101 = vpop.f32.mrf.mxu0
        %v7102 = vadd.f32 0.0, %v7101
        %v7103 = vpop.f32.mrf.mxu0
        %7104 = vdwg.mxu0
        %7105 = vrot.lane.b32.xlu0 %v6523, 104
        %v7106 = vpop.permute.xlu0 %7105
        %7107 = vrot.lane.b32.xlu0 %v6603, 104
        %v7108 = vpop.permute.xlu0 %7107
        %v7109 = vsel %vm1398, %v7106, 0
        %v7111 = vsel %vm1398, %v7108, 0
        %7113 = vmatprep.subr.mxu0 0.0
        %7114 = vmatpush1.xpose.msra.mxu0 0.0
        %7115 = vmatprep.subr.mxu0 0.0
        %7116 = vmatpush1.xpose.msra.mxu0 0.0
        %7117 = vmatprep.subr.mxu0 0.0
        %7118 = vmatpush1.xpose.msra.mxu0 0.0
        %7119 = vmatprep.subr.mxu0 0.0
        %7120 = vmatpush1.xpose.msra.mxu0 0.0
        %7121 = vmatprep.subr.mxu0 0.0
        %7122 = vmatpush1.xpose.msra.mxu0 0.0
        %7123 = vmatprep.subr.mxu0 0.0
        %7124 = vmatpush1.xpose.msra.mxu0 0.0
        %7125 = vmatprep.subr.mxu0 0.0
        %7126 = vmatpush1.xpose.msra.mxu0 0.0
        %7127 = vmatprep.subr.mxu0 0.0
        %7128 = vmatpush1.xpose.msra.mxu0 0.0
        %7129 = vmatprep.subr.mxu0 0.0
        %7130 = vmatpush1.xpose.msra.mxu0 0.0
        %7131 = vmatprep.subr.mxu0 0.0
        %7132 = vmatpush1.xpose.msra.mxu0 0.0
        %7133 = vmatprep.subr.mxu0 0.0
        %7134 = vmatpush1.xpose.msra.mxu0 0.0
        %7135 = vmatprep.subr.mxu0 0.0
        %7136 = vmatpush1.xpose.msra.mxu0 0.0
        %7137 = vmatprep.subr.mxu0 0.0
        %7138 = vmatpush1.xpose.msra.mxu0 0.0
        %7139 = vmatprep.subr.mxu0 0.0
        %7140 = vmatpush1.xpose.msra.mxu0 0.0
        %7141 = vmatprep.subr.mxu0 0.0
        %7142 = vmatpush1.xpose.msra.mxu0 0.0
        %7143 = vmatprep.subr.mxu0 0.0
        %7144 = vmatpush1.xpose.msra.mxu0 %v7111
        %7145 = vmatprep.subr.mxu0 0.0
        %7146 = vmatpush2.xpose.msra.mxu0 0.0
        %7147 = vmatprep.subr.mxu0 0.0
        %7148 = vmatpush2.xpose.msra.mxu0 0.0
        %7149 = vmatprep.subr.mxu0 0.0
        %7150 = vmatpush2.xpose.msra.mxu0 0.0
        %7151 = vmatprep.subr.mxu0 0.0
        %7152 = vmatpush2.xpose.msra.mxu0 0.0
        %7153 = vmatprep.subr.mxu0 0.0
        %7154 = vmatpush2.xpose.msra.mxu0 0.0
        %7155 = vmatprep.subr.mxu0 0.0
        %7156 = vmatpush2.xpose.msra.mxu0 0.0
        %7157 = vmatprep.subr.mxu0 0.0
        %7158 = vmatpush2.xpose.msra.mxu0 0.0
        %7159 = vmatprep.subr.mxu0 0.0
        %7160 = vmatpush2.xpose.msra.mxu0 0.0
        %7161 = vmatprep.subr.mxu0 0.0
        %7162 = vmatpush2.xpose.msra.mxu0 0.0
        %7163 = vmatprep.subr.mxu0 0.0
        %7164 = vmatpush2.xpose.msra.mxu0 0.0
        %7165 = vmatprep.subr.mxu0 0.0
        %7166 = vmatpush2.xpose.msra.mxu0 0.0
        %7167 = vmatprep.subr.mxu0 0.0
        %7168 = vmatpush2.xpose.msra.mxu0 0.0
        %7169 = vmatprep.subr.mxu0 0.0
        %7170 = vmatpush2.xpose.msra.mxu0 0.0
        %7171 = vmatprep.subr.mxu0 0.0
        %7172 = vmatpush2.xpose.msra.mxu0 0.0
        %7173 = vmatprep.subr.mxu0 0.0
        %7174 = vmatpush2.xpose.msra.mxu0 0.0
        %7175 = vmatprep.subr.mxu0 0.0
        %7176 = vmatpush2.xpose.msra.mxu0 0.0
        %7177 = vmatprep.mubr.f32.mxu0 0.0
        %7178 = vmatmul.mubr.f32.gmra.mxu0 %v7109
        %v7179 = vpop.f32.mrf.mxu0
        %v7180 = vadd.f32 0.0, %v7179
        %v7181 = vpop.f32.mrf.mxu0
        %7182 = vdwg.mxu0
        %v7183 = vmul.f32 %v7180, 0.35355338
        %v7184 = vadd.f32 %v7183, %v1478
        %v7185 = vsel %vm1398, %v7184, -inf
        %7186 = vmax.xlane.f32.xlu0 %v7185
        %v7187 = vpop.xlane.xlu0 %7186
        %v7188 = vsub.f32 %v7184, %v7187
        %v7189 = vmul.f32 %v7188, 1.442695
        %v7190 = vpow.pop %v7189
        %v7191 = vsel %vm1398, %v7190, 0.0
        %7192 = vadd.xlane.f32.xlu0 %v7191
        %v7193 = vpop.xlane.xlu0 %7192
        %v7194 = vrcp.pop %v7193
        %v7195 = vmul.f32 %v7190, %v7194
        %7196 = vrot.lane.b32.xlu0 %v6603, 72
        %v7197 = vpop.permute.xlu0 %7196
        %v7200 = vsel %vm1398, %v7195, 0
        %7202 = vmatprep.subr.mxu0 0.0
        %7203 = vmatpush1.msra.mxu0 0.0
        %7204 = vmatprep.subr.mxu0 0.0
        %7205 = vmatpush1.msra.mxu0 0.0
        %7206 = vmatprep.subr.mxu0 0.0
        %7207 = vmatpush1.msra.mxu0 0.0
        %7208 = vmatprep.subr.mxu0 0.0
        %7209 = vmatpush1.msra.mxu0 0.0
        %7210 = vmatprep.subr.mxu0 0.0
        %7211 = vmatpush1.msra.mxu0 0.0
        %7212 = vmatprep.subr.mxu0 0.0
        %7213 = vmatpush1.msra.mxu0 0.0
        %7214 = vmatprep.subr.mxu0 0.0
        %7215 = vmatpush1.msra.mxu0 0.0
        %7216 = vmatprep.subr.mxu0 0.0
        %7217 = vmatpush1.msra.mxu0 0.0
        %7218 = vmatprep.subr.mxu0 0.0
        %7219 = vmatpush1.msra.mxu0 0.0
        %7220 = vmatprep.subr.mxu0 0.0
        %7221 = vmatpush1.msra.mxu0 0.0
        %7222 = vmatprep.subr.mxu0 0.0
        %7223 = vmatpush1.msra.mxu0 0.0
        %7224 = vmatprep.subr.mxu0 0.0
        %7225 = vmatpush1.msra.mxu0 0.0
        %7226 = vmatprep.subr.mxu0 0.0
        %7227 = vmatpush1.msra.mxu0 0.0
        %7228 = vmatprep.subr.mxu0 0.0
        %7229 = vmatpush1.msra.mxu0 0.0
        %7230 = vmatprep.subr.mxu0 0.0
        %7231 = vmatpush1.msra.mxu0 0.0
        %7232 = vmatprep.subr.mxu0 0.0
        %7233 = vmatpush1.msra.mxu0 %v7197
        %7234 = vmatprep.subr.mxu0 0.0
        %7235 = vmatpush2.msra.mxu0 0.0
        %7236 = vmatprep.subr.mxu0 0.0
        %7237 = vmatpush2.msra.mxu0 0.0
        %7238 = vmatprep.subr.mxu0 0.0
        %7239 = vmatpush2.msra.mxu0 0.0
        %7240 = vmatprep.subr.mxu0 0.0
        %7241 = vmatpush2.msra.mxu0 0.0
        %7242 = vmatprep.subr.mxu0 0.0
        %7243 = vmatpush2.msra.mxu0 0.0
        %7244 = vmatprep.subr.mxu0 0.0
        %7245 = vmatpush2.msra.mxu0 0.0
        %7246 = vmatprep.subr.mxu0 0.0
        %7247 = vmatpush2.msra.mxu0 0.0
        %7248 = vmatprep.subr.mxu0 0.0
        %7249 = vmatpush2.msra.mxu0 0.0
        %7250 = vmatprep.subr.mxu0 0.0
        %7251 = vmatpush2.msra.mxu0 0.0
        %7252 = vmatprep.subr.mxu0 0.0
        %7253 = vmatpush2.msra.mxu0 0.0
        %7254 = vmatprep.subr.mxu0 0.0
        %7255 = vmatpush2.msra.mxu0 0.0
        %7256 = vmatprep.subr.mxu0 0.0
        %7257 = vmatpush2.msra.mxu0 0.0
        %7258 = vmatprep.subr.mxu0 0.0
        %7259 = vmatpush2.msra.mxu0 0.0
        %7260 = vmatprep.subr.mxu0 0.0
        %7261 = vmatpush2.msra.mxu0 0.0
        %7262 = vmatprep.subr.mxu0 0.0
        %7263 = vmatpush2.msra.mxu0 0.0
        %7264 = vmatprep.subr.mxu0 0.0
        %7265 = vmatpush2.msra.mxu0 0.0
        %7266 = vmatprep.mubr.f32.mxu0 0.0
        %7267 = vmatmul.mubr.f32.gmra.mxu0 %v7200
        %v7268 = vpop.f32.mrf.mxu0
        %v7269 = vadd.f32 0.0, %v7268
        %v7270 = vpop.f32.mrf.mxu0
        %7271 = vdwg.mxu0
        %7273 = vrot.lane.b32.xlu0 %v6935, 8
        %v7274 = vpop.permute.xlu0 %7273
        %7277 = vrot.lane.b32.xlu0 %v7102, 16
        %v7278 = vpop.permute.xlu0 %7277
        %7281 = vrot.lane.b32.xlu0 %v7269, 24
        %v7282 = vpop.permute.xlu0 %7281
        %v7284 = vsel %vm1398, %v6768, %v7274
        %v7285 = vsel %vm2082, %v7284, %v7278
        %v7286 = vsel %vm2084, %v7285, %v7282
        %s7287 = scalar_lea.vmem %s61, 32
        %v7288 = vld [vmem:[%s7287] sm:$0xff]
        %v7289 = vld [vmem:[%s7287 + $0x8] sm:$0xff]
        %v7290 = vld [vmem:[%s7287 + $0x10] sm:$0xff]
        %v7291 = vld [vmem:[%s7287 + $0x18] sm:$0xff]
        %v7292 = vld [vmem:[%s63 + $0x1] sm:$0x1]
        %v7293 = vlaneseq
        %v7294 = vshrl.u32 %v7293, 7
        %v7295 = vsub.s32 0, %v7294
        %v7296 = vrot.slane %v7292, %v7295
        %v7298 = vsel %vm1276, %v7286, 0
        %7300 = vmatprep.subr.mxu0 0.0
        %7301 = vmatpush1.msra.mxu0 0.0
        %7302 = vmatprep.subr.mxu0 0.0
        %7303 = vmatpush1.msra.mxu0 0.0
        %7304 = vmatprep.subr.mxu0 0.0
        %7305 = vmatpush1.msra.mxu0 0.0
        %7306 = vmatprep.subr.mxu0 0.0
        %7307 = vmatpush1.msra.mxu0 0.0
        %7308 = vmatprep.subr.mxu0 0.0
        %7309 = vmatpush1.msra.mxu0 0.0
        %7310 = vmatprep.subr.mxu0 0.0
        %7311 = vmatpush1.msra.mxu0 0.0
        %7312 = vmatprep.subr.mxu0 0.0
        %7313 = vmatpush1.msra.mxu0 0.0
        %7314 = vmatprep.subr.mxu0 0.0
        %7315 = vmatpush1.msra.mxu0 0.0
        %7316 = vmatprep.subr.mxu0 0.0
        %7317 = vmatpush1.msra.mxu0 0.0
        %7318 = vmatprep.subr.mxu0 0.0
        %7319 = vmatpush1.msra.mxu0 0.0
        %7320 = vmatprep.subr.mxu0 0.0
        %7321 = vmatpush1.msra.mxu0 0.0
        %7322 = vmatprep.subr.mxu0 0.0
        %7323 = vmatpush1.msra.mxu0 0.0
        %7324 = vmatprep.subr.mxu0 0.0
        %7325 = vmatpush1.msra.mxu0 %v7291
        %7326 = vmatprep.subr.mxu0 0.0
        %7327 = vmatpush1.msra.mxu0 %v7290
        %7328 = vmatprep.subr.mxu0 0.0
        %7329 = vmatpush1.msra.mxu0 %v7289
        %7330 = vmatprep.subr.mxu0 0.0
        %7331 = vmatpush1.msra.mxu0 %v7288
        %7332 = vmatprep.subr.mxu0 0.0
        %7333 = vmatpush2.msra.mxu0 0.0
        %7334 = vmatprep.subr.mxu0 0.0
        %7335 = vmatpush2.msra.mxu0 0.0
        %7336 = vmatprep.subr.mxu0 0.0
        %7337 = vmatpush2.msra.mxu0 0.0
        %7338 = vmatprep.subr.mxu0 0.0
        %7339 = vmatpush2.msra.mxu0 0.0
        %7340 = vmatprep.subr.mxu0 0.0
        %7341 = vmatpush2.msra.mxu0 0.0
        %7342 = vmatprep.subr.mxu0 0.0
        %7343 = vmatpush2.msra.mxu0 0.0
        %7344 = vmatprep.subr.mxu0 0.0
        %7345 = vmatpush2.msra.mxu0 0.0
        %7346 = vmatprep.subr.mxu0 0.0
        %7347 = vmatpush2.msra.mxu0 0.0
        %7348 = vmatprep.subr.mxu0 0.0
        %7349 = vmatpush2.msra.mxu0 0.0
        %7350 = vmatprep.subr.mxu0 0.0
        %7351 = vmatpush2.msra.mxu0 0.0
        %7352 = vmatprep.subr.mxu0 0.0
        %7353 = vmatpush2.msra.mxu0 0.0
        %7354 = vmatprep.subr.mxu0 0.0
        %7355 = vmatpush2.msra.mxu0 0.0
        %7356 = vmatprep.subr.mxu0 0.0
        %7357 = vmatpush2.msra.mxu0 0.0
        %7358 = vmatprep.subr.mxu0 0.0
        %7359 = vmatpush2.msra.mxu0 0.0
        %7360 = vmatprep.subr.mxu0 0.0
        %7361 = vmatpush2.msra.mxu0 0.0
        %7362 = vmatprep.subr.mxu0 0.0
        %7363 = vmatpush2.msra.mxu0 0.0
        %7364 = vmatprep.mubr.f32.mxu0 0.0
        %7365 = vmatmul.mubr.f32.gmra.mxu0 %v7298
        %v7366 = vpop.f32.mrf.mxu0
        %v7367 = vadd.f32 %v7296, %v7366
        %v7368 = vpop.f32.mrf.mxu0
        %7369 = vdwg.mxu0
        %v7370 = vadd.f32 %v6410, %v7367
        %v7371 = vld [vmem:[%s65 + $0x1] sm:$0x1]
        %v7372 = vld [vmem:[%s67 + $0x1] sm:$0x1]
        %v7373 = vsel %vm1276, %v7370, 0.0
        %7374 = vadd.xlane.f32.xlu0 %v7373
        %v7375 = vpop.xlane.xlu0 %7374
        %v7376 = vmul.f32 %v7375, %v1280
        %v7377 = vsub.f32 %v7370, %v7376
        %v7378 = vmul.f32 %v7377, %v7377
        %v7379 = vsel %vm1276, %v7378, 0.0
        %7380 = vadd.xlane.f32.xlu0 %v7379
        %v7381 = vpop.xlane.xlu0 %7380
        %v7382 = vmul.f32 %v7381, 0.032258064
        %v7383 = vrsqrt.pop %v7382
        %v7384 = vmul.f32 %v7382, %v7383
        %vm7385 = vcmp.eq.f32.partialorder %v7382, inf
        %v7386 = vsel %vm7385, %v7382, %v7384
        %vm7387 = vcmp.eq.f32.partialorder %v7382, 0.0
        %v7388 = vand.u32 %v7382, 2147483648
        %v7389 = vsel %vm7387, %v7388, %v7386
        %v7390 = vadd.f32 %v7389, 1e-06
        %v7391 = vrcp.pop %v7390
        %v7392 = vlaneseq
        %v7393 = vshrl.u32 %v7392, 7
        %v7394 = vsub.s32 0, %v7393
        %v7395 = vrot.slane %v7371, %v7394
        %v7396 = vmul.f32 %v7395, %v7377
        %v7397 = vmul.f32 %v7396, %v7391
        %v7398 = vlaneseq
        %v7399 = vshrl.u32 %v7398, 7
        %v7400 = vsub.s32 0, %v7399
        %v7401 = vrot.slane %v7372, %v7400
        %v7402 = vadd.f32 %v7397, %v7401
        %s7403 = scalar_lea.vmem %s69, 32
        %v7404 = vld [vmem:[%s7403] sm:$0xff]
        %v7405 = vld [vmem:[%s7403 + $0x8] sm:$0xff]
        %v7406 = vld [vmem:[%s7403 + $0x10] sm:$0xff]
        %v7407 = vld [vmem:[%s7403 + $0x18] sm:$0xff]
        %v7408 = vld [vmem:[%s71 + $0x1] sm:$0x1]
        %s7409 = scalar_lea.vmem %s73, 64
        %v7410 = vld [vmem:[%s7409] sm:$0xff]
        %v7411 = vld [vmem:[%s7409 + $0x8] sm:$0xff]
        %v7412 = vld [vmem:[%s7409 + $0x10] sm:$0xff]
        %v7413 = vld [vmem:[%s7409 + $0x18] sm:$0xff]
        %v7414 = vld [vmem:[%s7409 + $0x20] sm:$0xff]
        %v7415 = vld [vmem:[%s7409 + $0x28] sm:$0xff]
        %v7416 = vld [vmem:[%s7409 + $0x30] sm:$0xff]
        %v7417 = vld [vmem:[%s7409 + $0x38] sm:$0xff]
        %v7418 = vld [vmem:[%s75 + $0x1] sm:$0x1]
        %v7419 = vlaneseq
        %v7420 = vshrl.u32 %v7419, 7
        %v7421 = vsub.s32 0, %v7420
        %v7422 = vrot.slane %v7408, %v7421
        %v7424 = vsel %vm1276, %v7402, 0
        %7426 = vmatprep.subr.mxu0 0.0
        %7427 = vmatpush1.msra.mxu0 0.0
        %7428 = vmatprep.subr.mxu0 0.0
        %7429 = vmatpush1.msra.mxu0 0.0
        %7430 = vmatprep.subr.mxu0 0.0
        %7431 = vmatpush1.msra.mxu0 0.0
        %7432 = vmatprep.subr.mxu0 0.0
        %7433 = vmatpush1.msra.mxu0 0.0
        %7434 = vmatprep.subr.mxu0 0.0
        %7435 = vmatpush1.msra.mxu0 0.0
        %7436 = vmatprep.subr.mxu0 0.0
        %7437 = vmatpush1.msra.mxu0 0.0
        %7438 = vmatprep.subr.mxu0 0.0
        %7439 = vmatpush1.msra.mxu0 0.0
        %7440 = vmatprep.subr.mxu0 0.0
        %7441 = vmatpush1.msra.mxu0 0.0
        %7442 = vmatprep.subr.mxu0 0.0
        %7443 = vmatpush1.msra.mxu0 0.0
        %7444 = vmatprep.subr.mxu0 0.0
        %7445 = vmatpush1.msra.mxu0 0.0
        %7446 = vmatprep.subr.mxu0 0.0
        %7447 = vmatpush1.msra.mxu0 0.0
        %7448 = vmatprep.subr.mxu0 0.0
        %7449 = vmatpush1.msra.mxu0 0.0
        %7450 = vmatprep.subr.mxu0 0.0
        %7451 = vmatpush1.msra.mxu0 %v7407
        %7452 = vmatprep.subr.mxu0 0.0
        %7453 = vmatpush1.msra.mxu0 %v7406
        %7454 = vmatprep.subr.mxu0 0.0
        %7455 = vmatpush1.msra.mxu0 %v7405
        %7456 = vmatprep.subr.mxu0 0.0
        %7457 = vmatpush1.msra.mxu0 %v7404
        %7458 = vmatprep.subr.mxu0 0.0
        %7459 = vmatpush2.msra.mxu0 0.0
        %7460 = vmatprep.subr.mxu0 0.0
        %7461 = vmatpush2.msra.mxu0 0.0
        %7462 = vmatprep.subr.mxu0 0.0
        %7463 = vmatpush2.msra.mxu0 0.0
        %7464 = vmatprep.subr.mxu0 0.0
        %7465 = vmatpush2.msra.mxu0 0.0
        %7466 = vmatprep.subr.mxu0 0.0
        %7467 = vmatpush2.msra.mxu0 0.0
        %7468 = vmatprep.subr.mxu0 0.0
        %7469 = vmatpush2.msra.mxu0 0.0
        %7470 = vmatprep.subr.mxu0 0.0
        %7471 = vmatpush2.msra.mxu0 0.0
        %7472 = vmatprep.subr.mxu0 0.0
        %7473 = vmatpush2.msra.mxu0 0.0
        %7474 = vmatprep.subr.mxu0 0.0
        %7475 = vmatpush2.msra.mxu0 0.0
        %7476 = vmatprep.subr.mxu0 0.0
        %7477 = vmatpush2.msra.mxu0 0.0
        %7478 = vmatprep.subr.mxu0 0.0
        %7479 = vmatpush2.msra.mxu0 0.0
        %7480 = vmatprep.subr.mxu0 0.0
        %7481 = vmatpush2.msra.mxu0 0.0
        %7482 = vmatprep.subr.mxu0 0.0
        %7483 = vmatpush2.msra.mxu0 0.0
        %7484 = vmatprep.subr.mxu0 0.0
        %7485 = vmatpush2.msra.mxu0 0.0
        %7486 = vmatprep.subr.mxu0 0.0
        %7487 = vmatpush2.msra.mxu0 0.0
        %7488 = vmatprep.subr.mxu0 0.0
        %7489 = vmatpush2.msra.mxu0 0.0
        %7490 = vmatprep.mubr.f32.mxu0 0.0
        %7491 = vmatmul.mubr.f32.gmra.mxu0 %v7424
        %v7492 = vpop.f32.mrf.mxu0
        %v7493 = vadd.f32 %v7422, %v7492
        %v7494 = vpop.f32.mrf.mxu0
        %7495 = vdwg.mxu0
        %v7496 = vmax.f32 %v7493, 0.0
        %v7497 = vlaneseq
        %v7498 = vshrl.u32 %v7497, 7
        %v7499 = vsub.s32 0, %v7498
        %v7500 = vrot.slane %v7418, %v7499
        %v7502 = vsel %vm2292, %v7496, 0
        %7504 = vmatprep.subr.mxu0 0.0
        %7505 = vmatpush1.msra.mxu0 0.0
        %7506 = vmatprep.subr.mxu0 0.0
        %7507 = vmatpush1.msra.mxu0 0.0
        %7508 = vmatprep.subr.mxu0 0.0
        %7509 = vmatpush1.msra.mxu0 0.0
        %7510 = vmatprep.subr.mxu0 0.0
        %7511 = vmatpush1.msra.mxu0 0.0
        %7512 = vmatprep.subr.mxu0 0.0
        %7513 = vmatpush1.msra.mxu0 0.0
        %7514 = vmatprep.subr.mxu0 0.0
        %7515 = vmatpush1.msra.mxu0 0.0
        %7516 = vmatprep.subr.mxu0 0.0
        %7517 = vmatpush1.msra.mxu0 0.0
        %7518 = vmatprep.subr.mxu0 0.0
        %7519 = vmatpush1.msra.mxu0 0.0
        %7520 = vmatprep.subr.mxu0 0.0
        %7521 = vmatpush1.msra.mxu0 %v7417
        %7522 = vmatprep.subr.mxu0 0.0
        %7523 = vmatpush1.msra.mxu0 %v7416
        %7524 = vmatprep.subr.mxu0 0.0
        %7525 = vmatpush1.msra.mxu0 %v7415
        %7526 = vmatprep.subr.mxu0 0.0
        %7527 = vmatpush1.msra.mxu0 %v7414
        %7528 = vmatprep.subr.mxu0 0.0
        %7529 = vmatpush1.msra.mxu0 %v7413
        %7530 = vmatprep.subr.mxu0 0.0
        %7531 = vmatpush1.msra.mxu0 %v7412
        %7532 = vmatprep.subr.mxu0 0.0
        %7533 = vmatpush1.msra.mxu0 %v7411
        %7534 = vmatprep.subr.mxu0 0.0
        %7535 = vmatpush1.msra.mxu0 %v7410
        %7536 = vmatprep.subr.mxu0 0.0
        %7537 = vmatpush2.msra.mxu0 0.0
        %7538 = vmatprep.subr.mxu0 0.0
        %7539 = vmatpush2.msra.mxu0 0.0
        %7540 = vmatprep.subr.mxu0 0.0
        %7541 = vmatpush2.msra.mxu0 0.0
        %7542 = vmatprep.subr.mxu0 0.0
        %7543 = vmatpush2.msra.mxu0 0.0
        %7544 = vmatprep.subr.mxu0 0.0
        %7545 = vmatpush2.msra.mxu0 0.0
        %7546 = vmatprep.subr.mxu0 0.0
        %7547 = vmatpush2.msra.mxu0 0.0
        %7548 = vmatprep.subr.mxu0 0.0
        %7549 = vmatpush2.msra.mxu0 0.0
        %7550 = vmatprep.subr.mxu0 0.0
        %7551 = vmatpush2.msra.mxu0 0.0
        %7552 = vmatprep.subr.mxu0 0.0
        %7553 = vmatpush2.msra.mxu0 0.0
        %7554 = vmatprep.subr.mxu0 0.0
        %7555 = vmatpush2.msra.mxu0 0.0
        %7556 = vmatprep.subr.mxu0 0.0
        %7557 = vmatpush2.msra.mxu0 0.0
        %7558 = vmatprep.subr.mxu0 0.0
        %7559 = vmatpush2.msra.mxu0 0.0
        %7560 = vmatprep.subr.mxu0 0.0
        %7561 = vmatpush2.msra.mxu0 0.0
        %7562 = vmatprep.subr.mxu0 0.0
        %7563 = vmatpush2.msra.mxu0 0.0
        %7564 = vmatprep.subr.mxu0 0.0
        %7565 = vmatpush2.msra.mxu0 0.0
        %7566 = vmatprep.subr.mxu0 0.0
        %7567 = vmatpush2.msra.mxu0 0.0
        %7568 = vmatprep.mubr.f32.mxu0 0.0
        %7569 = vmatmul.mubr.f32.gmra.mxu0 %v7502
        %v7570 = vpop.f32.mrf.mxu0
        %v7571 = vadd.f32 %v7500, %v7570
        %v7572 = vpop.f32.mrf.mxu0
        %7573 = vdwg.mxu0
        %v7574 = vadd.f32 %v7370, %v7571
        %v7575 = vld [vmem:[%s77] sm:$0x1]
        %v7576 = vld [vmem:[#allocation2] sm:$0x1]
        %v7577 = vsel %vm1276, %v7574, 0.0
        %7578 = vadd.xlane.f32.xlu0 %v7577
        %v7579 = vpop.xlane.xlu0 %7578
        %v7580 = vmul.f32 %v7579, %v1280
        %v7581 = vsub.f32 %v7574, %v7580
        %v7582 = vmul.f32 %v7581, %v7581
        %v7583 = vsel %vm1276, %v7582, 0.0
        %7584 = vadd.xlane.f32.xlu0 %v7583
        %v7585 = vpop.xlane.xlu0 %7584
        %v7586 = vmul.f32 %v7585, 0.032258064
        %v7587 = vrsqrt.pop %v7586
        %v7588 = vmul.f32 %v7586, %v7587
        %vm7589 = vcmp.eq.f32.partialorder %v7586, inf
        %v7590 = vsel %vm7589, %v7586, %v7588
        %vm7591 = vcmp.eq.f32.partialorder %v7586, 0.0
        %v7592 = vand.u32 %v7586, 2147483648
        %v7593 = vsel %vm7591, %v7592, %v7590
        %v7594 = vadd.f32 %v7593, 1e-06
        %v7595 = vrcp.pop %v7594
        %v7597 = vlaneseq
        %v7598 = vshrl.u32 %v7597, 7
        %v7599 = vsub.s32 0, %v7598
        %v7600 = vrot.slane %v7575, %v7599
        %v7602 = vmul.f32 %v7600, %v7581
        %v7603 = vmul.f32 %v7602, %v7595
        %v7605 = vlaneseq
        %v7606 = vshrl.u32 %v7605, 7
        %v7607 = vsub.s32 0, %v7606
        %v7608 = vrot.slane %v7576, %v7607
        %v7610 = vadd.f32 %v7603, %v7608
        %7611 = vst.msk [vmem:[%s1251] sm:$0xff] %vm1276, %v7610
        %s7612 = sand.u32 %s964, 1
        %s7613 = scalar_lea.sflag [#allocation4], %s7612
        %s7614 = sand.u32 %s964, 1
        %s7615 = smul.addr %s7614, 8
        %s7616 = scalar_lea.vmem [#allocation5], %s7615
        // Predicated region
        $region185: #{encoder_decoder_forward.1} parent=179 // pred_check
          %p7617 = pneg %p974
        $region186: #{encoder_decoder_forward.1} parent=179 // pred_check_branch
          %7619 = sbr.rel (%p7617) target = $region188
        $region187: #{encoder_decoder_forward.1} parent=179 // pred_region
          %s7621 = ssub.s32 128, 128
          %7622 = vsyncadd %s7613, %s7621
          %s7623 = smul.addr %s96, 128
          %s7624 = scalar_lea.hbm %s81, %s7623
          %s7626 = sshll.u32 %s7616, 4
          %s7627 = int_to_ptr.vmem [resolvable:$true] %s7626
          %7629 = dma.vmem_to_hbm [thread:$0]  %s7627, 128, %s7624, %s7613
        $region188: #{encoder_decoder_forward.1} parent=179 // pred_fallthru
          _
      $region180: #{encoder_decoder_forward.1} parent=5 // pred_fallthru
        _
      %p7630 = scmp.le.s32.totalorder 2, %s91
      // Predicated region
      $region189: #{encoder_decoder_forward.1} parent=5 // pred_check
        %p7631 = pneg %p7630
      $region190: #{encoder_decoder_forward.1} parent=5 // pred_check_branch
        %7633 = sbr.rel (%p7631) target = $region192
      $region191: #{encoder_decoder_forward.1} parent=5 // pred_region
        %s7634 = ssub.s32 %s91, 2
        // Predicated region
        $region193: #{encoder_decoder_forward.1} parent=191 // pred_check
          %p7635 = pneg %p980
        $region194: #{encoder_decoder_forward.1} parent=191 // pred_check_branch
          %7637 = sbr.rel (%p7635) target = $region196
        $region195: #{encoder_decoder_forward.1} parent=191 // pred_region
          %s7638 = sand.u32 %s965, 1
          %s7639 = scalar_lea.sflag [#allocation4], %s7638
          %s7640 = sand.u32 %s965, 1
          %s7641 = smul.addr %s7640, 8
          %s7642 = scalar_lea.vmem [#allocation5], %s7641
          %7643 = dma.done %s7639, 128
        $region196: #{encoder_decoder_forward.1} parent=191 // pred_fallthru
          _
      $region192: #{encoder_decoder_forward.1} parent=5 // pred_fallthru
        _
    $region6: #{encoder_decoder_forward.1} parent=1 // loop_footer
      %s95 = sadd.s32 1, %s91
    $region7: #{encoder_decoder_forward.1} parent=1 // loop_footer_branch
      %90 = sbr.rel target = $region3
    $region8: #{encoder_decoder_forward.1} parent=1 // loop_exit
      _
    %7644 = vsyncpa [#allocation3], 1
    %s7645 = scalar_lea.sflag [#allocation3], 1
    %7646 = vsyncpa %s7645, 1
    %7647 = vsyncpa [#allocation4], 1
    %s7648 = scalar_lea.sflag [#allocation4], 1
    %7649 = vsyncpa %s7648, 1

</llo_original>
